<compile_context>
chip_gen: v7x
topology: tpu7x:2x2x1
jax: 0.10.0
libtpu: 0.0.40
codegen_flags: <defaults>
</compile_context>

<pallas_src>
import functools

import jax
import jax.numpy as jnp
from jax.experimental import pallas as pl
from jax.experimental.pallas import tpu as pltpu

BN_EPS = 1e-5
_LANE = 128


# ----------------------------------------------------------------------------
# small helpers
# ----------------------------------------------------------------------------
def _round_up(x, m):
    return (x + m - 1) // m * m


def _vmem_limit_bytes():
    # generation-aware scoped-VMEM budget (v7x: 64 MiB physical, v5e/v6e: 128 MiB)
    try:
        cap = int(pltpu.get_tpu_info().vmem_capacity_bytes)
        if cap < (16 << 20):
            cap = 64 << 20
    except Exception:
        cap = 64 << 20
    return min(cap * 3 // 4, 96 << 20)


_VMEM_LIMIT = _vmem_limit_bytes()


def _pick_tm(m, target=512):
    tm = min(target, _round_up(m, 8))
    if m > 16 and _round_up(m, tm) // tm < 2:
        tm = _round_up((m + 1) // 2, 8)   # >=2 grid steps (v7x has 2 TCs)
    return max(8, tm)


def _bn_affine(gamma, beta, mean, var, eps=BN_EPS):
    scale = gamma / jnp.sqrt(var + eps)
    shift = beta - mean * scale
    return scale, shift


# ----------------------------------------------------------------------------
# Pallas kernel 1: pooling GEMM  out = (x @ W) * scale + shift
#   (1x1x1 stride-2 conv; stride handled by the wrapper's subsample,
#    conv bias + BN_pool + BN1 folded into scale/shift)
# ----------------------------------------------------------------------------
def _pool_gemm_kernel(x_ref, w_ref, s_ref, t_ref, o_ref):
    acc = jnp.dot(x_ref[...], w_ref[...], preferred_element_type=jnp.float32)
    o_ref[...] = (acc * s_ref[...] + t_ref[...]).astype(o_ref.dtype)


def _pool_gemm(x2d, w, scale, shift, *, out_dtype=jnp.bfloat16):
    M, K = x2d.shape
    _, Cout = w.shape
    tm = _pick_tm(M)
    Mp = _round_up(M, tm)
    if Mp != M:
        x2d = jnp.pad(x2d, ((0, Mp - M), (0, 0)))
    out = pl.pallas_call(
        _pool_gemm_kernel,
        out_shape=jax.ShapeDtypeStruct((Mp, Cout), out_dtype),
        grid_spec=pltpu.PrefetchScalarGridSpec(
            num_scalar_prefetch=0,
            grid=(Mp // tm,),
            in_specs=[
                pl.BlockSpec((tm, K), lambda i: (i, 0)),
                pl.BlockSpec((K, Cout), lambda i: (0, 0)),
                pl.BlockSpec((1, Cout), lambda i: (0, 0)),
                pl.BlockSpec((1, Cout), lambda i: (0, 0)),
            ],
            out_specs=pl.BlockSpec((tm, Cout), lambda i: (i, 0)),
        ),
        compiler_params=pltpu.CompilerParams(
            dimension_semantics=("parallel",),
            vmem_limit_bytes=_VMEM_LIMIT),
    )(x2d, w, scale, shift)
    return out[:M] if Mp != M else out


# ----------------------------------------------------------------------------
# Pallas kernel 2: fused 3x3x3 conv (pad=1, stride=1) + ReLU [+ BN affine]
#
# Input layout per (n, d) grid step: three depth-shifted, spatially padded
# planes flattened to ((H+3)*(W+2), Cin_p).  The 9 in-plane taps are realized as
# static row-offset slices of the flat plane (flat index h*(W+2)+w), the 3 depth
# taps are folded into the contraction dim via a lane concat.  The accumulator
# holds H*(W+2) rows (2 junk columns per row, stripped by the wrapper).
# ----------------------------------------------------------------------------
def _conv3d_kernel(*refs, wp, n_rows, has_affine):
    if has_affine:
        x0_ref, x1_ref, x2_ref, w_ref, s_ref, t_ref, o_ref, acc_ref = refs
    else:
        x0_ref, x1_ref, x2_ref, w_ref, o_ref, acc_ref = refs
        s_ref = t_ref = None

    acc_ref[...] = jnp.zeros_like(acc_ref)
    planes = (x0_ref, x1_ref, x2_ref)
    for kh in range(3):
        for kw in range(3):
            start = kh * wp + kw
            xcat = jnp.concatenate(
                [p[0, 0, pl.ds(start, n_rows), :] for p in planes], axis=-1)
            acc_ref[...] += jnp.dot(xcat, w_ref[kh * 3 + kw],
                                    preferred_element_type=jnp.float32)

    out = jnp.maximum(acc_ref[...], 0.0)
    if has_affine:
        out = out * s_ref[...] + t_ref[...]
    o_ref[0, 0] = out.astype(o_ref.dtype)


def _conv3x3x3(xpad_flat, w_packed, H, W, *, scale=None, shift=None,
               out_dtype=jnp.bfloat16):
    """xpad_flat: (N, D+2, (H+3)*(W+2), Cin_p) bf16, w_packed: (9, 3*Cin_p, Cout_p)."""
    N, Dp, R, Cin_p = xpad_flat.shape
    D = Dp - 2
    Wp = W + 2
    n_rows = H * Wp
    assert R == (H + 3) * Wp
    n_taps, K3, Cout_p = w_packed.shape
    assert n_taps == 9 and K3 == 3 * Cin_p
    has_affine = scale is not None

    kernel = functools.partial(_conv3d_kernel, wp=Wp, n_rows=n_rows,
                               has_affine=has_affine)

    in_specs = [pl.BlockSpec((1, 1, R, Cin_p),
                             (lambda n, d, kd=kd: (n, d + kd, 0, 0)))
                for kd in range(3)]
    in_specs.append(pl.BlockSpec((9, K3, Cout_p), lambda n, d: (0, 0, 0)))
    args = [xpad_flat, xpad_flat, xpad_flat, w_packed]
    if has_affine:
        in_specs += [pl.BlockSpec((1, Cout_p), lambda n, d: (0, 0)),
                     pl.BlockSpec((1, Cout_p), lambda n, d: (0, 0))]
        args += [scale, shift]

    return pl.pallas_call(
        kernel,
        out_shape=jax.ShapeDtypeStruct((N, D, n_rows, Cout_p), out_dtype),
        grid_spec=pltpu.PrefetchScalarGridSpec(
            num_scalar_prefetch=0,
            grid=(N, D),
            in_specs=in_specs,
            out_specs=pl.BlockSpec((1, 1, n_rows, Cout_p),
                                   lambda n, d: (n, d, 0, 0)),
            scratch_shapes=[pltpu.VMEM((n_rows, Cout_p), jnp.float32)],
        ),
        compiler_params=pltpu.CompilerParams(
            dimension_semantics=("parallel", "parallel"),
            vmem_limit_bytes=_VMEM_LIMIT),
    )(*args)


# ----------------------------------------------------------------------------
# parameter packing glue (pure data movement / folding)
# ----------------------------------------------------------------------------
def _pack_conv_weight(w_oidhw, cin_p, cout_p):
    """PyTorch (O, I, kd, kh, kw) -> (9, 3*cin_p, cout_p) bf16, tap = kh*3+kw."""
    O, I, KD, KH, KW = w_oidhw.shape
    w = jnp.transpose(w_oidhw, (3, 4, 2, 1, 0))            # (kh, kw, kd, I, O)
    w = jnp.pad(w, ((0, 0), (0, 0), (0, 0), (0, cin_p - I), (0, cout_p - O)))
    return w.reshape(KH * KW, KD * cin_p, cout_p).astype(jnp.bfloat16)


def _pad_for_conv(a):
    """(N, D, H, W, C) -> spatially padded & flattened (N, D+2, (H+3)*(W+2), C)."""
    n, d, h, w, c = a.shape
    a = jnp.pad(a, ((0, 0), (1, 1), (1, 2), (1, 1), (0, 0)))
    return a.reshape(n, d + 2, (h + 3) * (w + 2), c)


def init_params(key, in_ch, out_ch):
    c_mid = out_ch // 2
    if c_mid < in_ch:
        c_mid = in_ch
    ks = jax.random.split(key, 8)

    def nrm(k, shape, s=0.1):
        return s * jax.random.normal(k, shape, jnp.float32)

    def bn(k, c):
        k1, k2, k3, k4 = jax.random.split(k, 4)
        return dict(gamma=1.0 + nrm(k1, (c,)),
                    beta=nrm(k2, (c,)),
                    mean=nrm(k3, (c,)),
                    var=0.5 + jax.random.uniform(k4, (c,), minval=0.0, maxval=1.0))

    params = dict(
        pool_w=nrm(ks[0], (in_ch, in_ch, 1, 1, 1), 0.3),   # Conv3d k=1 s=2 (OIDHW)
        pool_b=nrm(ks[1], (in_ch,), 0.1),
        pool_bn=bn(ks[2], in_ch),
        bn1=bn(ks[3], in_ch),
        conv1_w=nrm(ks[4], (c_mid, in_ch, 3, 3, 3), 0.2),
        bn2=bn(ks[5], c_mid),
        conv2_w=nrm(ks[6], (out_ch, c_mid, 3, 3, 3), 0.2),
    )
    return params, c_mid


# ----------------------------------------------------------------------------
# Encoder forward (Pallas)
# ----------------------------------------------------------------------------
def encoder_forward(params, x_ncdhw):
    f32, bf16 = jnp.float32, jnp.bfloat16
    N, C, D, H, W = x_ncdhw.shape
    Cmid = params['conv1_w'].shape[0]
    Cout = params['conv2_w'].shape[0]
    Cp, Cmid_p, Cout_p = (_round_up(c, _LANE) for c in (C, Cmid, Cout))

    # ---- layout: NCDHW -> NDHWC, stride-2 subsample (== 1x1x1 conv stride 2),
    #      channel pad to lane multiple, cast bf16 (single XLA copy pass)
    xs = x_ncdhw[:, :, ::2, ::2, ::2]
    xs = jnp.transpose(xs, (0, 2, 3, 4, 1))
    N_, D2, H2, W2, _ = xs.shape
    xs = jnp.pad(xs, ((0, 0),) * 4 + ((0, Cp - C),)).astype(bf16)

    # ---- pooling: Conv3d(C,C,1,s=2,bias) + BN_pool, with SingleConv1's BN1
    #      ('b' precedes 'c') folded into the same epilogue.
    wm = params['pool_w'][:, :, 0, 0, 0].T                                # (Cin, Cin)
    wm = jnp.pad(wm, ((0, Cp - C), (0, Cp - C))).astype(bf16)
    s_p, t_p = _bn_affine(**params['pool_bn'])
    s_1, t_1 = _bn_affine(**params['bn1'])
    scale0 = s_p * s_1
    shift0 = params['pool_b'] * scale0 + t_p * s_1 + t_1
    scale0 = jnp.pad(scale0, (0, Cp - C)).reshape(1, Cp).astype(f32)
    shift0 = jnp.pad(shift0, (0, Cp - C)).reshape(1, Cp).astype(f32)
    y2d = _pool_gemm(xs.reshape(-1, Cp), wm, scale0, shift0, out_dtype=bf16)
    y = y2d.reshape(N_, D2, H2, W2, Cp)

    # ---- SingleConv1: Conv3d(C, Cmid, 3, pad=1) -> ReLU, with SingleConv2's
    #      BatchNorm (precedes conv2) fused into the epilogue.
    w1 = _pack_conv_weight(params['conv1_w'], Cp, Cmid_p)
    s_2, t_2 = _bn_affine(**params['bn2'])
    s2 = jnp.pad(s_2, (0, Cmid_p - Cmid)).reshape(1, Cmid_p).astype(f32)
    t2 = jnp.pad(t_2, (0, Cmid_p - Cmid)).reshape(1, Cmid_p).astype(f32)
    z = _conv3x3x3(_pad_for_conv(y), w1, H2, W2, scale=s2, shift=t2,
                   out_dtype=bf16)
    z = z.reshape(N_, D2, H2, W2 + 2, Cmid_p)[:, :, :, :W2, :]   # drop junk cols

    # ---- SingleConv2: Conv3d(Cmid, Cout, 3, pad=1) -> ReLU
    w2 = _pack_conv_weight(params['conv2_w'], Cmid_p, Cout_p)
    o = _conv3x3x3(_pad_for_conv(z), w2, H2, W2, scale=None, shift=None,
                   out_dtype=f32)
    o = o.reshape(N_, D2, H2, W2 + 2, Cout_p)[:, :, :, :W2, :Cout]
    return jnp.transpose(o, (0, 4, 1, 2, 3))                     # back to NCDHW


# ----------------------------------------------------------------------------
# Pure-JAX reference (lax.conv) mirroring the bf16 storage points
# ----------------------------------------------------------------------------
def reference_forward(params, x_ncdhw):
    f32 = jnp.float32
    hi = jax.lax.Precision.HIGHEST

    def bf(a):
        return a.astype(jnp.bfloat16).astype(f32)

    def conv3d(x, w_oidhw):
        wt = jnp.transpose(bf(w_oidhw), (2, 3, 4, 1, 0))          # OIDHW -> DHWIO
        return jax.lax.conv_general_dilated(
            x, wt, window_strides=(1, 1, 1), padding=[(1, 1)] * 3,
            dimension_numbers=('NDHWC', 'DHWIO', 'NDHWC'), precision=hi)

    x = x_ncdhw[:, :, ::2, ::2, ::2]
    x = bf(jnp.transpose(x, (0, 2, 3, 4, 1)))

    wm = bf(params['pool_w'][:, :, 0, 0, 0].T)
    s_p, t_p = _bn_affine(**params['pool_bn'])
    s_1, t_1 = _bn_affine(**params['bn1'])
    y = jnp.einsum('ndhwc,co->ndhwo', x, wm, precision=hi) + params['pool_b']
    y = y * s_p + t_p
    y = y * s_1 + t_1
    y = bf(y)                                   # kernel stores pooled act as bf16

    s_2, t_2 = _bn_affine(**params['bn2'])
    z = jnp.maximum(conv3d(y, params['conv1_w']), 0.0) * s_2 + t_2
    z = bf(z)                                   # kernel stores conv1 act as bf16

    o = jnp.maximum(conv3d(z, params['conv2_w']), 0.0)
    return jnp.transpose(o, (0, 4, 1, 2, 3))


if __name__ == "__main__":
    key = jax.random.PRNGKey(0)
    kx, kp = jax.random.split(key)
    N, Cin, D, H, W = 2, 4, 8, 8, 8
    Cout = 8

    x = jax.random.normal(kx, (N, Cin, D, H, W), jnp.float32)
    params, _ = init_params(kp, Cin, Cout)

    out = jax.block_until_ready(jax.jit(encoder_forward)(params, x))
    ref = jax.block_until_ready(reference_forward(params, x))

    assert out.shape == (N, Cout, D // 2, H // 2, W // 2), out.shape
    max_err = float(jnp.max(jnp.abs(out - ref)))
    assert jnp.allclose(out, ref, rtol=2e-2, atol=2e-2), max_err

    print("KERNEL_OK")
</pallas_src>

<mosaic_0001>
module attributes {stable_mosaic.version = 11 : i64} {
  func.func @_pool_gemm_kernel(%arg0: i32, %arg1: memref<64x128xbf16, #tpu.memory_space<vmem>>, %arg2: memref<128x128xbf16, #tpu.memory_space<vmem>>, %arg3: memref<1x128xf32, #tpu.memory_space<vmem>>, %arg4: memref<1x128xf32, #tpu.memory_space<vmem>>, %arg5: memref<64x128xbf16, #tpu.memory_space<vmem>>) attributes {dimension_semantics = [#tpu.dimension_semantics<parallel>], iteration_bounds = array<i64: 2>, scalar_prefetch = 0 : i64, scratch_operands = 0 : i64, tpu.core_type = #tpu.core_type<tc>, window_params = [{transform_indices = @transform_0, window_bounds = array<i64: 64, 128>}, {pipeline_mode = #tpu.pipeline_mode<synchronous>, transform_indices = @transform_1, window_bounds = array<i64: 128, 128>}, {pipeline_mode = #tpu.pipeline_mode<synchronous>, transform_indices = @transform_2, window_bounds = array<i64: 1, 128>}, {pipeline_mode = #tpu.pipeline_mode<synchronous>, transform_indices = @transform_3, window_bounds = array<i64: 1, 128>}, {transform_indices = @transform_4, window_bounds = array<i64: 64, 128>}]} {
    %c0 = arith.constant 0 : index
    %c0_0 = arith.constant 0 : index
    %0 = vector.load %arg1[%c0, %c0_0] : memref<64x128xbf16, #tpu.memory_space<vmem>>, vector<64x128xbf16>
    %c0_1 = arith.constant 0 : index
    %c0_2 = arith.constant 0 : index
    %1 = vector.load %arg2[%c0_1, %c0_2] : memref<128x128xbf16, #tpu.memory_space<vmem>>, vector<128x128xbf16>
    %cst = arith.constant dense<0.000000e+00> : vector<64x128xf32>
    %2 = tpu.matmul %0, %1, %cst {dimension_numbers = #tpu.dot_dimension_numbers<[1], [0], [0], [1], [0, 0, 1, 1], [], []>} : vector<64x128xbf16>, vector<128x128xbf16>, vector<64x128xf32> -> vector<64x128xf32>
    %c0_3 = arith.constant 0 : index
    %c0_4 = arith.constant 0 : index
    %3 = vector.load %arg3[%c0_3, %c0_4] : memref<1x128xf32, #tpu.memory_space<vmem>>, vector<1x128xf32>
    %4 = vector.broadcast %3 : vector<1x128xf32> to vector<64x128xf32>
    %5 = arith.mulf %2, %4 : vector<64x128xf32>
    %c0_5 = arith.constant 0 : index
    %c0_6 = arith.constant 0 : index
    %6 = vector.load %arg4[%c0_5, %c0_6] : memref<1x128xf32, #tpu.memory_space<vmem>>, vector<1x128xf32>
    %7 = vector.broadcast %6 : vector<1x128xf32> to vector<64x128xf32>
    %8 = arith.addf %5, %7 : vector<64x128xf32>
    %9 = arith.truncf %8 : vector<64x128xf32> to vector<64x128xbf16>
    %c0_7 = arith.constant 0 : index
    %c0_8 = arith.constant 0 : index
    %10 = vector.load %arg5[%c0_7, %c0_8] : memref<64x128xbf16, #tpu.memory_space<vmem>>, vector<64x128xbf16>
    tpu.vector_store %arg5[%c0_7, %c0_8], %9 {strides = array<i32>} : memref<64x128xbf16, #tpu.memory_space<vmem>>, vector<64x128xbf16>,
    return
  }
  func.func @transform_0(%arg0: i32) -> (i32, i32) {
    %c0_i32 = arith.constant 0 : i32
    %c0_i32_0 = arith.constant 0 : i32
    return %arg0, %c0_i32 : i32, i32
  }
  func.func @transform_1(%arg0: i32) -> (i32, i32) {
    %c0_i32 = arith.constant 0 : i32
    %c0_i32_0 = arith.constant 0 : i32
    %c0_i32_1 = arith.constant 0 : i32
    return %c0_i32, %c0_i32_0 : i32, i32
  }
  func.func @transform_2(%arg0: i32) -> (i32, i32) {
    %c0_i32 = arith.constant 0 : i32
    %c0_i32_0 = arith.constant 0 : i32
    %c0_i32_1 = arith.constant 0 : i32
    return %c0_i32, %c0_i32_0 : i32, i32
  }
  func.func @transform_3(%arg0: i32) -> (i32, i32) {
    %c0_i32 = arith.constant 0 : i32
    %c0_i32_0 = arith.constant 0 : i32
    %c0_i32_1 = arith.constant 0 : i32
    return %c0_i32, %c0_i32_0 : i32, i32
  }
  func.func @transform_4(%arg0: i32) -> (i32, i32) {
    %c0_i32 = arith.constant 0 : i32
    %c0_i32_0 = arith.constant 0 : i32
    return %arg0, %c0_i32 : i32, i32
  }
}

module attributes {stable_mosaic.version = 11 : i64} {
  func.func @_conv3d_kernel(%arg0: i32, %arg1: i32, %arg2: memref<1x1x42x128xbf16, #tpu.memory_space<vmem>>, %arg3: memref<1x1x42x128xbf16, #tpu.memory_space<vmem>>, %arg4: memref<1x1x42x128xbf16, #tpu.memory_space<vmem>>, %arg5: memref<9x384x128xbf16, #tpu.memory_space<vmem>>, %arg6: memref<1x128xf32, #tpu.memory_space<vmem>>, %arg7: memref<1x128xf32, #tpu.memory_space<vmem>>, %arg8: memref<1x1x24x128xbf16, #tpu.memory_space<vmem>>, %arg9: memref<24x128xf32, #tpu.memory_space<vmem>>) attributes {dimension_semantics = [#tpu.dimension_semantics<parallel>, #tpu.dimension_semantics<parallel>], iteration_bounds = array<i64: 2, 4>, scalar_prefetch = 0 : i64, scratch_operands = 1 : i64, tpu.core_type = #tpu.core_type<tc>, window_params = [{transform_indices = @transform_0, window_bounds = array<i64: 1, 1, 42, 128>}, {transform_indices = @transform_1, window_bounds = array<i64: 1, 1, 42, 128>}, {transform_indices = @transform_2, window_bounds = array<i64: 1, 1, 42, 128>}, {pipeline_mode = #tpu.pipeline_mode<synchronous>, transform_indices = @transform_3, window_bounds = array<i64: 9, 384, 128>}, {pipeline_mode = #tpu.pipeline_mode<synchronous>, transform_indices = @transform_4, window_bounds = array<i64: 1, 128>}, {pipeline_mode = #tpu.pipeline_mode<synchronous>, transform_indices = @transform_5, window_bounds = array<i64: 1, 128>}, {transform_indices = @transform_6, window_bounds = array<i64: 1, 1, 24, 128>}]} {
    %cst = arith.constant 0.000000e+00 : f32
    %0 = vector.broadcast %cst : f32 to vector<24x128xf32>
    %c0 = arith.constant 0 : index
    %c0_0 = arith.constant 0 : index
    %1 = vector.load %arg9[%c0, %c0_0] : memref<24x128xf32, #tpu.memory_space<vmem>>, vector<24x128xf32>
    tpu.vector_store %arg9[%c0, %c0_0], %0 {strides = array<i32>} : memref<24x128xf32, #tpu.memory_space<vmem>>, vector<24x128xf32>,
    %c0_1 = arith.constant 0 : index
    %c0_2 = arith.constant 0 : index
    %c0_3 = arith.constant 0 : index
    %c0_4 = arith.constant 0 : index
    %2 = vector.load %arg2[%c0_1, %c0_2, %c0_3, %c0_4] : memref<1x1x42x128xbf16, #tpu.memory_space<vmem>>, vector<1x1x24x128xbf16>
    %3 = vector.shape_cast %2 : vector<1x1x24x128xbf16> to vector<24x128xbf16>
    %c0_5 = arith.constant 0 : index
    %c0_6 = arith.constant 0 : index
    %c0_7 = arith.constant 0 : index
    %c0_8 = arith.constant 0 : index
    %4 = vector.load %arg3[%c0_5, %c0_6, %c0_7, %c0_8] : memref<1x1x42x128xbf16, #tpu.memory_space<vmem>>, vector<1x1x24x128xbf16>
    %5 = vector.shape_cast %4 : vector<1x1x24x128xbf16> to vector<24x128xbf16>
    %c0_9 = arith.constant 0 : index
    %c0_10 = arith.constant 0 : index
    %c0_11 = arith.constant 0 : index
    %c0_12 = arith.constant 0 : index
    %6 = vector.load %arg4[%c0_9, %c0_10, %c0_11, %c0_12] : memref<1x1x42x128xbf16, #tpu.memory_space<vmem>>, vector<1x1x24x128xbf16>
    %7 = vector.shape_cast %6 : vector<1x1x24x128xbf16> to vector<24x128xbf16>
    %8 = tpu.concatenate %3, %5, %7 in 1 : vector<24x128xbf16>, vector<24x128xbf16>, vector<24x128xbf16> -> vector<24x384xbf16>
    %c0_13 = arith.constant 0 : index
    %c0_14 = arith.constant 0 : index
    %9 = vector.load %arg9[%c0_13, %c0_14] : memref<24x128xf32, #tpu.memory_space<vmem>>, vector<24x128xf32>
    %c0_15 = arith.constant 0 : index
    %c0_16 = arith.constant 0 : index
    %c0_17 = arith.constant 0 : index
    %10 = vector.load %arg5[%c0_15, %c0_16, %c0_17] : memref<9x384x128xbf16, #tpu.memory_space<vmem>>, vector<1x384x128xbf16>
    %11 = vector.shape_cast %10 : vector<1x384x128xbf16> to vector<384x128xbf16>
    %cst_18 = arith.constant dense<0.000000e+00> : vector<24x128xf32>
    %12 = tpu.matmul %8, %11, %cst_18 {dimension_numbers = #tpu.dot_dimension_numbers<[1], [0], [0], [1], [0, 0, 1, 1], [], []>} : vector<24x384xbf16>, vector<384x128xbf16>, vector<24x128xf32> -> vector<24x128xf32>
    %13 = arith.addf %9, %12 : vector<24x128xf32>
    %c0_19 = arith.constant 0 : index
    %c0_20 = arith.constant 0 : index
    %14 = vector.load %arg9[%c0_19, %c0_20] : memref<24x128xf32, #tpu.memory_space<vmem>>, vector<24x128xf32>
    tpu.vector_store %arg9[%c0_19, %c0_20], %13 {strides = array<i32>} : memref<24x128xf32, #tpu.memory_space<vmem>>, vector<24x128xf32>,
    %c0_21 = arith.constant 0 : index
    %c0_22 = arith.constant 0 : index
    %c1 = arith.constant 1 : index
    %c0_23 = arith.constant 0 : index
    %15 = vector.load %arg2[%c0_21, %c0_22, %c1, %c0_23] : memref<1x1x42x128xbf16, #tpu.memory_space<vmem>>, vector<1x1x24x128xbf16>
    %16 = vector.shape_cast %15 : vector<1x1x24x128xbf16> to vector<24x128xbf16>
    %c0_24 = arith.constant 0 : index
    %c0_25 = arith.constant 0 : index
    %c1_26 = arith.constant 1 : index
    %c0_27 = arith.constant 0 : index
    %17 = vector.load %arg3[%c0_24, %c0_25, %c1_26, %c0_27] : memref<1x1x42x128xbf16, #tpu.memory_space<vmem>>, vector<1x1x24x128xbf16>
    %18 = vector.shape_cast %17 : vector<1x1x24x128xbf16> to vector<24x128xbf16>
    %c0_28 = arith.constant 0 : index
    %c0_29 = arith.constant 0 : index
    %c1_30 = arith.constant 1 : index
    %c0_31 = arith.constant 0 : index
    %19 = vector.load %arg4[%c0_28, %c0_29, %c1_30, %c0_31] : memref<1x1x42x128xbf16, #tpu.memory_space<vmem>>, vector<1x1x24x128xbf16>
    %20 = vector.shape_cast %19 : vector<1x1x24x128xbf16> to vector<24x128xbf16>
    %21 = tpu.concatenate %16, %18, %20 in 1 : vector<24x128xbf16>, vector<24x128xbf16>, vector<24x128xbf16> -> vector<24x384xbf16>
    %c0_32 = arith.constant 0 : index
    %c0_33 = arith.constant 0 : index
    %22 = vector.load %arg9[%c0_32, %c0_33] : memref<24x128xf32, #tpu.memory_space<vmem>>, vector<24x128xf32>
    %c1_34 = arith.constant 1 : index
    %c0_35 = arith.constant 0 : index
    %c0_36 = arith.constant 0 : index
    %23 = vector.load %arg5[%c1_34, %c0_35, %c0_36] : memref<9x384x128xbf16, #tpu.memory_space<vmem>>, vector<1x384x128xbf16>
    %24 = vector.shape_cast %23 : vector<1x384x128xbf16> to vector<384x128xbf16>
    %cst_37 = arith.constant dense<0.000000e+00> : vector<24x128xf32>
    %25 = tpu.matmul %21, %24, %cst_37 {dimension_numbers = #tpu.dot_dimension_numbers<[1], [0], [0], [1], [0, 0, 1, 1], [], []>} : vector<24x384xbf16>, vector<384x128xbf16>, vector<24x128xf32> -> vector<24x128xf32>
    %26 = arith.addf %22, %25 : vector<24x128xf32>
    %c0_38 = arith.constant 0 : index
    %c0_39 = arith.constant 0 : index
    %27 = vector.load %arg9[%c0_38, %c0_39] : memref<24x128xf32, #tpu.memory_space<vmem>>, vector<24x128xf32>
    tpu.vector_store %arg9[%c0_38, %c0_39], %26 {strides = array<i32>} : memref<24x128xf32, #tpu.memory_space<vmem>>, vector<24x128xf32>,
    %c0_40 = arith.constant 0 : index
    %c0_41 = arith.constant 0 : index
    %c2 = arith.constant 2 : index
    %c0_42 = arith.constant 0 : index
    %28 = vector.load %arg2[%c0_40, %c0_41, %c2, %c0_42] : memref<1x1x42x128xbf16, #tpu.memory_space<vmem>>, vector<1x1x24x128xbf16>
    %29 = vector.shape_cast %28 : vector<1x1x24x128xbf16> to vector<24x128xbf16>
    %c0_43 = arith.constant 0 : index
    %c0_44 = arith.constant 0 : index
    %c2_45 = arith.constant 2 : index
    %c0_46 = arith.constant 0 : index
    %30 = vector.load %arg3[%c0_43, %c0_44, %c2_45, %c0_46] : memref<1x1x42x128xbf16, #tpu.memory_space<vmem>>, vector<1x1x24x128xbf16>
    %31 = vector.shape_cast %30 : vector<1x1x24x128xbf16> to vector<24x128xbf16>
    %c0_47 = arith.constant 0 : index
    %c0_48 = arith.constant 0 : index
    %c2_49 = arith.constant 2 : index
    %c0_50 = arith.constant 0 : index
    %32 = vector.load %arg4[%c0_47, %c0_48, %c2_49, %c0_50] : memref<1x1x42x128xbf16, #tpu.memory_space<vmem>>, vector<1x1x24x128xbf16>
    %33 = vector.shape_cast %32 : vector<1x1x24x128xbf16> to vector<24x128xbf16>
    %34 = tpu.concatenate %29, %31, %33 in 1 : vector<24x128xbf16>, vector<24x128xbf16>, vector<24x128xbf16> -> vector<24x384xbf16>
    %c0_51 = arith.constant 0 : index
    %c0_52 = arith.constant 0 : index
    %35 = vector.load %arg9[%c0_51, %c0_52] : memref<24x128xf32, #tpu.memory_space<vmem>>, vector<24x128xf32>
    %c2_53 = arith.constant 2 : index
    %c0_54 = arith.constant 0 : index
    %c0_55 = arith.constant 0 : index
    %36 = vector.load %arg5[%c2_53, %c0_54, %c0_55] : memref<9x384x128xbf16, #tpu.memory_space<vmem>>, vector<1x384x128xbf16>
    %37 = vector.shape_cast %36 : vector<1x384x128xbf16> to vector<384x128xbf16>
    %cst_56 = arith.constant dense<0.000000e+00> : vector<24x128xf32>
    %38 = tpu.matmul %34, %37, %cst_56 {dimension_numbers = #tpu.dot_dimension_numbers<[1], [0], [0], [1], [0, 0, 1, 1], [], []>} : vector<24x384xbf16>, vector<384x128xbf16>, vector<24x128xf32> -> vector<24x128xf32>
    %39 = arith.addf %35, %38 : vector<24x128xf32>
    %c0_57 = arith.constant 0 : index
    %c0_58 = arith.constant 0 : index
    %40 = vector.load %arg9[%c0_57, %c0_58] : memref<24x128xf32, #tpu.memory_space<vmem>>, vector<24x128xf32>
    tpu.vector_store %arg9[%c0_57, %c0_58], %39 {strides = array<i32>} : memref<24x128xf32, #tpu.memory_space<vmem>>, vector<24x128xf32>,
    %c0_59 = arith.constant 0 : index
    %c0_60 = arith.constant 0 : index
    %c6 = arith.constant 6 : index
    %c0_61 = arith.constant 0 : index
    %41 = vector.load %arg2[%c0_59, %c0_60, %c6, %c0_61] : memref<1x1x42x128xbf16, #tpu.memory_space<vmem>>, vector<1x1x24x128xbf16>
    %42 = vector.shape_cast %41 : vector<1x1x24x128xbf16> to vector<24x128xbf16>
    %c0_62 = arith.constant 0 : index
    %c0_63 = arith.constant 0 : index
    %c6_64 = arith.constant 6 : index
    %c0_65 = arith.constant 0 : index
    %43 = vector.load %arg3[%c0_62, %c0_63, %c6_64, %c0_65] : memref<1x1x42x128xbf16, #tpu.memory_space<vmem>>, vector<1x1x24x128xbf16>
    %44 = vector.shape_cast %43 : vector<1x1x24x128xbf16> to vector<24x128xbf16>
    %c0_66 = arith.constant 0 : index
    %c0_67 = arith.constant 0 : index
    %c6_68 = arith.constant 6 : index
    %c0_69 = arith.constant 0 : index
    %45 = vector.load %arg4[%c0_66, %c0_67, %c6_68, %c0_69] : memref<1x1x42x128xbf16, #tpu.memory_space<vmem>>, vector<1x1x24x128xbf16>
    %46 = vector.shape_cast %45 : vector<1x1x24x128xbf16> to vector<24x128xbf16>
    %47 = tpu.concatenate %42, %44, %46 in 1 : vector<24x128xbf16>, vector<24x128xbf16>, vector<24x128xbf16> -> vector<24x384xbf16>
    %c0_70 = arith.constant 0 : index
    %c0_71 = arith.constant 0 : index
    %48 = vector.load %arg9[%c0_70, %c0_71] : memref<24x128xf32, #tpu.memory_space<vmem>>, vector<24x128xf32>
    %c3 = arith.constant 3 : index
    %c0_72 = arith.constant 0 : index
    %c0_73 = arith.constant 0 : index
    %49 = vector.load %arg5[%c3, %c0_72, %c0_73] : memref<9x384x128xbf16, #tpu.memory_space<vmem>>, vector<1x384x128xbf16>
    %50 = vector.shape_cast %49 : vector<1x384x128xbf16> to vector<384x128xbf16>
    %cst_74 = arith.constant dense<0.000000e+00> : vector<24x128xf32>
    %51 = tpu.matmul %47, %50, %cst_74 {dimension_numbers = #tpu.dot_dimension_numbers<[1], [0], [0], [1], [0, 0, 1, 1], [], []>} : vector<24x384xbf16>, vector<384x128xbf16>, vector<24x128xf32> -> vector<24x128xf32>
    %52 = arith.addf %48, %51 : vector<24x128xf32>
    %c0_75 = arith.constant 0 : index
    %c0_76 = arith.constant 0 : index
    %53 = vector.load %arg9[%c0_75, %c0_76] : memref<24x128xf32, #tpu.memory_space<vmem>>, vector<24x128xf32>
    tpu.vector_store %arg9[%c0_75, %c0_76], %52 {strides = array<i32>} : memref<24x128xf32, #tpu.memory_space<vmem>>, vector<24x128xf32>,
    %c0_77 = arith.constant 0 : index
    %c0_78 = arith.constant 0 : index
    %c7 = arith.constant 7 : index
    %c0_79 = arith.constant 0 : index
    %54 = vector.load %arg2[%c0_77, %c0_78, %c7, %c0_79] : memref<1x1x42x128xbf16, #tpu.memory_space<vmem>>, vector<1x1x24x128xbf16>
    %55 = vector.shape_cast %54 : vector<1x1x24x128xbf16> to vector<24x128xbf16>
    %c0_80 = arith.constant 0 : index
    %c0_81 = arith.constant 0 : index
    %c7_82 = arith.constant 7 : index
    %c0_83 = arith.constant 0 : index
    %56 = vector.load %arg3[%c0_80, %c0_81, %c7_82, %c0_83] : memref<1x1x42x128xbf16, #tpu.memory_space<vmem>>, vector<1x1x24x128xbf16>
    %57 = vector.shape_cast %56 : vector<1x1x24x128xbf16> to vector<24x128xbf16>
    %c0_84 = arith.constant 0 : index
    %c0_85 = arith.constant 0 : index
    %c7_86 = arith.constant 7 : index
    %c0_87 = arith.constant 0 : index
    %58 = vector.load %arg4[%c0_84, %c0_85, %c7_86, %c0_87] : memref<1x1x42x128xbf16, #tpu.memory_space<vmem>>, vector<1x1x24x128xbf16>
    %59 = vector.shape_cast %58 : vector<1x1x24x128xbf16> to vector<24x128xbf16>
    %60 = tpu.concatenate %55, %57, %59 in 1 : vector<24x128xbf16>, vector<24x128xbf16>, vector<24x128xbf16> -> vector<24x384xbf16>
    %c0_88 = arith.constant 0 : index
    %c0_89 = arith.constant 0 : index
    %61 = vector.load %arg9[%c0_88, %c0_89] : memref<24x128xf32, #tpu.memory_space<vmem>>, vector<24x128xf32>
    %c4 = arith.constant 4 : index
    %c0_90 = arith.constant 0 : index
    %c0_91 = arith.constant 0 : index
    %62 = vector.load %arg5[%c4, %c0_90, %c0_91] : memref<9x384x128xbf16, #tpu.memory_space<vmem>>, vector<1x384x128xbf16>
    %63 = vector.shape_cast %62 : vector<1x384x128xbf16> to vector<384x128xbf16>
    %cst_92 = arith.constant dense<0.000000e+00> : vector<24x128xf32>
    %64 = tpu.matmul %60, %63, %cst_92 {dimension_numbers = #tpu.dot_dimension_numbers<[1], [0], [0], [1], [0, 0, 1, 1], [], []>} : vector<24x384xbf16>, vector<384x128xbf16>, vector<24x128xf32> -> vector<24x128xf32>
    %65 = arith.addf %61, %64 : vector<24x128xf32>
    %c0_93 = arith.constant 0 : index
    %c0_94 = arith.constant 0 : index
    %66 = vector.load %arg9[%c0_93, %c0_94] : memref<24x128xf32, #tpu.memory_space<vmem>>, vector<24x128xf32>
    tpu.vector_store %arg9[%c0_93, %c0_94], %65 {strides = array<i32>} : memref<24x128xf32, #tpu.memory_space<vmem>>, vector<24x128xf32>,
    %c0_95 = arith.constant 0 : index
    %c0_96 = arith.constant 0 : index
    %c8 = arith.constant 8 : index
    %c0_97 = arith.constant 0 : index
    %67 = vector.load %arg2[%c0_95, %c0_96, %c8, %c0_97] : memref<1x1x42x128xbf16, #tpu.memory_space<vmem>>, vector<1x1x24x128xbf16>
    %68 = vector.shape_cast %67 : vector<1x1x24x128xbf16> to vector<24x128xbf16>
    %c0_98 = arith.constant 0 : index
    %c0_99 = arith.constant 0 : index
    %c8_100 = arith.constant 8 : index
    %c0_101 = arith.constant 0 : index
    %69 = vector.load %arg3[%c0_98, %c0_99, %c8_100, %c0_101] : memref<1x1x42x128xbf16, #tpu.memory_space<vmem>>, vector<1x1x24x128xbf16>
    %70 = vector.shape_cast %69 : vector<1x1x24x128xbf16> to vector<24x128xbf16>
    %c0_102 = arith.constant 0 : index
    %c0_103 = arith.constant 0 : index
    %c8_104 = arith.constant 8 : index
    %c0_105 = arith.constant 0 : index
    %71 = vector.load %arg4[%c0_102, %c0_103, %c8_104, %c0_105] : memref<1x1x42x128xbf16, #tpu.memory_space<vmem>>, vector<1x1x24x128xbf16>
    %72 = vector.shape_cast %71 : vector<1x1x24x128xbf16> to vector<24x128xbf16>
    %73 = tpu.concatenate %68, %70, %72 in 1 : vector<24x128xbf16>, vector<24x128xbf16>, vector<24x128xbf16> -> vector<24x384xbf16>
    %c0_106 = arith.constant 0 : index
    %c0_107 = arith.constant 0 : index
    %74 = vector.load %arg9[%c0_106, %c0_107] : memref<24x128xf32, #tpu.memory_space<vmem>>, vector<24x128xf32>
    %c5 = arith.constant 5 : index
    %c0_108 = arith.constant 0 : index
    %c0_109 = arith.constant 0 : index
    %75 = vector.load %arg5[%c5, %c0_108, %c0_109] : memref<9x384x128xbf16, #tpu.memory_space<vmem>>, vector<1x384x128xbf16>
    %76 = vector.shape_cast %75 : vector<1x384x128xbf16> to vector<384x128xbf16>
    %cst_110 = arith.constant dense<0.000000e+00> : vector<24x128xf32>
    %77 = tpu.matmul %73, %76, %cst_110 {dimension_numbers = #tpu.dot_dimension_numbers<[1], [0], [0], [1], [0, 0, 1, 1], [], []>} : vector<24x384xbf16>, vector<384x128xbf16>, vector<24x128xf32> -> vector<24x128xf32>
    %78 = arith.addf %74, %77 : vector<24x128xf32>
    %c0_111 = arith.constant 0 : index
    %c0_112 = arith.constant 0 : index
    %79 = vector.load %arg9[%c0_111, %c0_112] : memref<24x128xf32, #tpu.memory_space<vmem>>, vector<24x128xf32>
    tpu.vector_store %arg9[%c0_111, %c0_112], %78 {strides = array<i32>} : memref<24x128xf32, #tpu.memory_space<vmem>>, vector<24x128xf32>,
    %c0_113 = arith.constant 0 : index
    %c0_114 = arith.constant 0 : index
    %c12 = arith.constant 12 : index
    %c0_115 = arith.constant 0 : index
    %80 = vector.load %arg2[%c0_113, %c0_114, %c12, %c0_115] : memref<1x1x42x128xbf16, #tpu.memory_space<vmem>>, vector<1x1x24x128xbf16>
    %81 = vector.shape_cast %80 : vector<1x1x24x128xbf16> to vector<24x128xbf16>
    %c0_116 = arith.constant 0 : index
    %c0_117 = arith.constant 0 : index
    %c12_118 = arith.constant 12 : index
    %c0_119 = arith.constant 0 : index
    %82 = vector.load %arg3[%c0_116, %c0_117, %c12_118, %c0_119] : memref<1x1x42x128xbf16, #tpu.memory_space<vmem>>, vector<1x1x24x128xbf16>
    %83 = vector.shape_cast %82 : vector<1x1x24x128xbf16> to vector<24x128xbf16>
    %c0_120 = arith.constant 0 : index
    %c0_121 = arith.constant 0 : index
    %c12_122 = arith.constant 12 : index
    %c0_123 = arith.constant 0 : index
    %84 = vector.load %arg4[%c0_120, %c0_121, %c12_122, %c0_123] : memref<1x1x42x128xbf16, #tpu.memory_space<vmem>>, vector<1x1x24x128xbf16>
    %85 = vector.shape_cast %84 : vector<1x1x24x128xbf16> to vector<24x128xbf16>
    %86 = tpu.concatenate %81, %83, %85 in 1 : vector<24x128xbf16>, vector<24x128xbf16>, vector<24x128xbf16> -> vector<24x384xbf16>
    %c0_124 = arith.constant 0 : index
    %c0_125 = arith.constant 0 : index
    %87 = vector.load %arg9[%c0_124, %c0_125] : memref<24x128xf32, #tpu.memory_space<vmem>>, vector<24x128xf32>
    %c6_126 = arith.constant 6 : index
    %c0_127 = arith.constant 0 : index
    %c0_128 = arith.constant 0 : index
    %88 = vector.load %arg5[%c6_126, %c0_127, %c0_128] : memref<9x384x128xbf16, #tpu.memory_space<vmem>>, vector<1x384x128xbf16>
    %89 = vector.shape_cast %88 : vector<1x384x128xbf16> to vector<384x128xbf16>
    %cst_129 = arith.constant dense<0.000000e+00> : vector<24x128xf32>
    %90 = tpu.matmul %86, %89, %cst_129 {dimension_numbers = #tpu.dot_dimension_numbers<[1], [0], [0], [1], [0, 0, 1, 1], [], []>} : vector<24x384xbf16>, vector<384x128xbf16>, vector<24x128xf32> -> vector<24x128xf32>
    %91 = arith.addf %87, %90 : vector<24x128xf32>
    %c0_130 = arith.constant 0 : index
    %c0_131 = arith.constant 0 : index
    %92 = vector.load %arg9[%c0_130, %c0_131] : memref<24x128xf32, #tpu.memory_space<vmem>>, vector<24x128xf32>
    tpu.vector_store %arg9[%c0_130, %c0_131], %91 {strides = array<i32>} : memref<24x128xf32, #tpu.memory_space<vmem>>, vector<24x128xf32>,
    %c0_132 = arith.constant 0 : index
    %c0_133 = arith.constant 0 : index
    %c13 = arith.constant 13 : index
    %c0_134 = arith.constant 0 : index
    %93 = vector.load %arg2[%c0_132, %c0_133, %c13, %c0_134] : memref<1x1x42x128xbf16, #tpu.memory_space<vmem>>, vector<1x1x24x128xbf16>
    %94 = vector.shape_cast %93 : vector<1x1x24x128xbf16> to vector<24x128xbf16>
    %c0_135 = arith.constant 0 : index
    %c0_136 = arith.constant 0 : index
    %c13_137 = arith.constant 13 : index
    %c0_138 = arith.constant 0 : index
    %95 = vector.load %arg3[%c0_135, %c0_136, %c13_137, %c0_138] : memref<1x1x42x128xbf16, #tpu.memory_space<vmem>>, vector<1x1x24x128xbf16>
    %96 = vector.shape_cast %95 : vector<1x1x24x128xbf16> to vector<24x128xbf16>
    %c0_139 = arith.constant 0 : index
    %c0_140 = arith.constant 0 : index
    %c13_141 = arith.constant 13 : index
    %c0_142 = arith.constant 0 : index
    %97 = vector.load %arg4[%c0_139, %c0_140, %c13_141, %c0_142] : memref<1x1x42x128xbf16, #tpu.memory_space<vmem>>, vector<1x1x24x128xbf16>
    %98 = vector.shape_cast %97 : vector<1x1x24x128xbf16> to vector<24x128xbf16>
    %99 = tpu.concatenate %94, %96, %98 in 1 : vector<24x128xbf16>, vector<24x128xbf16>, vector<24x128xbf16> -> vector<24x384xbf16>
    %c0_143 = arith.constant 0 : index
    %c0_144 = arith.constant 0 : index
    %100 = vector.load %arg9[%c0_143, %c0_144] : memref<24x128xf32, #tpu.memory_space<vmem>>, vector<24x128xf32>
    %c7_145 = arith.constant 7 : index
    %c0_146 = arith.constant 0 : index
    %c0_147 = arith.constant 0 : index
    %101 = vector.load %arg5[%c7_145, %c0_146, %c0_147] : memref<9x384x128xbf16, #tpu.memory_space<vmem>>, vector<1x384x128xbf16>
    %102 = vector.shape_cast %101 : vector<1x384x128xbf16> to vector<384x128xbf16>
    %cst_148 = arith.constant dense<0.000000e+00> : vector<24x128xf32>
    %103 = tpu.matmul %99, %102, %cst_148 {dimension_numbers = #tpu.dot_dimension_numbers<[1], [0], [0], [1], [0, 0, 1, 1], [], []>} : vector<24x384xbf16>, vector<384x128xbf16>, vector<24x128xf32> -> vector<24x128xf32>
    %104 = arith.addf %100, %103 : vector<24x128xf32>
    %c0_149 = arith.constant 0 : index
    %c0_150 = arith.constant 0 : index
    %105 = vector.load %arg9[%c0_149, %c0_150] : memref<24x128xf32, #tpu.memory_space<vmem>>, vector<24x128xf32>
    tpu.vector_store %arg9[%c0_149, %c0_150], %104 {strides = array<i32>} : memref<24x128xf32, #tpu.memory_space<vmem>>, vector<24x128xf32>,
    %c0_151 = arith.constant 0 : index
    %c0_152 = arith.constant 0 : index
    %c14 = arith.constant 14 : index
    %c0_153 = arith.constant 0 : index
    %106 = vector.load %arg2[%c0_151, %c0_152, %c14, %c0_153] : memref<1x1x42x128xbf16, #tpu.memory_space<vmem>>, vector<1x1x24x128xbf16>
    %107 = vector.shape_cast %106 : vector<1x1x24x128xbf16> to vector<24x128xbf16>
    %c0_154 = arith.constant 0 : index
    %c0_155 = arith.constant 0 : index
    %c14_156 = arith.constant 14 : index
    %c0_157 = arith.constant 0 : index
    %108 = vector.load %arg3[%c0_154, %c0_155, %c14_156, %c0_157] : memref<1x1x42x128xbf16, #tpu.memory_space<vmem>>, vector<1x1x24x128xbf16>
    %109 = vector.shape_cast %108 : vector<1x1x24x128xbf16> to vector<24x128xbf16>
    %c0_158 = arith.constant 0 : index
    %c0_159 = arith.constant 0 : index
    %c14_160 = arith.constant 14 : index
    %c0_161 = arith.constant 0 : index
    %110 = vector.load %arg4[%c0_158, %c0_159, %c14_160, %c0_161] : memref<1x1x42x128xbf16, #tpu.memory_space<vmem>>, vector<1x1x24x128xbf16>
    %111 = vector.shape_cast %110 : vector<1x1x24x128xbf16> to vector<24x128xbf16>
    %112 = tpu.concatenate %107, %109, %111 in 1 : vector<24x128xbf16>, vector<24x128xbf16>, vector<24x128xbf16> -> vector<24x384xbf16>
    %c0_162 = arith.constant 0 : index
    %c0_163 = arith.constant 0 : index
    %113 = vector.load %arg9[%c0_162, %c0_163] : memref<24x128xf32, #tpu.memory_space<vmem>>, vector<24x128xf32>
    %c8_164 = arith.constant 8 : index
    %c0_165 = arith.constant 0 : index
    %c0_166 = arith.constant 0 : index
    %114 = vector.load %arg5[%c8_164, %c0_165, %c0_166] : memref<9x384x128xbf16, #tpu.memory_space<vmem>>, vector<1x384x128xbf16>
    %115 = vector.shape_cast %114 : vector<1x384x128xbf16> to vector<384x128xbf16>
    %cst_167 = arith.constant dense<0.000000e+00> : vector<24x128xf32>
    %116 = tpu.matmul %112, %115, %cst_167 {dimension_numbers = #tpu.dot_dimension_numbers<[1], [0], [0], [1], [0, 0, 1, 1], [], []>} : vector<24x384xbf16>, vector<384x128xbf16>, vector<24x128xf32> -> vector<24x128xf32>
    %117 = arith.addf %113, %116 : vector<24x128xf32>
    %c0_168 = arith.constant 0 : index
    %c0_169 = arith.constant 0 : index
    %118 = vector.load %arg9[%c0_168, %c0_169] : memref<24x128xf32, #tpu.memory_space<vmem>>, vector<24x128xf32>
    tpu.vector_store %arg9[%c0_168, %c0_169], %117 {strides = array<i32>} : memref<24x128xf32, #tpu.memory_space<vmem>>, vector<24x128xf32>,
    %c0_170 = arith.constant 0 : index
    %c0_171 = arith.constant 0 : index
    %119 = vector.load %arg9[%c0_170, %c0_171] : memref<24x128xf32, #tpu.memory_space<vmem>>, vector<24x128xf32>
    %cst_172 = arith.constant 0.000000e+00 : f32
    %120 = vector.broadcast %cst_172 : f32 to vector<24x128xf32>
    %121 = arith.maximumf %119, %120 : vector<24x128xf32>
    %c0_173 = arith.constant 0 : index
    %c0_174 = arith.constant 0 : index
    %122 = vector.load %arg6[%c0_173, %c0_174] : memref<1x128xf32, #tpu.memory_space<vmem>>, vector<1x128xf32>
    %123 = vector.broadcast %122 : vector<1x128xf32> to vector<24x128xf32>
    %124 = arith.mulf %121, %123 : vector<24x128xf32>
    %c0_175 = arith.constant 0 : index
    %c0_176 = arith.constant 0 : index
    %125 = vector.load %arg7[%c0_175, %c0_176] : memref<1x128xf32, #tpu.memory_space<vmem>>, vector<1x128xf32>
    %126 = vector.broadcast %125 : vector<1x128xf32> to vector<24x128xf32>
    %127 = arith.addf %124, %126 : vector<24x128xf32>
    %128 = arith.truncf %127 : vector<24x128xf32> to vector<24x128xbf16>
    %c0_177 = arith.constant 0 : index
    %c0_178 = arith.constant 0 : index
    %c0_179 = arith.constant 0 : index
    %c0_180 = arith.constant 0 : index
    %129 = vector.load %arg8[%c0_177, %c0_178, %c0_179, %c0_180] : memref<1x1x24x128xbf16, #tpu.memory_space<vmem>>, vector<1x1x24x128xbf16>
    %130 = vector.shape_cast %129 : vector<1x1x24x128xbf16> to vector<24x128xbf16>
    %131 = vector.shape_cast %128 : vector<24x128xbf16> to vector<1x1x24x128xbf16>
    tpu.vector_store %arg8[%c0_177, %c0_178, %c0_179, %c0_180], %131 {strides = array<i32>} : memref<1x1x24x128xbf16, #tpu.memory_space<vmem>>, vector<1x1x24x128xbf16>,
    return
  }
  func.func @transform_0(%arg0: i32, %arg1: i32) -> (i32, i32, i32, i32) {
    %c0_i32 = arith.constant 0 : i32
    %0 = arith.addi %arg1, %c0_i32 : i32
    %c0_i32_0 = arith.constant 0 : i32
    %c0_i32_1 = arith.constant 0 : i32
    %c0_i32_2 = arith.constant 0 : i32
    return %arg0, %0, %c0_i32_0, %c0_i32_1 : i32, i32, i32, i32
  }
  func.func @transform_1(%arg0: i32, %arg1: i32) -> (i32, i32, i32, i32) {
    %c1_i32 = arith.constant 1 : i32
    %0 = arith.addi %arg1, %c1_i32 : i32
    %c0_i32 = arith.constant 0 : i32
    %c0_i32_0 = arith.constant 0 : i32
    %c0_i32_1 = arith.constant 0 : i32
    return %arg0, %0, %c0_i32, %c0_i32_0 : i32, i32, i32, i32
  }
  func.func @transform_2(%arg0: i32, %arg1: i32) -> (i32, i32, i32, i32) {
    %c2_i32 = arith.constant 2 : i32
    %0 = arith.addi %arg1, %c2_i32 : i32
    %c0_i32 = arith.constant 0 : i32
    %c0_i32_0 = arith.constant 0 : i32
    %c0_i32_1 = arith.constant 0 : i32
    return %arg0, %0, %c0_i32, %c0_i32_0 : i32, i32, i32, i32
  }
  func.func @transform_3(%arg0: i32, %arg1: i32) -> (i32, i32, i32) {
    %c0_i32 = arith.constant 0 : i32
    %c0_i32_0 = arith.constant 0 : i32
    %c0_i32_1 = arith.constant 0 : i32
    %c0_i32_2 = arith.constant 0 : i32
    return %c0_i32, %c0_i32_0, %c0_i32_1 : i32, i32, i32
  }
  func.func @transform_4(%arg0: i32, %arg1: i32) -> (i32, i32) {
    %c0_i32 = arith.constant 0 : i32
    %c0_i32_0 = arith.constant 0 : i32
    %c0_i32_1 = arith.constant 0 : i32
    return %c0_i32, %c0_i32_0 : i32, i32
  }
  func.func @transform_5(%arg0: i32, %arg1: i32) -> (i32, i32) {
    %c0_i32 = arith.constant 0 : i32
    %c0_i32_0 = arith.constant 0 : i32
    %c0_i32_1 = arith.constant 0 : i32
    return %c0_i32, %c0_i32_0 : i32, i32
  }
  func.func @transform_6(%arg0: i32, %arg1: i32) -> (i32, i32, i32, i32) {
    %c0_i32 = arith.constant 0 : i32
    %c0_i32_0 = arith.constant 0 : i32
    %c0_i32_1 = arith.constant 0 : i32
    return %arg0, %arg1, %c0_i32, %c0_i32_0 : i32, i32, i32, i32
  }
}

module attributes {stable_mosaic.version = 11 : i64} {
  func.func @_conv3d_kernel(%arg0: i32, %arg1: i32, %arg2: memref<1x1x42x128xbf16, #tpu.memory_space<vmem>>, %arg3: memref<1x1x42x128xbf16, #tpu.memory_space<vmem>>, %arg4: memref<1x1x42x128xbf16, #tpu.memory_space<vmem>>, %arg5: memref<9x384x128xbf16, #tpu.memory_space<vmem>>, %arg6: memref<1x1x24x128xf32, #tpu.memory_space<vmem>>, %arg7: memref<24x128xf32, #tpu.memory_space<vmem>>) attributes {dimension_semantics = [#tpu.dimension_semantics<parallel>, #tpu.dimension_semantics<parallel>], iteration_bounds = array<i64: 2, 4>, scalar_prefetch = 0 : i64, scratch_operands = 1 : i64, tpu.core_type = #tpu.core_type<tc>, window_params = [{transform_indices = @transform_0, window_bounds = array<i64: 1, 1, 42, 128>}, {transform_indices = @transform_1, window_bounds = array<i64: 1, 1, 42, 128>}, {transform_indices = @transform_2, window_bounds = array<i64: 1, 1, 42, 128>}, {pipeline_mode = #tpu.pipeline_mode<synchronous>, transform_indices = @transform_3, window_bounds = array<i64: 9, 384, 128>}, {transform_indices = @transform_4, window_bounds = array<i64: 1, 1, 24, 128>}]} {
    %cst = arith.constant 0.000000e+00 : f32
    %0 = vector.broadcast %cst : f32 to vector<24x128xf32>
    %c0 = arith.constant 0 : index
    %c0_0 = arith.constant 0 : index
    %1 = vector.load %arg7[%c0, %c0_0] : memref<24x128xf32, #tpu.memory_space<vmem>>, vector<24x128xf32>
    tpu.vector_store %arg7[%c0, %c0_0], %0 {strides = array<i32>} : memref<24x128xf32, #tpu.memory_space<vmem>>, vector<24x128xf32>,
    %c0_1 = arith.constant 0 : index
    %c0_2 = arith.constant 0 : index
    %c0_3 = arith.constant 0 : index
    %c0_4 = arith.constant 0 : index
    %2 = vector.load %arg2[%c0_1, %c0_2, %c0_3, %c0_4] : memref<1x1x42x128xbf16, #tpu.memory_space<vmem>>, vector<1x1x24x128xbf16>
    %3 = vector.shape_cast %2 : vector<1x1x24x128xbf16> to vector<24x128xbf16>
    %c0_5 = arith.constant 0 : index
    %c0_6 = arith.constant 0 : index
    %c0_7 = arith.constant 0 : index
    %c0_8 = arith.constant 0 : index
    %4 = vector.load %arg3[%c0_5, %c0_6, %c0_7, %c0_8] : memref<1x1x42x128xbf16, #tpu.memory_space<vmem>>, vector<1x1x24x128xbf16>
    %5 = vector.shape_cast %4 : vector<1x1x24x128xbf16> to vector<24x128xbf16>
    %c0_9 = arith.constant 0 : index
    %c0_10 = arith.constant 0 : index
    %c0_11 = arith.constant 0 : index
    %c0_12 = arith.constant 0 : index
    %6 = vector.load %arg4[%c0_9, %c0_10, %c0_11, %c0_12] : memref<1x1x42x128xbf16, #tpu.memory_space<vmem>>, vector<1x1x24x128xbf16>
    %7 = vector.shape_cast %6 : vector<1x1x24x128xbf16> to vector<24x128xbf16>
    %8 = tpu.concatenate %3, %5, %7 in 1 : vector<24x128xbf16>, vector<24x128xbf16>, vector<24x128xbf16> -> vector<24x384xbf16>
    %c0_13 = arith.constant 0 : index
    %c0_14 = arith.constant 0 : index
    %9 = vector.load %arg7[%c0_13, %c0_14] : memref<24x128xf32, #tpu.memory_space<vmem>>, vector<24x128xf32>
    %c0_15 = arith.constant 0 : index
    %c0_16 = arith.constant 0 : index
    %c0_17 = arith.constant 0 : index
    %10 = vector.load %arg5[%c0_15, %c0_16, %c0_17] : memref<9x384x128xbf16, #tpu.memory_space<vmem>>, vector<1x384x128xbf16>
    %11 = vector.shape_cast %10 : vector<1x384x128xbf16> to vector<384x128xbf16>
    %cst_18 = arith.constant dense<0.000000e+00> : vector<24x128xf32>
    %12 = tpu.matmul %8, %11, %cst_18 {dimension_numbers = #tpu.dot_dimension_numbers<[1], [0], [0], [1], [0, 0, 1, 1], [], []>} : vector<24x384xbf16>, vector<384x128xbf16>, vector<24x128xf32> -> vector<24x128xf32>
    %13 = arith.addf %9, %12 : vector<24x128xf32>
    %c0_19 = arith.constant 0 : index
    %c0_20 = arith.constant 0 : index
    %14 = vector.load %arg7[%c0_19, %c0_20] : memref<24x128xf32, #tpu.memory_space<vmem>>, vector<24x128xf32>
    tpu.vector_store %arg7[%c0_19, %c0_20], %13 {strides = array<i32>} : memref<24x128xf32, #tpu.memory_space<vmem>>, vector<24x128xf32>,
    %c0_21 = arith.constant 0 : index
    %c0_22 = arith.constant 0 : index
    %c1 = arith.constant 1 : index
    %c0_23 = arith.constant 0 : index
    %15 = vector.load %arg2[%c0_21, %c0_22, %c1, %c0_23] : memref<1x1x42x128xbf16, #tpu.memory_space<vmem>>, vector<1x1x24x128xbf16>
    %16 = vector.shape_cast %15 : vector<1x1x24x128xbf16> to vector<24x128xbf16>
    %c0_24 = arith.constant 0 : index
    %c0_25 = arith.constant 0 : index
    %c1_26 = arith.constant 1 : index
    %c0_27 = arith.constant 0 : index
    %17 = vector.load %arg3[%c0_24, %c0_25, %c1_26, %c0_27] : memref<1x1x42x128xbf16, #tpu.memory_space<vmem>>, vector<1x1x24x128xbf16>
    %18 = vector.shape_cast %17 : vector<1x1x24x128xbf16> to vector<24x128xbf16>
    %c0_28 = arith.constant 0 : index
    %c0_29 = arith.constant 0 : index
    %c1_30 = arith.constant 1 : index
    %c0_31 = arith.constant 0 : index
    %19 = vector.load %arg4[%c0_28, %c0_29, %c1_30, %c0_31] : memref<1x1x42x128xbf16, #tpu.memory_space<vmem>>, vector<1x1x24x128xbf16>
    %20 = vector.shape_cast %19 : vector<1x1x24x128xbf16> to vector<24x128xbf16>
    %21 = tpu.concatenate %16, %18, %20 in 1 : vector<24x128xbf16>, vector<24x128xbf16>, vector<24x128xbf16> -> vector<24x384xbf16>
    %c0_32 = arith.constant 0 : index
    %c0_33 = arith.constant 0 : index
    %22 = vector.load %arg7[%c0_32, %c0_33] : memref<24x128xf32, #tpu.memory_space<vmem>>, vector<24x128xf32>
    %c1_34 = arith.constant 1 : index
    %c0_35 = arith.constant 0 : index
    %c0_36 = arith.constant 0 : index
    %23 = vector.load %arg5[%c1_34, %c0_35, %c0_36] : memref<9x384x128xbf16, #tpu.memory_space<vmem>>, vector<1x384x128xbf16>
    %24 = vector.shape_cast %23 : vector<1x384x128xbf16> to vector<384x128xbf16>
    %cst_37 = arith.constant dense<0.000000e+00> : vector<24x128xf32>
    %25 = tpu.matmul %21, %24, %cst_37 {dimension_numbers = #tpu.dot_dimension_numbers<[1], [0], [0], [1], [0, 0, 1, 1], [], []>} : vector<24x384xbf16>, vector<384x128xbf16>, vector<24x128xf32> -> vector<24x128xf32>
    %26 = arith.addf %22, %25 : vector<24x128xf32>
    %c0_38 = arith.constant 0 : index
    %c0_39 = arith.constant 0 : index
    %27 = vector.load %arg7[%c0_38, %c0_39] : memref<24x128xf32, #tpu.memory_space<vmem>>, vector<24x128xf32>
    tpu.vector_store %arg7[%c0_38, %c0_39], %26 {strides = array<i32>} : memref<24x128xf32, #tpu.memory_space<vmem>>, vector<24x128xf32>,
    %c0_40 = arith.constant 0 : index
    %c0_41 = arith.constant 0 : index
    %c2 = arith.constant 2 : index
    %c0_42 = arith.constant 0 : index
    %28 = vector.load %arg2[%c0_40, %c0_41, %c2, %c0_42] : memref<1x1x42x128xbf16, #tpu.memory_space<vmem>>, vector<1x1x24x128xbf16>
    %29 = vector.shape_cast %28 : vector<1x1x24x128xbf16> to vector<24x128xbf16>
    %c0_43 = arith.constant 0 : index
    %c0_44 = arith.constant 0 : index
    %c2_45 = arith.constant 2 : index
    %c0_46 = arith.constant 0 : index
    %30 = vector.load %arg3[%c0_43, %c0_44, %c2_45, %c0_46] : memref<1x1x42x128xbf16, #tpu.memory_space<vmem>>, vector<1x1x24x128xbf16>
    %31 = vector.shape_cast %30 : vector<1x1x24x128xbf16> to vector<24x128xbf16>
    %c0_47 = arith.constant 0 : index
    %c0_48 = arith.constant 0 : index
    %c2_49 = arith.constant 2 : index
    %c0_50 = arith.constant 0 : index
    %32 = vector.load %arg4[%c0_47, %c0_48, %c2_49, %c0_50] : memref<1x1x42x128xbf16, #tpu.memory_space<vmem>>, vector<1x1x24x128xbf16>
    %33 = vector.shape_cast %32 : vector<1x1x24x128xbf16> to vector<24x128xbf16>
    %34 = tpu.concatenate %29, %31, %33 in 1 : vector<24x128xbf16>, vector<24x128xbf16>, vector<24x128xbf16> -> vector<24x384xbf16>
    %c0_51 = arith.constant 0 : index
    %c0_52 = arith.constant 0 : index
    %35 = vector.load %arg7[%c0_51, %c0_52] : memref<24x128xf32, #tpu.memory_space<vmem>>, vector<24x128xf32>
    %c2_53 = arith.constant 2 : index
    %c0_54 = arith.constant 0 : index
    %c0_55 = arith.constant 0 : index
    %36 = vector.load %arg5[%c2_53, %c0_54, %c0_55] : memref<9x384x128xbf16, #tpu.memory_space<vmem>>, vector<1x384x128xbf16>
    %37 = vector.shape_cast %36 : vector<1x384x128xbf16> to vector<384x128xbf16>
    %cst_56 = arith.constant dense<0.000000e+00> : vector<24x128xf32>
    %38 = tpu.matmul %34, %37, %cst_56 {dimension_numbers = #tpu.dot_dimension_numbers<[1], [0], [0], [1], [0, 0, 1, 1], [], []>} : vector<24x384xbf16>, vector<384x128xbf16>, vector<24x128xf32> -> vector<24x128xf32>
    %39 = arith.addf %35, %38 : vector<24x128xf32>
    %c0_57 = arith.constant 0 : index
    %c0_58 = arith.constant 0 : index
    %40 = vector.load %arg7[%c0_57, %c0_58] : memref<24x128xf32, #tpu.memory_space<vmem>>, vector<24x128xf32>
    tpu.vector_store %arg7[%c0_57, %c0_58], %39 {strides = array<i32>} : memref<24x128xf32, #tpu.memory_space<vmem>>, vector<24x128xf32>,
    %c0_59 = arith.constant 0 : index
    %c0_60 = arith.constant 0 : index
    %c6 = arith.constant 6 : index
    %c0_61 = arith.constant 0 : index
    %41 = vector.load %arg2[%c0_59, %c0_60, %c6, %c0_61] : memref<1x1x42x128xbf16, #tpu.memory_space<vmem>>, vector<1x1x24x128xbf16>
    %42 = vector.shape_cast %41 : vector<1x1x24x128xbf16> to vector<24x128xbf16>
    %c0_62 = arith.constant 0 : index
    %c0_63 = arith.constant 0 : index
    %c6_64 = arith.constant 6 : index
    %c0_65 = arith.constant 0 : index
    %43 = vector.load %arg3[%c0_62, %c0_63, %c6_64, %c0_65] : memref<1x1x42x128xbf16, #tpu.memory_space<vmem>>, vector<1x1x24x128xbf16>
    %44 = vector.shape_cast %43 : vector<1x1x24x128xbf16> to vector<24x128xbf16>
    %c0_66 = arith.constant 0 : index
    %c0_67 = arith.constant 0 : index
    %c6_68 = arith.constant 6 : index
    %c0_69 = arith.constant 0 : index
    %45 = vector.load %arg4[%c0_66, %c0_67, %c6_68, %c0_69] : memref<1x1x42x128xbf16, #tpu.memory_space<vmem>>, vector<1x1x24x128xbf16>
    %46 = vector.shape_cast %45 : vector<1x1x24x128xbf16> to vector<24x128xbf16>
    %47 = tpu.concatenate %42, %44, %46 in 1 : vector<24x128xbf16>, vector<24x128xbf16>, vector<24x128xbf16> -> vector<24x384xbf16>
    %c0_70 = arith.constant 0 : index
    %c0_71 = arith.constant 0 : index
    %48 = vector.load %arg7[%c0_70, %c0_71] : memref<24x128xf32, #tpu.memory_space<vmem>>, vector<24x128xf32>
    %c3 = arith.constant 3 : index
    %c0_72 = arith.constant 0 : index
    %c0_73 = arith.constant 0 : index
    %49 = vector.load %arg5[%c3, %c0_72, %c0_73] : memref<9x384x128xbf16, #tpu.memory_space<vmem>>, vector<1x384x128xbf16>
    %50 = vector.shape_cast %49 : vector<1x384x128xbf16> to vector<384x128xbf16>
    %cst_74 = arith.constant dense<0.000000e+00> : vector<24x128xf32>
    %51 = tpu.matmul %47, %50, %cst_74 {dimension_numbers = #tpu.dot_dimension_numbers<[1], [0], [0], [1], [0, 0, 1, 1], [], []>} : vector<24x384xbf16>, vector<384x128xbf16>, vector<24x128xf32> -> vector<24x128xf32>
    %52 = arith.addf %48, %51 : vector<24x128xf32>
    %c0_75 = arith.constant 0 : index
    %c0_76 = arith.constant 0 : index
    %53 = vector.load %arg7[%c0_75, %c0_76] : memref<24x128xf32, #tpu.memory_space<vmem>>, vector<24x128xf32>
    tpu.vector_store %arg7[%c0_75, %c0_76], %52 {strides = array<i32>} : memref<24x128xf32, #tpu.memory_space<vmem>>, vector<24x128xf32>,
    %c0_77 = arith.constant 0 : index
    %c0_78 = arith.constant 0 : index
    %c7 = arith.constant 7 : index
    %c0_79 = arith.constant 0 : index
    %54 = vector.load %arg2[%c0_77, %c0_78, %c7, %c0_79] : memref<1x1x42x128xbf16, #tpu.memory_space<vmem>>, vector<1x1x24x128xbf16>
    %55 = vector.shape_cast %54 : vector<1x1x24x128xbf16> to vector<24x128xbf16>
    %c0_80 = arith.constant 0 : index
    %c0_81 = arith.constant 0 : index
    %c7_82 = arith.constant 7 : index
    %c0_83 = arith.constant 0 : index
    %56 = vector.load %arg3[%c0_80, %c0_81, %c7_82, %c0_83] : memref<1x1x42x128xbf16, #tpu.memory_space<vmem>>, vector<1x1x24x128xbf16>
    %57 = vector.shape_cast %56 : vector<1x1x24x128xbf16> to vector<24x128xbf16>
    %c0_84 = arith.constant 0 : index
    %c0_85 = arith.constant 0 : index
    %c7_86 = arith.constant 7 : index
    %c0_87 = arith.constant 0 : index
    %58 = vector.load %arg4[%c0_84, %c0_85, %c7_86, %c0_87] : memref<1x1x42x128xbf16, #tpu.memory_space<vmem>>, vector<1x1x24x128xbf16>
    %59 = vector.shape_cast %58 : vector<1x1x24x128xbf16> to vector<24x128xbf16>
    %60 = tpu.concatenate %55, %57, %59 in 1 : vector<24x128xbf16>, vector<24x128xbf16>, vector<24x128xbf16> -> vector<24x384xbf16>
    %c0_88 = arith.constant 0 : index
    %c0_89 = arith.constant 0 : index
    %61 = vector.load %arg7[%c0_88, %c0_89] : memref<24x128xf32, #tpu.memory_space<vmem>>, vector<24x128xf32>
    %c4 = arith.constant 4 : index
    %c0_90 = arith.constant 0 : index
    %c0_91 = arith.constant 0 : index
    %62 = vector.load %arg5[%c4, %c0_90, %c0_91] : memref<9x384x128xbf16, #tpu.memory_space<vmem>>, vector<1x384x128xbf16>
    %63 = vector.shape_cast %62 : vector<1x384x128xbf16> to vector<384x128xbf16>
    %cst_92 = arith.constant dense<0.000000e+00> : vector<24x128xf32>
    %64 = tpu.matmul %60, %63, %cst_92 {dimension_numbers = #tpu.dot_dimension_numbers<[1], [0], [0], [1], [0, 0, 1, 1], [], []>} : vector<24x384xbf16>, vector<384x128xbf16>, vector<24x128xf32> -> vector<24x128xf32>
    %65 = arith.addf %61, %64 : vector<24x128xf32>
    %c0_93 = arith.constant 0 : index
    %c0_94 = arith.constant 0 : index
    %66 = vector.load %arg7[%c0_93, %c0_94] : memref<24x128xf32, #tpu.memory_space<vmem>>, vector<24x128xf32>
    tpu.vector_store %arg7[%c0_93, %c0_94], %65 {strides = array<i32>} : memref<24x128xf32, #tpu.memory_space<vmem>>, vector<24x128xf32>,
    %c0_95 = arith.constant 0 : index
    %c0_96 = arith.constant 0 : index
    %c8 = arith.constant 8 : index
    %c0_97 = arith.constant 0 : index
    %67 = vector.load %arg2[%c0_95, %c0_96, %c8, %c0_97] : memref<1x1x42x128xbf16, #tpu.memory_space<vmem>>, vector<1x1x24x128xbf16>
    %68 = vector.shape_cast %67 : vector<1x1x24x128xbf16> to vector<24x128xbf16>
    %c0_98 = arith.constant 0 : index
    %c0_99 = arith.constant 0 : index
    %c8_100 = arith.constant 8 : index
    %c0_101 = arith.constant 0 : index
    %69 = vector.load %arg3[%c0_98, %c0_99, %c8_100, %c0_101] : memref<1x1x42x128xbf16, #tpu.memory_space<vmem>>, vector<1x1x24x128xbf16>
    %70 = vector.shape_cast %69 : vector<1x1x24x128xbf16> to vector<24x128xbf16>
    %c0_102 = arith.constant 0 : index
    %c0_103 = arith.constant 0 : index
    %c8_104 = arith.constant 8 : index
    %c0_105 = arith.constant 0 : index
    %71 = vector.load %arg4[%c0_102, %c0_103, %c8_104, %c0_105] : memref<1x1x42x128xbf16, #tpu.memory_space<vmem>>, vector<1x1x24x128xbf16>
    %72 = vector.shape_cast %71 : vector<1x1x24x128xbf16> to vector<24x128xbf16>
    %73 = tpu.concatenate %68, %70, %72 in 1 : vector<24x128xbf16>, vector<24x128xbf16>, vector<24x128xbf16> -> vector<24x384xbf16>
    %c0_106 = arith.constant 0 : index
    %c0_107 = arith.constant 0 : index
    %74 = vector.load %arg7[%c0_106, %c0_107] : memref<24x128xf32, #tpu.memory_space<vmem>>, vector<24x128xf32>
    %c5 = arith.constant 5 : index
    %c0_108 = arith.constant 0 : index
    %c0_109 = arith.constant 0 : index
    %75 = vector.load %arg5[%c5, %c0_108, %c0_109] : memref<9x384x128xbf16, #tpu.memory_space<vmem>>, vector<1x384x128xbf16>
    %76 = vector.shape_cast %75 : vector<1x384x128xbf16> to vector<384x128xbf16>
    %cst_110 = arith.constant dense<0.000000e+00> : vector<24x128xf32>
    %77 = tpu.matmul %73, %76, %cst_110 {dimension_numbers = #tpu.dot_dimension_numbers<[1], [0], [0], [1], [0, 0, 1, 1], [], []>} : vector<24x384xbf16>, vector<384x128xbf16>, vector<24x128xf32> -> vector<24x128xf32>
    %78 = arith.addf %74, %77 : vector<24x128xf32>
    %c0_111 = arith.constant 0 : index
    %c0_112 = arith.constant 0 : index
    %79 = vector.load %arg7[%c0_111, %c0_112] : memref<24x128xf32, #tpu.memory_space<vmem>>, vector<24x128xf32>
    tpu.vector_store %arg7[%c0_111, %c0_112], %78 {strides = array<i32>} : memref<24x128xf32, #tpu.memory_space<vmem>>, vector<24x128xf32>,
    %c0_113 = arith.constant 0 : index
    %c0_114 = arith.constant 0 : index
    %c12 = arith.constant 12 : index
    %c0_115 = arith.constant 0 : index
    %80 = vector.load %arg2[%c0_113, %c0_114, %c12, %c0_115] : memref<1x1x42x128xbf16, #tpu.memory_space<vmem>>, vector<1x1x24x128xbf16>
    %81 = vector.shape_cast %80 : vector<1x1x24x128xbf16> to vector<24x128xbf16>
    %c0_116 = arith.constant 0 : index
    %c0_117 = arith.constant 0 : index
    %c12_118 = arith.constant 12 : index
    %c0_119 = arith.constant 0 : index
    %82 = vector.load %arg3[%c0_116, %c0_117, %c12_118, %c0_119] : memref<1x1x42x128xbf16, #tpu.memory_space<vmem>>, vector<1x1x24x128xbf16>
    %83 = vector.shape_cast %82 : vector<1x1x24x128xbf16> to vector<24x128xbf16>
    %c0_120 = arith.constant 0 : index
    %c0_121 = arith.constant 0 : index
    %c12_122 = arith.constant 12 : index
    %c0_123 = arith.constant 0 : index
    %84 = vector.load %arg4[%c0_120, %c0_121, %c12_122, %c0_123] : memref<1x1x42x128xbf16, #tpu.memory_space<vmem>>, vector<1x1x24x128xbf16>
    %85 = vector.shape_cast %84 : vector<1x1x24x128xbf16> to vector<24x128xbf16>
    %86 = tpu.concatenate %81, %83, %85 in 1 : vector<24x128xbf16>, vector<24x128xbf16>, vector<24x128xbf16> -> vector<24x384xbf16>
    %c0_124 = arith.constant 0 : index
    %c0_125 = arith.constant 0 : index
    %87 = vector.load %arg7[%c0_124, %c0_125] : memref<24x128xf32, #tpu.memory_space<vmem>>, vector<24x128xf32>
    %c6_126 = arith.constant 6 : index
    %c0_127 = arith.constant 0 : index
    %c0_128 = arith.constant 0 : index
    %88 = vector.load %arg5[%c6_126, %c0_127, %c0_128] : memref<9x384x128xbf16, #tpu.memory_space<vmem>>, vector<1x384x128xbf16>
    %89 = vector.shape_cast %88 : vector<1x384x128xbf16> to vector<384x128xbf16>
    %cst_129 = arith.constant dense<0.000000e+00> : vector<24x128xf32>
    %90 = tpu.matmul %86, %89, %cst_129 {dimension_numbers = #tpu.dot_dimension_numbers<[1], [0], [0], [1], [0, 0, 1, 1], [], []>} : vector<24x384xbf16>, vector<384x128xbf16>, vector<24x128xf32> -> vector<24x128xf32>
    %91 = arith.addf %87, %90 : vector<24x128xf32>
    %c0_130 = arith.constant 0 : index
    %c0_131 = arith.constant 0 : index
    %92 = vector.load %arg7[%c0_130, %c0_131] : memref<24x128xf32, #tpu.memory_space<vmem>>, vector<24x128xf32>
    tpu.vector_store %arg7[%c0_130, %c0_131], %91 {strides = array<i32>} : memref<24x128xf32, #tpu.memory_space<vmem>>, vector<24x128xf32>,
    %c0_132 = arith.constant 0 : index
    %c0_133 = arith.constant 0 : index
    %c13 = arith.constant 13 : index
    %c0_134 = arith.constant 0 : index
    %93 = vector.load %arg2[%c0_132, %c0_133, %c13, %c0_134] : memref<1x1x42x128xbf16, #tpu.memory_space<vmem>>, vector<1x1x24x128xbf16>
    %94 = vector.shape_cast %93 : vector<1x1x24x128xbf16> to vector<24x128xbf16>
    %c0_135 = arith.constant 0 : index
    %c0_136 = arith.constant 0 : index
    %c13_137 = arith.constant 13 : index
    %c0_138 = arith.constant 0 : index
    %95 = vector.load %arg3[%c0_135, %c0_136, %c13_137, %c0_138] : memref<1x1x42x128xbf16, #tpu.memory_space<vmem>>, vector<1x1x24x128xbf16>
    %96 = vector.shape_cast %95 : vector<1x1x24x128xbf16> to vector<24x128xbf16>
    %c0_139 = arith.constant 0 : index
    %c0_140 = arith.constant 0 : index
    %c13_141 = arith.constant 13 : index
    %c0_142 = arith.constant 0 : index
    %97 = vector.load %arg4[%c0_139, %c0_140, %c13_141, %c0_142] : memref<1x1x42x128xbf16, #tpu.memory_space<vmem>>, vector<1x1x24x128xbf16>
    %98 = vector.shape_cast %97 : vector<1x1x24x128xbf16> to vector<24x128xbf16>
    %99 = tpu.concatenate %94, %96, %98 in 1 : vector<24x128xbf16>, vector<24x128xbf16>, vector<24x128xbf16> -> vector<24x384xbf16>
    %c0_143 = arith.constant 0 : index
    %c0_144 = arith.constant 0 : index
    %100 = vector.load %arg7[%c0_143, %c0_144] : memref<24x128xf32, #tpu.memory_space<vmem>>, vector<24x128xf32>
    %c7_145 = arith.constant 7 : index
    %c0_146 = arith.constant 0 : index
    %c0_147 = arith.constant 0 : index
    %101 = vector.load %arg5[%c7_145, %c0_146, %c0_147] : memref<9x384x128xbf16, #tpu.memory_space<vmem>>, vector<1x384x128xbf16>
    %102 = vector.shape_cast %101 : vector<1x384x128xbf16> to vector<384x128xbf16>
    %cst_148 = arith.constant dense<0.000000e+00> : vector<24x128xf32>
    %103 = tpu.matmul %99, %102, %cst_148 {dimension_numbers = #tpu.dot_dimension_numbers<[1], [0], [0], [1], [0, 0, 1, 1], [], []>} : vector<24x384xbf16>, vector<384x128xbf16>, vector<24x128xf32> -> vector<24x128xf32>
    %104 = arith.addf %100, %103 : vector<24x128xf32>
    %c0_149 = arith.constant 0 : index
    %c0_150 = arith.constant 0 : index
    %105 = vector.load %arg7[%c0_149, %c0_150] : memref<24x128xf32, #tpu.memory_space<vmem>>, vector<24x128xf32>
    tpu.vector_store %arg7[%c0_149, %c0_150], %104 {strides = array<i32>} : memref<24x128xf32, #tpu.memory_space<vmem>>, vector<24x128xf32>,
    %c0_151 = arith.constant 0 : index
    %c0_152 = arith.constant 0 : index
    %c14 = arith.constant 14 : index
    %c0_153 = arith.constant 0 : index
    %106 = vector.load %arg2[%c0_151, %c0_152, %c14, %c0_153] : memref<1x1x42x128xbf16, #tpu.memory_space<vmem>>, vector<1x1x24x128xbf16>
    %107 = vector.shape_cast %106 : vector<1x1x24x128xbf16> to vector<24x128xbf16>
    %c0_154 = arith.constant 0 : index
    %c0_155 = arith.constant 0 : index
    %c14_156 = arith.constant 14 : index
    %c0_157 = arith.constant 0 : index
    %108 = vector.load %arg3[%c0_154, %c0_155, %c14_156, %c0_157] : memref<1x1x42x128xbf16, #tpu.memory_space<vmem>>, vector<1x1x24x128xbf16>
    %109 = vector.shape_cast %108 : vector<1x1x24x128xbf16> to vector<24x128xbf16>
    %c0_158 = arith.constant 0 : index
    %c0_159 = arith.constant 0 : index
    %c14_160 = arith.constant 14 : index
    %c0_161 = arith.constant 0 : index
    %110 = vector.load %arg4[%c0_158, %c0_159, %c14_160, %c0_161] : memref<1x1x42x128xbf16, #tpu.memory_space<vmem>>, vector<1x1x24x128xbf16>
    %111 = vector.shape_cast %110 : vector<1x1x24x128xbf16> to vector<24x128xbf16>
    %112 = tpu.concatenate %107, %109, %111 in 1 : vector<24x128xbf16>, vector<24x128xbf16>, vector<24x128xbf16> -> vector<24x384xbf16>
    %c0_162 = arith.constant 0 : index
    %c0_163 = arith.constant 0 : index
    %113 = vector.load %arg7[%c0_162, %c0_163] : memref<24x128xf32, #tpu.memory_space<vmem>>, vector<24x128xf32>
    %c8_164 = arith.constant 8 : index
    %c0_165 = arith.constant 0 : index
    %c0_166 = arith.constant 0 : index
    %114 = vector.load %arg5[%c8_164, %c0_165, %c0_166] : memref<9x384x128xbf16, #tpu.memory_space<vmem>>, vector<1x384x128xbf16>
    %115 = vector.shape_cast %114 : vector<1x384x128xbf16> to vector<384x128xbf16>
    %cst_167 = arith.constant dense<0.000000e+00> : vector<24x128xf32>
    %116 = tpu.matmul %112, %115, %cst_167 {dimension_numbers = #tpu.dot_dimension_numbers<[1], [0], [0], [1], [0, 0, 1, 1], [], []>} : vector<24x384xbf16>, vector<384x128xbf16>, vector<24x128xf32> -> vector<24x128xf32>
    %117 = arith.addf %113, %116 : vector<24x128xf32>
    %c0_168 = arith.constant 0 : index
    %c0_169 = arith.constant 0 : index
    %118 = vector.load %arg7[%c0_168, %c0_169] : memref<24x128xf32, #tpu.memory_space<vmem>>, vector<24x128xf32>
    tpu.vector_store %arg7[%c0_168, %c0_169], %117 {strides = array<i32>} : memref<24x128xf32, #tpu.memory_space<vmem>>, vector<24x128xf32>,
    %c0_170 = arith.constant 0 : index
    %c0_171 = arith.constant 0 : index
    %119 = vector.load %arg7[%c0_170, %c0_171] : memref<24x128xf32, #tpu.memory_space<vmem>>, vector<24x128xf32>
    %cst_172 = arith.constant 0.000000e+00 : f32
    %120 = vector.broadcast %cst_172 : f32 to vector<24x128xf32>
    %121 = arith.maximumf %119, %120 : vector<24x128xf32>
    %c0_173 = arith.constant 0 : index
    %c0_174 = arith.constant 0 : index
    %c0_175 = arith.constant 0 : index
    %c0_176 = arith.constant 0 : index
    %122 = vector.load %arg6[%c0_173, %c0_174, %c0_175, %c0_176] : memref<1x1x24x128xf32, #tpu.memory_space<vmem>>, vector<1x1x24x128xf32>
    %123 = vector.shape_cast %122 : vector<1x1x24x128xf32> to vector<24x128xf32>
    %124 = vector.shape_cast %121 : vector<24x128xf32> to vector<1x1x24x128xf32>
    tpu.vector_store %arg6[%c0_173, %c0_174, %c0_175, %c0_176], %124 {strides = array<i32>} : memref<1x1x24x128xf32, #tpu.memory_space<vmem>>, vector<1x1x24x128xf32>,
    return
  }
  func.func @transform_0(%arg0: i32, %arg1: i32) -> (i32, i32, i32, i32) {
    %c0_i32 = arith.constant 0 : i32
    %0 = arith.addi %arg1, %c0_i32 : i32
    %c0_i32_0 = arith.constant 0 : i32
    %c0_i32_1 = arith.constant 0 : i32
    %c0_i32_2 = arith.constant 0 : i32
    return %arg0, %0, %c0_i32_0, %c0_i32_1 : i32, i32, i32, i32
  }
  func.func @transform_1(%arg0: i32, %arg1: i32) -> (i32, i32, i32, i32) {
    %c1_i32 = arith.constant 1 : i32
    %0 = arith.addi %arg1, %c1_i32 : i32
    %c0_i32 = arith.constant 0 : i32
    %c0_i32_0 = arith.constant 0 : i32
    %c0_i32_1 = arith.constant 0 : i32
    return %arg0, %0, %c0_i32, %c0_i32_0 : i32, i32, i32, i32
  }
  func.func @transform_2(%arg0: i32, %arg1: i32) -> (i32, i32, i32, i32) {
    %c2_i32 = arith.constant 2 : i32
    %0 = arith.addi %arg1, %c2_i32 : i32
    %c0_i32 = arith.constant 0 : i32
    %c0_i32_0 = arith.constant 0 : i32
    %c0_i32_1 = arith.constant 0 : i32
    return %arg0, %0, %c0_i32, %c0_i32_0 : i32, i32, i32, i32
  }
  func.func @transform_3(%arg0: i32, %arg1: i32) -> (i32, i32, i32) {
    %c0_i32 = arith.constant 0 : i32
    %c0_i32_0 = arith.constant 0 : i32
    %c0_i32_1 = arith.constant 0 : i32
    %c0_i32_2 = arith.constant 0 : i32
    return %c0_i32, %c0_i32_0, %c0_i32_1 : i32, i32, i32
  }
  func.func @transform_4(%arg0: i32, %arg1: i32) -> (i32, i32, i32, i32) {
    %c0_i32 = arith.constant 0 : i32
    %c0_i32_0 = arith.constant 0 : i32
    %c0_i32_1 = arith.constant 0 : i32
    return %arg0, %arg1, %c0_i32, %c0_i32_0 : i32, i32, i32, i32
  }
}

</mosaic_0001>

<llo_original>
// kernel: encoder_forward.3
$region0: #{encoder_forward.3}
  #allocation0 [shape = 'u32[]', space=smem, size = 0x4, offset = 0x4, fixed_abs, tag = 'smem constant byte address 0x4 - core index']
  #allocation1 [shape = 'u32[144,128]{1,0:T(1,128)}', space=vmem, size = 0x12000, scoped, tag = 'internal scratch']
  %s0 = inlined_call_operand.vmem [shape: bf16[128,128], index: 0, kind: input, shape index: {}]
  %s1 = inlined_call_operand.vmem [shape: bf16[128,128], index: 1, kind: input, shape index: {}]
  %s2 = inlined_call_operand.vmem [shape: f32[1,128], index: 2, kind: input, shape index: {}]
  %s3 = inlined_call_operand.vmem [shape: f32[1,128], index: 3, kind: input, shape index: {}]
  %s4 = inlined_call_operand.vmem [shape: bf16[128,128], index: 4, kind: output, shape index: {}]
  %s5 = sld [smem:[#allocation0]]
  $region49: #{encoder_forward.3} parent=0
    _
  %s7 = ssub.s32 1, %s5
  %s8 = scalar_select 0, %s7, %s5
  loop: start=0, step=1, limit=4
  $region2: #{encoder_forward.3} parent=0 // loop_pre_header
    _
  $region3: #{encoder_forward.3} parent=0 // loop_header
    %s10 = sphi 0, %s14
    %p11 = scmp.ge.s32.totalorder %s10, 4
    %s20 = sphi 0, %s22
    %s23 = sphi 0, %s20
    %s24 = sphi 0, %s23
    %s40 = sphi 0, %s24
    %s44 = sphi 0, %s44
    %s46 = sphi 0, %s44
    %s47 = sphi 0, %s46
    %s61 = sphi 0, %s47
    %s65 = sphi 0, %s65
    %s67 = sphi 0, %s65
    %s68 = sphi 0, %s67
    %s82 = sphi 0, %s68
    %s86 = sphi 0, %s86
    %s88 = sphi 0, %s86
    %s89 = sphi 0, %s88
    %s103 = sphi 0, %s89
    %s109 = sphi 0, %s111
    %s112 = sphi 0, %s109
    %s113 = sphi 0, %s112
    %s129 = sphi 0, %s113
  $region4: #{encoder_forward.3} parent=0 // loop_header_branch
    %13 = sbr.rel (%p11) target = $region8
  $region5: #{encoder_forward.3} parent=0 // loop_body
    %s15 = ssub.s32 %s10, 1
    %s16 = ssub.s32 %s10, 2
    %s17 = sadd.s32 %s10, 1
    %s18 = ssub.s32 %s10, %s17
    %p19 = scmp.eq.s32.totalorder %s18, 0
    %s21 = sadd.s32 %s20, 1
    %s22 = scalar_select %p19, %s20, %s21
    %p25 = pneg %p19
    %p26 = scmp.eq.s32.totalorder %s10, 1
    %p27 = por %p25, %p26
    %p28 = scmp.ne.s32.totalorder %s20, %s23
    %p29 = scmp.eq.s32.totalorder %s10, 0
    %p30 = por %p28, %p29
    %p31 = scmp.ne.s32.totalorder %s20, %s23
    %p32 = scmp.eq.s32.totalorder %s15, 1
    %p33 = por %p31, %p32
    %p34 = scmp.ne.s32.totalorder %s23, %s24
    %p35 = scmp.eq.s32.totalorder %s15, 0
    %p36 = por %p34, %p35
    %p37 = scmp.ne.s32.totalorder %s23, %s24
    %p38 = scmp.eq.s32.totalorder %s16, 1
    %p39 = por %p37, %p38
    %p41 = scmp.ne.s32.totalorder %s24, %s40
    %p42 = scmp.eq.s32.totalorder %s16, 0
    %p43 = por %p41, %p42
    %s45 = sadd.s32 %s44, 1
    %p48 = scmp.eq.s32.totalorder %s10, 1
    %p49 = scmp.ne.s32.totalorder %s44, %s46
    %p50 = scmp.eq.s32.totalorder %s10, 0
    %p51 = por %p49, %p50
    %p52 = scmp.ne.s32.totalorder %s44, %s46
    %p53 = scmp.eq.s32.totalorder %s15, 1
    %p54 = por %p52, %p53
    %p55 = scmp.ne.s32.totalorder %s46, %s47
    %p56 = scmp.eq.s32.totalorder %s15, 0
    %p57 = por %p55, %p56
    %p58 = scmp.ne.s32.totalorder %s46, %s47
    %p59 = scmp.eq.s32.totalorder %s16, 1
    %p60 = por %p58, %p59
    %p62 = scmp.ne.s32.totalorder %s47, %s61
    %p63 = scmp.eq.s32.totalorder %s16, 0
    %p64 = por %p62, %p63
    %s66 = sadd.s32 %s65, 1
    %p69 = scmp.eq.s32.totalorder %s10, 1
    %p70 = scmp.ne.s32.totalorder %s65, %s67
    %p71 = scmp.eq.s32.totalorder %s10, 0
    %p72 = por %p70, %p71
    %p73 = scmp.ne.s32.totalorder %s65, %s67
    %p74 = scmp.eq.s32.totalorder %s15, 1
    %p75 = por %p73, %p74
    %p76 = scmp.ne.s32.totalorder %s67, %s68
    %p77 = scmp.eq.s32.totalorder %s15, 0
    %p78 = por %p76, %p77
    %p79 = scmp.ne.s32.totalorder %s67, %s68
    %p80 = scmp.eq.s32.totalorder %s16, 1
    %p81 = por %p79, %p80
    %p83 = scmp.ne.s32.totalorder %s68, %s82
    %p84 = scmp.eq.s32.totalorder %s16, 0
    %p85 = por %p83, %p84
    %s87 = sadd.s32 %s86, 1
    %p90 = scmp.eq.s32.totalorder %s10, 1
    %p91 = scmp.ne.s32.totalorder %s86, %s88
    %p92 = scmp.eq.s32.totalorder %s10, 0
    %p93 = por %p91, %p92
    %p94 = scmp.ne.s32.totalorder %s86, %s88
    %p95 = scmp.eq.s32.totalorder %s15, 1
    %p96 = por %p94, %p95
    %p97 = scmp.ne.s32.totalorder %s88, %s89
    %p98 = scmp.eq.s32.totalorder %s15, 0
    %p99 = por %p97, %p98
    %p100 = scmp.ne.s32.totalorder %s88, %s89
    %p101 = scmp.eq.s32.totalorder %s16, 1
    %p102 = por %p100, %p101
    %p104 = scmp.ne.s32.totalorder %s89, %s103
    %p105 = scmp.eq.s32.totalorder %s16, 0
    %p106 = por %p104, %p105
    %s107 = ssub.s32 %s10, %s17
    %p108 = scmp.eq.s32.totalorder %s107, 0
    %s110 = sadd.s32 %s109, 1
    %s111 = scalar_select %p108, %s109, %s110
    %p114 = pneg %p108
    %p115 = scmp.eq.s32.totalorder %s10, 1
    %p116 = por %p114, %p115
    %p117 = scmp.ne.s32.totalorder %s109, %s112
    %p118 = scmp.eq.s32.totalorder %s10, 0
    %p119 = por %p117, %p118
    %p120 = scmp.ne.s32.totalorder %s109, %s112
    %p121 = scmp.eq.s32.totalorder %s15, 1
    %p122 = por %p120, %p121
    %p123 = scmp.ne.s32.totalorder %s112, %s113
    %p124 = scmp.eq.s32.totalorder %s15, 0
    %p125 = por %p123, %p124
    %p126 = scmp.ne.s32.totalorder %s112, %s113
    %p127 = scmp.eq.s32.totalorder %s16, 1
    %p128 = por %p126, %p127
    %p130 = scmp.ne.s32.totalorder %s113, %s129
    %p131 = scmp.eq.s32.totalorder %s16, 0
    %p132 = por %p130, %p131
    %p133 = scmp.le.s32.totalorder 1, %s10
    %p134 = scmp.lt.s32.totalorder %s10, 3
    %p135 = pnand %p133, %p134
    %p136 = pneg %p135
    // Predicated region
    $region9: #{encoder_forward.3} parent=5 // pred_check
      _
    $region10: #{encoder_forward.3} parent=5 // pred_check_branch
      %138 = sbr.rel (%p135) target = $region12
    $region11: #{encoder_forward.3} parent=5 // pred_region
      %s139 = ssub.s32 %s10, 1
      // Predicated region
      $region13: #{encoder_forward.3} parent=11 // pred_check
        %p140 = pneg %p57
      $region14: #{encoder_forward.3} parent=11 // pred_check_branch
        %142 = sbr.rel (%p140) target = $region16
      $region15: #{encoder_forward.3} parent=11 // pred_region
        _
      $region16: #{encoder_forward.3} parent=11 // pred_fallthru
        _
      // Predicated region
      $region17: #{encoder_forward.3} parent=11 // pred_check
        %p143 = pneg %p78
      $region18: #{encoder_forward.3} parent=11 // pred_check_branch
        %145 = sbr.rel (%p143) target = $region20
      $region19: #{encoder_forward.3} parent=11 // pred_region
        _
      $region20: #{encoder_forward.3} parent=11 // pred_fallthru
        _
      // Predicated region
      $region21: #{encoder_forward.3} parent=11 // pred_check
        %p146 = pneg %p99
      $region22: #{encoder_forward.3} parent=11 // pred_check_branch
        %148 = sbr.rel (%p146) target = $region24
      $region23: #{encoder_forward.3} parent=11 // pred_region
        _
      $region24: #{encoder_forward.3} parent=11 // pred_fallthru
        _
    $region12: #{encoder_forward.3} parent=5 // pred_fallthru
      _
    %p149 = scmp.lt.s32.totalorder %s10, 2
    // Predicated region
    $region25: #{encoder_forward.3} parent=5 // pred_check
      %p150 = pneg %p149
    $region26: #{encoder_forward.3} parent=5 // pred_check_branch
      %152 = sbr.rel (%p150) target = $region28
    $region27: #{encoder_forward.3} parent=5 // pred_region
      // Predicated region
      $region29: #{encoder_forward.3} parent=27 // pred_check
        %p153 = pneg %p30
      $region30: #{encoder_forward.3} parent=27 // pred_check_branch
        %155 = sbr.rel (%p153) target = $region32
      $region31: #{encoder_forward.3} parent=27 // pred_region
        %s156 = smul.u32 8, %s10
        %p157 = scmp.lt.s32.totalorder %s156, 15
        %s158 = scalar_select %p157, %s156, 15
        %s159 = smul.addr %s158, 4
        %s160 = scalar_lea.vmem %s0, %s159
        %s161 = smul.u32 8, %s10
      $region32: #{encoder_forward.3} parent=27 // pred_fallthru
        _
    $region28: #{encoder_forward.3} parent=5 // pred_fallthru
      _
    %p162 = scmp.le.s32.totalorder 1, %s10
    %p163 = scmp.lt.s32.totalorder %s10, 3
    %p164 = pnand %p162, %p163
    %p165 = pneg %p164
    // Predicated region
    $region33: #{encoder_forward.3} parent=5 // pred_check
      _
    $region34: #{encoder_forward.3} parent=5 // pred_check_branch
      %167 = sbr.rel (%p164) target = $region36
    $region35: #{encoder_forward.3} parent=5 // pred_region
      %s168 = ssub.s32 %s10, 1
      %s169 = smul.u32 8, %s15
      %p170 = scmp.lt.s32.totalorder %s169, 15
      %s171 = scalar_select %p170, %s169, 15
      %s172 = smul.addr %s171, 4
      %s173 = scalar_lea.vmem %s0, %s172
      %p174 = pneg %p36
      %p175 = pneg %p33
      %p176 = pneg %p57
      %p177 = pneg %p54
      %p178 = pneg %p78
      %p179 = pneg %p75
      %p180 = pneg %p99
      %p181 = pneg %p96
      %p182 = pneg %p125
      %p183 = pneg %p122
      %s184 = smul.u32 8, %s15
      %p185 = scmp.lt.s32.totalorder %s184, 15
      %s186 = scalar_select %p185, %s184, 15
      %s187 = smul.addr %s186, 4
      %s188 = scalar_lea.vmem %s4, %s187
      %s189 = smul.u32 8, %s15
      %p190 = scmp.lt.s32.totalorder %s189, 15
      %s191 = scalar_select %p190, %s189, 15
      %s192 = smul.addr %s191, 4
      %s193 = scalar_lea.vmem %s0, %s192
      %s194 = smul.u32 8, %s15
      %s195 = smul.u32 8, %s15
      %p196 = scmp.lt.s32.totalorder %s195, 15
      %s197 = scalar_select %p196, %s195, 15
      %s198 = smul.addr %s197, 4
      %s199 = scalar_lea.vmem %s4, %s198
      %s200 = smul.u32 8, %s15
      %v202 = vld [vmem:[%s193] sm:$0xf]
      %v203 = vld [vmem:[%s193 + $0x4] sm:$0xf]
      %v204 = vld [vmem:[%s193 + $0x8] sm:$0xf]
      %v205 = vld [vmem:[%s193 + $0xc] sm:$0xf]
      %v206 = vld [vmem:[%s193 + $0x10] sm:$0xf]
      %v207 = vld [vmem:[%s193 + $0x14] sm:$0xf]
      %v208 = vld [vmem:[%s193 + $0x18] sm:$0xf]
      %v209 = vld [vmem:[%s193 + $0x1c] sm:$0xf]
      %v210 = vld [vmem:[%s1] sm:$0xf]
      %v211 = vld [vmem:[%s1 + $0x4] sm:$0xf]
      %v212 = vld [vmem:[%s1 + $0x8] sm:$0xf]
      %v213 = vld [vmem:[%s1 + $0xc] sm:$0xf]
      %v214 = vld [vmem:[%s1 + $0x10] sm:$0xf]
      %v215 = vld [vmem:[%s1 + $0x14] sm:$0xf]
      %v216 = vld [vmem:[%s1 + $0x18] sm:$0xf]
      %v217 = vld [vmem:[%s1 + $0x1c] sm:$0xf]
      %v218 = vld [vmem:[%s1 + $0x20] sm:$0xf]
      %v219 = vld [vmem:[%s1 + $0x24] sm:$0xf]
      %v220 = vld [vmem:[%s1 + $0x28] sm:$0xf]
      %v221 = vld [vmem:[%s1 + $0x2c] sm:$0xf]
      %v222 = vld [vmem:[%s1 + $0x30] sm:$0xf]
      %v223 = vld [vmem:[%s1 + $0x34] sm:$0xf]
      %v224 = vld [vmem:[%s1 + $0x38] sm:$0xf]
      %v225 = vld [vmem:[%s1 + $0x3c] sm:$0xf]
      %v234 = vunpack.c.l.b16 %v202
      %v235 = vunpack.c.l.b16 %v203
      %v236 = vunpack.c.l.b16 %v204
      %v237 = vunpack.c.l.b16 %v205
      %v238 = vunpack.c.l.b16 %v206
      %v239 = vunpack.c.l.b16 %v207
      %v240 = vunpack.c.l.b16 %v208
      %v241 = vunpack.c.l.b16 %v209
      %v242 = vpack.c.b16 %v235, %v234
      %v243 = vpack.c.b16 %v237, %v236
      %v244 = vpack.c.b16 %v239, %v238
      %v245 = vpack.c.b16 %v241, %v240
      %v266 = vunpack.c.l.b16 %v210
      %v267 = vunpack.c.l.b16 %v211
      %v268 = vunpack.c.l.b16 %v212
      %v269 = vunpack.c.l.b16 %v213
      %v270 = vunpack.c.l.b16 %v214
      %v271 = vunpack.c.l.b16 %v215
      %v272 = vunpack.c.l.b16 %v216
      %v273 = vunpack.c.l.b16 %v217
      %v274 = vunpack.c.l.b16 %v218
      %v275 = vunpack.c.l.b16 %v219
      %v276 = vunpack.c.l.b16 %v220
      %v277 = vunpack.c.l.b16 %v221
      %v278 = vunpack.c.l.b16 %v222
      %v279 = vunpack.c.l.b16 %v223
      %v280 = vunpack.c.l.b16 %v224
      %v281 = vunpack.c.l.b16 %v225
      %v282 = vpack.c.b16 %v267, %v266
      %v283 = vpack.c.b16 %v269, %v268
      %v284 = vpack.c.b16 %v271, %v270
      %v285 = vpack.c.b16 %v273, %v272
      %v286 = vpack.c.b16 %v275, %v274
      %v287 = vpack.c.b16 %v277, %v276
      %v288 = vpack.c.b16 %v279, %v278
      %v289 = vpack.c.b16 %v281, %v280
      %298 = vmatprep.subr.bf16.mxu0 0
      %299 = vmatpush1.bf16.msra.mxu0 %v282
      %300 = vmatprep.subr.bf16.mxu0 0
      %301 = vmatpush1.bf16.msra.mxu0 %v283
      %302 = vmatprep.subr.bf16.mxu0 0
      %303 = vmatpush1.bf16.msra.mxu0 %v284
      %304 = vmatprep.subr.bf16.mxu0 0
      %305 = vmatpush1.bf16.msra.mxu0 %v285
      %306 = vmatprep.subr.bf16.mxu0 0
      %307 = vmatpush1.bf16.msra.mxu0 %v286
      %308 = vmatprep.subr.bf16.mxu0 0
      %309 = vmatpush1.bf16.msra.mxu0 %v287
      %310 = vmatprep.subr.bf16.mxu0 0
      %311 = vmatpush1.bf16.msra.mxu0 %v288
      %312 = vmatprep.subr.bf16.mxu0 0
      %313 = vmatpush1.bf16.msra.mxu0 %v289
      %314 = vmatprep.subr.bf16.mxu0 0
      %315 = vmatpush1.bf16.msra.mxu0 0
      %316 = vmatprep.subr.bf16.mxu0 0
      %317 = vmatpush1.bf16.msra.mxu0 0
      %318 = vmatprep.subr.bf16.mxu0 0
      %319 = vmatpush1.bf16.msra.mxu0 0
      %320 = vmatprep.subr.bf16.mxu0 0
      %321 = vmatpush1.bf16.msra.mxu0 0
      %322 = vmatprep.subr.bf16.mxu0 0
      %323 = vmatpush1.bf16.msra.mxu0 0
      %324 = vmatprep.subr.bf16.mxu0 0
      %325 = vmatpush1.bf16.msra.mxu0 0
      %326 = vmatprep.subr.bf16.mxu0 0
      %327 = vmatpush1.bf16.msra.mxu0 0
      %328 = vmatprep.subr.bf16.mxu0 0
      %329 = vmatpush1.bf16.msra.mxu0 0
      %330 = vmatprep.mubr.bf16.mxu0 0
      %331 = vmatmul.mubr.bf16.gmra.mrb[0].mxu0 %v242
      %v332 = vpop.f32.mrb[0].mxu0
      %v333 = vadd.f32 0.0, %v332
      %v334 = vpop.f32.mrb[0].mxu0
      %v335 = vpop.f32.mrb[0].mxu0
      %v336 = vadd.f32 0.0, %v335
      %v337 = vpop.f32.mrb[0].mxu0
      %338 = vmatprep.mubr.bf16.mxu0 0
      %339 = vmatmul.mubr.bf16.gmra.mrb[0].mxu0 %v243
      %v340 = vpop.f32.mrb[0].mxu0
      %v341 = vadd.f32 0.0, %v340
      %v342 = vpop.f32.mrb[0].mxu0
      %v343 = vpop.f32.mrb[0].mxu0
      %v344 = vadd.f32 0.0, %v343
      %v345 = vpop.f32.mrb[0].mxu0
      %346 = vmatprep.mubr.bf16.mxu0 0
      %347 = vmatmul.mubr.bf16.gmra.mrb[0].mxu0 %v244
      %v348 = vpop.f32.mrb[0].mxu0
      %v349 = vadd.f32 0.0, %v348
      %v350 = vpop.f32.mrb[0].mxu0
      %v351 = vpop.f32.mrb[0].mxu0
      %v352 = vadd.f32 0.0, %v351
      %v353 = vpop.f32.mrb[0].mxu0
      %354 = vmatprep.mubr.bf16.mxu0 0
      %355 = vmatmul.mubr.bf16.gmra.mrb[0].mxu0 %v245
      %v356 = vpop.f32.mrb[0].mxu0
      %v357 = vadd.f32 0.0, %v356
      %v358 = vpop.f32.mrb[0].mxu0
      %v359 = vpop.f32.mrb[0].mxu0
      %v360 = vadd.f32 0.0, %v359
      %v361 = vpop.f32.mrb[0].mxu0
      %362 = vdwg.mxu0
      %v363 = vld [vmem:[%s2] sm:$0x1]
      %v365 = vlaneseq
      %v366 = vshrl.u32 %v365, 7
      %v367 = vsub.s32 0, %v366
      %v368 = vrot.slane %v363, %v367
      %v370 = vmul.f32 %v333, %v368
      %v371 = vmul.f32 %v336, %v368
      %v372 = vmul.f32 %v341, %v368
      %v373 = vmul.f32 %v344, %v368
      %v374 = vmul.f32 %v349, %v368
      %v375 = vmul.f32 %v352, %v368
      %v376 = vmul.f32 %v357, %v368
      %v377 = vmul.f32 %v360, %v368
      %v378 = vld [vmem:[%s3] sm:$0x1]
      %v380 = vlaneseq
      %v381 = vshrl.u32 %v380, 7
      %v382 = vsub.s32 0, %v381
      %v383 = vrot.slane %v378, %v382
      %v385 = vadd.f32 %v370, %v383
      %v386 = vadd.f32 %v371, %v383
      %v387 = vadd.f32 %v372, %v383
      %v388 = vadd.f32 %v373, %v383
      %v389 = vadd.f32 %v374, %v383
      %v390 = vadd.f32 %v375, %v383
      %v391 = vadd.f32 %v376, %v383
      %v392 = vadd.f32 %v377, %v383
      %v393 = vpack.c.bf16 %v386, %v385
      %v394 = vpack.c.bf16 %v388, %v387
      %v395 = vpack.c.bf16 %v390, %v389
      %v396 = vpack.c.bf16 %v392, %v391
      %v401 = vunpack.c.l.b16 %v393
      %v402 = vunpack.c.h.b16 %v393
      %v403 = vunpack.c.l.b16 %v394
      %v404 = vunpack.c.h.b16 %v394
      %v405 = vunpack.c.l.b16 %v395
      %v406 = vunpack.c.h.b16 %v395
      %v407 = vunpack.c.l.b16 %v396
      %v408 = vunpack.c.h.b16 %v396
      %v409 = vpack.c.b16 %v401, %v401
      %v410 = vpack.c.b16 %v402, %v402
      %v411 = vpack.c.b16 %v403, %v403
      %v412 = vpack.c.b16 %v404, %v404
      %v413 = vpack.c.b16 %v405, %v405
      %v414 = vpack.c.b16 %v406, %v406
      %v415 = vpack.c.b16 %v407, %v407
      %v416 = vpack.c.b16 %v408, %v408
      %425 = vst [vmem:[%s199] sm:$0xf] %v409
      %426 = vst [vmem:[%s199 + $0x4] sm:$0xf] %v410
      %427 = vst [vmem:[%s199 + $0x8] sm:$0xf] %v411
      %428 = vst [vmem:[%s199 + $0xc] sm:$0xf] %v412
      %429 = vst [vmem:[%s199 + $0x10] sm:$0xf] %v413
      %430 = vst [vmem:[%s199 + $0x14] sm:$0xf] %v414
      %431 = vst [vmem:[%s199 + $0x18] sm:$0xf] %v415
      %432 = vst [vmem:[%s199 + $0x1c] sm:$0xf] %v416
      %s433 = smul.u32 8, %s15
      %p434 = scmp.lt.s32.totalorder %s433, 15
      %s435 = scalar_select %p434, %s433, 15
      %s436 = smul.addr %s435, 4
      %s437 = scalar_lea.vmem %s4, %s436
      // Predicated region
      $region37: #{encoder_forward.3} parent=35 // pred_check
        %p438 = pneg %p122
      $region38: #{encoder_forward.3} parent=35 // pred_check_branch
        %440 = sbr.rel (%p438) target = $region40
      $region39: #{encoder_forward.3} parent=35 // pred_region
        %s441 = smul.u32 8, %s15
      $region40: #{encoder_forward.3} parent=35 // pred_fallthru
        _
    $region36: #{encoder_forward.3} parent=5 // pred_fallthru
      _
    %p442 = scmp.le.s32.totalorder 2, %s10
    // Predicated region
    $region41: #{encoder_forward.3} parent=5 // pred_check
      %p443 = pneg %p442
    $region42: #{encoder_forward.3} parent=5 // pred_check_branch
      %445 = sbr.rel (%p443) target = $region44
    $region43: #{encoder_forward.3} parent=5 // pred_region
      %s446 = ssub.s32 %s10, 2
      // Predicated region
      $region45: #{encoder_forward.3} parent=43 // pred_check
        %p447 = pneg %p128
      $region46: #{encoder_forward.3} parent=43 // pred_check_branch
        %449 = sbr.rel (%p447) target = $region48
      $region47: #{encoder_forward.3} parent=43 // pred_region
        %s450 = smul.u32 8, %s16
        %p451 = scmp.lt.s32.totalorder %s450, 15
        %s452 = scalar_select %p451, %s450, 15
        %s453 = smul.addr %s452, 4
        %s454 = scalar_lea.vmem %s4, %s453
      $region48: #{encoder_forward.3} parent=43 // pred_fallthru
        _
    $region44: #{encoder_forward.3} parent=5 // pred_fallthru
      _
  $region6: #{encoder_forward.3} parent=0 // loop_footer
    %s14 = sadd.s32 1, %s10
  $region7: #{encoder_forward.3} parent=0 // loop_footer_branch
    %9 = sbr.rel target = $region3
  $region8: #{encoder_forward.3} parent=0 // loop_exit
    _

// kernel: encoder_forward.4
$region0: #{encoder_forward.4}
  #allocation0 [shape = 'u32[]', space=smem, size = 0x4, offset = 0x4, fixed_abs, tag = 'smem constant byte address 0x4 - core index']
  #allocation1 [shape = 'u32[144,128]{1,0:T(1,128)}', space=vmem, size = 0x12000, scoped, tag = 'internal scratch']
  #allocation2 [shape = 'f32[24,128]{1,0:T(8,128)}', space=vmem, size = 0x3000, scoped, tag = 'scratch operand']
  %s0 = inlined_call_operand.vmem [shape: bf16[2,6,42,128], index: 0, kind: input, shape index: {}, may-alias: {0,1,2}]
  %s1 = inlined_call_operand.vmem [shape: bf16[2,6,42,128], index: 1, kind: input, shape index: {}, may-alias: {0,1,2}]
  %s2 = inlined_call_operand.vmem [shape: bf16[2,6,42,128], index: 2, kind: input, shape index: {}, may-alias: {0,1,2}]
  %s3 = inlined_call_operand.vmem [shape: bf16[9,384,128], index: 3, kind: input, shape index: {}]
  %s4 = inlined_call_operand.vmem [shape: f32[1,128], index: 4, kind: input, shape index: {}]
  %s5 = inlined_call_operand.vmem [shape: f32[1,128], index: 5, kind: input, shape index: {}]
  %s6 = inlined_call_operand.vmem [shape: bf16[2,4,24,128], index: 6, kind: output, shape index: {}]
  %s7 = sld [smem:[#allocation0]]
  $region57: #{encoder_forward.4} parent=0
    _
  %s9 = ssub.s32 1, %s7
  %s10 = scalar_select 0, %s9, %s7
  loop: start=0, step=1, limit=10
  $region2: #{encoder_forward.4} parent=0 // loop_pre_header
    _
  $region3: #{encoder_forward.4} parent=0 // loop_header
    %s12 = sphi 0, %s16
    %p13 = scmp.ge.s32.totalorder %s12, 10
    %s19 = sphi 0, %s31
    %s20 = sphi 0, %s27
    %s21 = sphi 0, %s19
    %s22 = sphi 0, %s20
    %s23 = sphi 0, %s21
    %s24 = sphi 0, %s22
    %s36 = sphi 0, %s38
    %s39 = sphi 0, %s36
    %s40 = sphi 0, %s39
    %s56 = sphi 0, %s40
    %s66 = sphi 0, %s68
    %s69 = sphi 0, %s66
    %s70 = sphi 0, %s69
    %s86 = sphi 0, %s70
    %s96 = sphi 0, %s98
    %s99 = sphi 0, %s96
    %s100 = sphi 0, %s99
    %s116 = sphi 0, %s100
    %s120 = sphi 0, %s120
    %s122 = sphi 0, %s120
    %s123 = sphi 0, %s122
    %s137 = sphi 0, %s123
    %s141 = sphi 0, %s141
    %s143 = sphi 0, %s141
    %s144 = sphi 0, %s143
    %s158 = sphi 0, %s144
    %s162 = sphi 0, %s162
    %s164 = sphi 0, %s162
    %s165 = sphi 0, %s164
    %s179 = sphi 0, %s165
    %s187 = sphi 0, %s189
    %s190 = sphi 0, %s187
    %s191 = sphi 0, %s190
    %s207 = sphi 0, %s191
  $region4: #{encoder_forward.4} parent=0 // loop_header_branch
    %15 = sbr.rel (%p13) target = $region8
  $region5: #{encoder_forward.4} parent=0 // loop_body
    %s17 = ssub.s32 %s12, 1
    %s18 = ssub.s32 %s12, 2
    %s25 = sadd.s32 1, %s20
    %p26 = scmp.ge.s32.totalorder %s25, 4
    %s27 = scalar_select %p26, 0, %s25
    %s28 = sadd.s32 1, %s19
    %s29 = scalar_select %p26, %s28, %s19
    %p30 = scmp.ge.s32.totalorder %s29, 2
    %s31 = scalar_select %p30, 0, %s29
    %s32 = ssub.s32 %s19, %s31
    %s33 = ssub.s32 %s20, %s27
    %s34 = sor.u32 %s32, %s33
    %p35 = scmp.eq.s32.totalorder %s34, 0
    %s37 = sadd.s32 %s36, 1
    %s38 = scalar_select %p35, %s36, %s37
    %p41 = pneg %p35
    %p42 = scmp.eq.s32.totalorder %s12, 7
    %p43 = por %p41, %p42
    %p44 = scmp.ne.s32.totalorder %s36, %s39
    %p45 = scmp.eq.s32.totalorder %s12, 0
    %p46 = por %p44, %p45
    %p47 = scmp.ne.s32.totalorder %s36, %s39
    %p48 = scmp.eq.s32.totalorder %s17, 7
    %p49 = por %p47, %p48
    %p50 = scmp.ne.s32.totalorder %s39, %s40
    %p51 = scmp.eq.s32.totalorder %s17, 0
    %p52 = por %p50, %p51
    %p53 = scmp.ne.s32.totalorder %s39, %s40
    %p54 = scmp.eq.s32.totalorder %s18, 7
    %p55 = por %p53, %p54
    %p57 = scmp.ne.s32.totalorder %s40, %s56
    %p58 = scmp.eq.s32.totalorder %s18, 0
    %p59 = por %p57, %p58
    %s60 = sadd.s32 %s20, 1
    %s61 = sadd.s32 %s27, 1
    %s62 = ssub.s32 %s19, %s31
    %s63 = ssub.s32 %s60, %s61
    %s64 = sor.u32 %s62, %s63
    %p65 = scmp.eq.s32.totalorder %s64, 0
    %s67 = sadd.s32 %s66, 1
    %s68 = scalar_select %p65, %s66, %s67
    %p71 = pneg %p65
    %p72 = scmp.eq.s32.totalorder %s12, 7
    %p73 = por %p71, %p72
    %p74 = scmp.ne.s32.totalorder %s66, %s69
    %p75 = scmp.eq.s32.totalorder %s12, 0
    %p76 = por %p74, %p75
    %p77 = scmp.ne.s32.totalorder %s66, %s69
    %p78 = scmp.eq.s32.totalorder %s17, 7
    %p79 = por %p77, %p78
    %p80 = scmp.ne.s32.totalorder %s69, %s70
    %p81 = scmp.eq.s32.totalorder %s17, 0
    %p82 = por %p80, %p81
    %p83 = scmp.ne.s32.totalorder %s69, %s70
    %p84 = scmp.eq.s32.totalorder %s18, 7
    %p85 = por %p83, %p84
    %p87 = scmp.ne.s32.totalorder %s70, %s86
    %p88 = scmp.eq.s32.totalorder %s18, 0
    %p89 = por %p87, %p88
    %s90 = sadd.s32 %s20, 2
    %s91 = sadd.s32 %s27, 2
    %s92 = ssub.s32 %s19, %s31
    %s93 = ssub.s32 %s90, %s91
    %s94 = sor.u32 %s92, %s93
    %p95 = scmp.eq.s32.totalorder %s94, 0
    %s97 = sadd.s32 %s96, 1
    %s98 = scalar_select %p95, %s96, %s97
    %p101 = pneg %p95
    %p102 = scmp.eq.s32.totalorder %s12, 7
    %p103 = por %p101, %p102
    %p104 = scmp.ne.s32.totalorder %s96, %s99
    %p105 = scmp.eq.s32.totalorder %s12, 0
    %p106 = por %p104, %p105
    %p107 = scmp.ne.s32.totalorder %s96, %s99
    %p108 = scmp.eq.s32.totalorder %s17, 7
    %p109 = por %p107, %p108
    %p110 = scmp.ne.s32.totalorder %s99, %s100
    %p111 = scmp.eq.s32.totalorder %s17, 0
    %p112 = por %p110, %p111
    %p113 = scmp.ne.s32.totalorder %s99, %s100
    %p114 = scmp.eq.s32.totalorder %s18, 7
    %p115 = por %p113, %p114
    %p117 = scmp.ne.s32.totalorder %s100, %s116
    %p118 = scmp.eq.s32.totalorder %s18, 0
    %p119 = por %p117, %p118
    %s121 = sadd.s32 %s120, 1
    %p124 = scmp.eq.s32.totalorder %s12, 7
    %p125 = scmp.ne.s32.totalorder %s120, %s122
    %p126 = scmp.eq.s32.totalorder %s12, 0
    %p127 = por %p125, %p126
    %p128 = scmp.ne.s32.totalorder %s120, %s122
    %p129 = scmp.eq.s32.totalorder %s17, 7
    %p130 = por %p128, %p129
    %p131 = scmp.ne.s32.totalorder %s122, %s123
    %p132 = scmp.eq.s32.totalorder %s17, 0
    %p133 = por %p131, %p132
    %p134 = scmp.ne.s32.totalorder %s122, %s123
    %p135 = scmp.eq.s32.totalorder %s18, 7
    %p136 = por %p134, %p135
    %p138 = scmp.ne.s32.totalorder %s123, %s137
    %p139 = scmp.eq.s32.totalorder %s18, 0
    %p140 = por %p138, %p139
    %s142 = sadd.s32 %s141, 1
    %p145 = scmp.eq.s32.totalorder %s12, 7
    %p146 = scmp.ne.s32.totalorder %s141, %s143
    %p147 = scmp.eq.s32.totalorder %s12, 0
    %p148 = por %p146, %p147
    %p149 = scmp.ne.s32.totalorder %s141, %s143
    %p150 = scmp.eq.s32.totalorder %s17, 7
    %p151 = por %p149, %p150
    %p152 = scmp.ne.s32.totalorder %s143, %s144
    %p153 = scmp.eq.s32.totalorder %s17, 0
    %p154 = por %p152, %p153
    %p155 = scmp.ne.s32.totalorder %s143, %s144
    %p156 = scmp.eq.s32.totalorder %s18, 7
    %p157 = por %p155, %p156
    %p159 = scmp.ne.s32.totalorder %s144, %s158
    %p160 = scmp.eq.s32.totalorder %s18, 0
    %p161 = por %p159, %p160
    %s163 = sadd.s32 %s162, 1
    %p166 = scmp.eq.s32.totalorder %s12, 7
    %p167 = scmp.ne.s32.totalorder %s162, %s164
    %p168 = scmp.eq.s32.totalorder %s12, 0
    %p169 = por %p167, %p168
    %p170 = scmp.ne.s32.totalorder %s162, %s164
    %p171 = scmp.eq.s32.totalorder %s17, 7
    %p172 = por %p170, %p171
    %p173 = scmp.ne.s32.totalorder %s164, %s165
    %p174 = scmp.eq.s32.totalorder %s17, 0
    %p175 = por %p173, %p174
    %p176 = scmp.ne.s32.totalorder %s164, %s165
    %p177 = scmp.eq.s32.totalorder %s18, 7
    %p178 = por %p176, %p177
    %p180 = scmp.ne.s32.totalorder %s165, %s179
    %p181 = scmp.eq.s32.totalorder %s18, 0
    %p182 = por %p180, %p181
    %s183 = ssub.s32 %s19, %s31
    %s184 = ssub.s32 %s20, %s27
    %s185 = sor.u32 %s183, %s184
    %p186 = scmp.eq.s32.totalorder %s185, 0
    %s188 = sadd.s32 %s187, 1
    %s189 = scalar_select %p186, %s187, %s188
    %p192 = pneg %p186
    %p193 = scmp.eq.s32.totalorder %s12, 7
    %p194 = por %p192, %p193
    %p195 = scmp.ne.s32.totalorder %s187, %s190
    %p196 = scmp.eq.s32.totalorder %s12, 0
    %p197 = por %p195, %p196
    %p198 = scmp.ne.s32.totalorder %s187, %s190
    %p199 = scmp.eq.s32.totalorder %s17, 7
    %p200 = por %p198, %p199
    %p201 = scmp.ne.s32.totalorder %s190, %s191
    %p202 = scmp.eq.s32.totalorder %s17, 0
    %p203 = por %p201, %p202
    %p204 = scmp.ne.s32.totalorder %s190, %s191
    %p205 = scmp.eq.s32.totalorder %s18, 7
    %p206 = por %p204, %p205
    %p208 = scmp.ne.s32.totalorder %s191, %s207
    %p209 = scmp.eq.s32.totalorder %s18, 0
    %p210 = por %p208, %p209
    %p211 = scmp.le.s32.totalorder 1, %s12
    %p212 = scmp.lt.s32.totalorder %s12, 9
    %p213 = pnand %p211, %p212
    %p214 = pneg %p213
    // Predicated region
    $region9: #{encoder_forward.4} parent=5 // pred_check
      _
    $region10: #{encoder_forward.4} parent=5 // pred_check_branch
      %216 = sbr.rel (%p213) target = $region12
    $region11: #{encoder_forward.4} parent=5 // pred_region
      %s217 = ssub.s32 %s12, 1
      // Predicated region
      $region13: #{encoder_forward.4} parent=11 // pred_check
        %p218 = pneg %p133
      $region14: #{encoder_forward.4} parent=11 // pred_check_branch
        %220 = sbr.rel (%p218) target = $region16
      $region15: #{encoder_forward.4} parent=11 // pred_region
        _
      $region16: #{encoder_forward.4} parent=11 // pred_fallthru
        _
      // Predicated region
      $region17: #{encoder_forward.4} parent=11 // pred_check
        %p221 = pneg %p154
      $region18: #{encoder_forward.4} parent=11 // pred_check_branch
        %223 = sbr.rel (%p221) target = $region20
      $region19: #{encoder_forward.4} parent=11 // pred_region
        _
      $region20: #{encoder_forward.4} parent=11 // pred_fallthru
        _
      // Predicated region
      $region21: #{encoder_forward.4} parent=11 // pred_check
        %p224 = pneg %p175
      $region22: #{encoder_forward.4} parent=11 // pred_check_branch
        %226 = sbr.rel (%p224) target = $region24
      $region23: #{encoder_forward.4} parent=11 // pred_region
        _
      $region24: #{encoder_forward.4} parent=11 // pred_fallthru
        _
    $region12: #{encoder_forward.4} parent=5 // pred_fallthru
      _
    %p227 = scmp.lt.s32.totalorder %s12, 8
    // Predicated region
    $region25: #{encoder_forward.4} parent=5 // pred_check
      %p228 = pneg %p227
    $region26: #{encoder_forward.4} parent=5 // pred_check_branch
      %230 = sbr.rel (%p228) target = $region28
    $region27: #{encoder_forward.4} parent=5 // pred_region
      // Predicated region
      $region29: #{encoder_forward.4} parent=27 // pred_check
        %p231 = pneg %p46
      $region30: #{encoder_forward.4} parent=27 // pred_check_branch
        %233 = sbr.rel (%p231) target = $region32
      $region31: #{encoder_forward.4} parent=27 // pred_region
        %p234 = scmp.lt.s32.totalorder %s19, 1
        %s235 = scalar_select %p234, %s19, 1
        %p236 = scmp.lt.s32.totalorder %s20, 5
        %s237 = scalar_select %p236, %s20, 5
        %s238 = smul.addr %s237, 6
        %s239 = smul.addr %s235, 36
        %s240 = sadd.s32 %s238, %s239
        %s241 = smul.addr %s240, 4
        %s242 = scalar_lea.vmem %s0, %s241
      $region32: #{encoder_forward.4} parent=27 // pred_fallthru
        _
      // Predicated region
      $region33: #{encoder_forward.4} parent=27 // pred_check
        %p243 = pneg %p76
      $region34: #{encoder_forward.4} parent=27 // pred_check_branch
        %245 = sbr.rel (%p243) target = $region36
      $region35: #{encoder_forward.4} parent=27 // pred_region
        %s246 = sadd.s32 %s20, 1
        %p247 = scmp.lt.s32.totalorder %s19, 1
        %s248 = scalar_select %p247, %s19, 1
        %p249 = scmp.lt.s32.totalorder %s246, 5
        %s250 = scalar_select %p249, %s246, 5
        %s251 = smul.addr %s250, 6
        %s252 = smul.addr %s248, 36
        %s253 = sadd.s32 %s251, %s252
        %s254 = smul.addr %s253, 4
        %s255 = scalar_lea.vmem %s1, %s254
        %s256 = sadd.s32 %s20, 1
      $region36: #{encoder_forward.4} parent=27 // pred_fallthru
        _
      // Predicated region
      $region37: #{encoder_forward.4} parent=27 // pred_check
        %p257 = pneg %p106
      $region38: #{encoder_forward.4} parent=27 // pred_check_branch
        %259 = sbr.rel (%p257) target = $region40
      $region39: #{encoder_forward.4} parent=27 // pred_region
        %s260 = sadd.s32 %s20, 2
        %p261 = scmp.lt.s32.totalorder %s19, 1
        %s262 = scalar_select %p261, %s19, 1
        %p263 = scmp.lt.s32.totalorder %s260, 5
        %s264 = scalar_select %p263, %s260, 5
        %s265 = smul.addr %s264, 6
        %s266 = smul.addr %s262, 36
        %s267 = sadd.s32 %s265, %s266
        %s268 = smul.addr %s267, 4
        %s269 = scalar_lea.vmem %s2, %s268
        %s270 = sadd.s32 %s20, 2
      $region40: #{encoder_forward.4} parent=27 // pred_fallthru
        _
    $region28: #{encoder_forward.4} parent=5 // pred_fallthru
      _
    %p271 = scmp.le.s32.totalorder 1, %s12
    %p272 = scmp.lt.s32.totalorder %s12, 9
    %p273 = pnand %p271, %p272
    %p274 = pneg %p273
    // Predicated region
    $region41: #{encoder_forward.4} parent=5 // pred_check
      _
    $region42: #{encoder_forward.4} parent=5 // pred_check_branch
      %276 = sbr.rel (%p273) target = $region44
    $region43: #{encoder_forward.4} parent=5 // pred_region
      %s277 = ssub.s32 %s12, 1
      %p278 = scmp.lt.s32.totalorder %s21, 1
      %s279 = scalar_select %p278, %s21, 1
      %p280 = scmp.lt.s32.totalorder %s22, 5
      %s281 = scalar_select %p280, %s22, 5
      %s282 = smul.addr %s281, 6
      %s283 = smul.addr %s279, 36
      %s284 = sadd.s32 %s282, %s283
      %s285 = smul.addr %s284, 4
      %s286 = scalar_lea.vmem %s0, %s285
      %p287 = pneg %p52
      %p288 = pneg %p49
      %s289 = sadd.s32 %s22, 1
      %p290 = scmp.lt.s32.totalorder %s21, 1
      %s291 = scalar_select %p290, %s21, 1
      %p292 = scmp.lt.s32.totalorder %s289, 5
      %s293 = scalar_select %p292, %s289, 5
      %s294 = smul.addr %s293, 6
      %s295 = smul.addr %s291, 36
      %s296 = sadd.s32 %s294, %s295
      %s297 = smul.addr %s296, 4
      %s298 = scalar_lea.vmem %s1, %s297
      %p299 = pneg %p82
      %p300 = pneg %p79
      %s301 = sadd.s32 %s22, 2
      %p302 = scmp.lt.s32.totalorder %s21, 1
      %s303 = scalar_select %p302, %s21, 1
      %p304 = scmp.lt.s32.totalorder %s301, 5
      %s305 = scalar_select %p304, %s301, 5
      %s306 = smul.addr %s305, 6
      %s307 = smul.addr %s303, 36
      %s308 = sadd.s32 %s306, %s307
      %s309 = smul.addr %s308, 4
      %s310 = scalar_lea.vmem %s2, %s309
      %p311 = pneg %p112
      %p312 = pneg %p109
      %p313 = pneg %p133
      %p314 = pneg %p130
      %p315 = pneg %p154
      %p316 = pneg %p151
      %p317 = pneg %p175
      %p318 = pneg %p172
      %p319 = pneg %p203
      %p320 = pneg %p200
      %p321 = scmp.lt.s32.totalorder %s21, 1
      %s322 = scalar_select %p321, %s21, 1
      %p323 = scmp.lt.s32.totalorder %s22, 3
      %s324 = scalar_select %p323, %s22, 3
      %s325 = smul.addr %s324, 3
      %s326 = smul.addr %s322, 12
      %s327 = sadd.s32 %s325, %s326
      %s328 = smul.addr %s327, 4
      %s329 = scalar_lea.vmem %s6, %s328
      %p330 = scmp.lt.s32.totalorder %s21, 1
      %s331 = scalar_select %p330, %s21, 1
      %p332 = scmp.lt.s32.totalorder %s22, 5
      %s333 = scalar_select %p332, %s22, 5
      %s334 = smul.addr %s333, 6
      %s335 = smul.addr %s331, 36
      %s336 = sadd.s32 %s334, %s335
      %s337 = smul.addr %s336, 4
      %s338 = scalar_lea.vmem %s0, %s337
      %s339 = sadd.s32 %s22, 1
      %p340 = scmp.lt.s32.totalorder %s21, 1
      %s341 = scalar_select %p340, %s21, 1
      %p342 = scmp.lt.s32.totalorder %s339, 5
      %s343 = scalar_select %p342, %s339, 5
      %s344 = smul.addr %s343, 6
      %s345 = smul.addr %s341, 36
      %s346 = sadd.s32 %s344, %s345
      %s347 = smul.addr %s346, 4
      %s348 = scalar_lea.vmem %s1, %s347
      %s349 = sadd.s32 %s22, 1
      %s350 = sadd.s32 %s22, 2
      %p351 = scmp.lt.s32.totalorder %s21, 1
      %s352 = scalar_select %p351, %s21, 1
      %p353 = scmp.lt.s32.totalorder %s350, 5
      %s354 = scalar_select %p353, %s350, 5
      %s355 = smul.addr %s354, 6
      %s356 = smul.addr %s352, 36
      %s357 = sadd.s32 %s355, %s356
      %s358 = smul.addr %s357, 4
      %s359 = scalar_lea.vmem %s2, %s358
      %s360 = sadd.s32 %s22, 2
      %p361 = scmp.lt.s32.totalorder %s21, 1
      %s362 = scalar_select %p361, %s21, 1
      %p363 = scmp.lt.s32.totalorder %s22, 3
      %s364 = scalar_select %p363, %s22, 3
      %s365 = smul.addr %s364, 3
      %s366 = smul.addr %s362, 12
      %s367 = sadd.s32 %s365, %s366
      %s368 = smul.addr %s367, 4
      %s369 = scalar_lea.vmem %s6, %s368
      %371 = vst [vmem:[#allocation2] sm:$0xff] 0.0
      %372 = vst [vmem:[#allocation2 + $0x8] sm:$0xff] 0.0
      %373 = vst [vmem:[#allocation2 + $0x10] sm:$0xff] 0.0
      %v374 = vld [vmem:[%s338] sm:$0xf]
      %v375 = vld [vmem:[%s338 + $0x4] sm:$0xf]
      %v376 = vld [vmem:[%s338 + $0x8] sm:$0xf]
      %v377 = vld [vmem:[%s348] sm:$0xf]
      %v378 = vld [vmem:[%s348 + $0x4] sm:$0xf]
      %v379 = vld [vmem:[%s348 + $0x8] sm:$0xf]
      %v380 = vld [vmem:[%s359] sm:$0xf]
      %v381 = vld [vmem:[%s359 + $0x4] sm:$0xf]
      %v382 = vld [vmem:[%s359 + $0x8] sm:$0xf]
      %v386 = vunpack.c.l.b16 %v374
      %v387 = vunpack.c.l.b16 %v375
      %v388 = vunpack.c.l.b16 %v376
      %v389 = vpack.c.b16 %v387, %v386
      %v390 = vpack.c.b16 %v388, %v388
      %v396 = vunpack.c.l.b16 %v377
      %v397 = vunpack.c.l.b16 %v378
      %v398 = vunpack.c.l.b16 %v379
      %v399 = vpack.c.b16 %v397, %v396
      %v400 = vpack.c.b16 %v398, %v398
      %v406 = vunpack.c.l.b16 %v380
      %v407 = vunpack.c.l.b16 %v381
      %v408 = vunpack.c.l.b16 %v382
      %v409 = vpack.c.b16 %v407, %v406
      %v410 = vpack.c.b16 %v408, %v408
      %v413 = vld [vmem:[#allocation2] sm:$0xff]
      %v414 = vld [vmem:[#allocation2 + $0x8] sm:$0xff]
      %v415 = vld [vmem:[#allocation2 + $0x10] sm:$0xff]
      %v416 = vld [vmem:[%s3] sm:$0xf]
      %v417 = vld [vmem:[%s3 + $0x4] sm:$0xf]
      %v418 = vld [vmem:[%s3 + $0x8] sm:$0xf]
      %v419 = vld [vmem:[%s3 + $0xc] sm:$0xf]
      %v420 = vld [vmem:[%s3 + $0x10] sm:$0xf]
      %v421 = vld [vmem:[%s3 + $0x14] sm:$0xf]
      %v422 = vld [vmem:[%s3 + $0x18] sm:$0xf]
      %v423 = vld [vmem:[%s3 + $0x1c] sm:$0xf]
      %v424 = vld [vmem:[%s3 + $0x20] sm:$0xf]
      %v425 = vld [vmem:[%s3 + $0x24] sm:$0xf]
      %v426 = vld [vmem:[%s3 + $0x28] sm:$0xf]
      %v427 = vld [vmem:[%s3 + $0x2c] sm:$0xf]
      %v428 = vld [vmem:[%s3 + $0x30] sm:$0xf]
      %v429 = vld [vmem:[%s3 + $0x34] sm:$0xf]
      %v430 = vld [vmem:[%s3 + $0x38] sm:$0xf]
      %v431 = vld [vmem:[%s3 + $0x3c] sm:$0xf]
      %v432 = vld [vmem:[%s3 + $0x40] sm:$0xf]
      %v433 = vld [vmem:[%s3 + $0x44] sm:$0xf]
      %v434 = vld [vmem:[%s3 + $0x48] sm:$0xf]
      %v435 = vld [vmem:[%s3 + $0x4c] sm:$0xf]
      %v436 = vld [vmem:[%s3 + $0x50] sm:$0xf]
      %v437 = vld [vmem:[%s3 + $0x54] sm:$0xf]
      %v438 = vld [vmem:[%s3 + $0x58] sm:$0xf]
      %v439 = vld [vmem:[%s3 + $0x5c] sm:$0xf]
      %v440 = vld [vmem:[%s3 + $0x60] sm:$0xf]
      %v441 = vld [vmem:[%s3 + $0x64] sm:$0xf]
      %v442 = vld [vmem:[%s3 + $0x68] sm:$0xf]
      %v443 = vld [vmem:[%s3 + $0x6c] sm:$0xf]
      %v444 = vld [vmem:[%s3 + $0x70] sm:$0xf]
      %v445 = vld [vmem:[%s3 + $0x74] sm:$0xf]
      %v446 = vld [vmem:[%s3 + $0x78] sm:$0xf]
      %v447 = vld [vmem:[%s3 + $0x7c] sm:$0xf]
      %v448 = vld [vmem:[%s3 + $0x80] sm:$0xf]
      %v449 = vld [vmem:[%s3 + $0x84] sm:$0xf]
      %v450 = vld [vmem:[%s3 + $0x88] sm:$0xf]
      %v451 = vld [vmem:[%s3 + $0x8c] sm:$0xf]
      %v452 = vld [vmem:[%s3 + $0x90] sm:$0xf]
      %v453 = vld [vmem:[%s3 + $0x94] sm:$0xf]
      %v454 = vld [vmem:[%s3 + $0x98] sm:$0xf]
      %v455 = vld [vmem:[%s3 + $0x9c] sm:$0xf]
      %v456 = vld [vmem:[%s3 + $0xa0] sm:$0xf]
      %v457 = vld [vmem:[%s3 + $0xa4] sm:$0xf]
      %v458 = vld [vmem:[%s3 + $0xa8] sm:$0xf]
      %v459 = vld [vmem:[%s3 + $0xac] sm:$0xf]
      %v460 = vld [vmem:[%s3 + $0xb0] sm:$0xf]
      %v461 = vld [vmem:[%s3 + $0xb4] sm:$0xf]
      %v462 = vld [vmem:[%s3 + $0xb8] sm:$0xf]
      %v463 = vld [vmem:[%s3 + $0xbc] sm:$0xf]
      %v512 = vunpack.c.l.b16 %v416
      %v513 = vunpack.c.l.b16 %v417
      %v514 = vunpack.c.l.b16 %v418
      %v515 = vunpack.c.l.b16 %v419
      %v516 = vunpack.c.l.b16 %v420
      %v517 = vunpack.c.l.b16 %v421
      %v518 = vunpack.c.l.b16 %v422
      %v519 = vunpack.c.l.b16 %v423
      %v520 = vunpack.c.l.b16 %v424
      %v521 = vunpack.c.l.b16 %v425
      %v522 = vunpack.c.l.b16 %v426
      %v523 = vunpack.c.l.b16 %v427
      %v524 = vunpack.c.l.b16 %v428
      %v525 = vunpack.c.l.b16 %v429
      %v526 = vunpack.c.l.b16 %v430
      %v527 = vunpack.c.l.b16 %v431
      %v528 = vunpack.c.l.b16 %v432
      %v529 = vunpack.c.l.b16 %v433
      %v530 = vunpack.c.l.b16 %v434
      %v531 = vunpack.c.l.b16 %v435
      %v532 = vunpack.c.l.b16 %v436
      %v533 = vunpack.c.l.b16 %v437
      %v534 = vunpack.c.l.b16 %v438
      %v535 = vunpack.c.l.b16 %v439
      %v536 = vunpack.c.l.b16 %v440
      %v537 = vunpack.c.l.b16 %v441
      %v538 = vunpack.c.l.b16 %v442
      %v539 = vunpack.c.l.b16 %v443
      %v540 = vunpack.c.l.b16 %v444
      %v541 = vunpack.c.l.b16 %v445
      %v542 = vunpack.c.l.b16 %v446
      %v543 = vunpack.c.l.b16 %v447
      %v544 = vunpack.c.l.b16 %v448
      %v545 = vunpack.c.l.b16 %v449
      %v546 = vunpack.c.l.b16 %v450
      %v547 = vunpack.c.l.b16 %v451
      %v548 = vunpack.c.l.b16 %v452
      %v549 = vunpack.c.l.b16 %v453
      %v550 = vunpack.c.l.b16 %v454
      %v551 = vunpack.c.l.b16 %v455
      %v552 = vunpack.c.l.b16 %v456
      %v553 = vunpack.c.l.b16 %v457
      %v554 = vunpack.c.l.b16 %v458
      %v555 = vunpack.c.l.b16 %v459
      %v556 = vunpack.c.l.b16 %v460
      %v557 = vunpack.c.l.b16 %v461
      %v558 = vunpack.c.l.b16 %v462
      %v559 = vunpack.c.l.b16 %v463
      %v560 = vpack.c.b16 %v513, %v512
      %v561 = vpack.c.b16 %v515, %v514
      %v562 = vpack.c.b16 %v517, %v516
      %v563 = vpack.c.b16 %v519, %v518
      %v564 = vpack.c.b16 %v521, %v520
      %v565 = vpack.c.b16 %v523, %v522
      %v566 = vpack.c.b16 %v525, %v524
      %v567 = vpack.c.b16 %v527, %v526
      %v568 = vpack.c.b16 %v529, %v528
      %v569 = vpack.c.b16 %v531, %v530
      %v570 = vpack.c.b16 %v533, %v532
      %v571 = vpack.c.b16 %v535, %v534
      %v572 = vpack.c.b16 %v537, %v536
      %v573 = vpack.c.b16 %v539, %v538
      %v574 = vpack.c.b16 %v541, %v540
      %v575 = vpack.c.b16 %v543, %v542
      %v576 = vpack.c.b16 %v545, %v544
      %v577 = vpack.c.b16 %v547, %v546
      %v578 = vpack.c.b16 %v549, %v548
      %v579 = vpack.c.b16 %v551, %v550
      %v580 = vpack.c.b16 %v553, %v552
      %v581 = vpack.c.b16 %v555, %v554
      %v582 = vpack.c.b16 %v557, %v556
      %v583 = vpack.c.b16 %v559, %v558
      %608 = vmatprep.subr.bf16.mxu0 0
      %609 = vmatpush1.bf16.msra.mxu0 %v560
      %610 = vmatprep.subr.bf16.mxu0 0
      %611 = vmatpush1.bf16.msra.mxu0 %v561
      %612 = vmatprep.subr.bf16.mxu0 0
      %613 = vmatpush1.bf16.msra.mxu0 %v562
      %614 = vmatprep.subr.bf16.mxu0 0
      %615 = vmatpush1.bf16.msra.mxu0 %v563
      %616 = vmatprep.subr.bf16.mxu0 0
      %617 = vmatpush1.bf16.msra.mxu0 %v564
      %618 = vmatprep.subr.bf16.mxu0 0
      %619 = vmatpush1.bf16.msra.mxu0 %v565
      %620 = vmatprep.subr.bf16.mxu0 0
      %621 = vmatpush1.bf16.msra.mxu0 %v566
      %622 = vmatprep.subr.bf16.mxu0 0
      %623 = vmatpush1.bf16.msra.mxu0 %v567
      %624 = vmatprep.subr.bf16.mxu0 0
      %625 = vmatpush1.bf16.msra.mxu0 %v568
      %626 = vmatprep.subr.bf16.mxu0 0
      %627 = vmatpush1.bf16.msra.mxu0 %v569
      %628 = vmatprep.subr.bf16.mxu0 0
      %629 = vmatpush1.bf16.msra.mxu0 %v570
      %630 = vmatprep.subr.bf16.mxu0 0
      %631 = vmatpush1.bf16.msra.mxu0 %v571
      %632 = vmatprep.subr.bf16.mxu0 0
      %633 = vmatpush1.bf16.msra.mxu0 %v572
      %634 = vmatprep.subr.bf16.mxu0 0
      %635 = vmatpush1.bf16.msra.mxu0 %v573
      %636 = vmatprep.subr.bf16.mxu0 0
      %637 = vmatpush1.bf16.msra.mxu0 %v574
      %638 = vmatprep.subr.bf16.mxu0 0
      %639 = vmatpush1.bf16.msra.mxu0 %v575
      %640 = vmatprep.mubr.bf16.mxu0 %v399
      %641 = vmatmul.mubr.bf16.gmra.mrb[0].mxu0 %v389
      %v642 = vpop.f32.mrb[0].mxu0
      %v643 = vadd.f32 0.0, %v642
      %v644 = vpop.f32.mrb[0].mxu0
      %v645 = vpop.f32.mrb[0].mxu0
      %v646 = vadd.f32 0.0, %v645
      %v647 = vpop.f32.mrb[0].mxu0
      %648 = vmatprep.mubr.bf16.mxu0 %v400
      %649 = vmatmul.mubr.bf16.gmra.mrb[0].mxu0 %v390
      %v650 = vpop.f32.mrb[0].mxu0
      %v651 = vadd.f32 0.0, %v650
      %v652 = vpop.f32.mrb[0].mxu0
      %v653 = vpop.f32.mrb[0].mxu0
      %v654 = vpop.f32.mrb[0].mxu0
      %655 = vdwg.mxu0
      %656 = vmatprep.subr.bf16.mxu0 0
      %657 = vmatpush1.bf16.msra.mxu0 %v576
      %658 = vmatprep.subr.bf16.mxu0 0
      %659 = vmatpush1.bf16.msra.mxu0 %v577
      %660 = vmatprep.subr.bf16.mxu0 0
      %661 = vmatpush1.bf16.msra.mxu0 %v578
      %662 = vmatprep.subr.bf16.mxu0 0
      %663 = vmatpush1.bf16.msra.mxu0 %v579
      %664 = vmatprep.subr.bf16.mxu0 0
      %665 = vmatpush1.bf16.msra.mxu0 %v580
      %666 = vmatprep.subr.bf16.mxu0 0
      %667 = vmatpush1.bf16.msra.mxu0 %v581
      %668 = vmatprep.subr.bf16.mxu0 0
      %669 = vmatpush1.bf16.msra.mxu0 %v582
      %670 = vmatprep.subr.bf16.mxu0 0
      %671 = vmatpush1.bf16.msra.mxu0 %v583
      %672 = vmatprep.subr.bf16.mxu0 0
      %673 = vmatpush1.bf16.msra.mxu0 0
      %674 = vmatprep.subr.bf16.mxu0 0
      %675 = vmatpush1.bf16.msra.mxu0 0
      %676 = vmatprep.subr.bf16.mxu0 0
      %677 = vmatpush1.bf16.msra.mxu0 0
      %678 = vmatprep.subr.bf16.mxu0 0
      %679 = vmatpush1.bf16.msra.mxu0 0
      %680 = vmatprep.subr.bf16.mxu0 0
      %681 = vmatpush1.bf16.msra.mxu0 0
      %682 = vmatprep.subr.bf16.mxu0 0
      %683 = vmatpush1.bf16.msra.mxu0 0
      %684 = vmatprep.subr.bf16.mxu0 0
      %685 = vmatpush1.bf16.msra.mxu0 0
      %686 = vmatprep.subr.bf16.mxu0 0
      %687 = vmatpush1.bf16.msra.mxu0 0
      %688 = vmatprep.mubr.bf16.mxu0 0
      %689 = vmatmul.mubr.bf16.gmra.mrb[0].mxu0 %v409
      %v690 = vpop.f32.mrb[0].mxu0
      %v691 = vadd.f32 %v643, %v690
      %v692 = vpop.f32.mrb[0].mxu0
      %v693 = vpop.f32.mrb[0].mxu0
      %v694 = vadd.f32 %v646, %v693
      %v695 = vpop.f32.mrb[0].mxu0
      %696 = vmatprep.mubr.bf16.mxu0 0
      %697 = vmatmul.mubr.bf16.gmra.mrb[0].mxu0 %v410
      %v698 = vpop.f32.mrb[0].mxu0
      %v699 = vadd.f32 %v651, %v698
      %v700 = vpop.f32.mrb[0].mxu0
      %v701 = vpop.f32.mrb[0].mxu0
      %v702 = vpop.f32.mrb[0].mxu0
      %703 = vdwg.mxu0
      %v704 = vadd.f32 %v413, %v691
      %v705 = vadd.f32 %v414, %v694
      %v706 = vadd.f32 %v415, %v699
      %707 = vst [vmem:[#allocation2] sm:$0xff] %v704
      %708 = vst [vmem:[#allocation2 + $0x8] sm:$0xff] %v705
      %709 = vst [vmem:[#allocation2 + $0x10] sm:$0xff] %v706
      %v710 = vld [vmem:[%s338] sm:$0xf]
      %v711 = vld [vmem:[%s338 + $0x4] sm:$0xf]
      %v712 = vld [vmem:[%s338 + $0x8] sm:$0xf]
      %v713 = vld [vmem:[%s338 + $0xc] sm:$0x1]
      %v714 = vld [vmem:[%s348] sm:$0xf]
      %v715 = vld [vmem:[%s348 + $0x4] sm:$0xf]
      %v716 = vld [vmem:[%s348 + $0x8] sm:$0xf]
      %v717 = vld [vmem:[%s348 + $0xc] sm:$0x1]
      %v718 = vld [vmem:[%s359] sm:$0xf]
      %v719 = vld [vmem:[%s359 + $0x4] sm:$0xf]
      %v720 = vld [vmem:[%s359 + $0x8] sm:$0xf]
      %v721 = vld [vmem:[%s359 + $0xc] sm:$0x1]
      %v726 = vunpack.c.l.b16 %v710
      %v727 = vunpack.c.l.b16 %v711
      %v728 = vunpack.c.l.b16 %v712
      %v729 = vunpack.c.l.b16 %v713
      %v730 = vpack.c.b16 %v727, %v726
      %v731 = vpack.c.b16 %v729, %v728
      %v736 = vunpack.c.l.b16 %v714
      %v737 = vunpack.c.l.b16 %v715
      %v738 = vunpack.c.l.b16 %v716
      %v739 = vunpack.c.l.b16 %v717
      %v740 = vpack.c.b16 %v737, %v736
      %v741 = vpack.c.b16 %v739, %v738
      %v746 = vunpack.c.l.b16 %v718
      %v747 = vunpack.c.l.b16 %v719
      %v748 = vunpack.c.l.b16 %v720
      %v749 = vunpack.c.l.b16 %v721
      %v750 = vpack.c.b16 %v747, %v746
      %v751 = vpack.c.b16 %v749, %v748
      %v752 = vld [vmem:[#allocation2] sm:$0xff]
      %v753 = vld [vmem:[#allocation2 + $0x8] sm:$0xff]
      %v754 = vld [vmem:[#allocation2 + $0x10] sm:$0xff]
      %s755 = scalar_lea.vmem %s3, 192
      %v756 = vld [vmem:[%s755] sm:$0xf]
      %v757 = vld [vmem:[%s755 + $0x4] sm:$0xf]
      %v758 = vld [vmem:[%s755 + $0x8] sm:$0xf]
      %v759 = vld [vmem:[%s755 + $0xc] sm:$0xf]
      %v760 = vld [vmem:[%s755 + $0x10] sm:$0xf]
      %v761 = vld [vmem:[%s755 + $0x14] sm:$0xf]
      %v762 = vld [vmem:[%s755 + $0x18] sm:$0xf]
      %v763 = vld [vmem:[%s755 + $0x1c] sm:$0xf]
      %v764 = vld [vmem:[%s755 + $0x20] sm:$0xf]
      %v765 = vld [vmem:[%s755 + $0x24] sm:$0xf]
      %v766 = vld [vmem:[%s755 + $0x28] sm:$0xf]
      %v767 = vld [vmem:[%s755 + $0x2c] sm:$0xf]
      %v768 = vld [vmem:[%s755 + $0x30] sm:$0xf]
      %v769 = vld [vmem:[%s755 + $0x34] sm:$0xf]
      %v770 = vld [vmem:[%s755 + $0x38] sm:$0xf]
      %v771 = vld [vmem:[%s755 + $0x3c] sm:$0xf]
      %v772 = vld [vmem:[%s755 + $0x40] sm:$0xf]
      %v773 = vld [vmem:[%s755 + $0x44] sm:$0xf]
      %v774 = vld [vmem:[%s755 + $0x48] sm:$0xf]
      %v775 = vld [vmem:[%s755 + $0x4c] sm:$0xf]
      %v776 = vld [vmem:[%s755 + $0x50] sm:$0xf]
      %v777 = vld [vmem:[%s755 + $0x54] sm:$0xf]
      %v778 = vld [vmem:[%s755 + $0x58] sm:$0xf]
      %v779 = vld [vmem:[%s755 + $0x5c] sm:$0xf]
      %v780 = vld [vmem:[%s755 + $0x60] sm:$0xf]
      %v781 = vld [vmem:[%s755 + $0x64] sm:$0xf]
      %v782 = vld [vmem:[%s755 + $0x68] sm:$0xf]
      %v783 = vld [vmem:[%s755 + $0x6c] sm:$0xf]
      %v784 = vld [vmem:[%s755 + $0x70] sm:$0xf]
      %v785 = vld [vmem:[%s755 + $0x74] sm:$0xf]
      %v786 = vld [vmem:[%s755 + $0x78] sm:$0xf]
      %v787 = vld [vmem:[%s755 + $0x7c] sm:$0xf]
      %v788 = vld [vmem:[%s755 + $0x80] sm:$0xf]
      %v789 = vld [vmem:[%s755 + $0x84] sm:$0xf]
      %v790 = vld [vmem:[%s755 + $0x88] sm:$0xf]
      %v791 = vld [vmem:[%s755 + $0x8c] sm:$0xf]
      %v792 = vld [vmem:[%s755 + $0x90] sm:$0xf]
      %v793 = vld [vmem:[%s755 + $0x94] sm:$0xf]
      %v794 = vld [vmem:[%s755 + $0x98] sm:$0xf]
      %v795 = vld [vmem:[%s755 + $0x9c] sm:$0xf]
      %v796 = vld [vmem:[%s755 + $0xa0] sm:$0xf]
      %v797 = vld [vmem:[%s755 + $0xa4] sm:$0xf]
      %v798 = vld [vmem:[%s755 + $0xa8] sm:$0xf]
      %v799 = vld [vmem:[%s755 + $0xac] sm:$0xf]
      %v800 = vld [vmem:[%s755 + $0xb0] sm:$0xf]
      %v801 = vld [vmem:[%s755 + $0xb4] sm:$0xf]
      %v802 = vld [vmem:[%s755 + $0xb8] sm:$0xf]
      %v803 = vld [vmem:[%s755 + $0xbc] sm:$0xf]
      %vm804 = vsmask.f32 7424
      %v806 = vshrl.u32 %v730, 16
      %v808 = vshll.u32 %v730, 16
      %v810 = vrot.slane %v808, 1
      %v811 = vor.u32 %v806, %v810
      %v813 = vshll.u32 %v731, 16
      %v815 = vrot.slane %v813, 1
      %v816 = vsel %vm804, %v811, %v815
      %v818 = vshrl.u32 %v740, 16
      %v820 = vshll.u32 %v740, 16
      %v822 = vrot.slane %v820, 1
      %v823 = vor.u32 %v818, %v822
      %v825 = vshll.u32 %v741, 16
      %v827 = vrot.slane %v825, 1
      %v828 = vsel %vm804, %v823, %v827
      %v830 = vshrl.u32 %v750, 16
      %v832 = vshll.u32 %v750, 16
      %v834 = vrot.slane %v832, 1
      %v835 = vor.u32 %v830, %v834
      %v837 = vshll.u32 %v751, 16
      %v839 = vrot.slane %v837, 1
      %v840 = vsel %vm804, %v835, %v839
      %v841 = vshrl.u32 %v731, 16
      %v843 = vor.u32 %v841, %v815
      %v844 = vshrl.u32 %v741, 16
      %v846 = vor.u32 %v844, %v827
      %v847 = vshrl.u32 %v751, 16
      %v849 = vor.u32 %v847, %v839
      %v904 = vunpack.c.l.b16 %v756
      %v905 = vunpack.c.l.b16 %v757
      %v906 = vunpack.c.l.b16 %v758
      %v907 = vunpack.c.l.b16 %v759
      %v908 = vunpack.c.l.b16 %v760
      %v909 = vunpack.c.l.b16 %v761
      %v910 = vunpack.c.l.b16 %v762
      %v911 = vunpack.c.l.b16 %v763
      %v912 = vunpack.c.l.b16 %v764
      %v913 = vunpack.c.l.b16 %v765
      %v914 = vunpack.c.l.b16 %v766
      %v915 = vunpack.c.l.b16 %v767
      %v916 = vunpack.c.l.b16 %v768
      %v917 = vunpack.c.l.b16 %v769
      %v918 = vunpack.c.l.b16 %v770
      %v919 = vunpack.c.l.b16 %v771
      %v920 = vunpack.c.l.b16 %v772
      %v921 = vunpack.c.l.b16 %v773
      %v922 = vunpack.c.l.b16 %v774
      %v923 = vunpack.c.l.b16 %v775
      %v924 = vunpack.c.l.b16 %v776
      %v925 = vunpack.c.l.b16 %v777
      %v926 = vunpack.c.l.b16 %v778
      %v927 = vunpack.c.l.b16 %v779
      %v928 = vunpack.c.l.b16 %v780
      %v929 = vunpack.c.l.b16 %v781
      %v930 = vunpack.c.l.b16 %v782
      %v931 = vunpack.c.l.b16 %v783
      %v932 = vunpack.c.l.b16 %v784
      %v933 = vunpack.c.l.b16 %v785
      %v934 = vunpack.c.l.b16 %v786
      %v935 = vunpack.c.l.b16 %v787
      %v936 = vunpack.c.l.b16 %v788
      %v937 = vunpack.c.l.b16 %v789
      %v938 = vunpack.c.l.b16 %v790
      %v939 = vunpack.c.l.b16 %v791
      %v940 = vunpack.c.l.b16 %v792
      %v941 = vunpack.c.l.b16 %v793
      %v942 = vunpack.c.l.b16 %v794
      %v943 = vunpack.c.l.b16 %v795
      %v944 = vunpack.c.l.b16 %v796
      %v945 = vunpack.c.l.b16 %v797
      %v946 = vunpack.c.l.b16 %v798
      %v947 = vunpack.c.l.b16 %v799
      %v948 = vunpack.c.l.b16 %v800
      %v949 = vunpack.c.l.b16 %v801
      %v950 = vunpack.c.l.b16 %v802
      %v951 = vunpack.c.l.b16 %v803
      %v952 = vpack.c.b16 %v905, %v904
      %v953 = vpack.c.b16 %v907, %v906
      %v954 = vpack.c.b16 %v909, %v908
      %v955 = vpack.c.b16 %v911, %v910
      %v956 = vpack.c.b16 %v913, %v912
      %v957 = vpack.c.b16 %v915, %v914
      %v958 = vpack.c.b16 %v917, %v916
      %v959 = vpack.c.b16 %v919, %v918
      %v960 = vpack.c.b16 %v921, %v920
      %v961 = vpack.c.b16 %v923, %v922
      %v962 = vpack.c.b16 %v925, %v924
      %v963 = vpack.c.b16 %v927, %v926
      %v964 = vpack.c.b16 %v929, %v928
      %v965 = vpack.c.b16 %v931, %v930
      %v966 = vpack.c.b16 %v933, %v932
      %v967 = vpack.c.b16 %v935, %v934
      %v968 = vpack.c.b16 %v937, %v936
      %v969 = vpack.c.b16 %v939, %v938
      %v970 = vpack.c.b16 %v941, %v940
      %v971 = vpack.c.b16 %v943, %v942
      %v972 = vpack.c.b16 %v945, %v944
      %v973 = vpack.c.b16 %v947, %v946
      %v974 = vpack.c.b16 %v949, %v948
      %v975 = vpack.c.b16 %v951, %v950
      %1000 = vmatprep.subr.bf16.mxu0 0
      %1001 = vmatpush1.bf16.msra.mxu0 %v952
      %1002 = vmatprep.subr.bf16.mxu0 0
      %1003 = vmatpush1.bf16.msra.mxu0 %v953
      %1004 = vmatprep.subr.bf16.mxu0 0
      %1005 = vmatpush1.bf16.msra.mxu0 %v954
      %1006 = vmatprep.subr.bf16.mxu0 0
      %1007 = vmatpush1.bf16.msra.mxu0 %v955
      %1008 = vmatprep.subr.bf16.mxu0 0
      %1009 = vmatpush1.bf16.msra.mxu0 %v956
      %1010 = vmatprep.subr.bf16.mxu0 0
      %1011 = vmatpush1.bf16.msra.mxu0 %v957
      %1012 = vmatprep.subr.bf16.mxu0 0
      %1013 = vmatpush1.bf16.msra.mxu0 %v958
      %1014 = vmatprep.subr.bf16.mxu0 0
      %1015 = vmatpush1.bf16.msra.mxu0 %v959
      %1016 = vmatprep.subr.bf16.mxu0 0
      %1017 = vmatpush1.bf16.msra.mxu0 %v960
      %1018 = vmatprep.subr.bf16.mxu0 0
      %1019 = vmatpush1.bf16.msra.mxu0 %v961
      %1020 = vmatprep.subr.bf16.mxu0 0
      %1021 = vmatpush1.bf16.msra.mxu0 %v962
      %1022 = vmatprep.subr.bf16.mxu0 0
      %1023 = vmatpush1.bf16.msra.mxu0 %v963
      %1024 = vmatprep.subr.bf16.mxu0 0
      %1025 = vmatpush1.bf16.msra.mxu0 %v964
      %1026 = vmatprep.subr.bf16.mxu0 0
      %1027 = vmatpush1.bf16.msra.mxu0 %v965
      %1028 = vmatprep.subr.bf16.mxu0 0
      %1029 = vmatpush1.bf16.msra.mxu0 %v966
      %1030 = vmatprep.subr.bf16.mxu0 0
      %1031 = vmatpush1.bf16.msra.mxu0 %v967
      %1032 = vmatprep.mubr.bf16.mxu0 %v828
      %1033 = vmatmul.mubr.bf16.gmra.mrb[0].mxu0 %v816
      %v1034 = vpop.f32.mrb[0].mxu0
      %v1035 = vadd.f32 0.0, %v1034
      %v1036 = vpop.f32.mrb[0].mxu0
      %v1037 = vpop.f32.mrb[0].mxu0
      %v1038 = vadd.f32 0.0, %v1037
      %v1039 = vpop.f32.mrb[0].mxu0
      %1040 = vmatprep.mubr.bf16.mxu0 %v846
      %1041 = vmatmul.mubr.bf16.gmra.mrb[0].mxu0 %v843
      %v1042 = vpop.f32.mrb[0].mxu0
      %v1043 = vadd.f32 0.0, %v1042
      %v1044 = vpop.f32.mrb[0].mxu0
      %v1045 = vpop.f32.mrb[0].mxu0
      %v1046 = vpop.f32.mrb[0].mxu0
      %1047 = vdwg.mxu0
      %1048 = vmatprep.subr.bf16.mxu0 0
      %1049 = vmatpush1.bf16.msra.mxu0 %v968
      %1050 = vmatprep.subr.bf16.mxu0 0
      %1051 = vmatpush1.bf16.msra.mxu0 %v969
      %1052 = vmatprep.subr.bf16.mxu0 0
      %1053 = vmatpush1.bf16.msra.mxu0 %v970
      %1054 = vmatprep.subr.bf16.mxu0 0
      %1055 = vmatpush1.bf16.msra.mxu0 %v971
      %1056 = vmatprep.subr.bf16.mxu0 0
      %1057 = vmatpush1.bf16.msra.mxu0 %v972
      %1058 = vmatprep.subr.bf16.mxu0 0
      %1059 = vmatpush1.bf16.msra.mxu0 %v973
      %1060 = vmatprep.subr.bf16.mxu0 0
      %1061 = vmatpush1.bf16.msra.mxu0 %v974
      %1062 = vmatprep.subr.bf16.mxu0 0
      %1063 = vmatpush1.bf16.msra.mxu0 %v975
      %1064 = vmatprep.subr.bf16.mxu0 0
      %1065 = vmatpush1.bf16.msra.mxu0 0
      %1066 = vmatprep.subr.bf16.mxu0 0
      %1067 = vmatpush1.bf16.msra.mxu0 0
      %1068 = vmatprep.subr.bf16.mxu0 0
      %1069 = vmatpush1.bf16.msra.mxu0 0
      %1070 = vmatprep.subr.bf16.mxu0 0
      %1071 = vmatpush1.bf16.msra.mxu0 0
      %1072 = vmatprep.subr.bf16.mxu0 0
      %1073 = vmatpush1.bf16.msra.mxu0 0
      %1074 = vmatprep.subr.bf16.mxu0 0
      %1075 = vmatpush1.bf16.msra.mxu0 0
      %1076 = vmatprep.subr.bf16.mxu0 0
      %1077 = vmatpush1.bf16.msra.mxu0 0
      %1078 = vmatprep.subr.bf16.mxu0 0
      %1079 = vmatpush1.bf16.msra.mxu0 0
      %1080 = vmatprep.mubr.bf16.mxu0 0
      %1081 = vmatmul.mubr.bf16.gmra.mrb[0].mxu0 %v840
      %v1082 = vpop.f32.mrb[0].mxu0
      %v1083 = vadd.f32 %v1035, %v1082
      %v1084 = vpop.f32.mrb[0].mxu0
      %v1085 = vpop.f32.mrb[0].mxu0
      %v1086 = vadd.f32 %v1038, %v1085
      %v1087 = vpop.f32.mrb[0].mxu0
      %1088 = vmatprep.mubr.bf16.mxu0 0
      %1089 = vmatmul.mubr.bf16.gmra.mrb[0].mxu0 %v849
      %v1090 = vpop.f32.mrb[0].mxu0
      %v1091 = vadd.f32 %v1043, %v1090
      %v1092 = vpop.f32.mrb[0].mxu0
      %v1093 = vpop.f32.mrb[0].mxu0
      %v1094 = vpop.f32.mrb[0].mxu0
      %1095 = vdwg.mxu0
      %v1096 = vadd.f32 %v752, %v1083
      %v1097 = vadd.f32 %v753, %v1086
      %v1098 = vadd.f32 %v754, %v1091
      %1099 = vst [vmem:[#allocation2] sm:$0xff] %v1096
      %1100 = vst [vmem:[#allocation2 + $0x8] sm:$0xff] %v1097
      %1101 = vst [vmem:[#allocation2 + $0x10] sm:$0xff] %v1098
      %v1102 = vld [vmem:[%s338] sm:$0xe]
      %v1103 = vld [vmem:[%s338 + $0x4] sm:$0xf]
      %v1104 = vld [vmem:[%s338 + $0x8] sm:$0xf]
      %v1105 = vld [vmem:[%s338 + $0xc] sm:$0x1]
      %v1106 = vld [vmem:[%s348] sm:$0xe]
      %v1107 = vld [vmem:[%s348 + $0x4] sm:$0xf]
      %v1108 = vld [vmem:[%s348 + $0x8] sm:$0xf]
      %v1109 = vld [vmem:[%s348 + $0xc] sm:$0x1]
      %v1110 = vld [vmem:[%s359] sm:$0xe]
      %v1111 = vld [vmem:[%s359 + $0x4] sm:$0xf]
      %v1112 = vld [vmem:[%s359 + $0x8] sm:$0xf]
      %v1113 = vld [vmem:[%s359 + $0xc] sm:$0x1]
      %v1118 = vunpack.c.l.b16 %v1102
      %v1119 = vunpack.c.l.b16 %v1103
      %v1120 = vunpack.c.l.b16 %v1104
      %v1121 = vunpack.c.l.b16 %v1105
      %v1122 = vpack.c.b16 %v1119, %v1118
      %v1123 = vpack.c.b16 %v1121, %v1120
      %v1128 = vunpack.c.l.b16 %v1106
      %v1129 = vunpack.c.l.b16 %v1107
      %v1130 = vunpack.c.l.b16 %v1108
      %v1131 = vunpack.c.l.b16 %v1109
      %v1132 = vpack.c.b16 %v1129, %v1128
      %v1133 = vpack.c.b16 %v1131, %v1130
      %v1138 = vunpack.c.l.b16 %v1110
      %v1139 = vunpack.c.l.b16 %v1111
      %v1140 = vunpack.c.l.b16 %v1112
      %v1141 = vunpack.c.l.b16 %v1113
      %v1142 = vpack.c.b16 %v1139, %v1138
      %v1143 = vpack.c.b16 %v1141, %v1140
      %v1144 = vld [vmem:[#allocation2] sm:$0xff]
      %v1145 = vld [vmem:[#allocation2 + $0x8] sm:$0xff]
      %v1146 = vld [vmem:[#allocation2 + $0x10] sm:$0xff]
      %s1147 = scalar_lea.vmem %s3, 384
      %v1148 = vld [vmem:[%s1147] sm:$0xf]
      %v1149 = vld [vmem:[%s1147 + $0x4] sm:$0xf]
      %v1150 = vld [vmem:[%s1147 + $0x8] sm:$0xf]
      %v1151 = vld [vmem:[%s1147 + $0xc] sm:$0xf]
      %v1152 = vld [vmem:[%s1147 + $0x10] sm:$0xf]
      %v1153 = vld [vmem:[%s1147 + $0x14] sm:$0xf]
      %v1154 = vld [vmem:[%s1147 + $0x18] sm:$0xf]
      %v1155 = vld [vmem:[%s1147 + $0x1c] sm:$0xf]
      %v1156 = vld [vmem:[%s1147 + $0x20] sm:$0xf]
      %v1157 = vld [vmem:[%s1147 + $0x24] sm:$0xf]
      %v1158 = vld [vmem:[%s1147 + $0x28] sm:$0xf]
      %v1159 = vld [vmem:[%s1147 + $0x2c] sm:$0xf]
      %v1160 = vld [vmem:[%s1147 + $0x30] sm:$0xf]
      %v1161 = vld [vmem:[%s1147 + $0x34] sm:$0xf]
      %v1162 = vld [vmem:[%s1147 + $0x38] sm:$0xf]
      %v1163 = vld [vmem:[%s1147 + $0x3c] sm:$0xf]
      %v1164 = vld [vmem:[%s1147 + $0x40] sm:$0xf]
      %v1165 = vld [vmem:[%s1147 + $0x44] sm:$0xf]
      %v1166 = vld [vmem:[%s1147 + $0x48] sm:$0xf]
      %v1167 = vld [vmem:[%s1147 + $0x4c] sm:$0xf]
      %v1168 = vld [vmem:[%s1147 + $0x50] sm:$0xf]
      %v1169 = vld [vmem:[%s1147 + $0x54] sm:$0xf]
      %v1170 = vld [vmem:[%s1147 + $0x58] sm:$0xf]
      %v1171 = vld [vmem:[%s1147 + $0x5c] sm:$0xf]
      %v1172 = vld [vmem:[%s1147 + $0x60] sm:$0xf]
      %v1173 = vld [vmem:[%s1147 + $0x64] sm:$0xf]
      %v1174 = vld [vmem:[%s1147 + $0x68] sm:$0xf]
      %v1175 = vld [vmem:[%s1147 + $0x6c] sm:$0xf]
      %v1176 = vld [vmem:[%s1147 + $0x70] sm:$0xf]
      %v1177 = vld [vmem:[%s1147 + $0x74] sm:$0xf]
      %v1178 = vld [vmem:[%s1147 + $0x78] sm:$0xf]
      %v1179 = vld [vmem:[%s1147 + $0x7c] sm:$0xf]
      %v1180 = vld [vmem:[%s1147 + $0x80] sm:$0xf]
      %v1181 = vld [vmem:[%s1147 + $0x84] sm:$0xf]
      %v1182 = vld [vmem:[%s1147 + $0x88] sm:$0xf]
      %v1183 = vld [vmem:[%s1147 + $0x8c] sm:$0xf]
      %v1184 = vld [vmem:[%s1147 + $0x90] sm:$0xf]
      %v1185 = vld [vmem:[%s1147 + $0x94] sm:$0xf]
      %v1186 = vld [vmem:[%s1147 + $0x98] sm:$0xf]
      %v1187 = vld [vmem:[%s1147 + $0x9c] sm:$0xf]
      %v1188 = vld [vmem:[%s1147 + $0xa0] sm:$0xf]
      %v1189 = vld [vmem:[%s1147 + $0xa4] sm:$0xf]
      %v1190 = vld [vmem:[%s1147 + $0xa8] sm:$0xf]
      %v1191 = vld [vmem:[%s1147 + $0xac] sm:$0xf]
      %v1192 = vld [vmem:[%s1147 + $0xb0] sm:$0xf]
      %v1193 = vld [vmem:[%s1147 + $0xb4] sm:$0xf]
      %v1194 = vld [vmem:[%s1147 + $0xb8] sm:$0xf]
      %v1195 = vld [vmem:[%s1147 + $0xbc] sm:$0xf]
      %vm1196 = vcmask 1046528
      %v1197 = vrot.slane %v1122, 1
      %v1198 = vrot.slane %v1123, 1
      %v1199 = vsel %vm1196, %v1197, %v1198
      %v1200 = vrot.slane %v1132, 1
      %v1201 = vrot.slane %v1133, 1
      %v1202 = vsel %vm1196, %v1200, %v1201
      %v1203 = vrot.slane %v1142, 1
      %v1204 = vrot.slane %v1143, 1
      %v1205 = vsel %vm1196, %v1203, %v1204
      %v1260 = vunpack.c.l.b16 %v1148
      %v1261 = vunpack.c.l.b16 %v1149
      %v1262 = vunpack.c.l.b16 %v1150
      %v1263 = vunpack.c.l.b16 %v1151
      %v1264 = vunpack.c.l.b16 %v1152
      %v1265 = vunpack.c.l.b16 %v1153
      %v1266 = vunpack.c.l.b16 %v1154
      %v1267 = vunpack.c.l.b16 %v1155
      %v1268 = vunpack.c.l.b16 %v1156
      %v1269 = vunpack.c.l.b16 %v1157
      %v1270 = vunpack.c.l.b16 %v1158
      %v1271 = vunpack.c.l.b16 %v1159
      %v1272 = vunpack.c.l.b16 %v1160
      %v1273 = vunpack.c.l.b16 %v1161
      %v1274 = vunpack.c.l.b16 %v1162
      %v1275 = vunpack.c.l.b16 %v1163
      %v1276 = vunpack.c.l.b16 %v1164
      %v1277 = vunpack.c.l.b16 %v1165
      %v1278 = vunpack.c.l.b16 %v1166
      %v1279 = vunpack.c.l.b16 %v1167
      %v1280 = vunpack.c.l.b16 %v1168
      %v1281 = vunpack.c.l.b16 %v1169
      %v1282 = vunpack.c.l.b16 %v1170
      %v1283 = vunpack.c.l.b16 %v1171
      %v1284 = vunpack.c.l.b16 %v1172
      %v1285 = vunpack.c.l.b16 %v1173
      %v1286 = vunpack.c.l.b16 %v1174
      %v1287 = vunpack.c.l.b16 %v1175
      %v1288 = vunpack.c.l.b16 %v1176
      %v1289 = vunpack.c.l.b16 %v1177
      %v1290 = vunpack.c.l.b16 %v1178
      %v1291 = vunpack.c.l.b16 %v1179
      %v1292 = vunpack.c.l.b16 %v1180
      %v1293 = vunpack.c.l.b16 %v1181
      %v1294 = vunpack.c.l.b16 %v1182
      %v1295 = vunpack.c.l.b16 %v1183
      %v1296 = vunpack.c.l.b16 %v1184
      %v1297 = vunpack.c.l.b16 %v1185
      %v1298 = vunpack.c.l.b16 %v1186
      %v1299 = vunpack.c.l.b16 %v1187
      %v1300 = vunpack.c.l.b16 %v1188
      %v1301 = vunpack.c.l.b16 %v1189
      %v1302 = vunpack.c.l.b16 %v1190
      %v1303 = vunpack.c.l.b16 %v1191
      %v1304 = vunpack.c.l.b16 %v1192
      %v1305 = vunpack.c.l.b16 %v1193
      %v1306 = vunpack.c.l.b16 %v1194
      %v1307 = vunpack.c.l.b16 %v1195
      %v1308 = vpack.c.b16 %v1261, %v1260
      %v1309 = vpack.c.b16 %v1263, %v1262
      %v1310 = vpack.c.b16 %v1265, %v1264
      %v1311 = vpack.c.b16 %v1267, %v1266
      %v1312 = vpack.c.b16 %v1269, %v1268
      %v1313 = vpack.c.b16 %v1271, %v1270
      %v1314 = vpack.c.b16 %v1273, %v1272
      %v1315 = vpack.c.b16 %v1275, %v1274
      %v1316 = vpack.c.b16 %v1277, %v1276
      %v1317 = vpack.c.b16 %v1279, %v1278
      %v1318 = vpack.c.b16 %v1281, %v1280
      %v1319 = vpack.c.b16 %v1283, %v1282
      %v1320 = vpack.c.b16 %v1285, %v1284
      %v1321 = vpack.c.b16 %v1287, %v1286
      %v1322 = vpack.c.b16 %v1289, %v1288
      %v1323 = vpack.c.b16 %v1291, %v1290
      %v1324 = vpack.c.b16 %v1293, %v1292
      %v1325 = vpack.c.b16 %v1295, %v1294
      %v1326 = vpack.c.b16 %v1297, %v1296
      %v1327 = vpack.c.b16 %v1299, %v1298
      %v1328 = vpack.c.b16 %v1301, %v1300
      %v1329 = vpack.c.b16 %v1303, %v1302
      %v1330 = vpack.c.b16 %v1305, %v1304
      %v1331 = vpack.c.b16 %v1307, %v1306
      %1356 = vmatprep.subr.bf16.mxu0 0
      %1357 = vmatpush1.bf16.msra.mxu0 %v1308
      %1358 = vmatprep.subr.bf16.mxu0 0
      %1359 = vmatpush1.bf16.msra.mxu0 %v1309
      %1360 = vmatprep.subr.bf16.mxu0 0
      %1361 = vmatpush1.bf16.msra.mxu0 %v1310
      %1362 = vmatprep.subr.bf16.mxu0 0
      %1363 = vmatpush1.bf16.msra.mxu0 %v1311
      %1364 = vmatprep.subr.bf16.mxu0 0
      %1365 = vmatpush1.bf16.msra.mxu0 %v1312
      %1366 = vmatprep.subr.bf16.mxu0 0
      %1367 = vmatpush1.bf16.msra.mxu0 %v1313
      %1368 = vmatprep.subr.bf16.mxu0 0
      %1369 = vmatpush1.bf16.msra.mxu0 %v1314
      %1370 = vmatprep.subr.bf16.mxu0 0
      %1371 = vmatpush1.bf16.msra.mxu0 %v1315
      %1372 = vmatprep.subr.bf16.mxu0 0
      %1373 = vmatpush1.bf16.msra.mxu0 %v1316
      %1374 = vmatprep.subr.bf16.mxu0 0
      %1375 = vmatpush1.bf16.msra.mxu0 %v1317
      %1376 = vmatprep.subr.bf16.mxu0 0
      %1377 = vmatpush1.bf16.msra.mxu0 %v1318
      %1378 = vmatprep.subr.bf16.mxu0 0
      %1379 = vmatpush1.bf16.msra.mxu0 %v1319
      %1380 = vmatprep.subr.bf16.mxu0 0
      %1381 = vmatpush1.bf16.msra.mxu0 %v1320
      %1382 = vmatprep.subr.bf16.mxu0 0
      %1383 = vmatpush1.bf16.msra.mxu0 %v1321
      %1384 = vmatprep.subr.bf16.mxu0 0
      %1385 = vmatpush1.bf16.msra.mxu0 %v1322
      %1386 = vmatprep.subr.bf16.mxu0 0
      %1387 = vmatpush1.bf16.msra.mxu0 %v1323
      %1388 = vmatprep.mubr.bf16.mxu0 %v1202
      %1389 = vmatmul.mubr.bf16.gmra.mrb[0].mxu0 %v1199
      %v1390 = vpop.f32.mrb[0].mxu0
      %v1391 = vadd.f32 0.0, %v1390
      %v1392 = vpop.f32.mrb[0].mxu0
      %v1393 = vpop.f32.mrb[0].mxu0
      %v1394 = vadd.f32 0.0, %v1393
      %v1395 = vpop.f32.mrb[0].mxu0
      %1396 = vmatprep.mubr.bf16.mxu0 %v1201
      %1397 = vmatmul.mubr.bf16.gmra.mrb[0].mxu0 %v1198
      %v1398 = vpop.f32.mrb[0].mxu0
      %v1399 = vadd.f32 0.0, %v1398
      %v1400 = vpop.f32.mrb[0].mxu0
      %v1401 = vpop.f32.mrb[0].mxu0
      %v1402 = vpop.f32.mrb[0].mxu0
      %1403 = vdwg.mxu0
      %1404 = vmatprep.subr.bf16.mxu0 0
      %1405 = vmatpush1.bf16.msra.mxu0 %v1324
      %1406 = vmatprep.subr.bf16.mxu0 0
      %1407 = vmatpush1.bf16.msra.mxu0 %v1325
      %1408 = vmatprep.subr.bf16.mxu0 0
      %1409 = vmatpush1.bf16.msra.mxu0 %v1326
      %1410 = vmatprep.subr.bf16.mxu0 0
      %1411 = vmatpush1.bf16.msra.mxu0 %v1327
      %1412 = vmatprep.subr.bf16.mxu0 0
      %1413 = vmatpush1.bf16.msra.mxu0 %v1328
      %1414 = vmatprep.subr.bf16.mxu0 0
      %1415 = vmatpush1.bf16.msra.mxu0 %v1329
      %1416 = vmatprep.subr.bf16.mxu0 0
      %1417 = vmatpush1.bf16.msra.mxu0 %v1330
      %1418 = vmatprep.subr.bf16.mxu0 0
      %1419 = vmatpush1.bf16.msra.mxu0 %v1331
      %1420 = vmatprep.subr.bf16.mxu0 0
      %1421 = vmatpush1.bf16.msra.mxu0 0
      %1422 = vmatprep.subr.bf16.mxu0 0
      %1423 = vmatpush1.bf16.msra.mxu0 0
      %1424 = vmatprep.subr.bf16.mxu0 0
      %1425 = vmatpush1.bf16.msra.mxu0 0
      %1426 = vmatprep.subr.bf16.mxu0 0
      %1427 = vmatpush1.bf16.msra.mxu0 0
      %1428 = vmatprep.subr.bf16.mxu0 0
      %1429 = vmatpush1.bf16.msra.mxu0 0
      %1430 = vmatprep.subr.bf16.mxu0 0
      %1431 = vmatpush1.bf16.msra.mxu0 0
      %1432 = vmatprep.subr.bf16.mxu0 0
      %1433 = vmatpush1.bf16.msra.mxu0 0
      %1434 = vmatprep.subr.bf16.mxu0 0
      %1435 = vmatpush1.bf16.msra.mxu0 0
      %1436 = vmatprep.mubr.bf16.mxu0 0
      %1437 = vmatmul.mubr.bf16.gmra.mrb[0].mxu0 %v1205
      %v1438 = vpop.f32.mrb[0].mxu0
      %v1439 = vadd.f32 %v1391, %v1438
      %v1440 = vpop.f32.mrb[0].mxu0
      %v1441 = vpop.f32.mrb[0].mxu0
      %v1442 = vadd.f32 %v1394, %v1441
      %v1443 = vpop.f32.mrb[0].mxu0
      %1444 = vmatprep.mubr.bf16.mxu0 0
      %1445 = vmatmul.mubr.bf16.gmra.mrb[0].mxu0 %v1204
      %v1446 = vpop.f32.mrb[0].mxu0
      %v1447 = vadd.f32 %v1399, %v1446
      %v1448 = vpop.f32.mrb[0].mxu0
      %v1449 = vpop.f32.mrb[0].mxu0
      %v1450 = vpop.f32.mrb[0].mxu0
      %1451 = vdwg.mxu0
      %v1452 = vadd.f32 %v1144, %v1439
      %v1453 = vadd.f32 %v1145, %v1442
      %v1454 = vadd.f32 %v1146, %v1447
      %1455 = vst [vmem:[#allocation2] sm:$0xff] %v1452
      %1456 = vst [vmem:[#allocation2 + $0x8] sm:$0xff] %v1453
      %1457 = vst [vmem:[#allocation2 + $0x10] sm:$0xff] %v1454
      %v1458 = vld [vmem:[%s338] sm:$0x8]
      %v1459 = vld [vmem:[%s338 + $0x4] sm:$0xf]
      %v1460 = vld [vmem:[%s338 + $0x8] sm:$0xf]
      %v1461 = vld [vmem:[%s338 + $0xc] sm:$0x7]
      %v1462 = vld [vmem:[%s348] sm:$0x8]
      %v1463 = vld [vmem:[%s348 + $0x4] sm:$0xf]
      %v1464 = vld [vmem:[%s348 + $0x8] sm:$0xf]
      %v1465 = vld [vmem:[%s348 + $0xc] sm:$0x7]
      %v1466 = vld [vmem:[%s359] sm:$0x8]
      %v1467 = vld [vmem:[%s359 + $0x4] sm:$0xf]
      %v1468 = vld [vmem:[%s359 + $0x8] sm:$0xf]
      %v1469 = vld [vmem:[%s359 + $0xc] sm:$0x7]
      %v1474 = vunpack.c.l.b16 %v1458
      %v1475 = vunpack.c.l.b16 %v1459
      %v1476 = vunpack.c.l.b16 %v1460
      %v1477 = vunpack.c.l.b16 %v1461
      %v1478 = vpack.c.b16 %v1475, %v1474
      %v1479 = vpack.c.b16 %v1477, %v1476
      %v1484 = vunpack.c.l.b16 %v1462
      %v1485 = vunpack.c.l.b16 %v1463
      %v1486 = vunpack.c.l.b16 %v1464
      %v1487 = vunpack.c.l.b16 %v1465
      %v1488 = vpack.c.b16 %v1485, %v1484
      %v1489 = vpack.c.b16 %v1487, %v1486
      %v1494 = vunpack.c.l.b16 %v1466
      %v1495 = vunpack.c.l.b16 %v1467
      %v1496 = vunpack.c.l.b16 %v1468
      %v1497 = vunpack.c.l.b16 %v1469
      %v1498 = vpack.c.b16 %v1495, %v1494
      %v1499 = vpack.c.b16 %v1497, %v1496
      %v1500 = vld [vmem:[#allocation2] sm:$0xff]
      %v1501 = vld [vmem:[#allocation2 + $0x8] sm:$0xff]
      %v1502 = vld [vmem:[#allocation2 + $0x10] sm:$0xff]
      %s1503 = scalar_lea.vmem %s3, 576
      %v1504 = vld [vmem:[%s1503] sm:$0xf]
      %v1505 = vld [vmem:[%s1503 + $0x4] sm:$0xf]
      %v1506 = vld [vmem:[%s1503 + $0x8] sm:$0xf]
      %v1507 = vld [vmem:[%s1503 + $0xc] sm:$0xf]
      %v1508 = vld [vmem:[%s1503 + $0x10] sm:$0xf]
      %v1509 = vld [vmem:[%s1503 + $0x14] sm:$0xf]
      %v1510 = vld [vmem:[%s1503 + $0x18] sm:$0xf]
      %v1511 = vld [vmem:[%s1503 + $0x1c] sm:$0xf]
      %v1512 = vld [vmem:[%s1503 + $0x20] sm:$0xf]
      %v1513 = vld [vmem:[%s1503 + $0x24] sm:$0xf]
      %v1514 = vld [vmem:[%s1503 + $0x28] sm:$0xf]
      %v1515 = vld [vmem:[%s1503 + $0x2c] sm:$0xf]
      %v1516 = vld [vmem:[%s1503 + $0x30] sm:$0xf]
      %v1517 = vld [vmem:[%s1503 + $0x34] sm:$0xf]
      %v1518 = vld [vmem:[%s1503 + $0x38] sm:$0xf]
      %v1519 = vld [vmem:[%s1503 + $0x3c] sm:$0xf]
      %v1520 = vld [vmem:[%s1503 + $0x40] sm:$0xf]
      %v1521 = vld [vmem:[%s1503 + $0x44] sm:$0xf]
      %v1522 = vld [vmem:[%s1503 + $0x48] sm:$0xf]
      %v1523 = vld [vmem:[%s1503 + $0x4c] sm:$0xf]
      %v1524 = vld [vmem:[%s1503 + $0x50] sm:$0xf]
      %v1525 = vld [vmem:[%s1503 + $0x54] sm:$0xf]
      %v1526 = vld [vmem:[%s1503 + $0x58] sm:$0xf]
      %v1527 = vld [vmem:[%s1503 + $0x5c] sm:$0xf]
      %v1528 = vld [vmem:[%s1503 + $0x60] sm:$0xf]
      %v1529 = vld [vmem:[%s1503 + $0x64] sm:$0xf]
      %v1530 = vld [vmem:[%s1503 + $0x68] sm:$0xf]
      %v1531 = vld [vmem:[%s1503 + $0x6c] sm:$0xf]
      %v1532 = vld [vmem:[%s1503 + $0x70] sm:$0xf]
      %v1533 = vld [vmem:[%s1503 + $0x74] sm:$0xf]
      %v1534 = vld [vmem:[%s1503 + $0x78] sm:$0xf]
      %v1535 = vld [vmem:[%s1503 + $0x7c] sm:$0xf]
      %v1536 = vld [vmem:[%s1503 + $0x80] sm:$0xf]
      %v1537 = vld [vmem:[%s1503 + $0x84] sm:$0xf]
      %v1538 = vld [vmem:[%s1503 + $0x88] sm:$0xf]
      %v1539 = vld [vmem:[%s1503 + $0x8c] sm:$0xf]
      %v1540 = vld [vmem:[%s1503 + $0x90] sm:$0xf]
      %v1541 = vld [vmem:[%s1503 + $0x94] sm:$0xf]
      %v1542 = vld [vmem:[%s1503 + $0x98] sm:$0xf]
      %v1543 = vld [vmem:[%s1503 + $0x9c] sm:$0xf]
      %v1544 = vld [vmem:[%s1503 + $0xa0] sm:$0xf]
      %v1545 = vld [vmem:[%s1503 + $0xa4] sm:$0xf]
      %v1546 = vld [vmem:[%s1503 + $0xa8] sm:$0xf]
      %v1547 = vld [vmem:[%s1503 + $0xac] sm:$0xf]
      %v1548 = vld [vmem:[%s1503 + $0xb0] sm:$0xf]
      %v1549 = vld [vmem:[%s1503 + $0xb4] sm:$0xf]
      %v1550 = vld [vmem:[%s1503 + $0xb8] sm:$0xf]
      %v1551 = vld [vmem:[%s1503 + $0xbc] sm:$0xf]
      %vm1552 = vcmask 1044480
      %v1553 = vrot.slane %v1478, 3
      %v1554 = vrot.slane %v1479, 3
      %v1555 = vsel %vm1552, %v1553, %v1554
      %v1556 = vrot.slane %v1488, 3
      %v1557 = vrot.slane %v1489, 3
      %v1558 = vsel %vm1552, %v1556, %v1557
      %v1559 = vrot.slane %v1498, 3
      %v1560 = vrot.slane %v1499, 3
      %v1561 = vsel %vm1552, %v1559, %v1560
      %v1616 = vunpack.c.l.b16 %v1504
      %v1617 = vunpack.c.l.b16 %v1505
      %v1618 = vunpack.c.l.b16 %v1506
      %v1619 = vunpack.c.l.b16 %v1507
      %v1620 = vunpack.c.l.b16 %v1508
      %v1621 = vunpack.c.l.b16 %v1509
      %v1622 = vunpack.c.l.b16 %v1510
      %v1623 = vunpack.c.l.b16 %v1511
      %v1624 = vunpack.c.l.b16 %v1512
      %v1625 = vunpack.c.l.b16 %v1513
      %v1626 = vunpack.c.l.b16 %v1514
      %v1627 = vunpack.c.l.b16 %v1515
      %v1628 = vunpack.c.l.b16 %v1516
      %v1629 = vunpack.c.l.b16 %v1517
      %v1630 = vunpack.c.l.b16 %v1518
      %v1631 = vunpack.c.l.b16 %v1519
      %v1632 = vunpack.c.l.b16 %v1520
      %v1633 = vunpack.c.l.b16 %v1521
      %v1634 = vunpack.c.l.b16 %v1522
      %v1635 = vunpack.c.l.b16 %v1523
      %v1636 = vunpack.c.l.b16 %v1524
      %v1637 = vunpack.c.l.b16 %v1525
      %v1638 = vunpack.c.l.b16 %v1526
      %v1639 = vunpack.c.l.b16 %v1527
      %v1640 = vunpack.c.l.b16 %v1528
      %v1641 = vunpack.c.l.b16 %v1529
      %v1642 = vunpack.c.l.b16 %v1530
      %v1643 = vunpack.c.l.b16 %v1531
      %v1644 = vunpack.c.l.b16 %v1532
      %v1645 = vunpack.c.l.b16 %v1533
      %v1646 = vunpack.c.l.b16 %v1534
      %v1647 = vunpack.c.l.b16 %v1535
      %v1648 = vunpack.c.l.b16 %v1536
      %v1649 = vunpack.c.l.b16 %v1537
      %v1650 = vunpack.c.l.b16 %v1538
      %v1651 = vunpack.c.l.b16 %v1539
      %v1652 = vunpack.c.l.b16 %v1540
      %v1653 = vunpack.c.l.b16 %v1541
      %v1654 = vunpack.c.l.b16 %v1542
      %v1655 = vunpack.c.l.b16 %v1543
      %v1656 = vunpack.c.l.b16 %v1544
      %v1657 = vunpack.c.l.b16 %v1545
      %v1658 = vunpack.c.l.b16 %v1546
      %v1659 = vunpack.c.l.b16 %v1547
      %v1660 = vunpack.c.l.b16 %v1548
      %v1661 = vunpack.c.l.b16 %v1549
      %v1662 = vunpack.c.l.b16 %v1550
      %v1663 = vunpack.c.l.b16 %v1551
      %v1664 = vpack.c.b16 %v1617, %v1616
      %v1665 = vpack.c.b16 %v1619, %v1618
      %v1666 = vpack.c.b16 %v1621, %v1620
      %v1667 = vpack.c.b16 %v1623, %v1622
      %v1668 = vpack.c.b16 %v1625, %v1624
      %v1669 = vpack.c.b16 %v1627, %v1626
      %v1670 = vpack.c.b16 %v1629, %v1628
      %v1671 = vpack.c.b16 %v1631, %v1630
      %v1672 = vpack.c.b16 %v1633, %v1632
      %v1673 = vpack.c.b16 %v1635, %v1634
      %v1674 = vpack.c.b16 %v1637, %v1636
      %v1675 = vpack.c.b16 %v1639, %v1638
      %v1676 = vpack.c.b16 %v1641, %v1640
      %v1677 = vpack.c.b16 %v1643, %v1642
      %v1678 = vpack.c.b16 %v1645, %v1644
      %v1679 = vpack.c.b16 %v1647, %v1646
      %v1680 = vpack.c.b16 %v1649, %v1648
      %v1681 = vpack.c.b16 %v1651, %v1650
      %v1682 = vpack.c.b16 %v1653, %v1652
      %v1683 = vpack.c.b16 %v1655, %v1654
      %v1684 = vpack.c.b16 %v1657, %v1656
      %v1685 = vpack.c.b16 %v1659, %v1658
      %v1686 = vpack.c.b16 %v1661, %v1660
      %v1687 = vpack.c.b16 %v1663, %v1662
      %1712 = vmatprep.subr.bf16.mxu0 0
      %1713 = vmatpush1.bf16.msra.mxu0 %v1664
      %1714 = vmatprep.subr.bf16.mxu0 0
      %1715 = vmatpush1.bf16.msra.mxu0 %v1665
      %1716 = vmatprep.subr.bf16.mxu0 0
      %1717 = vmatpush1.bf16.msra.mxu0 %v1666
      %1718 = vmatprep.subr.bf16.mxu0 0
      %1719 = vmatpush1.bf16.msra.mxu0 %v1667
      %1720 = vmatprep.subr.bf16.mxu0 0
      %1721 = vmatpush1.bf16.msra.mxu0 %v1668
      %1722 = vmatprep.subr.bf16.mxu0 0
      %1723 = vmatpush1.bf16.msra.mxu0 %v1669
      %1724 = vmatprep.subr.bf16.mxu0 0
      %1725 = vmatpush1.bf16.msra.mxu0 %v1670
      %1726 = vmatprep.subr.bf16.mxu0 0
      %1727 = vmatpush1.bf16.msra.mxu0 %v1671
      %1728 = vmatprep.subr.bf16.mxu0 0
      %1729 = vmatpush1.bf16.msra.mxu0 %v1672
      %1730 = vmatprep.subr.bf16.mxu0 0
      %1731 = vmatpush1.bf16.msra.mxu0 %v1673
      %1732 = vmatprep.subr.bf16.mxu0 0
      %1733 = vmatpush1.bf16.msra.mxu0 %v1674
      %1734 = vmatprep.subr.bf16.mxu0 0
      %1735 = vmatpush1.bf16.msra.mxu0 %v1675
      %1736 = vmatprep.subr.bf16.mxu0 0
      %1737 = vmatpush1.bf16.msra.mxu0 %v1676
      %1738 = vmatprep.subr.bf16.mxu0 0
      %1739 = vmatpush1.bf16.msra.mxu0 %v1677
      %1740 = vmatprep.subr.bf16.mxu0 0
      %1741 = vmatpush1.bf16.msra.mxu0 %v1678
      %1742 = vmatprep.subr.bf16.mxu0 0
      %1743 = vmatpush1.bf16.msra.mxu0 %v1679
      %1744 = vmatprep.mubr.bf16.mxu0 %v1558
      %1745 = vmatmul.mubr.bf16.gmra.mrb[0].mxu0 %v1555
      %v1746 = vpop.f32.mrb[0].mxu0
      %v1747 = vadd.f32 0.0, %v1746
      %v1748 = vpop.f32.mrb[0].mxu0
      %v1749 = vpop.f32.mrb[0].mxu0
      %v1750 = vadd.f32 0.0, %v1749
      %v1751 = vpop.f32.mrb[0].mxu0
      %1752 = vmatprep.mubr.bf16.mxu0 %v1557
      %1753 = vmatmul.mubr.bf16.gmra.mrb[0].mxu0 %v1554
      %v1754 = vpop.f32.mrb[0].mxu0
      %v1755 = vadd.f32 0.0, %v1754
      %v1756 = vpop.f32.mrb[0].mxu0
      %v1757 = vpop.f32.mrb[0].mxu0
      %v1758 = vpop.f32.mrb[0].mxu0
      %1759 = vdwg.mxu0
      %1760 = vmatprep.subr.bf16.mxu0 0
      %1761 = vmatpush1.bf16.msra.mxu0 %v1680
      %1762 = vmatprep.subr.bf16.mxu0 0
      %1763 = vmatpush1.bf16.msra.mxu0 %v1681
      %1764 = vmatprep.subr.bf16.mxu0 0
      %1765 = vmatpush1.bf16.msra.mxu0 %v1682
      %1766 = vmatprep.subr.bf16.mxu0 0
      %1767 = vmatpush1.bf16.msra.mxu0 %v1683
      %1768 = vmatprep.subr.bf16.mxu0 0
      %1769 = vmatpush1.bf16.msra.mxu0 %v1684
      %1770 = vmatprep.subr.bf16.mxu0 0
      %1771 = vmatpush1.bf16.msra.mxu0 %v1685
      %1772 = vmatprep.subr.bf16.mxu0 0
      %1773 = vmatpush1.bf16.msra.mxu0 %v1686
      %1774 = vmatprep.subr.bf16.mxu0 0
      %1775 = vmatpush1.bf16.msra.mxu0 %v1687
      %1776 = vmatprep.subr.bf16.mxu0 0
      %1777 = vmatpush1.bf16.msra.mxu0 0
      %1778 = vmatprep.subr.bf16.mxu0 0
      %1779 = vmatpush1.bf16.msra.mxu0 0
      %1780 = vmatprep.subr.bf16.mxu0 0
      %1781 = vmatpush1.bf16.msra.mxu0 0
      %1782 = vmatprep.subr.bf16.mxu0 0
      %1783 = vmatpush1.bf16.msra.mxu0 0
      %1784 = vmatprep.subr.bf16.mxu0 0
      %1785 = vmatpush1.bf16.msra.mxu0 0
      %1786 = vmatprep.subr.bf16.mxu0 0
      %1787 = vmatpush1.bf16.msra.mxu0 0
      %1788 = vmatprep.subr.bf16.mxu0 0
      %1789 = vmatpush1.bf16.msra.mxu0 0
      %1790 = vmatprep.subr.bf16.mxu0 0
      %1791 = vmatpush1.bf16.msra.mxu0 0
      %1792 = vmatprep.mubr.bf16.mxu0 0
      %1793 = vmatmul.mubr.bf16.gmra.mrb[0].mxu0 %v1561
      %v1794 = vpop.f32.mrb[0].mxu0
      %v1795 = vadd.f32 %v1747, %v1794
      %v1796 = vpop.f32.mrb[0].mxu0
      %v1797 = vpop.f32.mrb[0].mxu0
      %v1798 = vadd.f32 %v1750, %v1797
      %v1799 = vpop.f32.mrb[0].mxu0
      %1800 = vmatprep.mubr.bf16.mxu0 0
      %1801 = vmatmul.mubr.bf16.gmra.mrb[0].mxu0 %v1560
      %v1802 = vpop.f32.mrb[0].mxu0
      %v1803 = vadd.f32 %v1755, %v1802
      %v1804 = vpop.f32.mrb[0].mxu0
      %v1805 = vpop.f32.mrb[0].mxu0
      %v1806 = vpop.f32.mrb[0].mxu0
      %1807 = vdwg.mxu0
      %v1808 = vadd.f32 %v1500, %v1795
      %v1809 = vadd.f32 %v1501, %v1798
      %v1810 = vadd.f32 %v1502, %v1803
      %1811 = vst [vmem:[#allocation2] sm:$0xff] %v1808
      %1812 = vst [vmem:[#allocation2 + $0x8] sm:$0xff] %v1809
      %1813 = vst [vmem:[#allocation2 + $0x10] sm:$0xff] %v1810
      %v1814 = vld [vmem:[%s338] sm:$0x8]
      %v1815 = vld [vmem:[%s338 + $0x4] sm:$0xf]
      %v1816 = vld [vmem:[%s338 + $0x8] sm:$0xf]
      %v1817 = vld [vmem:[%s338 + $0xc] sm:$0xf]
      %v1818 = vld [vmem:[%s348] sm:$0x8]
      %v1819 = vld [vmem:[%s348 + $0x4] sm:$0xf]
      %v1820 = vld [vmem:[%s348 + $0x8] sm:$0xf]
      %v1821 = vld [vmem:[%s348 + $0xc] sm:$0xf]
      %v1822 = vld [vmem:[%s359] sm:$0x8]
      %v1823 = vld [vmem:[%s359 + $0x4] sm:$0xf]
      %v1824 = vld [vmem:[%s359 + $0x8] sm:$0xf]
      %v1825 = vld [vmem:[%s359 + $0xc] sm:$0xf]
      %v1830 = vunpack.c.l.b16 %v1814
      %v1831 = vunpack.c.l.b16 %v1815
      %v1832 = vunpack.c.l.b16 %v1816
      %v1833 = vunpack.c.l.b16 %v1817
      %v1834 = vpack.c.b16 %v1831, %v1830
      %v1835 = vpack.c.b16 %v1833, %v1832
      %v1840 = vunpack.c.l.b16 %v1818
      %v1841 = vunpack.c.l.b16 %v1819
      %v1842 = vunpack.c.l.b16 %v1820
      %v1843 = vunpack.c.l.b16 %v1821
      %v1844 = vpack.c.b16 %v1841, %v1840
      %v1845 = vpack.c.b16 %v1843, %v1842
      %v1850 = vunpack.c.l.b16 %v1822
      %v1851 = vunpack.c.l.b16 %v1823
      %v1852 = vunpack.c.l.b16 %v1824
      %v1853 = vunpack.c.l.b16 %v1825
      %v1854 = vpack.c.b16 %v1851, %v1850
      %v1855 = vpack.c.b16 %v1853, %v1852
      %v1856 = vld [vmem:[#allocation2] sm:$0xff]
      %v1857 = vld [vmem:[#allocation2 + $0x8] sm:$0xff]
      %v1858 = vld [vmem:[#allocation2 + $0x10] sm:$0xff]
      %s1859 = scalar_lea.vmem %s3, 768
      %v1860 = vld [vmem:[%s1859] sm:$0xf]
      %v1861 = vld [vmem:[%s1859 + $0x4] sm:$0xf]
      %v1862 = vld [vmem:[%s1859 + $0x8] sm:$0xf]
      %v1863 = vld [vmem:[%s1859 + $0xc] sm:$0xf]
      %v1864 = vld [vmem:[%s1859 + $0x10] sm:$0xf]
      %v1865 = vld [vmem:[%s1859 + $0x14] sm:$0xf]
      %v1866 = vld [vmem:[%s1859 + $0x18] sm:$0xf]
      %v1867 = vld [vmem:[%s1859 + $0x1c] sm:$0xf]
      %v1868 = vld [vmem:[%s1859 + $0x20] sm:$0xf]
      %v1869 = vld [vmem:[%s1859 + $0x24] sm:$0xf]
      %v1870 = vld [vmem:[%s1859 + $0x28] sm:$0xf]
      %v1871 = vld [vmem:[%s1859 + $0x2c] sm:$0xf]
      %v1872 = vld [vmem:[%s1859 + $0x30] sm:$0xf]
      %v1873 = vld [vmem:[%s1859 + $0x34] sm:$0xf]
      %v1874 = vld [vmem:[%s1859 + $0x38] sm:$0xf]
      %v1875 = vld [vmem:[%s1859 + $0x3c] sm:$0xf]
      %v1876 = vld [vmem:[%s1859 + $0x40] sm:$0xf]
      %v1877 = vld [vmem:[%s1859 + $0x44] sm:$0xf]
      %v1878 = vld [vmem:[%s1859 + $0x48] sm:$0xf]
      %v1879 = vld [vmem:[%s1859 + $0x4c] sm:$0xf]
      %v1880 = vld [vmem:[%s1859 + $0x50] sm:$0xf]
      %v1881 = vld [vmem:[%s1859 + $0x54] sm:$0xf]
      %v1882 = vld [vmem:[%s1859 + $0x58] sm:$0xf]
      %v1883 = vld [vmem:[%s1859 + $0x5c] sm:$0xf]
      %v1884 = vld [vmem:[%s1859 + $0x60] sm:$0xf]
      %v1885 = vld [vmem:[%s1859 + $0x64] sm:$0xf]
      %v1886 = vld [vmem:[%s1859 + $0x68] sm:$0xf]
      %v1887 = vld [vmem:[%s1859 + $0x6c] sm:$0xf]
      %v1888 = vld [vmem:[%s1859 + $0x70] sm:$0xf]
      %v1889 = vld [vmem:[%s1859 + $0x74] sm:$0xf]
      %v1890 = vld [vmem:[%s1859 + $0x78] sm:$0xf]
      %v1891 = vld [vmem:[%s1859 + $0x7c] sm:$0xf]
      %v1892 = vld [vmem:[%s1859 + $0x80] sm:$0xf]
      %v1893 = vld [vmem:[%s1859 + $0x84] sm:$0xf]
      %v1894 = vld [vmem:[%s1859 + $0x88] sm:$0xf]
      %v1895 = vld [vmem:[%s1859 + $0x8c] sm:$0xf]
      %v1896 = vld [vmem:[%s1859 + $0x90] sm:$0xf]
      %v1897 = vld [vmem:[%s1859 + $0x94] sm:$0xf]
      %v1898 = vld [vmem:[%s1859 + $0x98] sm:$0xf]
      %v1899 = vld [vmem:[%s1859 + $0x9c] sm:$0xf]
      %v1900 = vld [vmem:[%s1859 + $0xa0] sm:$0xf]
      %v1901 = vld [vmem:[%s1859 + $0xa4] sm:$0xf]
      %v1902 = vld [vmem:[%s1859 + $0xa8] sm:$0xf]
      %v1903 = vld [vmem:[%s1859 + $0xac] sm:$0xf]
      %v1904 = vld [vmem:[%s1859 + $0xb0] sm:$0xf]
      %v1905 = vld [vmem:[%s1859 + $0xb4] sm:$0xf]
      %v1906 = vld [vmem:[%s1859 + $0xb8] sm:$0xf]
      %v1907 = vld [vmem:[%s1859 + $0xbc] sm:$0xf]
      %vm1908 = vsmask.f32 4352
      %v1910 = vshrl.u32 %v1834, 16
      %v1912 = vrot.slane %v1910, 3
      %v1913 = vshll.u32 %v1834, 16
      %v1915 = vrot.slane %v1913, 4
      %v1916 = vor.u32 %v1912, %v1915
      %v1918 = vshrl.u32 %v1835, 16
      %v1920 = vrot.slane %v1918, 3
      %v1921 = vshll.u32 %v1835, 16
      %v1923 = vrot.slane %v1921, 4
      %v1924 = vor.u32 %v1920, %v1923
      %v1925 = vsel %vm1908, %v1916, %v1924
      %v1927 = vshrl.u32 %v1844, 16
      %v1929 = vrot.slane %v1927, 3
      %v1930 = vshll.u32 %v1844, 16
      %v1932 = vrot.slane %v1930, 4
      %v1933 = vor.u32 %v1929, %v1932
      %v1935 = vshrl.u32 %v1845, 16
      %v1937 = vrot.slane %v1935, 3
      %v1938 = vshll.u32 %v1845, 16
      %v1940 = vrot.slane %v1938, 4
      %v1941 = vor.u32 %v1937, %v1940
      %v1942 = vsel %vm1908, %v1933, %v1941
      %v1944 = vshrl.u32 %v1854, 16
      %v1946 = vrot.slane %v1944, 3
      %v1947 = vshll.u32 %v1854, 16
      %v1949 = vrot.slane %v1947, 4
      %v1950 = vor.u32 %v1946, %v1949
      %v1952 = vshrl.u32 %v1855, 16
      %v1954 = vrot.slane %v1952, 3
      %v1955 = vshll.u32 %v1855, 16
      %v1957 = vrot.slane %v1955, 4
      %v1958 = vor.u32 %v1954, %v1957
      %v1959 = vsel %vm1908, %v1950, %v1958
      %v2014 = vunpack.c.l.b16 %v1860
      %v2015 = vunpack.c.l.b16 %v1861
      %v2016 = vunpack.c.l.b16 %v1862
      %v2017 = vunpack.c.l.b16 %v1863
      %v2018 = vunpack.c.l.b16 %v1864
      %v2019 = vunpack.c.l.b16 %v1865
      %v2020 = vunpack.c.l.b16 %v1866
      %v2021 = vunpack.c.l.b16 %v1867
      %v2022 = vunpack.c.l.b16 %v1868
      %v2023 = vunpack.c.l.b16 %v1869
      %v2024 = vunpack.c.l.b16 %v1870
      %v2025 = vunpack.c.l.b16 %v1871
      %v2026 = vunpack.c.l.b16 %v1872
      %v2027 = vunpack.c.l.b16 %v1873
      %v2028 = vunpack.c.l.b16 %v1874
      %v2029 = vunpack.c.l.b16 %v1875
      %v2030 = vunpack.c.l.b16 %v1876
      %v2031 = vunpack.c.l.b16 %v1877
      %v2032 = vunpack.c.l.b16 %v1878
      %v2033 = vunpack.c.l.b16 %v1879
      %v2034 = vunpack.c.l.b16 %v1880
      %v2035 = vunpack.c.l.b16 %v1881
      %v2036 = vunpack.c.l.b16 %v1882
      %v2037 = vunpack.c.l.b16 %v1883
      %v2038 = vunpack.c.l.b16 %v1884
      %v2039 = vunpack.c.l.b16 %v1885
      %v2040 = vunpack.c.l.b16 %v1886
      %v2041 = vunpack.c.l.b16 %v1887
      %v2042 = vunpack.c.l.b16 %v1888
      %v2043 = vunpack.c.l.b16 %v1889
      %v2044 = vunpack.c.l.b16 %v1890
      %v2045 = vunpack.c.l.b16 %v1891
      %v2046 = vunpack.c.l.b16 %v1892
      %v2047 = vunpack.c.l.b16 %v1893
      %v2048 = vunpack.c.l.b16 %v1894
      %v2049 = vunpack.c.l.b16 %v1895
      %v2050 = vunpack.c.l.b16 %v1896
      %v2051 = vunpack.c.l.b16 %v1897
      %v2052 = vunpack.c.l.b16 %v1898
      %v2053 = vunpack.c.l.b16 %v1899
      %v2054 = vunpack.c.l.b16 %v1900
      %v2055 = vunpack.c.l.b16 %v1901
      %v2056 = vunpack.c.l.b16 %v1902
      %v2057 = vunpack.c.l.b16 %v1903
      %v2058 = vunpack.c.l.b16 %v1904
      %v2059 = vunpack.c.l.b16 %v1905
      %v2060 = vunpack.c.l.b16 %v1906
      %v2061 = vunpack.c.l.b16 %v1907
      %v2062 = vpack.c.b16 %v2015, %v2014
      %v2063 = vpack.c.b16 %v2017, %v2016
      %v2064 = vpack.c.b16 %v2019, %v2018
      %v2065 = vpack.c.b16 %v2021, %v2020
      %v2066 = vpack.c.b16 %v2023, %v2022
      %v2067 = vpack.c.b16 %v2025, %v2024
      %v2068 = vpack.c.b16 %v2027, %v2026
      %v2069 = vpack.c.b16 %v2029, %v2028
      %v2070 = vpack.c.b16 %v2031, %v2030
      %v2071 = vpack.c.b16 %v2033, %v2032
      %v2072 = vpack.c.b16 %v2035, %v2034
      %v2073 = vpack.c.b16 %v2037, %v2036
      %v2074 = vpack.c.b16 %v2039, %v2038
      %v2075 = vpack.c.b16 %v2041, %v2040
      %v2076 = vpack.c.b16 %v2043, %v2042
      %v2077 = vpack.c.b16 %v2045, %v2044
      %v2078 = vpack.c.b16 %v2047, %v2046
      %v2079 = vpack.c.b16 %v2049, %v2048
      %v2080 = vpack.c.b16 %v2051, %v2050
      %v2081 = vpack.c.b16 %v2053, %v2052
      %v2082 = vpack.c.b16 %v2055, %v2054
      %v2083 = vpack.c.b16 %v2057, %v2056
      %v2084 = vpack.c.b16 %v2059, %v2058
      %v2085 = vpack.c.b16 %v2061, %v2060
      %2110 = vmatprep.subr.bf16.mxu0 0
      %2111 = vmatpush1.bf16.msra.mxu0 %v2062
      %2112 = vmatprep.subr.bf16.mxu0 0
      %2113 = vmatpush1.bf16.msra.mxu0 %v2063
      %2114 = vmatprep.subr.bf16.mxu0 0
      %2115 = vmatpush1.bf16.msra.mxu0 %v2064
      %2116 = vmatprep.subr.bf16.mxu0 0
      %2117 = vmatpush1.bf16.msra.mxu0 %v2065
      %2118 = vmatprep.subr.bf16.mxu0 0
      %2119 = vmatpush1.bf16.msra.mxu0 %v2066
      %2120 = vmatprep.subr.bf16.mxu0 0
      %2121 = vmatpush1.bf16.msra.mxu0 %v2067
      %2122 = vmatprep.subr.bf16.mxu0 0
      %2123 = vmatpush1.bf16.msra.mxu0 %v2068
      %2124 = vmatprep.subr.bf16.mxu0 0
      %2125 = vmatpush1.bf16.msra.mxu0 %v2069
      %2126 = vmatprep.subr.bf16.mxu0 0
      %2127 = vmatpush1.bf16.msra.mxu0 %v2070
      %2128 = vmatprep.subr.bf16.mxu0 0
      %2129 = vmatpush1.bf16.msra.mxu0 %v2071
      %2130 = vmatprep.subr.bf16.mxu0 0
      %2131 = vmatpush1.bf16.msra.mxu0 %v2072
      %2132 = vmatprep.subr.bf16.mxu0 0
      %2133 = vmatpush1.bf16.msra.mxu0 %v2073
      %2134 = vmatprep.subr.bf16.mxu0 0
      %2135 = vmatpush1.bf16.msra.mxu0 %v2074
      %2136 = vmatprep.subr.bf16.mxu0 0
      %2137 = vmatpush1.bf16.msra.mxu0 %v2075
      %2138 = vmatprep.subr.bf16.mxu0 0
      %2139 = vmatpush1.bf16.msra.mxu0 %v2076
      %2140 = vmatprep.subr.bf16.mxu0 0
      %2141 = vmatpush1.bf16.msra.mxu0 %v2077
      %2142 = vmatprep.mubr.bf16.mxu0 %v1942
      %2143 = vmatmul.mubr.bf16.gmra.mrb[0].mxu0 %v1925
      %v2144 = vpop.f32.mrb[0].mxu0
      %v2145 = vadd.f32 0.0, %v2144
      %v2146 = vpop.f32.mrb[0].mxu0
      %v2147 = vpop.f32.mrb[0].mxu0
      %v2148 = vadd.f32 0.0, %v2147
      %v2149 = vpop.f32.mrb[0].mxu0
      %2150 = vmatprep.mubr.bf16.mxu0 %v1941
      %2151 = vmatmul.mubr.bf16.gmra.mrb[0].mxu0 %v1924
      %v2152 = vpop.f32.mrb[0].mxu0
      %v2153 = vadd.f32 0.0, %v2152
      %v2154 = vpop.f32.mrb[0].mxu0
      %v2155 = vpop.f32.mrb[0].mxu0
      %v2156 = vpop.f32.mrb[0].mxu0
      %2157 = vdwg.mxu0
      %2158 = vmatprep.subr.bf16.mxu0 0
      %2159 = vmatpush1.bf16.msra.mxu0 %v2078
      %2160 = vmatprep.subr.bf16.mxu0 0
      %2161 = vmatpush1.bf16.msra.mxu0 %v2079
      %2162 = vmatprep.subr.bf16.mxu0 0
      %2163 = vmatpush1.bf16.msra.mxu0 %v2080
      %2164 = vmatprep.subr.bf16.mxu0 0
      %2165 = vmatpush1.bf16.msra.mxu0 %v2081
      %2166 = vmatprep.subr.bf16.mxu0 0
      %2167 = vmatpush1.bf16.msra.mxu0 %v2082
      %2168 = vmatprep.subr.bf16.mxu0 0
      %2169 = vmatpush1.bf16.msra.mxu0 %v2083
      %2170 = vmatprep.subr.bf16.mxu0 0
      %2171 = vmatpush1.bf16.msra.mxu0 %v2084
      %2172 = vmatprep.subr.bf16.mxu0 0
      %2173 = vmatpush1.bf16.msra.mxu0 %v2085
      %2174 = vmatprep.subr.bf16.mxu0 0
      %2175 = vmatpush1.bf16.msra.mxu0 0
      %2176 = vmatprep.subr.bf16.mxu0 0
      %2177 = vmatpush1.bf16.msra.mxu0 0
      %2178 = vmatprep.subr.bf16.mxu0 0
      %2179 = vmatpush1.bf16.msra.mxu0 0
      %2180 = vmatprep.subr.bf16.mxu0 0
      %2181 = vmatpush1.bf16.msra.mxu0 0
      %2182 = vmatprep.subr.bf16.mxu0 0
      %2183 = vmatpush1.bf16.msra.mxu0 0
      %2184 = vmatprep.subr.bf16.mxu0 0
      %2185 = vmatpush1.bf16.msra.mxu0 0
      %2186 = vmatprep.subr.bf16.mxu0 0
      %2187 = vmatpush1.bf16.msra.mxu0 0
      %2188 = vmatprep.subr.bf16.mxu0 0
      %2189 = vmatpush1.bf16.msra.mxu0 0
      %2190 = vmatprep.mubr.bf16.mxu0 0
      %2191 = vmatmul.mubr.bf16.gmra.mrb[0].mxu0 %v1959
      %v2192 = vpop.f32.mrb[0].mxu0
      %v2193 = vadd.f32 %v2145, %v2192
      %v2194 = vpop.f32.mrb[0].mxu0
      %v2195 = vpop.f32.mrb[0].mxu0
      %v2196 = vadd.f32 %v2148, %v2195
      %v2197 = vpop.f32.mrb[0].mxu0
      %2198 = vmatprep.mubr.bf16.mxu0 0
      %2199 = vmatmul.mubr.bf16.gmra.mrb[0].mxu0 %v1958
      %v2200 = vpop.f32.mrb[0].mxu0
      %v2201 = vadd.f32 %v2153, %v2200
      %v2202 = vpop.f32.mrb[0].mxu0
      %v2203 = vpop.f32.mrb[0].mxu0
      %v2204 = vpop.f32.mrb[0].mxu0
      %2205 = vdwg.mxu0
      %v2206 = vadd.f32 %v1856, %v2193
      %v2207 = vadd.f32 %v1857, %v2196
      %v2208 = vadd.f32 %v1858, %v2201
      %2209 = vst [vmem:[#allocation2] sm:$0xff] %v2206
      %2210 = vst [vmem:[#allocation2 + $0x8] sm:$0xff] %v2207
      %2211 = vst [vmem:[#allocation2 + $0x10] sm:$0xff] %v2208
      %v2212 = vld [vmem:[%s338 + $0x4] sm:$0xf]
      %v2213 = vld [vmem:[%s338 + $0x8] sm:$0xf]
      %v2214 = vld [vmem:[%s338 + $0xc] sm:$0xf]
      %v2215 = vld [vmem:[%s348 + $0x4] sm:$0xf]
      %v2216 = vld [vmem:[%s348 + $0x8] sm:$0xf]
      %v2217 = vld [vmem:[%s348 + $0xc] sm:$0xf]
      %v2218 = vld [vmem:[%s359 + $0x4] sm:$0xf]
      %v2219 = vld [vmem:[%s359 + $0x8] sm:$0xf]
      %v2220 = vld [vmem:[%s359 + $0xc] sm:$0xf]
      %v2224 = vunpack.c.l.b16 %v2212
      %v2225 = vunpack.c.l.b16 %v2213
      %v2226 = vunpack.c.l.b16 %v2214
      %v2227 = vpack.c.b16 %v2225, %v2224
      %v2228 = vpack.c.b16 %v2226, %v2226
      %v2234 = vunpack.c.l.b16 %v2215
      %v2235 = vunpack.c.l.b16 %v2216
      %v2236 = vunpack.c.l.b16 %v2217
      %v2237 = vpack.c.b16 %v2235, %v2234
      %v2238 = vpack.c.b16 %v2236, %v2236
      %v2244 = vunpack.c.l.b16 %v2218
      %v2245 = vunpack.c.l.b16 %v2219
      %v2246 = vunpack.c.l.b16 %v2220
      %v2247 = vpack.c.b16 %v2245, %v2244
      %v2248 = vpack.c.b16 %v2246, %v2246
      %v2251 = vld [vmem:[#allocation2] sm:$0xff]
      %v2252 = vld [vmem:[#allocation2 + $0x8] sm:$0xff]
      %v2253 = vld [vmem:[#allocation2 + $0x10] sm:$0xff]
      %s2254 = scalar_lea.vmem %s3, 960
      %v2255 = vld [vmem:[%s2254] sm:$0xf]
      %v2256 = vld [vmem:[%s2254 + $0x4] sm:$0xf]
      %v2257 = vld [vmem:[%s2254 + $0x8] sm:$0xf]
      %v2258 = vld [vmem:[%s2254 + $0xc] sm:$0xf]
      %v2259 = vld [vmem:[%s2254 + $0x10] sm:$0xf]
      %v2260 = vld [vmem:[%s2254 + $0x14] sm:$0xf]
      %v2261 = vld [vmem:[%s2254 + $0x18] sm:$0xf]
      %v2262 = vld [vmem:[%s2254 + $0x1c] sm:$0xf]
      %v2263 = vld [vmem:[%s2254 + $0x20] sm:$0xf]
      %v2264 = vld [vmem:[%s2254 + $0x24] sm:$0xf]
      %v2265 = vld [vmem:[%s2254 + $0x28] sm:$0xf]
      %v2266 = vld [vmem:[%s2254 + $0x2c] sm:$0xf]
      %v2267 = vld [vmem:[%s2254 + $0x30] sm:$0xf]
      %v2268 = vld [vmem:[%s2254 + $0x34] sm:$0xf]
      %v2269 = vld [vmem:[%s2254 + $0x38] sm:$0xf]
      %v2270 = vld [vmem:[%s2254 + $0x3c] sm:$0xf]
      %v2271 = vld [vmem:[%s2254 + $0x40] sm:$0xf]
      %v2272 = vld [vmem:[%s2254 + $0x44] sm:$0xf]
      %v2273 = vld [vmem:[%s2254 + $0x48] sm:$0xf]
      %v2274 = vld [vmem:[%s2254 + $0x4c] sm:$0xf]
      %v2275 = vld [vmem:[%s2254 + $0x50] sm:$0xf]
      %v2276 = vld [vmem:[%s2254 + $0x54] sm:$0xf]
      %v2277 = vld [vmem:[%s2254 + $0x58] sm:$0xf]
      %v2278 = vld [vmem:[%s2254 + $0x5c] sm:$0xf]
      %v2279 = vld [vmem:[%s2254 + $0x60] sm:$0xf]
      %v2280 = vld [vmem:[%s2254 + $0x64] sm:$0xf]
      %v2281 = vld [vmem:[%s2254 + $0x68] sm:$0xf]
      %v2282 = vld [vmem:[%s2254 + $0x6c] sm:$0xf]
      %v2283 = vld [vmem:[%s2254 + $0x70] sm:$0xf]
      %v2284 = vld [vmem:[%s2254 + $0x74] sm:$0xf]
      %v2285 = vld [vmem:[%s2254 + $0x78] sm:$0xf]
      %v2286 = vld [vmem:[%s2254 + $0x7c] sm:$0xf]
      %v2287 = vld [vmem:[%s2254 + $0x80] sm:$0xf]
      %v2288 = vld [vmem:[%s2254 + $0x84] sm:$0xf]
      %v2289 = vld [vmem:[%s2254 + $0x88] sm:$0xf]
      %v2290 = vld [vmem:[%s2254 + $0x8c] sm:$0xf]
      %v2291 = vld [vmem:[%s2254 + $0x90] sm:$0xf]
      %v2292 = vld [vmem:[%s2254 + $0x94] sm:$0xf]
      %v2293 = vld [vmem:[%s2254 + $0x98] sm:$0xf]
      %v2294 = vld [vmem:[%s2254 + $0x9c] sm:$0xf]
      %v2295 = vld [vmem:[%s2254 + $0xa0] sm:$0xf]
      %v2296 = vld [vmem:[%s2254 + $0xa4] sm:$0xf]
      %v2297 = vld [vmem:[%s2254 + $0xa8] sm:$0xf]
      %v2298 = vld [vmem:[%s2254 + $0xac] sm:$0xf]
      %v2299 = vld [vmem:[%s2254 + $0xb0] sm:$0xf]
      %v2300 = vld [vmem:[%s2254 + $0xb4] sm:$0xf]
      %v2301 = vld [vmem:[%s2254 + $0xb8] sm:$0xf]
      %v2302 = vld [vmem:[%s2254 + $0xbc] sm:$0xf]
      %v2351 = vunpack.c.l.b16 %v2255
      %v2352 = vunpack.c.l.b16 %v2256
      %v2353 = vunpack.c.l.b16 %v2257
      %v2354 = vunpack.c.l.b16 %v2258
      %v2355 = vunpack.c.l.b16 %v2259
      %v2356 = vunpack.c.l.b16 %v2260
      %v2357 = vunpack.c.l.b16 %v2261
      %v2358 = vunpack.c.l.b16 %v2262
      %v2359 = vunpack.c.l.b16 %v2263
      %v2360 = vunpack.c.l.b16 %v2264
      %v2361 = vunpack.c.l.b16 %v2265
      %v2362 = vunpack.c.l.b16 %v2266
      %v2363 = vunpack.c.l.b16 %v2267
      %v2364 = vunpack.c.l.b16 %v2268
      %v2365 = vunpack.c.l.b16 %v2269
      %v2366 = vunpack.c.l.b16 %v2270
      %v2367 = vunpack.c.l.b16 %v2271
      %v2368 = vunpack.c.l.b16 %v2272
      %v2369 = vunpack.c.l.b16 %v2273
      %v2370 = vunpack.c.l.b16 %v2274
      %v2371 = vunpack.c.l.b16 %v2275
      %v2372 = vunpack.c.l.b16 %v2276
      %v2373 = vunpack.c.l.b16 %v2277
      %v2374 = vunpack.c.l.b16 %v2278
      %v2375 = vunpack.c.l.b16 %v2279
      %v2376 = vunpack.c.l.b16 %v2280
      %v2377 = vunpack.c.l.b16 %v2281
      %v2378 = vunpack.c.l.b16 %v2282
      %v2379 = vunpack.c.l.b16 %v2283
      %v2380 = vunpack.c.l.b16 %v2284
      %v2381 = vunpack.c.l.b16 %v2285
      %v2382 = vunpack.c.l.b16 %v2286
      %v2383 = vunpack.c.l.b16 %v2287
      %v2384 = vunpack.c.l.b16 %v2288
      %v2385 = vunpack.c.l.b16 %v2289
      %v2386 = vunpack.c.l.b16 %v2290
      %v2387 = vunpack.c.l.b16 %v2291
      %v2388 = vunpack.c.l.b16 %v2292
      %v2389 = vunpack.c.l.b16 %v2293
      %v2390 = vunpack.c.l.b16 %v2294
      %v2391 = vunpack.c.l.b16 %v2295
      %v2392 = vunpack.c.l.b16 %v2296
      %v2393 = vunpack.c.l.b16 %v2297
      %v2394 = vunpack.c.l.b16 %v2298
      %v2395 = vunpack.c.l.b16 %v2299
      %v2396 = vunpack.c.l.b16 %v2300
      %v2397 = vunpack.c.l.b16 %v2301
      %v2398 = vunpack.c.l.b16 %v2302
      %v2399 = vpack.c.b16 %v2352, %v2351
      %v2400 = vpack.c.b16 %v2354, %v2353
      %v2401 = vpack.c.b16 %v2356, %v2355
      %v2402 = vpack.c.b16 %v2358, %v2357
      %v2403 = vpack.c.b16 %v2360, %v2359
      %v2404 = vpack.c.b16 %v2362, %v2361
      %v2405 = vpack.c.b16 %v2364, %v2363
      %v2406 = vpack.c.b16 %v2366, %v2365
      %v2407 = vpack.c.b16 %v2368, %v2367
      %v2408 = vpack.c.b16 %v2370, %v2369
      %v2409 = vpack.c.b16 %v2372, %v2371
      %v2410 = vpack.c.b16 %v2374, %v2373
      %v2411 = vpack.c.b16 %v2376, %v2375
      %v2412 = vpack.c.b16 %v2378, %v2377
      %v2413 = vpack.c.b16 %v2380, %v2379
      %v2414 = vpack.c.b16 %v2382, %v2381
      %v2415 = vpack.c.b16 %v2384, %v2383
      %v2416 = vpack.c.b16 %v2386, %v2385
      %v2417 = vpack.c.b16 %v2388, %v2387
      %v2418 = vpack.c.b16 %v2390, %v2389
      %v2419 = vpack.c.b16 %v2392, %v2391
      %v2420 = vpack.c.b16 %v2394, %v2393
      %v2421 = vpack.c.b16 %v2396, %v2395
      %v2422 = vpack.c.b16 %v2398, %v2397
      %2447 = vmatprep.subr.bf16.mxu0 0
      %2448 = vmatpush1.bf16.msra.mxu0 %v2399
      %2449 = vmatprep.subr.bf16.mxu0 0
      %2450 = vmatpush1.bf16.msra.mxu0 %v2400
      %2451 = vmatprep.subr.bf16.mxu0 0
      %2452 = vmatpush1.bf16.msra.mxu0 %v2401
      %2453 = vmatprep.subr.bf16.mxu0 0
      %2454 = vmatpush1.bf16.msra.mxu0 %v2402
      %2455 = vmatprep.subr.bf16.mxu0 0
      %2456 = vmatpush1.bf16.msra.mxu0 %v2403
      %2457 = vmatprep.subr.bf16.mxu0 0
      %2458 = vmatpush1.bf16.msra.mxu0 %v2404
      %2459 = vmatprep.subr.bf16.mxu0 0
      %2460 = vmatpush1.bf16.msra.mxu0 %v2405
      %2461 = vmatprep.subr.bf16.mxu0 0
      %2462 = vmatpush1.bf16.msra.mxu0 %v2406
      %2463 = vmatprep.subr.bf16.mxu0 0
      %2464 = vmatpush1.bf16.msra.mxu0 %v2407
      %2465 = vmatprep.subr.bf16.mxu0 0
      %2466 = vmatpush1.bf16.msra.mxu0 %v2408
      %2467 = vmatprep.subr.bf16.mxu0 0
      %2468 = vmatpush1.bf16.msra.mxu0 %v2409
      %2469 = vmatprep.subr.bf16.mxu0 0
      %2470 = vmatpush1.bf16.msra.mxu0 %v2410
      %2471 = vmatprep.subr.bf16.mxu0 0
      %2472 = vmatpush1.bf16.msra.mxu0 %v2411
      %2473 = vmatprep.subr.bf16.mxu0 0
      %2474 = vmatpush1.bf16.msra.mxu0 %v2412
      %2475 = vmatprep.subr.bf16.mxu0 0
      %2476 = vmatpush1.bf16.msra.mxu0 %v2413
      %2477 = vmatprep.subr.bf16.mxu0 0
      %2478 = vmatpush1.bf16.msra.mxu0 %v2414
      %2479 = vmatprep.mubr.bf16.mxu0 %v2237
      %2480 = vmatmul.mubr.bf16.gmra.mrb[0].mxu0 %v2227
      %v2481 = vpop.f32.mrb[0].mxu0
      %v2482 = vadd.f32 0.0, %v2481
      %v2483 = vpop.f32.mrb[0].mxu0
      %v2484 = vpop.f32.mrb[0].mxu0
      %v2485 = vadd.f32 0.0, %v2484
      %v2486 = vpop.f32.mrb[0].mxu0
      %2487 = vmatprep.mubr.bf16.mxu0 %v2238
      %2488 = vmatmul.mubr.bf16.gmra.mrb[0].mxu0 %v2228
      %v2489 = vpop.f32.mrb[0].mxu0
      %v2490 = vadd.f32 0.0, %v2489
      %v2491 = vpop.f32.mrb[0].mxu0
      %v2492 = vpop.f32.mrb[0].mxu0
      %v2493 = vpop.f32.mrb[0].mxu0
      %2494 = vdwg.mxu0
      %2495 = vmatprep.subr.bf16.mxu0 0
      %2496 = vmatpush1.bf16.msra.mxu0 %v2415
      %2497 = vmatprep.subr.bf16.mxu0 0
      %2498 = vmatpush1.bf16.msra.mxu0 %v2416
      %2499 = vmatprep.subr.bf16.mxu0 0
      %2500 = vmatpush1.bf16.msra.mxu0 %v2417
      %2501 = vmatprep.subr.bf16.mxu0 0
      %2502 = vmatpush1.bf16.msra.mxu0 %v2418
      %2503 = vmatprep.subr.bf16.mxu0 0
      %2504 = vmatpush1.bf16.msra.mxu0 %v2419
      %2505 = vmatprep.subr.bf16.mxu0 0
      %2506 = vmatpush1.bf16.msra.mxu0 %v2420
      %2507 = vmatprep.subr.bf16.mxu0 0
      %2508 = vmatpush1.bf16.msra.mxu0 %v2421
      %2509 = vmatprep.subr.bf16.mxu0 0
      %2510 = vmatpush1.bf16.msra.mxu0 %v2422
      %2511 = vmatprep.subr.bf16.mxu0 0
      %2512 = vmatpush1.bf16.msra.mxu0 0
      %2513 = vmatprep.subr.bf16.mxu0 0
      %2514 = vmatpush1.bf16.msra.mxu0 0
      %2515 = vmatprep.subr.bf16.mxu0 0
      %2516 = vmatpush1.bf16.msra.mxu0 0
      %2517 = vmatprep.subr.bf16.mxu0 0
      %2518 = vmatpush1.bf16.msra.mxu0 0
      %2519 = vmatprep.subr.bf16.mxu0 0
      %2520 = vmatpush1.bf16.msra.mxu0 0
      %2521 = vmatprep.subr.bf16.mxu0 0
      %2522 = vmatpush1.bf16.msra.mxu0 0
      %2523 = vmatprep.subr.bf16.mxu0 0
      %2524 = vmatpush1.bf16.msra.mxu0 0
      %2525 = vmatprep.subr.bf16.mxu0 0
      %2526 = vmatpush1.bf16.msra.mxu0 0
      %2527 = vmatprep.mubr.bf16.mxu0 0
      %2528 = vmatmul.mubr.bf16.gmra.mrb[0].mxu0 %v2247
      %v2529 = vpop.f32.mrb[0].mxu0
      %v2530 = vadd.f32 %v2482, %v2529
      %v2531 = vpop.f32.mrb[0].mxu0
      %v2532 = vpop.f32.mrb[0].mxu0
      %v2533 = vadd.f32 %v2485, %v2532
      %v2534 = vpop.f32.mrb[0].mxu0
      %2535 = vmatprep.mubr.bf16.mxu0 0
      %2536 = vmatmul.mubr.bf16.gmra.mrb[0].mxu0 %v2248
      %v2537 = vpop.f32.mrb[0].mxu0
      %v2538 = vadd.f32 %v2490, %v2537
      %v2539 = vpop.f32.mrb[0].mxu0
      %v2540 = vpop.f32.mrb[0].mxu0
      %v2541 = vpop.f32.mrb[0].mxu0
      %2542 = vdwg.mxu0
      %v2543 = vadd.f32 %v2251, %v2530
      %v2544 = vadd.f32 %v2252, %v2533
      %v2545 = vadd.f32 %v2253, %v2538
      %2546 = vst [vmem:[#allocation2] sm:$0xff] %v2543
      %2547 = vst [vmem:[#allocation2 + $0x8] sm:$0xff] %v2544
      %2548 = vst [vmem:[#allocation2 + $0x10] sm:$0xff] %v2545
      %v2549 = vld [vmem:[%s338 + $0x4] sm:$0xc]
      %v2550 = vld [vmem:[%s338 + $0x8] sm:$0xf]
      %v2551 = vld [vmem:[%s338 + $0xc] sm:$0xf]
      %v2552 = vld [vmem:[%s338 + $0x10] sm:$0x3]
      %v2553 = vld [vmem:[%s348 + $0x4] sm:$0xc]
      %v2554 = vld [vmem:[%s348 + $0x8] sm:$0xf]
      %v2555 = vld [vmem:[%s348 + $0xc] sm:$0xf]
      %v2556 = vld [vmem:[%s348 + $0x10] sm:$0x3]
      %v2557 = vld [vmem:[%s359 + $0x4] sm:$0xc]
      %v2558 = vld [vmem:[%s359 + $0x8] sm:$0xf]
      %v2559 = vld [vmem:[%s359 + $0xc] sm:$0xf]
      %v2560 = vld [vmem:[%s359 + $0x10] sm:$0x3]
      %v2565 = vunpack.c.l.b16 %v2549
      %v2566 = vunpack.c.l.b16 %v2550
      %v2567 = vunpack.c.l.b16 %v2551
      %v2568 = vunpack.c.l.b16 %v2552
      %v2569 = vpack.c.b16 %v2566, %v2565
      %v2570 = vpack.c.b16 %v2568, %v2567
      %v2575 = vunpack.c.l.b16 %v2553
      %v2576 = vunpack.c.l.b16 %v2554
      %v2577 = vunpack.c.l.b16 %v2555
      %v2578 = vunpack.c.l.b16 %v2556
      %v2579 = vpack.c.b16 %v2576, %v2575
      %v2580 = vpack.c.b16 %v2578, %v2577
      %v2585 = vunpack.c.l.b16 %v2557
      %v2586 = vunpack.c.l.b16 %v2558
      %v2587 = vunpack.c.l.b16 %v2559
      %v2588 = vunpack.c.l.b16 %v2560
      %v2589 = vpack.c.b16 %v2586, %v2585
      %v2590 = vpack.c.b16 %v2588, %v2587
      %v2591 = vld [vmem:[#allocation2] sm:$0xff]
      %v2592 = vld [vmem:[#allocation2 + $0x8] sm:$0xff]
      %v2593 = vld [vmem:[#allocation2 + $0x10] sm:$0xff]
      %s2594 = scalar_lea.vmem %s3, 1152
      %v2595 = vld [vmem:[%s2594] sm:$0xf]
      %v2596 = vld [vmem:[%s2594 + $0x4] sm:$0xf]
      %v2597 = vld [vmem:[%s2594 + $0x8] sm:$0xf]
      %v2598 = vld [vmem:[%s2594 + $0xc] sm:$0xf]
      %v2599 = vld [vmem:[%s2594 + $0x10] sm:$0xf]
      %v2600 = vld [vmem:[%s2594 + $0x14] sm:$0xf]
      %v2601 = vld [vmem:[%s2594 + $0x18] sm:$0xf]
      %v2602 = vld [vmem:[%s2594 + $0x1c] sm:$0xf]
      %v2603 = vld [vmem:[%s2594 + $0x20] sm:$0xf]
      %v2604 = vld [vmem:[%s2594 + $0x24] sm:$0xf]
      %v2605 = vld [vmem:[%s2594 + $0x28] sm:$0xf]
      %v2606 = vld [vmem:[%s2594 + $0x2c] sm:$0xf]
      %v2607 = vld [vmem:[%s2594 + $0x30] sm:$0xf]
      %v2608 = vld [vmem:[%s2594 + $0x34] sm:$0xf]
      %v2609 = vld [vmem:[%s2594 + $0x38] sm:$0xf]
      %v2610 = vld [vmem:[%s2594 + $0x3c] sm:$0xf]
      %v2611 = vld [vmem:[%s2594 + $0x40] sm:$0xf]
      %v2612 = vld [vmem:[%s2594 + $0x44] sm:$0xf]
      %v2613 = vld [vmem:[%s2594 + $0x48] sm:$0xf]
      %v2614 = vld [vmem:[%s2594 + $0x4c] sm:$0xf]
      %v2615 = vld [vmem:[%s2594 + $0x50] sm:$0xf]
      %v2616 = vld [vmem:[%s2594 + $0x54] sm:$0xf]
      %v2617 = vld [vmem:[%s2594 + $0x58] sm:$0xf]
      %v2618 = vld [vmem:[%s2594 + $0x5c] sm:$0xf]
      %v2619 = vld [vmem:[%s2594 + $0x60] sm:$0xf]
      %v2620 = vld [vmem:[%s2594 + $0x64] sm:$0xf]
      %v2621 = vld [vmem:[%s2594 + $0x68] sm:$0xf]
      %v2622 = vld [vmem:[%s2594 + $0x6c] sm:$0xf]
      %v2623 = vld [vmem:[%s2594 + $0x70] sm:$0xf]
      %v2624 = vld [vmem:[%s2594 + $0x74] sm:$0xf]
      %v2625 = vld [vmem:[%s2594 + $0x78] sm:$0xf]
      %v2626 = vld [vmem:[%s2594 + $0x7c] sm:$0xf]
      %v2627 = vld [vmem:[%s2594 + $0x80] sm:$0xf]
      %v2628 = vld [vmem:[%s2594 + $0x84] sm:$0xf]
      %v2629 = vld [vmem:[%s2594 + $0x88] sm:$0xf]
      %v2630 = vld [vmem:[%s2594 + $0x8c] sm:$0xf]
      %v2631 = vld [vmem:[%s2594 + $0x90] sm:$0xf]
      %v2632 = vld [vmem:[%s2594 + $0x94] sm:$0xf]
      %v2633 = vld [vmem:[%s2594 + $0x98] sm:$0xf]
      %v2634 = vld [vmem:[%s2594 + $0x9c] sm:$0xf]
      %v2635 = vld [vmem:[%s2594 + $0xa0] sm:$0xf]
      %v2636 = vld [vmem:[%s2594 + $0xa4] sm:$0xf]
      %v2637 = vld [vmem:[%s2594 + $0xa8] sm:$0xf]
      %v2638 = vld [vmem:[%s2594 + $0xac] sm:$0xf]
      %v2639 = vld [vmem:[%s2594 + $0xb0] sm:$0xf]
      %v2640 = vld [vmem:[%s2594 + $0xb4] sm:$0xf]
      %v2641 = vld [vmem:[%s2594 + $0xb8] sm:$0xf]
      %v2642 = vld [vmem:[%s2594 + $0xbc] sm:$0xf]
      %vm2643 = vcmask 1045504
      %v2644 = vrot.slane %v2569, 2
      %v2645 = vrot.slane %v2570, 2
      %v2646 = vsel %vm2643, %v2644, %v2645
      %v2647 = vrot.slane %v2579, 2
      %v2648 = vrot.slane %v2580, 2
      %v2649 = vsel %vm2643, %v2647, %v2648
      %v2650 = vrot.slane %v2589, 2
      %v2651 = vrot.slane %v2590, 2
      %v2652 = vsel %vm2643, %v2650, %v2651
      %v2707 = vunpack.c.l.b16 %v2595
      %v2708 = vunpack.c.l.b16 %v2596
      %v2709 = vunpack.c.l.b16 %v2597
      %v2710 = vunpack.c.l.b16 %v2598
      %v2711 = vunpack.c.l.b16 %v2599
      %v2712 = vunpack.c.l.b16 %v2600
      %v2713 = vunpack.c.l.b16 %v2601
      %v2714 = vunpack.c.l.b16 %v2602
      %v2715 = vunpack.c.l.b16 %v2603
      %v2716 = vunpack.c.l.b16 %v2604
      %v2717 = vunpack.c.l.b16 %v2605
      %v2718 = vunpack.c.l.b16 %v2606
      %v2719 = vunpack.c.l.b16 %v2607
      %v2720 = vunpack.c.l.b16 %v2608
      %v2721 = vunpack.c.l.b16 %v2609
      %v2722 = vunpack.c.l.b16 %v2610
      %v2723 = vunpack.c.l.b16 %v2611
      %v2724 = vunpack.c.l.b16 %v2612
      %v2725 = vunpack.c.l.b16 %v2613
      %v2726 = vunpack.c.l.b16 %v2614
      %v2727 = vunpack.c.l.b16 %v2615
      %v2728 = vunpack.c.l.b16 %v2616
      %v2729 = vunpack.c.l.b16 %v2617
      %v2730 = vunpack.c.l.b16 %v2618
      %v2731 = vunpack.c.l.b16 %v2619
      %v2732 = vunpack.c.l.b16 %v2620
      %v2733 = vunpack.c.l.b16 %v2621
      %v2734 = vunpack.c.l.b16 %v2622
      %v2735 = vunpack.c.l.b16 %v2623
      %v2736 = vunpack.c.l.b16 %v2624
      %v2737 = vunpack.c.l.b16 %v2625
      %v2738 = vunpack.c.l.b16 %v2626
      %v2739 = vunpack.c.l.b16 %v2627
      %v2740 = vunpack.c.l.b16 %v2628
      %v2741 = vunpack.c.l.b16 %v2629
      %v2742 = vunpack.c.l.b16 %v2630
      %v2743 = vunpack.c.l.b16 %v2631
      %v2744 = vunpack.c.l.b16 %v2632
      %v2745 = vunpack.c.l.b16 %v2633
      %v2746 = vunpack.c.l.b16 %v2634
      %v2747 = vunpack.c.l.b16 %v2635
      %v2748 = vunpack.c.l.b16 %v2636
      %v2749 = vunpack.c.l.b16 %v2637
      %v2750 = vunpack.c.l.b16 %v2638
      %v2751 = vunpack.c.l.b16 %v2639
      %v2752 = vunpack.c.l.b16 %v2640
      %v2753 = vunpack.c.l.b16 %v2641
      %v2754 = vunpack.c.l.b16 %v2642
      %v2755 = vpack.c.b16 %v2708, %v2707
      %v2756 = vpack.c.b16 %v2710, %v2709
      %v2757 = vpack.c.b16 %v2712, %v2711
      %v2758 = vpack.c.b16 %v2714, %v2713
      %v2759 = vpack.c.b16 %v2716, %v2715
      %v2760 = vpack.c.b16 %v2718, %v2717
      %v2761 = vpack.c.b16 %v2720, %v2719
      %v2762 = vpack.c.b16 %v2722, %v2721
      %v2763 = vpack.c.b16 %v2724, %v2723
      %v2764 = vpack.c.b16 %v2726, %v2725
      %v2765 = vpack.c.b16 %v2728, %v2727
      %v2766 = vpack.c.b16 %v2730, %v2729
      %v2767 = vpack.c.b16 %v2732, %v2731
      %v2768 = vpack.c.b16 %v2734, %v2733
      %v2769 = vpack.c.b16 %v2736, %v2735
      %v2770 = vpack.c.b16 %v2738, %v2737
      %v2771 = vpack.c.b16 %v2740, %v2739
      %v2772 = vpack.c.b16 %v2742, %v2741
      %v2773 = vpack.c.b16 %v2744, %v2743
      %v2774 = vpack.c.b16 %v2746, %v2745
      %v2775 = vpack.c.b16 %v2748, %v2747
      %v2776 = vpack.c.b16 %v2750, %v2749
      %v2777 = vpack.c.b16 %v2752, %v2751
      %v2778 = vpack.c.b16 %v2754, %v2753
      %2803 = vmatprep.subr.bf16.mxu0 0
      %2804 = vmatpush1.bf16.msra.mxu0 %v2755
      %2805 = vmatprep.subr.bf16.mxu0 0
      %2806 = vmatpush1.bf16.msra.mxu0 %v2756
      %2807 = vmatprep.subr.bf16.mxu0 0
      %2808 = vmatpush1.bf16.msra.mxu0 %v2757
      %2809 = vmatprep.subr.bf16.mxu0 0
      %2810 = vmatpush1.bf16.msra.mxu0 %v2758
      %2811 = vmatprep.subr.bf16.mxu0 0
      %2812 = vmatpush1.bf16.msra.mxu0 %v2759
      %2813 = vmatprep.subr.bf16.mxu0 0
      %2814 = vmatpush1.bf16.msra.mxu0 %v2760
      %2815 = vmatprep.subr.bf16.mxu0 0
      %2816 = vmatpush1.bf16.msra.mxu0 %v2761
      %2817 = vmatprep.subr.bf16.mxu0 0
      %2818 = vmatpush1.bf16.msra.mxu0 %v2762
      %2819 = vmatprep.subr.bf16.mxu0 0
      %2820 = vmatpush1.bf16.msra.mxu0 %v2763
      %2821 = vmatprep.subr.bf16.mxu0 0
      %2822 = vmatpush1.bf16.msra.mxu0 %v2764
      %2823 = vmatprep.subr.bf16.mxu0 0
      %2824 = vmatpush1.bf16.msra.mxu0 %v2765
      %2825 = vmatprep.subr.bf16.mxu0 0
      %2826 = vmatpush1.bf16.msra.mxu0 %v2766
      %2827 = vmatprep.subr.bf16.mxu0 0
      %2828 = vmatpush1.bf16.msra.mxu0 %v2767
      %2829 = vmatprep.subr.bf16.mxu0 0
      %2830 = vmatpush1.bf16.msra.mxu0 %v2768
      %2831 = vmatprep.subr.bf16.mxu0 0
      %2832 = vmatpush1.bf16.msra.mxu0 %v2769
      %2833 = vmatprep.subr.bf16.mxu0 0
      %2834 = vmatpush1.bf16.msra.mxu0 %v2770
      %2835 = vmatprep.mubr.bf16.mxu0 %v2649
      %2836 = vmatmul.mubr.bf16.gmra.mrb[0].mxu0 %v2646
      %v2837 = vpop.f32.mrb[0].mxu0
      %v2838 = vadd.f32 0.0, %v2837
      %v2839 = vpop.f32.mrb[0].mxu0
      %v2840 = vpop.f32.mrb[0].mxu0
      %v2841 = vadd.f32 0.0, %v2840
      %v2842 = vpop.f32.mrb[0].mxu0
      %2843 = vmatprep.mubr.bf16.mxu0 %v2648
      %2844 = vmatmul.mubr.bf16.gmra.mrb[0].mxu0 %v2645
      %v2845 = vpop.f32.mrb[0].mxu0
      %v2846 = vadd.f32 0.0, %v2845
      %v2847 = vpop.f32.mrb[0].mxu0
      %v2848 = vpop.f32.mrb[0].mxu0
      %v2849 = vpop.f32.mrb[0].mxu0
      %2850 = vdwg.mxu0
      %2851 = vmatprep.subr.bf16.mxu0 0
      %2852 = vmatpush1.bf16.msra.mxu0 %v2771
      %2853 = vmatprep.subr.bf16.mxu0 0
      %2854 = vmatpush1.bf16.msra.mxu0 %v2772
      %2855 = vmatprep.subr.bf16.mxu0 0
      %2856 = vmatpush1.bf16.msra.mxu0 %v2773
      %2857 = vmatprep.subr.bf16.mxu0 0
      %2858 = vmatpush1.bf16.msra.mxu0 %v2774
      %2859 = vmatprep.subr.bf16.mxu0 0
      %2860 = vmatpush1.bf16.msra.mxu0 %v2775
      %2861 = vmatprep.subr.bf16.mxu0 0
      %2862 = vmatpush1.bf16.msra.mxu0 %v2776
      %2863 = vmatprep.subr.bf16.mxu0 0
      %2864 = vmatpush1.bf16.msra.mxu0 %v2777
      %2865 = vmatprep.subr.bf16.mxu0 0
      %2866 = vmatpush1.bf16.msra.mxu0 %v2778
      %2867 = vmatprep.subr.bf16.mxu0 0
      %2868 = vmatpush1.bf16.msra.mxu0 0
      %2869 = vmatprep.subr.bf16.mxu0 0
      %2870 = vmatpush1.bf16.msra.mxu0 0
      %2871 = vmatprep.subr.bf16.mxu0 0
      %2872 = vmatpush1.bf16.msra.mxu0 0
      %2873 = vmatprep.subr.bf16.mxu0 0
      %2874 = vmatpush1.bf16.msra.mxu0 0
      %2875 = vmatprep.subr.bf16.mxu0 0
      %2876 = vmatpush1.bf16.msra.mxu0 0
      %2877 = vmatprep.subr.bf16.mxu0 0
      %2878 = vmatpush1.bf16.msra.mxu0 0
      %2879 = vmatprep.subr.bf16.mxu0 0
      %2880 = vmatpush1.bf16.msra.mxu0 0
      %2881 = vmatprep.subr.bf16.mxu0 0
      %2882 = vmatpush1.bf16.msra.mxu0 0
      %2883 = vmatprep.mubr.bf16.mxu0 0
      %2884 = vmatmul.mubr.bf16.gmra.mrb[0].mxu0 %v2652
      %v2885 = vpop.f32.mrb[0].mxu0
      %v2886 = vadd.f32 %v2838, %v2885
      %v2887 = vpop.f32.mrb[0].mxu0
      %v2888 = vpop.f32.mrb[0].mxu0
      %v2889 = vadd.f32 %v2841, %v2888
      %v2890 = vpop.f32.mrb[0].mxu0
      %2891 = vmatprep.mubr.bf16.mxu0 0
      %2892 = vmatmul.mubr.bf16.gmra.mrb[0].mxu0 %v2651
      %v2893 = vpop.f32.mrb[0].mxu0
      %v2894 = vadd.f32 %v2846, %v2893
      %v2895 = vpop.f32.mrb[0].mxu0
      %v2896 = vpop.f32.mrb[0].mxu0
      %v2897 = vpop.f32.mrb[0].mxu0
      %2898 = vdwg.mxu0
      %v2899 = vadd.f32 %v2591, %v2886
      %v2900 = vadd.f32 %v2592, %v2889
      %v2901 = vadd.f32 %v2593, %v2894
      %2902 = vst [vmem:[#allocation2] sm:$0xff] %v2899
      %2903 = vst [vmem:[#allocation2 + $0x8] sm:$0xff] %v2900
      %2904 = vst [vmem:[#allocation2 + $0x10] sm:$0xff] %v2901
      %v2905 = vld [vmem:[%s338 + $0x4] sm:$0xc]
      %v2906 = vld [vmem:[%s338 + $0x8] sm:$0xf]
      %v2907 = vld [vmem:[%s338 + $0xc] sm:$0xf]
      %v2908 = vld [vmem:[%s338 + $0x10] sm:$0x7]
      %v2909 = vld [vmem:[%s348 + $0x4] sm:$0xc]
      %v2910 = vld [vmem:[%s348 + $0x8] sm:$0xf]
      %v2911 = vld [vmem:[%s348 + $0xc] sm:$0xf]
      %v2912 = vld [vmem:[%s348 + $0x10] sm:$0x7]
      %v2913 = vld [vmem:[%s359 + $0x4] sm:$0xc]
      %v2914 = vld [vmem:[%s359 + $0x8] sm:$0xf]
      %v2915 = vld [vmem:[%s359 + $0xc] sm:$0xf]
      %v2916 = vld [vmem:[%s359 + $0x10] sm:$0x7]
      %v2921 = vunpack.c.l.b16 %v2905
      %v2922 = vunpack.c.l.b16 %v2906
      %v2923 = vunpack.c.l.b16 %v2907
      %v2924 = vunpack.c.l.b16 %v2908
      %v2925 = vpack.c.b16 %v2922, %v2921
      %v2926 = vpack.c.b16 %v2924, %v2923
      %v2931 = vunpack.c.l.b16 %v2909
      %v2932 = vunpack.c.l.b16 %v2910
      %v2933 = vunpack.c.l.b16 %v2911
      %v2934 = vunpack.c.l.b16 %v2912
      %v2935 = vpack.c.b16 %v2932, %v2931
      %v2936 = vpack.c.b16 %v2934, %v2933
      %v2941 = vunpack.c.l.b16 %v2913
      %v2942 = vunpack.c.l.b16 %v2914
      %v2943 = vunpack.c.l.b16 %v2915
      %v2944 = vunpack.c.l.b16 %v2916
      %v2945 = vpack.c.b16 %v2942, %v2941
      %v2946 = vpack.c.b16 %v2944, %v2943
      %v2947 = vld [vmem:[#allocation2] sm:$0xff]
      %v2948 = vld [vmem:[#allocation2 + $0x8] sm:$0xff]
      %v2949 = vld [vmem:[#allocation2 + $0x10] sm:$0xff]
      %s2950 = scalar_lea.vmem %s3, 1344
      %v2951 = vld [vmem:[%s2950] sm:$0xf]
      %v2952 = vld [vmem:[%s2950 + $0x4] sm:$0xf]
      %v2953 = vld [vmem:[%s2950 + $0x8] sm:$0xf]
      %v2954 = vld [vmem:[%s2950 + $0xc] sm:$0xf]
      %v2955 = vld [vmem:[%s2950 + $0x10] sm:$0xf]
      %v2956 = vld [vmem:[%s2950 + $0x14] sm:$0xf]
      %v2957 = vld [vmem:[%s2950 + $0x18] sm:$0xf]
      %v2958 = vld [vmem:[%s2950 + $0x1c] sm:$0xf]
      %v2959 = vld [vmem:[%s2950 + $0x20] sm:$0xf]
      %v2960 = vld [vmem:[%s2950 + $0x24] sm:$0xf]
      %v2961 = vld [vmem:[%s2950 + $0x28] sm:$0xf]
      %v2962 = vld [vmem:[%s2950 + $0x2c] sm:$0xf]
      %v2963 = vld [vmem:[%s2950 + $0x30] sm:$0xf]
      %v2964 = vld [vmem:[%s2950 + $0x34] sm:$0xf]
      %v2965 = vld [vmem:[%s2950 + $0x38] sm:$0xf]
      %v2966 = vld [vmem:[%s2950 + $0x3c] sm:$0xf]
      %v2967 = vld [vmem:[%s2950 + $0x40] sm:$0xf]
      %v2968 = vld [vmem:[%s2950 + $0x44] sm:$0xf]
      %v2969 = vld [vmem:[%s2950 + $0x48] sm:$0xf]
      %v2970 = vld [vmem:[%s2950 + $0x4c] sm:$0xf]
      %v2971 = vld [vmem:[%s2950 + $0x50] sm:$0xf]
      %v2972 = vld [vmem:[%s2950 + $0x54] sm:$0xf]
      %v2973 = vld [vmem:[%s2950 + $0x58] sm:$0xf]
      %v2974 = vld [vmem:[%s2950 + $0x5c] sm:$0xf]
      %v2975 = vld [vmem:[%s2950 + $0x60] sm:$0xf]
      %v2976 = vld [vmem:[%s2950 + $0x64] sm:$0xf]
      %v2977 = vld [vmem:[%s2950 + $0x68] sm:$0xf]
      %v2978 = vld [vmem:[%s2950 + $0x6c] sm:$0xf]
      %v2979 = vld [vmem:[%s2950 + $0x70] sm:$0xf]
      %v2980 = vld [vmem:[%s2950 + $0x74] sm:$0xf]
      %v2981 = vld [vmem:[%s2950 + $0x78] sm:$0xf]
      %v2982 = vld [vmem:[%s2950 + $0x7c] sm:$0xf]
      %v2983 = vld [vmem:[%s2950 + $0x80] sm:$0xf]
      %v2984 = vld [vmem:[%s2950 + $0x84] sm:$0xf]
      %v2985 = vld [vmem:[%s2950 + $0x88] sm:$0xf]
      %v2986 = vld [vmem:[%s2950 + $0x8c] sm:$0xf]
      %v2987 = vld [vmem:[%s2950 + $0x90] sm:$0xf]
      %v2988 = vld [vmem:[%s2950 + $0x94] sm:$0xf]
      %v2989 = vld [vmem:[%s2950 + $0x98] sm:$0xf]
      %v2990 = vld [vmem:[%s2950 + $0x9c] sm:$0xf]
      %v2991 = vld [vmem:[%s2950 + $0xa0] sm:$0xf]
      %v2992 = vld [vmem:[%s2950 + $0xa4] sm:$0xf]
      %v2993 = vld [vmem:[%s2950 + $0xa8] sm:$0xf]
      %v2994 = vld [vmem:[%s2950 + $0xac] sm:$0xf]
      %v2995 = vld [vmem:[%s2950 + $0xb0] sm:$0xf]
      %v2996 = vld [vmem:[%s2950 + $0xb4] sm:$0xf]
      %v2997 = vld [vmem:[%s2950 + $0xb8] sm:$0xf]
      %v2998 = vld [vmem:[%s2950 + $0xbc] sm:$0xf]
      %vm2999 = vsmask.f32 5376
      %v3001 = vshrl.u32 %v2925, 16
      %v3003 = vrot.slane %v3001, 2
      %v3004 = vshll.u32 %v2925, 16
      %v3006 = vrot.slane %v3004, 3
      %v3007 = vor.u32 %v3003, %v3006
      %v3009 = vshrl.u32 %v2926, 16
      %v3011 = vrot.slane %v3009, 2
      %v3012 = vshll.u32 %v2926, 16
      %v3014 = vrot.slane %v3012, 3
      %v3015 = vor.u32 %v3011, %v3014
      %v3016 = vsel %vm2999, %v3007, %v3015
      %v3018 = vshrl.u32 %v2935, 16
      %v3020 = vrot.slane %v3018, 2
      %v3021 = vshll.u32 %v2935, 16
      %v3023 = vrot.slane %v3021, 3
      %v3024 = vor.u32 %v3020, %v3023
      %v3026 = vshrl.u32 %v2936, 16
      %v3028 = vrot.slane %v3026, 2
      %v3029 = vshll.u32 %v2936, 16
      %v3031 = vrot.slane %v3029, 3
      %v3032 = vor.u32 %v3028, %v3031
      %v3033 = vsel %vm2999, %v3024, %v3032
      %v3035 = vshrl.u32 %v2945, 16
      %v3037 = vrot.slane %v3035, 2
      %v3038 = vshll.u32 %v2945, 16
      %v3040 = vrot.slane %v3038, 3
      %v3041 = vor.u32 %v3037, %v3040
      %v3043 = vshrl.u32 %v2946, 16
      %v3045 = vrot.slane %v3043, 2
      %v3046 = vshll.u32 %v2946, 16
      %v3048 = vrot.slane %v3046, 3
      %v3049 = vor.u32 %v3045, %v3048
      %v3050 = vsel %vm2999, %v3041, %v3049
      %v3105 = vunpack.c.l.b16 %v2951
      %v3106 = vunpack.c.l.b16 %v2952
      %v3107 = vunpack.c.l.b16 %v2953
      %v3108 = vunpack.c.l.b16 %v2954
      %v3109 = vunpack.c.l.b16 %v2955
      %v3110 = vunpack.c.l.b16 %v2956
      %v3111 = vunpack.c.l.b16 %v2957
      %v3112 = vunpack.c.l.b16 %v2958
      %v3113 = vunpack.c.l.b16 %v2959
      %v3114 = vunpack.c.l.b16 %v2960
      %v3115 = vunpack.c.l.b16 %v2961
      %v3116 = vunpack.c.l.b16 %v2962
      %v3117 = vunpack.c.l.b16 %v2963
      %v3118 = vunpack.c.l.b16 %v2964
      %v3119 = vunpack.c.l.b16 %v2965
      %v3120 = vunpack.c.l.b16 %v2966
      %v3121 = vunpack.c.l.b16 %v2967
      %v3122 = vunpack.c.l.b16 %v2968
      %v3123 = vunpack.c.l.b16 %v2969
      %v3124 = vunpack.c.l.b16 %v2970
      %v3125 = vunpack.c.l.b16 %v2971
      %v3126 = vunpack.c.l.b16 %v2972
      %v3127 = vunpack.c.l.b16 %v2973
      %v3128 = vunpack.c.l.b16 %v2974
      %v3129 = vunpack.c.l.b16 %v2975
      %v3130 = vunpack.c.l.b16 %v2976
      %v3131 = vunpack.c.l.b16 %v2977
      %v3132 = vunpack.c.l.b16 %v2978
      %v3133 = vunpack.c.l.b16 %v2979
      %v3134 = vunpack.c.l.b16 %v2980
      %v3135 = vunpack.c.l.b16 %v2981
      %v3136 = vunpack.c.l.b16 %v2982
      %v3137 = vunpack.c.l.b16 %v2983
      %v3138 = vunpack.c.l.b16 %v2984
      %v3139 = vunpack.c.l.b16 %v2985
      %v3140 = vunpack.c.l.b16 %v2986
      %v3141 = vunpack.c.l.b16 %v2987
      %v3142 = vunpack.c.l.b16 %v2988
      %v3143 = vunpack.c.l.b16 %v2989
      %v3144 = vunpack.c.l.b16 %v2990
      %v3145 = vunpack.c.l.b16 %v2991
      %v3146 = vunpack.c.l.b16 %v2992
      %v3147 = vunpack.c.l.b16 %v2993
      %v3148 = vunpack.c.l.b16 %v2994
      %v3149 = vunpack.c.l.b16 %v2995
      %v3150 = vunpack.c.l.b16 %v2996
      %v3151 = vunpack.c.l.b16 %v2997
      %v3152 = vunpack.c.l.b16 %v2998
      %v3153 = vpack.c.b16 %v3106, %v3105
      %v3154 = vpack.c.b16 %v3108, %v3107
      %v3155 = vpack.c.b16 %v3110, %v3109
      %v3156 = vpack.c.b16 %v3112, %v3111
      %v3157 = vpack.c.b16 %v3114, %v3113
      %v3158 = vpack.c.b16 %v3116, %v3115
      %v3159 = vpack.c.b16 %v3118, %v3117
      %v3160 = vpack.c.b16 %v3120, %v3119
      %v3161 = vpack.c.b16 %v3122, %v3121
      %v3162 = vpack.c.b16 %v3124, %v3123
      %v3163 = vpack.c.b16 %v3126, %v3125
      %v3164 = vpack.c.b16 %v3128, %v3127
      %v3165 = vpack.c.b16 %v3130, %v3129
      %v3166 = vpack.c.b16 %v3132, %v3131
      %v3167 = vpack.c.b16 %v3134, %v3133
      %v3168 = vpack.c.b16 %v3136, %v3135
      %v3169 = vpack.c.b16 %v3138, %v3137
      %v3170 = vpack.c.b16 %v3140, %v3139
      %v3171 = vpack.c.b16 %v3142, %v3141
      %v3172 = vpack.c.b16 %v3144, %v3143
      %v3173 = vpack.c.b16 %v3146, %v3145
      %v3174 = vpack.c.b16 %v3148, %v3147
      %v3175 = vpack.c.b16 %v3150, %v3149
      %v3176 = vpack.c.b16 %v3152, %v3151
      %3201 = vmatprep.subr.bf16.mxu0 0
      %3202 = vmatpush1.bf16.msra.mxu0 %v3153
      %3203 = vmatprep.subr.bf16.mxu0 0
      %3204 = vmatpush1.bf16.msra.mxu0 %v3154
      %3205 = vmatprep.subr.bf16.mxu0 0
      %3206 = vmatpush1.bf16.msra.mxu0 %v3155
      %3207 = vmatprep.subr.bf16.mxu0 0
      %3208 = vmatpush1.bf16.msra.mxu0 %v3156
      %3209 = vmatprep.subr.bf16.mxu0 0
      %3210 = vmatpush1.bf16.msra.mxu0 %v3157
      %3211 = vmatprep.subr.bf16.mxu0 0
      %3212 = vmatpush1.bf16.msra.mxu0 %v3158
      %3213 = vmatprep.subr.bf16.mxu0 0
      %3214 = vmatpush1.bf16.msra.mxu0 %v3159
      %3215 = vmatprep.subr.bf16.mxu0 0
      %3216 = vmatpush1.bf16.msra.mxu0 %v3160
      %3217 = vmatprep.subr.bf16.mxu0 0
      %3218 = vmatpush1.bf16.msra.mxu0 %v3161
      %3219 = vmatprep.subr.bf16.mxu0 0
      %3220 = vmatpush1.bf16.msra.mxu0 %v3162
      %3221 = vmatprep.subr.bf16.mxu0 0
      %3222 = vmatpush1.bf16.msra.mxu0 %v3163
      %3223 = vmatprep.subr.bf16.mxu0 0
      %3224 = vmatpush1.bf16.msra.mxu0 %v3164
      %3225 = vmatprep.subr.bf16.mxu0 0
      %3226 = vmatpush1.bf16.msra.mxu0 %v3165
      %3227 = vmatprep.subr.bf16.mxu0 0
      %3228 = vmatpush1.bf16.msra.mxu0 %v3166
      %3229 = vmatprep.subr.bf16.mxu0 0
      %3230 = vmatpush1.bf16.msra.mxu0 %v3167
      %3231 = vmatprep.subr.bf16.mxu0 0
      %3232 = vmatpush1.bf16.msra.mxu0 %v3168
      %3233 = vmatprep.mubr.bf16.mxu0 %v3033
      %3234 = vmatmul.mubr.bf16.gmra.mrb[0].mxu0 %v3016
      %v3235 = vpop.f32.mrb[0].mxu0
      %v3236 = vadd.f32 0.0, %v3235
      %v3237 = vpop.f32.mrb[0].mxu0
      %v3238 = vpop.f32.mrb[0].mxu0
      %v3239 = vadd.f32 0.0, %v3238
      %v3240 = vpop.f32.mrb[0].mxu0
      %3241 = vmatprep.mubr.bf16.mxu0 %v3032
      %3242 = vmatmul.mubr.bf16.gmra.mrb[0].mxu0 %v3015
      %v3243 = vpop.f32.mrb[0].mxu0
      %v3244 = vadd.f32 0.0, %v3243
      %v3245 = vpop.f32.mrb[0].mxu0
      %v3246 = vpop.f32.mrb[0].mxu0
      %v3247 = vpop.f32.mrb[0].mxu0
      %3248 = vdwg.mxu0
      %3249 = vmatprep.subr.bf16.mxu0 0
      %3250 = vmatpush1.bf16.msra.mxu0 %v3169
      %3251 = vmatprep.subr.bf16.mxu0 0
      %3252 = vmatpush1.bf16.msra.mxu0 %v3170
      %3253 = vmatprep.subr.bf16.mxu0 0
      %3254 = vmatpush1.bf16.msra.mxu0 %v3171
      %3255 = vmatprep.subr.bf16.mxu0 0
      %3256 = vmatpush1.bf16.msra.mxu0 %v3172
      %3257 = vmatprep.subr.bf16.mxu0 0
      %3258 = vmatpush1.bf16.msra.mxu0 %v3173
      %3259 = vmatprep.subr.bf16.mxu0 0
      %3260 = vmatpush1.bf16.msra.mxu0 %v3174
      %3261 = vmatprep.subr.bf16.mxu0 0
      %3262 = vmatpush1.bf16.msra.mxu0 %v3175
      %3263 = vmatprep.subr.bf16.mxu0 0
      %3264 = vmatpush1.bf16.msra.mxu0 %v3176
      %3265 = vmatprep.subr.bf16.mxu0 0
      %3266 = vmatpush1.bf16.msra.mxu0 0
      %3267 = vmatprep.subr.bf16.mxu0 0
      %3268 = vmatpush1.bf16.msra.mxu0 0
      %3269 = vmatprep.subr.bf16.mxu0 0
      %3270 = vmatpush1.bf16.msra.mxu0 0
      %3271 = vmatprep.subr.bf16.mxu0 0
      %3272 = vmatpush1.bf16.msra.mxu0 0
      %3273 = vmatprep.subr.bf16.mxu0 0
      %3274 = vmatpush1.bf16.msra.mxu0 0
      %3275 = vmatprep.subr.bf16.mxu0 0
      %3276 = vmatpush1.bf16.msra.mxu0 0
      %3277 = vmatprep.subr.bf16.mxu0 0
      %3278 = vmatpush1.bf16.msra.mxu0 0
      %3279 = vmatprep.subr.bf16.mxu0 0
      %3280 = vmatpush1.bf16.msra.mxu0 0
      %3281 = vmatprep.mubr.bf16.mxu0 0
      %3282 = vmatmul.mubr.bf16.gmra.mrb[0].mxu0 %v3050
      %v3283 = vpop.f32.mrb[0].mxu0
      %v3284 = vadd.f32 %v3236, %v3283
      %v3285 = vpop.f32.mrb[0].mxu0
      %v3286 = vpop.f32.mrb[0].mxu0
      %v3287 = vadd.f32 %v3239, %v3286
      %v3288 = vpop.f32.mrb[0].mxu0
      %3289 = vmatprep.mubr.bf16.mxu0 0
      %3290 = vmatmul.mubr.bf16.gmra.mrb[0].mxu0 %v3049
      %v3291 = vpop.f32.mrb[0].mxu0
      %v3292 = vadd.f32 %v3244, %v3291
      %v3293 = vpop.f32.mrb[0].mxu0
      %v3294 = vpop.f32.mrb[0].mxu0
      %v3295 = vpop.f32.mrb[0].mxu0
      %3296 = vdwg.mxu0
      %v3297 = vadd.f32 %v2947, %v3284
      %v3298 = vadd.f32 %v2948, %v3287
      %v3299 = vadd.f32 %v2949, %v3292
      %3300 = vst [vmem:[#allocation2] sm:$0xff] %v3297
      %3301 = vst [vmem:[#allocation2 + $0x8] sm:$0xff] %v3298
      %3302 = vst [vmem:[#allocation2 + $0x10] sm:$0xff] %v3299
      %v3303 = vld [vmem:[%s338 + $0x4] sm:$0x8]
      %v3304 = vld [vmem:[%s338 + $0x8] sm:$0xf]
      %v3305 = vld [vmem:[%s338 + $0xc] sm:$0xf]
      %v3306 = vld [vmem:[%s338 + $0x10] sm:$0x7]
      %v3307 = vld [vmem:[%s348 + $0x4] sm:$0x8]
      %v3308 = vld [vmem:[%s348 + $0x8] sm:$0xf]
      %v3309 = vld [vmem:[%s348 + $0xc] sm:$0xf]
      %v3310 = vld [vmem:[%s348 + $0x10] sm:$0x7]
      %v3311 = vld [vmem:[%s359 + $0x4] sm:$0x8]
      %v3312 = vld [vmem:[%s359 + $0x8] sm:$0xf]
      %v3313 = vld [vmem:[%s359 + $0xc] sm:$0xf]
      %v3314 = vld [vmem:[%s359 + $0x10] sm:$0x7]
      %v3319 = vunpack.c.l.b16 %v3303
      %v3320 = vunpack.c.l.b16 %v3304
      %v3321 = vunpack.c.l.b16 %v3305
      %v3322 = vunpack.c.l.b16 %v3306
      %v3323 = vpack.c.b16 %v3320, %v3319
      %v3324 = vpack.c.b16 %v3322, %v3321
      %v3329 = vunpack.c.l.b16 %v3307
      %v3330 = vunpack.c.l.b16 %v3308
      %v3331 = vunpack.c.l.b16 %v3309
      %v3332 = vunpack.c.l.b16 %v3310
      %v3333 = vpack.c.b16 %v3330, %v3329
      %v3334 = vpack.c.b16 %v3332, %v3331
      %v3339 = vunpack.c.l.b16 %v3311
      %v3340 = vunpack.c.l.b16 %v3312
      %v3341 = vunpack.c.l.b16 %v3313
      %v3342 = vunpack.c.l.b16 %v3314
      %v3343 = vpack.c.b16 %v3340, %v3339
      %v3344 = vpack.c.b16 %v3342, %v3341
      %v3345 = vld [vmem:[#allocation2] sm:$0xff]
      %v3346 = vld [vmem:[#allocation2 + $0x8] sm:$0xff]
      %v3347 = vld [vmem:[#allocation2 + $0x10] sm:$0xff]
      %s3348 = scalar_lea.vmem %s3, 1536
      %v3349 = vld [vmem:[%s3348] sm:$0xf]
      %v3350 = vld [vmem:[%s3348 + $0x4] sm:$0xf]
      %v3351 = vld [vmem:[%s3348 + $0x8] sm:$0xf]
      %v3352 = vld [vmem:[%s3348 + $0xc] sm:$0xf]
      %v3353 = vld [vmem:[%s3348 + $0x10] sm:$0xf]
      %v3354 = vld [vmem:[%s3348 + $0x14] sm:$0xf]
      %v3355 = vld [vmem:[%s3348 + $0x18] sm:$0xf]
      %v3356 = vld [vmem:[%s3348 + $0x1c] sm:$0xf]
      %v3357 = vld [vmem:[%s3348 + $0x20] sm:$0xf]
      %v3358 = vld [vmem:[%s3348 + $0x24] sm:$0xf]
      %v3359 = vld [vmem:[%s3348 + $0x28] sm:$0xf]
      %v3360 = vld [vmem:[%s3348 + $0x2c] sm:$0xf]
      %v3361 = vld [vmem:[%s3348 + $0x30] sm:$0xf]
      %v3362 = vld [vmem:[%s3348 + $0x34] sm:$0xf]
      %v3363 = vld [vmem:[%s3348 + $0x38] sm:$0xf]
      %v3364 = vld [vmem:[%s3348 + $0x3c] sm:$0xf]
      %v3365 = vld [vmem:[%s3348 + $0x40] sm:$0xf]
      %v3366 = vld [vmem:[%s3348 + $0x44] sm:$0xf]
      %v3367 = vld [vmem:[%s3348 + $0x48] sm:$0xf]
      %v3368 = vld [vmem:[%s3348 + $0x4c] sm:$0xf]
      %v3369 = vld [vmem:[%s3348 + $0x50] sm:$0xf]
      %v3370 = vld [vmem:[%s3348 + $0x54] sm:$0xf]
      %v3371 = vld [vmem:[%s3348 + $0x58] sm:$0xf]
      %v3372 = vld [vmem:[%s3348 + $0x5c] sm:$0xf]
      %v3373 = vld [vmem:[%s3348 + $0x60] sm:$0xf]
      %v3374 = vld [vmem:[%s3348 + $0x64] sm:$0xf]
      %v3375 = vld [vmem:[%s3348 + $0x68] sm:$0xf]
      %v3376 = vld [vmem:[%s3348 + $0x6c] sm:$0xf]
      %v3377 = vld [vmem:[%s3348 + $0x70] sm:$0xf]
      %v3378 = vld [vmem:[%s3348 + $0x74] sm:$0xf]
      %v3379 = vld [vmem:[%s3348 + $0x78] sm:$0xf]
      %v3380 = vld [vmem:[%s3348 + $0x7c] sm:$0xf]
      %v3381 = vld [vmem:[%s3348 + $0x80] sm:$0xf]
      %v3382 = vld [vmem:[%s3348 + $0x84] sm:$0xf]
      %v3383 = vld [vmem:[%s3348 + $0x88] sm:$0xf]
      %v3384 = vld [vmem:[%s3348 + $0x8c] sm:$0xf]
      %v3385 = vld [vmem:[%s3348 + $0x90] sm:$0xf]
      %v3386 = vld [vmem:[%s3348 + $0x94] sm:$0xf]
      %v3387 = vld [vmem:[%s3348 + $0x98] sm:$0xf]
      %v3388 = vld [vmem:[%s3348 + $0x9c] sm:$0xf]
      %v3389 = vld [vmem:[%s3348 + $0xa0] sm:$0xf]
      %v3390 = vld [vmem:[%s3348 + $0xa4] sm:$0xf]
      %v3391 = vld [vmem:[%s3348 + $0xa8] sm:$0xf]
      %v3392 = vld [vmem:[%s3348 + $0xac] sm:$0xf]
      %v3393 = vld [vmem:[%s3348 + $0xb0] sm:$0xf]
      %v3394 = vld [vmem:[%s3348 + $0xb4] sm:$0xf]
      %v3395 = vld [vmem:[%s3348 + $0xb8] sm:$0xf]
      %v3396 = vld [vmem:[%s3348 + $0xbc] sm:$0xf]
      %v3397 = vrot.slane %v3323, 3
      %v3398 = vrot.slane %v3324, 3
      %v3399 = vsel %vm1552, %v3397, %v3398
      %v3400 = vrot.slane %v3333, 3
      %v3401 = vrot.slane %v3334, 3
      %v3402 = vsel %vm1552, %v3400, %v3401
      %v3403 = vrot.slane %v3343, 3
      %v3404 = vrot.slane %v3344, 3
      %v3405 = vsel %vm1552, %v3403, %v3404
      %v3460 = vunpack.c.l.b16 %v3349
      %v3461 = vunpack.c.l.b16 %v3350
      %v3462 = vunpack.c.l.b16 %v3351
      %v3463 = vunpack.c.l.b16 %v3352
      %v3464 = vunpack.c.l.b16 %v3353
      %v3465 = vunpack.c.l.b16 %v3354
      %v3466 = vunpack.c.l.b16 %v3355
      %v3467 = vunpack.c.l.b16 %v3356
      %v3468 = vunpack.c.l.b16 %v3357
      %v3469 = vunpack.c.l.b16 %v3358
      %v3470 = vunpack.c.l.b16 %v3359
      %v3471 = vunpack.c.l.b16 %v3360
      %v3472 = vunpack.c.l.b16 %v3361
      %v3473 = vunpack.c.l.b16 %v3362
      %v3474 = vunpack.c.l.b16 %v3363
      %v3475 = vunpack.c.l.b16 %v3364
      %v3476 = vunpack.c.l.b16 %v3365
      %v3477 = vunpack.c.l.b16 %v3366
      %v3478 = vunpack.c.l.b16 %v3367
      %v3479 = vunpack.c.l.b16 %v3368
      %v3480 = vunpack.c.l.b16 %v3369
      %v3481 = vunpack.c.l.b16 %v3370
      %v3482 = vunpack.c.l.b16 %v3371
      %v3483 = vunpack.c.l.b16 %v3372
      %v3484 = vunpack.c.l.b16 %v3373
      %v3485 = vunpack.c.l.b16 %v3374
      %v3486 = vunpack.c.l.b16 %v3375
      %v3487 = vunpack.c.l.b16 %v3376
      %v3488 = vunpack.c.l.b16 %v3377
      %v3489 = vunpack.c.l.b16 %v3378
      %v3490 = vunpack.c.l.b16 %v3379
      %v3491 = vunpack.c.l.b16 %v3380
      %v3492 = vunpack.c.l.b16 %v3381
      %v3493 = vunpack.c.l.b16 %v3382
      %v3494 = vunpack.c.l.b16 %v3383
      %v3495 = vunpack.c.l.b16 %v3384
      %v3496 = vunpack.c.l.b16 %v3385
      %v3497 = vunpack.c.l.b16 %v3386
      %v3498 = vunpack.c.l.b16 %v3387
      %v3499 = vunpack.c.l.b16 %v3388
      %v3500 = vunpack.c.l.b16 %v3389
      %v3501 = vunpack.c.l.b16 %v3390
      %v3502 = vunpack.c.l.b16 %v3391
      %v3503 = vunpack.c.l.b16 %v3392
      %v3504 = vunpack.c.l.b16 %v3393
      %v3505 = vunpack.c.l.b16 %v3394
      %v3506 = vunpack.c.l.b16 %v3395
      %v3507 = vunpack.c.l.b16 %v3396
      %v3508 = vpack.c.b16 %v3461, %v3460
      %v3509 = vpack.c.b16 %v3463, %v3462
      %v3510 = vpack.c.b16 %v3465, %v3464
      %v3511 = vpack.c.b16 %v3467, %v3466
      %v3512 = vpack.c.b16 %v3469, %v3468
      %v3513 = vpack.c.b16 %v3471, %v3470
      %v3514 = vpack.c.b16 %v3473, %v3472
      %v3515 = vpack.c.b16 %v3475, %v3474
      %v3516 = vpack.c.b16 %v3477, %v3476
      %v3517 = vpack.c.b16 %v3479, %v3478
      %v3518 = vpack.c.b16 %v3481, %v3480
      %v3519 = vpack.c.b16 %v3483, %v3482
      %v3520 = vpack.c.b16 %v3485, %v3484
      %v3521 = vpack.c.b16 %v3487, %v3486
      %v3522 = vpack.c.b16 %v3489, %v3488
      %v3523 = vpack.c.b16 %v3491, %v3490
      %v3524 = vpack.c.b16 %v3493, %v3492
      %v3525 = vpack.c.b16 %v3495, %v3494
      %v3526 = vpack.c.b16 %v3497, %v3496
      %v3527 = vpack.c.b16 %v3499, %v3498
      %v3528 = vpack.c.b16 %v3501, %v3500
      %v3529 = vpack.c.b16 %v3503, %v3502
      %v3530 = vpack.c.b16 %v3505, %v3504
      %v3531 = vpack.c.b16 %v3507, %v3506
      %3556 = vmatprep.subr.bf16.mxu0 0
      %3557 = vmatpush1.bf16.msra.mxu0 %v3508
      %3558 = vmatprep.subr.bf16.mxu0 0
      %3559 = vmatpush1.bf16.msra.mxu0 %v3509
      %3560 = vmatprep.subr.bf16.mxu0 0
      %3561 = vmatpush1.bf16.msra.mxu0 %v3510
      %3562 = vmatprep.subr.bf16.mxu0 0
      %3563 = vmatpush1.bf16.msra.mxu0 %v3511
      %3564 = vmatprep.subr.bf16.mxu0 0
      %3565 = vmatpush1.bf16.msra.mxu0 %v3512
      %3566 = vmatprep.subr.bf16.mxu0 0
      %3567 = vmatpush1.bf16.msra.mxu0 %v3513
      %3568 = vmatprep.subr.bf16.mxu0 0
      %3569 = vmatpush1.bf16.msra.mxu0 %v3514
      %3570 = vmatprep.subr.bf16.mxu0 0
      %3571 = vmatpush1.bf16.msra.mxu0 %v3515
      %3572 = vmatprep.subr.bf16.mxu0 0
      %3573 = vmatpush1.bf16.msra.mxu0 %v3516
      %3574 = vmatprep.subr.bf16.mxu0 0
      %3575 = vmatpush1.bf16.msra.mxu0 %v3517
      %3576 = vmatprep.subr.bf16.mxu0 0
      %3577 = vmatpush1.bf16.msra.mxu0 %v3518
      %3578 = vmatprep.subr.bf16.mxu0 0
      %3579 = vmatpush1.bf16.msra.mxu0 %v3519
      %3580 = vmatprep.subr.bf16.mxu0 0
      %3581 = vmatpush1.bf16.msra.mxu0 %v3520
      %3582 = vmatprep.subr.bf16.mxu0 0
      %3583 = vmatpush1.bf16.msra.mxu0 %v3521
      %3584 = vmatprep.subr.bf16.mxu0 0
      %3585 = vmatpush1.bf16.msra.mxu0 %v3522
      %3586 = vmatprep.subr.bf16.mxu0 0
      %3587 = vmatpush1.bf16.msra.mxu0 %v3523
      %3588 = vmatprep.mubr.bf16.mxu0 %v3402
      %3589 = vmatmul.mubr.bf16.gmra.mrb[0].mxu0 %v3399
      %v3590 = vpop.f32.mrb[0].mxu0
      %v3591 = vadd.f32 0.0, %v3590
      %v3592 = vpop.f32.mrb[0].mxu0
      %v3593 = vpop.f32.mrb[0].mxu0
      %v3594 = vadd.f32 0.0, %v3593
      %v3595 = vpop.f32.mrb[0].mxu0
      %3596 = vmatprep.mubr.bf16.mxu0 %v3401
      %3597 = vmatmul.mubr.bf16.gmra.mrb[0].mxu0 %v3398
      %v3598 = vpop.f32.mrb[0].mxu0
      %v3599 = vadd.f32 0.0, %v3598
      %v3600 = vpop.f32.mrb[0].mxu0
      %v3601 = vpop.f32.mrb[0].mxu0
      %v3602 = vpop.f32.mrb[0].mxu0
      %3603 = vdwg.mxu0
      %3604 = vmatprep.subr.bf16.mxu0 0
      %3605 = vmatpush1.bf16.msra.mxu0 %v3524
      %3606 = vmatprep.subr.bf16.mxu0 0
      %3607 = vmatpush1.bf16.msra.mxu0 %v3525
      %3608 = vmatprep.subr.bf16.mxu0 0
      %3609 = vmatpush1.bf16.msra.mxu0 %v3526
      %3610 = vmatprep.subr.bf16.mxu0 0
      %3611 = vmatpush1.bf16.msra.mxu0 %v3527
      %3612 = vmatprep.subr.bf16.mxu0 0
      %3613 = vmatpush1.bf16.msra.mxu0 %v3528
      %3614 = vmatprep.subr.bf16.mxu0 0
      %3615 = vmatpush1.bf16.msra.mxu0 %v3529
      %3616 = vmatprep.subr.bf16.mxu0 0
      %3617 = vmatpush1.bf16.msra.mxu0 %v3530
      %3618 = vmatprep.subr.bf16.mxu0 0
      %3619 = vmatpush1.bf16.msra.mxu0 %v3531
      %3620 = vmatprep.subr.bf16.mxu0 0
      %3621 = vmatpush1.bf16.msra.mxu0 0
      %3622 = vmatprep.subr.bf16.mxu0 0
      %3623 = vmatpush1.bf16.msra.mxu0 0
      %3624 = vmatprep.subr.bf16.mxu0 0
      %3625 = vmatpush1.bf16.msra.mxu0 0
      %3626 = vmatprep.subr.bf16.mxu0 0
      %3627 = vmatpush1.bf16.msra.mxu0 0
      %3628 = vmatprep.subr.bf16.mxu0 0
      %3629 = vmatpush1.bf16.msra.mxu0 0
      %3630 = vmatprep.subr.bf16.mxu0 0
      %3631 = vmatpush1.bf16.msra.mxu0 0
      %3632 = vmatprep.subr.bf16.mxu0 0
      %3633 = vmatpush1.bf16.msra.mxu0 0
      %3634 = vmatprep.subr.bf16.mxu0 0
      %3635 = vmatpush1.bf16.msra.mxu0 0
      %3636 = vmatprep.mubr.bf16.mxu0 0
      %3637 = vmatmul.mubr.bf16.gmra.mrb[0].mxu0 %v3405
      %v3638 = vpop.f32.mrb[0].mxu0
      %v3639 = vadd.f32 %v3591, %v3638
      %v3640 = vpop.f32.mrb[0].mxu0
      %v3641 = vpop.f32.mrb[0].mxu0
      %v3642 = vadd.f32 %v3594, %v3641
      %v3643 = vpop.f32.mrb[0].mxu0
      %3644 = vmatprep.mubr.bf16.mxu0 0
      %3645 = vmatmul.mubr.bf16.gmra.mrb[0].mxu0 %v3404
      %v3646 = vpop.f32.mrb[0].mxu0
      %v3647 = vadd.f32 %v3599, %v3646
      %v3648 = vpop.f32.mrb[0].mxu0
      %v3649 = vpop.f32.mrb[0].mxu0
      %v3650 = vpop.f32.mrb[0].mxu0
      %3651 = vdwg.mxu0
      %v3652 = vadd.f32 %v3345, %v3639
      %v3653 = vadd.f32 %v3346, %v3642
      %v3654 = vadd.f32 %v3347, %v3647
      %3655 = vst [vmem:[#allocation2] sm:$0xff] %v3652
      %3656 = vst [vmem:[#allocation2 + $0x8] sm:$0xff] %v3653
      %3657 = vst [vmem:[#allocation2 + $0x10] sm:$0xff] %v3654
      %v3658 = vld [vmem:[#allocation2] sm:$0xff]
      %v3659 = vld [vmem:[#allocation2 + $0x8] sm:$0xff]
      %v3660 = vld [vmem:[#allocation2 + $0x10] sm:$0xff]
      %v3661 = vmax.f32 %v3658, 0.0
      %v3662 = vmax.f32 %v3659, 0.0
      %v3663 = vmax.f32 %v3660, 0.0
      %v3664 = vld [vmem:[%s4] sm:$0x1]
      %v3666 = vlaneseq
      %v3667 = vshrl.u32 %v3666, 7
      %v3668 = vsub.s32 0, %v3667
      %v3669 = vrot.slane %v3664, %v3668
      %v3671 = vmul.f32 %v3661, %v3669
      %v3672 = vmul.f32 %v3662, %v3669
      %v3673 = vmul.f32 %v3663, %v3669
      %v3674 = vld [vmem:[%s5] sm:$0x1]
      %v3676 = vlaneseq
      %v3677 = vshrl.u32 %v3676, 7
      %v3678 = vsub.s32 0, %v3677
      %v3679 = vrot.slane %v3674, %v3678
      %v3681 = vadd.f32 %v3671, %v3679
      %v3682 = vadd.f32 %v3672, %v3679
      %v3683 = vadd.f32 %v3673, %v3679
      %v3684 = vpack.c.bf16 %v3682, %v3681
      %v3685 = vpack.c.bf16 %v3683, %v3683
      %v3688 = vunpack.c.l.b16 %v3684
      %v3689 = vunpack.c.h.b16 %v3684
      %v3690 = vunpack.c.l.b16 %v3685
      %v3691 = vpack.c.b16 %v3688, %v3688
      %v3692 = vpack.c.b16 %v3689, %v3689
      %v3693 = vpack.c.b16 %v3690, %v3690
      %3697 = vst [vmem:[%s369] sm:$0xf] %v3691
      %3698 = vst [vmem:[%s369 + $0x4] sm:$0xf] %v3692
      %3699 = vst [vmem:[%s369 + $0x8] sm:$0xf] %v3693
      %p3700 = scmp.lt.s32.totalorder %s21, 1
      %s3701 = scalar_select %p3700, %s21, 1
      %p3702 = scmp.lt.s32.totalorder %s22, 3
      %s3703 = scalar_select %p3702, %s22, 3
      %s3704 = smul.addr %s3703, 3
      %s3705 = smul.addr %s3701, 12
      %s3706 = sadd.s32 %s3704, %s3705
      %s3707 = smul.addr %s3706, 4
      %s3708 = scalar_lea.vmem %s6, %s3707
      // Predicated region
      $region45: #{encoder_forward.4} parent=43 // pred_check
        %p3709 = pneg %p200
      $region46: #{encoder_forward.4} parent=43 // pred_check_branch
        %3711 = sbr.rel (%p3709) target = $region48
      $region47: #{encoder_forward.4} parent=43 // pred_region
        _
      $region48: #{encoder_forward.4} parent=43 // pred_fallthru
        _
    $region44: #{encoder_forward.4} parent=5 // pred_fallthru
      _
    %p3712 = scmp.le.s32.totalorder 2, %s12
    // Predicated region
    $region49: #{encoder_forward.4} parent=5 // pred_check
      %p3713 = pneg %p3712
    $region50: #{encoder_forward.4} parent=5 // pred_check_branch
      %3715 = sbr.rel (%p3713) target = $region52
    $region51: #{encoder_forward.4} parent=5 // pred_region
      %s3716 = ssub.s32 %s12, 2
      // Predicated region
      $region53: #{encoder_forward.4} parent=51 // pred_check
        %p3717 = pneg %p206
      $region54: #{encoder_forward.4} parent=51 // pred_check_branch
        %3719 = sbr.rel (%p3717) target = $region56
      $region55: #{encoder_forward.4} parent=51 // pred_region
        %p3720 = scmp.lt.s32.totalorder %s23, 1
        %s3721 = scalar_select %p3720, %s23, 1
        %p3722 = scmp.lt.s32.totalorder %s24, 3
        %s3723 = scalar_select %p3722, %s24, 3
        %s3724 = smul.addr %s3723, 3
        %s3725 = smul.addr %s3721, 12
        %s3726 = sadd.s32 %s3724, %s3725
        %s3727 = smul.addr %s3726, 4
        %s3728 = scalar_lea.vmem %s6, %s3727
      $region56: #{encoder_forward.4} parent=51 // pred_fallthru
        _
    $region52: #{encoder_forward.4} parent=5 // pred_fallthru
      _
  $region6: #{encoder_forward.4} parent=0 // loop_footer
    %s16 = sadd.s32 1, %s12
  $region7: #{encoder_forward.4} parent=0 // loop_footer_branch
    %11 = sbr.rel target = $region3
  $region8: #{encoder_forward.4} parent=0 // loop_exit
    _

// kernel: encoder_forward.5
$region0: #{encoder_forward.5}
  #allocation0 [shape = 'u32[]', space=smem, size = 0x4, offset = 0x4, fixed_abs, tag = 'smem constant byte address 0x4 - core index']
  #allocation1 [shape = 'u32[144,128]{1,0:T(1,128)}', space=vmem, size = 0x12000, scoped, tag = 'internal scratch']
  #allocation2 [shape = 'f32[24,128]{1,0:T(8,128)}', space=vmem, size = 0x3000, scoped, tag = 'scratch operand']
  %s0 = inlined_call_operand.vmem [shape: bf16[2,6,42,128], index: 0, kind: input, shape index: {}, may-alias: {0,1,2}]
  %s1 = inlined_call_operand.vmem [shape: bf16[2,6,42,128], index: 1, kind: input, shape index: {}, may-alias: {0,1,2}]
  %s2 = inlined_call_operand.vmem [shape: bf16[2,6,42,128], index: 2, kind: input, shape index: {}, may-alias: {0,1,2}]
  %s3 = inlined_call_operand.vmem [shape: bf16[9,384,128], index: 3, kind: input, shape index: {}]
  %s4 = inlined_call_operand.vmem [shape: f32[2,4,24,128], index: 4, kind: output, shape index: {}]
  %s5 = sld [smem:[#allocation0]]
  $region49: #{encoder_forward.5} parent=0
    _
  %s7 = ssub.s32 1, %s5
  %s8 = scalar_select 0, %s7, %s5
  loop: start=0, step=1, limit=10
  $region2: #{encoder_forward.5} parent=0 // loop_pre_header
    _
  $region3: #{encoder_forward.5} parent=0 // loop_header
    %s10 = sphi 0, %s14
    %p11 = scmp.ge.s32.totalorder %s10, 10
    %s17 = sphi 0, %s29
    %s18 = sphi 0, %s25
    %s19 = sphi 0, %s17
    %s20 = sphi 0, %s18
    %s21 = sphi 0, %s19
    %s22 = sphi 0, %s20
    %s34 = sphi 0, %s36
    %s37 = sphi 0, %s34
    %s38 = sphi 0, %s37
    %s54 = sphi 0, %s38
    %s64 = sphi 0, %s66
    %s67 = sphi 0, %s64
    %s68 = sphi 0, %s67
    %s84 = sphi 0, %s68
    %s94 = sphi 0, %s96
    %s97 = sphi 0, %s94
    %s98 = sphi 0, %s97
    %s114 = sphi 0, %s98
    %s118 = sphi 0, %s118
    %s120 = sphi 0, %s118
    %s121 = sphi 0, %s120
    %s135 = sphi 0, %s121
    %s143 = sphi 0, %s145
    %s146 = sphi 0, %s143
    %s147 = sphi 0, %s146
    %s163 = sphi 0, %s147
  $region4: #{encoder_forward.5} parent=0 // loop_header_branch
    %13 = sbr.rel (%p11) target = $region8
  $region5: #{encoder_forward.5} parent=0 // loop_body
    %s15 = ssub.s32 %s10, 1
    %s16 = ssub.s32 %s10, 2
    %s23 = sadd.s32 1, %s18
    %p24 = scmp.ge.s32.totalorder %s23, 4
    %s25 = scalar_select %p24, 0, %s23
    %s26 = sadd.s32 1, %s17
    %s27 = scalar_select %p24, %s26, %s17
    %p28 = scmp.ge.s32.totalorder %s27, 2
    %s29 = scalar_select %p28, 0, %s27
    %s30 = ssub.s32 %s17, %s29
    %s31 = ssub.s32 %s18, %s25
    %s32 = sor.u32 %s30, %s31
    %p33 = scmp.eq.s32.totalorder %s32, 0
    %s35 = sadd.s32 %s34, 1
    %s36 = scalar_select %p33, %s34, %s35
    %p39 = pneg %p33
    %p40 = scmp.eq.s32.totalorder %s10, 7
    %p41 = por %p39, %p40
    %p42 = scmp.ne.s32.totalorder %s34, %s37
    %p43 = scmp.eq.s32.totalorder %s10, 0
    %p44 = por %p42, %p43
    %p45 = scmp.ne.s32.totalorder %s34, %s37
    %p46 = scmp.eq.s32.totalorder %s15, 7
    %p47 = por %p45, %p46
    %p48 = scmp.ne.s32.totalorder %s37, %s38
    %p49 = scmp.eq.s32.totalorder %s15, 0
    %p50 = por %p48, %p49
    %p51 = scmp.ne.s32.totalorder %s37, %s38
    %p52 = scmp.eq.s32.totalorder %s16, 7
    %p53 = por %p51, %p52
    %p55 = scmp.ne.s32.totalorder %s38, %s54
    %p56 = scmp.eq.s32.totalorder %s16, 0
    %p57 = por %p55, %p56
    %s58 = sadd.s32 %s18, 1
    %s59 = sadd.s32 %s25, 1
    %s60 = ssub.s32 %s17, %s29
    %s61 = ssub.s32 %s58, %s59
    %s62 = sor.u32 %s60, %s61
    %p63 = scmp.eq.s32.totalorder %s62, 0
    %s65 = sadd.s32 %s64, 1
    %s66 = scalar_select %p63, %s64, %s65
    %p69 = pneg %p63
    %p70 = scmp.eq.s32.totalorder %s10, 7
    %p71 = por %p69, %p70
    %p72 = scmp.ne.s32.totalorder %s64, %s67
    %p73 = scmp.eq.s32.totalorder %s10, 0
    %p74 = por %p72, %p73
    %p75 = scmp.ne.s32.totalorder %s64, %s67
    %p76 = scmp.eq.s32.totalorder %s15, 7
    %p77 = por %p75, %p76
    %p78 = scmp.ne.s32.totalorder %s67, %s68
    %p79 = scmp.eq.s32.totalorder %s15, 0
    %p80 = por %p78, %p79
    %p81 = scmp.ne.s32.totalorder %s67, %s68
    %p82 = scmp.eq.s32.totalorder %s16, 7
    %p83 = por %p81, %p82
    %p85 = scmp.ne.s32.totalorder %s68, %s84
    %p86 = scmp.eq.s32.totalorder %s16, 0
    %p87 = por %p85, %p86
    %s88 = sadd.s32 %s18, 2
    %s89 = sadd.s32 %s25, 2
    %s90 = ssub.s32 %s17, %s29
    %s91 = ssub.s32 %s88, %s89
    %s92 = sor.u32 %s90, %s91
    %p93 = scmp.eq.s32.totalorder %s92, 0
    %s95 = sadd.s32 %s94, 1
    %s96 = scalar_select %p93, %s94, %s95
    %p99 = pneg %p93
    %p100 = scmp.eq.s32.totalorder %s10, 7
    %p101 = por %p99, %p100
    %p102 = scmp.ne.s32.totalorder %s94, %s97
    %p103 = scmp.eq.s32.totalorder %s10, 0
    %p104 = por %p102, %p103
    %p105 = scmp.ne.s32.totalorder %s94, %s97
    %p106 = scmp.eq.s32.totalorder %s15, 7
    %p107 = por %p105, %p106
    %p108 = scmp.ne.s32.totalorder %s97, %s98
    %p109 = scmp.eq.s32.totalorder %s15, 0
    %p110 = por %p108, %p109
    %p111 = scmp.ne.s32.totalorder %s97, %s98
    %p112 = scmp.eq.s32.totalorder %s16, 7
    %p113 = por %p111, %p112
    %p115 = scmp.ne.s32.totalorder %s98, %s114
    %p116 = scmp.eq.s32.totalorder %s16, 0
    %p117 = por %p115, %p116
    %s119 = sadd.s32 %s118, 1
    %p122 = scmp.eq.s32.totalorder %s10, 7
    %p123 = scmp.ne.s32.totalorder %s118, %s120
    %p124 = scmp.eq.s32.totalorder %s10, 0
    %p125 = por %p123, %p124
    %p126 = scmp.ne.s32.totalorder %s118, %s120
    %p127 = scmp.eq.s32.totalorder %s15, 7
    %p128 = por %p126, %p127
    %p129 = scmp.ne.s32.totalorder %s120, %s121
    %p130 = scmp.eq.s32.totalorder %s15, 0
    %p131 = por %p129, %p130
    %p132 = scmp.ne.s32.totalorder %s120, %s121
    %p133 = scmp.eq.s32.totalorder %s16, 7
    %p134 = por %p132, %p133
    %p136 = scmp.ne.s32.totalorder %s121, %s135
    %p137 = scmp.eq.s32.totalorder %s16, 0
    %p138 = por %p136, %p137
    %s139 = ssub.s32 %s17, %s29
    %s140 = ssub.s32 %s18, %s25
    %s141 = sor.u32 %s139, %s140
    %p142 = scmp.eq.s32.totalorder %s141, 0
    %s144 = sadd.s32 %s143, 1
    %s145 = scalar_select %p142, %s143, %s144
    %p148 = pneg %p142
    %p149 = scmp.eq.s32.totalorder %s10, 7
    %p150 = por %p148, %p149
    %p151 = scmp.ne.s32.totalorder %s143, %s146
    %p152 = scmp.eq.s32.totalorder %s10, 0
    %p153 = por %p151, %p152
    %p154 = scmp.ne.s32.totalorder %s143, %s146
    %p155 = scmp.eq.s32.totalorder %s15, 7
    %p156 = por %p154, %p155
    %p157 = scmp.ne.s32.totalorder %s146, %s147
    %p158 = scmp.eq.s32.totalorder %s15, 0
    %p159 = por %p157, %p158
    %p160 = scmp.ne.s32.totalorder %s146, %s147
    %p161 = scmp.eq.s32.totalorder %s16, 7
    %p162 = por %p160, %p161
    %p164 = scmp.ne.s32.totalorder %s147, %s163
    %p165 = scmp.eq.s32.totalorder %s16, 0
    %p166 = por %p164, %p165
    %p167 = scmp.le.s32.totalorder 1, %s10
    %p168 = scmp.lt.s32.totalorder %s10, 9
    %p169 = pnand %p167, %p168
    %p170 = pneg %p169
    // Predicated region
    $region9: #{encoder_forward.5} parent=5 // pred_check
      _
    $region10: #{encoder_forward.5} parent=5 // pred_check_branch
      %172 = sbr.rel (%p169) target = $region12
    $region11: #{encoder_forward.5} parent=5 // pred_region
      %s173 = ssub.s32 %s10, 1
      // Predicated region
      $region13: #{encoder_forward.5} parent=11 // pred_check
        %p174 = pneg %p131
      $region14: #{encoder_forward.5} parent=11 // pred_check_branch
        %176 = sbr.rel (%p174) target = $region16
      $region15: #{encoder_forward.5} parent=11 // pred_region
        _
      $region16: #{encoder_forward.5} parent=11 // pred_fallthru
        _
    $region12: #{encoder_forward.5} parent=5 // pred_fallthru
      _
    %p177 = scmp.lt.s32.totalorder %s10, 8
    // Predicated region
    $region17: #{encoder_forward.5} parent=5 // pred_check
      %p178 = pneg %p177
    $region18: #{encoder_forward.5} parent=5 // pred_check_branch
      %180 = sbr.rel (%p178) target = $region20
    $region19: #{encoder_forward.5} parent=5 // pred_region
      // Predicated region
      $region21: #{encoder_forward.5} parent=19 // pred_check
        %p181 = pneg %p44
      $region22: #{encoder_forward.5} parent=19 // pred_check_branch
        %183 = sbr.rel (%p181) target = $region24
      $region23: #{encoder_forward.5} parent=19 // pred_region
        %p184 = scmp.lt.s32.totalorder %s17, 1
        %s185 = scalar_select %p184, %s17, 1
        %p186 = scmp.lt.s32.totalorder %s18, 5
        %s187 = scalar_select %p186, %s18, 5
        %s188 = smul.addr %s187, 6
        %s189 = smul.addr %s185, 36
        %s190 = sadd.s32 %s188, %s189
        %s191 = smul.addr %s190, 4
        %s192 = scalar_lea.vmem %s0, %s191
      $region24: #{encoder_forward.5} parent=19 // pred_fallthru
        _
      // Predicated region
      $region25: #{encoder_forward.5} parent=19 // pred_check
        %p193 = pneg %p74
      $region26: #{encoder_forward.5} parent=19 // pred_check_branch
        %195 = sbr.rel (%p193) target = $region28
      $region27: #{encoder_forward.5} parent=19 // pred_region
        %s196 = sadd.s32 %s18, 1
        %p197 = scmp.lt.s32.totalorder %s17, 1
        %s198 = scalar_select %p197, %s17, 1
        %p199 = scmp.lt.s32.totalorder %s196, 5
        %s200 = scalar_select %p199, %s196, 5
        %s201 = smul.addr %s200, 6
        %s202 = smul.addr %s198, 36
        %s203 = sadd.s32 %s201, %s202
        %s204 = smul.addr %s203, 4
        %s205 = scalar_lea.vmem %s1, %s204
        %s206 = sadd.s32 %s18, 1
      $region28: #{encoder_forward.5} parent=19 // pred_fallthru
        _
      // Predicated region
      $region29: #{encoder_forward.5} parent=19 // pred_check
        %p207 = pneg %p104
      $region30: #{encoder_forward.5} parent=19 // pred_check_branch
        %209 = sbr.rel (%p207) target = $region32
      $region31: #{encoder_forward.5} parent=19 // pred_region
        %s210 = sadd.s32 %s18, 2
        %p211 = scmp.lt.s32.totalorder %s17, 1
        %s212 = scalar_select %p211, %s17, 1
        %p213 = scmp.lt.s32.totalorder %s210, 5
        %s214 = scalar_select %p213, %s210, 5
        %s215 = smul.addr %s214, 6
        %s216 = smul.addr %s212, 36
        %s217 = sadd.s32 %s215, %s216
        %s218 = smul.addr %s217, 4
        %s219 = scalar_lea.vmem %s2, %s218
        %s220 = sadd.s32 %s18, 2
      $region32: #{encoder_forward.5} parent=19 // pred_fallthru
        _
    $region20: #{encoder_forward.5} parent=5 // pred_fallthru
      _
    %p221 = scmp.le.s32.totalorder 1, %s10
    %p222 = scmp.lt.s32.totalorder %s10, 9
    %p223 = pnand %p221, %p222
    %p224 = pneg %p223
    // Predicated region
    $region33: #{encoder_forward.5} parent=5 // pred_check
      _
    $region34: #{encoder_forward.5} parent=5 // pred_check_branch
      %226 = sbr.rel (%p223) target = $region36
    $region35: #{encoder_forward.5} parent=5 // pred_region
      %s227 = ssub.s32 %s10, 1
      %p228 = scmp.lt.s32.totalorder %s19, 1
      %s229 = scalar_select %p228, %s19, 1
      %p230 = scmp.lt.s32.totalorder %s20, 5
      %s231 = scalar_select %p230, %s20, 5
      %s232 = smul.addr %s231, 6
      %s233 = smul.addr %s229, 36
      %s234 = sadd.s32 %s232, %s233
      %s235 = smul.addr %s234, 4
      %s236 = scalar_lea.vmem %s0, %s235
      %p237 = pneg %p50
      %p238 = pneg %p47
      %s239 = sadd.s32 %s20, 1
      %p240 = scmp.lt.s32.totalorder %s19, 1
      %s241 = scalar_select %p240, %s19, 1
      %p242 = scmp.lt.s32.totalorder %s239, 5
      %s243 = scalar_select %p242, %s239, 5
      %s244 = smul.addr %s243, 6
      %s245 = smul.addr %s241, 36
      %s246 = sadd.s32 %s244, %s245
      %s247 = smul.addr %s246, 4
      %s248 = scalar_lea.vmem %s1, %s247
      %p249 = pneg %p80
      %p250 = pneg %p77
      %s251 = sadd.s32 %s20, 2
      %p252 = scmp.lt.s32.totalorder %s19, 1
      %s253 = scalar_select %p252, %s19, 1
      %p254 = scmp.lt.s32.totalorder %s251, 5
      %s255 = scalar_select %p254, %s251, 5
      %s256 = smul.addr %s255, 6
      %s257 = smul.addr %s253, 36
      %s258 = sadd.s32 %s256, %s257
      %s259 = smul.addr %s258, 4
      %s260 = scalar_lea.vmem %s2, %s259
      %p261 = pneg %p110
      %p262 = pneg %p107
      %p263 = pneg %p131
      %p264 = pneg %p128
      %p265 = pneg %p159
      %p266 = pneg %p156
      %p267 = scmp.lt.s32.totalorder %s19, 1
      %s268 = scalar_select %p267, %s19, 1
      %p269 = scmp.lt.s32.totalorder %s20, 3
      %s270 = scalar_select %p269, %s20, 3
      %s271 = smul.addr %s270, 3
      %s272 = smul.addr %s268, 12
      %s273 = sadd.s32 %s271, %s272
      %s274 = smul.addr %s273, 8
      %s275 = scalar_lea.vmem %s4, %s274
      %p276 = scmp.lt.s32.totalorder %s19, 1
      %s277 = scalar_select %p276, %s19, 1
      %p278 = scmp.lt.s32.totalorder %s20, 5
      %s279 = scalar_select %p278, %s20, 5
      %s280 = smul.addr %s279, 6
      %s281 = smul.addr %s277, 36
      %s282 = sadd.s32 %s280, %s281
      %s283 = smul.addr %s282, 4
      %s284 = scalar_lea.vmem %s0, %s283
      %s285 = sadd.s32 %s20, 1
      %p286 = scmp.lt.s32.totalorder %s19, 1
      %s287 = scalar_select %p286, %s19, 1
      %p288 = scmp.lt.s32.totalorder %s285, 5
      %s289 = scalar_select %p288, %s285, 5
      %s290 = smul.addr %s289, 6
      %s291 = smul.addr %s287, 36
      %s292 = sadd.s32 %s290, %s291
      %s293 = smul.addr %s292, 4
      %s294 = scalar_lea.vmem %s1, %s293
      %s295 = sadd.s32 %s20, 1
      %s296 = sadd.s32 %s20, 2
      %p297 = scmp.lt.s32.totalorder %s19, 1
      %s298 = scalar_select %p297, %s19, 1
      %p299 = scmp.lt.s32.totalorder %s296, 5
      %s300 = scalar_select %p299, %s296, 5
      %s301 = smul.addr %s300, 6
      %s302 = smul.addr %s298, 36
      %s303 = sadd.s32 %s301, %s302
      %s304 = smul.addr %s303, 4
      %s305 = scalar_lea.vmem %s2, %s304
      %s306 = sadd.s32 %s20, 2
      %p307 = scmp.lt.s32.totalorder %s19, 1
      %s308 = scalar_select %p307, %s19, 1
      %p309 = scmp.lt.s32.totalorder %s20, 3
      %s310 = scalar_select %p309, %s20, 3
      %s311 = smul.addr %s310, 3
      %s312 = smul.addr %s308, 12
      %s313 = sadd.s32 %s311, %s312
      %s314 = smul.addr %s313, 8
      %s315 = scalar_lea.vmem %s4, %s314
      %317 = vst [vmem:[#allocation2] sm:$0xff] 0.0
      %318 = vst [vmem:[#allocation2 + $0x8] sm:$0xff] 0.0
      %319 = vst [vmem:[#allocation2 + $0x10] sm:$0xff] 0.0
      %v320 = vld [vmem:[%s284] sm:$0xf]
      %v321 = vld [vmem:[%s284 + $0x4] sm:$0xf]
      %v322 = vld [vmem:[%s284 + $0x8] sm:$0xf]
      %v323 = vld [vmem:[%s294] sm:$0xf]
      %v324 = vld [vmem:[%s294 + $0x4] sm:$0xf]
      %v325 = vld [vmem:[%s294 + $0x8] sm:$0xf]
      %v326 = vld [vmem:[%s305] sm:$0xf]
      %v327 = vld [vmem:[%s305 + $0x4] sm:$0xf]
      %v328 = vld [vmem:[%s305 + $0x8] sm:$0xf]
      %v332 = vunpack.c.l.b16 %v320
      %v333 = vunpack.c.l.b16 %v321
      %v334 = vunpack.c.l.b16 %v322
      %v335 = vpack.c.b16 %v333, %v332
      %v336 = vpack.c.b16 %v334, %v334
      %v342 = vunpack.c.l.b16 %v323
      %v343 = vunpack.c.l.b16 %v324
      %v344 = vunpack.c.l.b16 %v325
      %v345 = vpack.c.b16 %v343, %v342
      %v346 = vpack.c.b16 %v344, %v344
      %v352 = vunpack.c.l.b16 %v326
      %v353 = vunpack.c.l.b16 %v327
      %v354 = vunpack.c.l.b16 %v328
      %v355 = vpack.c.b16 %v353, %v352
      %v356 = vpack.c.b16 %v354, %v354
      %v359 = vld [vmem:[#allocation2] sm:$0xff]
      %v360 = vld [vmem:[#allocation2 + $0x8] sm:$0xff]
      %v361 = vld [vmem:[#allocation2 + $0x10] sm:$0xff]
      %v362 = vld [vmem:[%s3] sm:$0xf]
      %v363 = vld [vmem:[%s3 + $0x4] sm:$0xf]
      %v364 = vld [vmem:[%s3 + $0x8] sm:$0xf]
      %v365 = vld [vmem:[%s3 + $0xc] sm:$0xf]
      %v366 = vld [vmem:[%s3 + $0x10] sm:$0xf]
      %v367 = vld [vmem:[%s3 + $0x14] sm:$0xf]
      %v368 = vld [vmem:[%s3 + $0x18] sm:$0xf]
      %v369 = vld [vmem:[%s3 + $0x1c] sm:$0xf]
      %v370 = vld [vmem:[%s3 + $0x20] sm:$0xf]
      %v371 = vld [vmem:[%s3 + $0x24] sm:$0xf]
      %v372 = vld [vmem:[%s3 + $0x28] sm:$0xf]
      %v373 = vld [vmem:[%s3 + $0x2c] sm:$0xf]
      %v374 = vld [vmem:[%s3 + $0x30] sm:$0xf]
      %v375 = vld [vmem:[%s3 + $0x34] sm:$0xf]
      %v376 = vld [vmem:[%s3 + $0x38] sm:$0xf]
      %v377 = vld [vmem:[%s3 + $0x3c] sm:$0xf]
      %v378 = vld [vmem:[%s3 + $0x40] sm:$0xf]
      %v379 = vld [vmem:[%s3 + $0x44] sm:$0xf]
      %v380 = vld [vmem:[%s3 + $0x48] sm:$0xf]
      %v381 = vld [vmem:[%s3 + $0x4c] sm:$0xf]
      %v382 = vld [vmem:[%s3 + $0x50] sm:$0xf]
      %v383 = vld [vmem:[%s3 + $0x54] sm:$0xf]
      %v384 = vld [vmem:[%s3 + $0x58] sm:$0xf]
      %v385 = vld [vmem:[%s3 + $0x5c] sm:$0xf]
      %v386 = vld [vmem:[%s3 + $0x60] sm:$0xf]
      %v387 = vld [vmem:[%s3 + $0x64] sm:$0xf]
      %v388 = vld [vmem:[%s3 + $0x68] sm:$0xf]
      %v389 = vld [vmem:[%s3 + $0x6c] sm:$0xf]
      %v390 = vld [vmem:[%s3 + $0x70] sm:$0xf]
      %v391 = vld [vmem:[%s3 + $0x74] sm:$0xf]
      %v392 = vld [vmem:[%s3 + $0x78] sm:$0xf]
      %v393 = vld [vmem:[%s3 + $0x7c] sm:$0xf]
      %v394 = vld [vmem:[%s3 + $0x80] sm:$0xf]
      %v395 = vld [vmem:[%s3 + $0x84] sm:$0xf]
      %v396 = vld [vmem:[%s3 + $0x88] sm:$0xf]
      %v397 = vld [vmem:[%s3 + $0x8c] sm:$0xf]
      %v398 = vld [vmem:[%s3 + $0x90] sm:$0xf]
      %v399 = vld [vmem:[%s3 + $0x94] sm:$0xf]
      %v400 = vld [vmem:[%s3 + $0x98] sm:$0xf]
      %v401 = vld [vmem:[%s3 + $0x9c] sm:$0xf]
      %v402 = vld [vmem:[%s3 + $0xa0] sm:$0xf]
      %v403 = vld [vmem:[%s3 + $0xa4] sm:$0xf]
      %v404 = vld [vmem:[%s3 + $0xa8] sm:$0xf]
      %v405 = vld [vmem:[%s3 + $0xac] sm:$0xf]
      %v406 = vld [vmem:[%s3 + $0xb0] sm:$0xf]
      %v407 = vld [vmem:[%s3 + $0xb4] sm:$0xf]
      %v408 = vld [vmem:[%s3 + $0xb8] sm:$0xf]
      %v409 = vld [vmem:[%s3 + $0xbc] sm:$0xf]
      %v458 = vunpack.c.l.b16 %v362
      %v459 = vunpack.c.l.b16 %v363
      %v460 = vunpack.c.l.b16 %v364
      %v461 = vunpack.c.l.b16 %v365
      %v462 = vunpack.c.l.b16 %v366
      %v463 = vunpack.c.l.b16 %v367
      %v464 = vunpack.c.l.b16 %v368
      %v465 = vunpack.c.l.b16 %v369
      %v466 = vunpack.c.l.b16 %v370
      %v467 = vunpack.c.l.b16 %v371
      %v468 = vunpack.c.l.b16 %v372
      %v469 = vunpack.c.l.b16 %v373
      %v470 = vunpack.c.l.b16 %v374
      %v471 = vunpack.c.l.b16 %v375
      %v472 = vunpack.c.l.b16 %v376
      %v473 = vunpack.c.l.b16 %v377
      %v474 = vunpack.c.l.b16 %v378
      %v475 = vunpack.c.l.b16 %v379
      %v476 = vunpack.c.l.b16 %v380
      %v477 = vunpack.c.l.b16 %v381
      %v478 = vunpack.c.l.b16 %v382
      %v479 = vunpack.c.l.b16 %v383
      %v480 = vunpack.c.l.b16 %v384
      %v481 = vunpack.c.l.b16 %v385
      %v482 = vunpack.c.l.b16 %v386
      %v483 = vunpack.c.l.b16 %v387
      %v484 = vunpack.c.l.b16 %v388
      %v485 = vunpack.c.l.b16 %v389
      %v486 = vunpack.c.l.b16 %v390
      %v487 = vunpack.c.l.b16 %v391
      %v488 = vunpack.c.l.b16 %v392
      %v489 = vunpack.c.l.b16 %v393
      %v490 = vunpack.c.l.b16 %v394
      %v491 = vunpack.c.l.b16 %v395
      %v492 = vunpack.c.l.b16 %v396
      %v493 = vunpack.c.l.b16 %v397
      %v494 = vunpack.c.l.b16 %v398
      %v495 = vunpack.c.l.b16 %v399
      %v496 = vunpack.c.l.b16 %v400
      %v497 = vunpack.c.l.b16 %v401
      %v498 = vunpack.c.l.b16 %v402
      %v499 = vunpack.c.l.b16 %v403
      %v500 = vunpack.c.l.b16 %v404
      %v501 = vunpack.c.l.b16 %v405
      %v502 = vunpack.c.l.b16 %v406
      %v503 = vunpack.c.l.b16 %v407
      %v504 = vunpack.c.l.b16 %v408
      %v505 = vunpack.c.l.b16 %v409
      %v506 = vpack.c.b16 %v459, %v458
      %v507 = vpack.c.b16 %v461, %v460
      %v508 = vpack.c.b16 %v463, %v462
      %v509 = vpack.c.b16 %v465, %v464
      %v510 = vpack.c.b16 %v467, %v466
      %v511 = vpack.c.b16 %v469, %v468
      %v512 = vpack.c.b16 %v471, %v470
      %v513 = vpack.c.b16 %v473, %v472
      %v514 = vpack.c.b16 %v475, %v474
      %v515 = vpack.c.b16 %v477, %v476
      %v516 = vpack.c.b16 %v479, %v478
      %v517 = vpack.c.b16 %v481, %v480
      %v518 = vpack.c.b16 %v483, %v482
      %v519 = vpack.c.b16 %v485, %v484
      %v520 = vpack.c.b16 %v487, %v486
      %v521 = vpack.c.b16 %v489, %v488
      %v522 = vpack.c.b16 %v491, %v490
      %v523 = vpack.c.b16 %v493, %v492
      %v524 = vpack.c.b16 %v495, %v494
      %v525 = vpack.c.b16 %v497, %v496
      %v526 = vpack.c.b16 %v499, %v498
      %v527 = vpack.c.b16 %v501, %v500
      %v528 = vpack.c.b16 %v503, %v502
      %v529 = vpack.c.b16 %v505, %v504
      %554 = vmatprep.subr.bf16.mxu0 0
      %555 = vmatpush1.bf16.msra.mxu0 %v506
      %556 = vmatprep.subr.bf16.mxu0 0
      %557 = vmatpush1.bf16.msra.mxu0 %v507
      %558 = vmatprep.subr.bf16.mxu0 0
      %559 = vmatpush1.bf16.msra.mxu0 %v508
      %560 = vmatprep.subr.bf16.mxu0 0
      %561 = vmatpush1.bf16.msra.mxu0 %v509
      %562 = vmatprep.subr.bf16.mxu0 0
      %563 = vmatpush1.bf16.msra.mxu0 %v510
      %564 = vmatprep.subr.bf16.mxu0 0
      %565 = vmatpush1.bf16.msra.mxu0 %v511
      %566 = vmatprep.subr.bf16.mxu0 0
      %567 = vmatpush1.bf16.msra.mxu0 %v512
      %568 = vmatprep.subr.bf16.mxu0 0
      %569 = vmatpush1.bf16.msra.mxu0 %v513
      %570 = vmatprep.subr.bf16.mxu0 0
      %571 = vmatpush1.bf16.msra.mxu0 %v514
      %572 = vmatprep.subr.bf16.mxu0 0
      %573 = vmatpush1.bf16.msra.mxu0 %v515
      %574 = vmatprep.subr.bf16.mxu0 0
      %575 = vmatpush1.bf16.msra.mxu0 %v516
      %576 = vmatprep.subr.bf16.mxu0 0
      %577 = vmatpush1.bf16.msra.mxu0 %v517
      %578 = vmatprep.subr.bf16.mxu0 0
      %579 = vmatpush1.bf16.msra.mxu0 %v518
      %580 = vmatprep.subr.bf16.mxu0 0
      %581 = vmatpush1.bf16.msra.mxu0 %v519
      %582 = vmatprep.subr.bf16.mxu0 0
      %583 = vmatpush1.bf16.msra.mxu0 %v520
      %584 = vmatprep.subr.bf16.mxu0 0
      %585 = vmatpush1.bf16.msra.mxu0 %v521
      %586 = vmatprep.mubr.bf16.mxu0 %v345
      %587 = vmatmul.mubr.bf16.gmra.mrb[0].mxu0 %v335
      %v588 = vpop.f32.mrb[0].mxu0
      %v589 = vadd.f32 0.0, %v588
      %v590 = vpop.f32.mrb[0].mxu0
      %v591 = vpop.f32.mrb[0].mxu0
      %v592 = vadd.f32 0.0, %v591
      %v593 = vpop.f32.mrb[0].mxu0
      %594 = vmatprep.mubr.bf16.mxu0 %v346
      %595 = vmatmul.mubr.bf16.gmra.mrb[0].mxu0 %v336
      %v596 = vpop.f32.mrb[0].mxu0
      %v597 = vadd.f32 0.0, %v596
      %v598 = vpop.f32.mrb[0].mxu0
      %v599 = vpop.f32.mrb[0].mxu0
      %v600 = vpop.f32.mrb[0].mxu0
      %601 = vdwg.mxu0
      %602 = vmatprep.subr.bf16.mxu0 0
      %603 = vmatpush1.bf16.msra.mxu0 %v522
      %604 = vmatprep.subr.bf16.mxu0 0
      %605 = vmatpush1.bf16.msra.mxu0 %v523
      %606 = vmatprep.subr.bf16.mxu0 0
      %607 = vmatpush1.bf16.msra.mxu0 %v524
      %608 = vmatprep.subr.bf16.mxu0 0
      %609 = vmatpush1.bf16.msra.mxu0 %v525
      %610 = vmatprep.subr.bf16.mxu0 0
      %611 = vmatpush1.bf16.msra.mxu0 %v526
      %612 = vmatprep.subr.bf16.mxu0 0
      %613 = vmatpush1.bf16.msra.mxu0 %v527
      %614 = vmatprep.subr.bf16.mxu0 0
      %615 = vmatpush1.bf16.msra.mxu0 %v528
      %616 = vmatprep.subr.bf16.mxu0 0
      %617 = vmatpush1.bf16.msra.mxu0 %v529
      %618 = vmatprep.subr.bf16.mxu0 0
      %619 = vmatpush1.bf16.msra.mxu0 0
      %620 = vmatprep.subr.bf16.mxu0 0
      %621 = vmatpush1.bf16.msra.mxu0 0
      %622 = vmatprep.subr.bf16.mxu0 0
      %623 = vmatpush1.bf16.msra.mxu0 0
      %624 = vmatprep.subr.bf16.mxu0 0
      %625 = vmatpush1.bf16.msra.mxu0 0
      %626 = vmatprep.subr.bf16.mxu0 0
      %627 = vmatpush1.bf16.msra.mxu0 0
      %628 = vmatprep.subr.bf16.mxu0 0
      %629 = vmatpush1.bf16.msra.mxu0 0
      %630 = vmatprep.subr.bf16.mxu0 0
      %631 = vmatpush1.bf16.msra.mxu0 0
      %632 = vmatprep.subr.bf16.mxu0 0
      %633 = vmatpush1.bf16.msra.mxu0 0
      %634 = vmatprep.mubr.bf16.mxu0 0
      %635 = vmatmul.mubr.bf16.gmra.mrb[0].mxu0 %v355
      %v636 = vpop.f32.mrb[0].mxu0
      %v637 = vadd.f32 %v589, %v636
      %v638 = vpop.f32.mrb[0].mxu0
      %v639 = vpop.f32.mrb[0].mxu0
      %v640 = vadd.f32 %v592, %v639
      %v641 = vpop.f32.mrb[0].mxu0
      %642 = vmatprep.mubr.bf16.mxu0 0
      %643 = vmatmul.mubr.bf16.gmra.mrb[0].mxu0 %v356
      %v644 = vpop.f32.mrb[0].mxu0
      %v645 = vadd.f32 %v597, %v644
      %v646 = vpop.f32.mrb[0].mxu0
      %v647 = vpop.f32.mrb[0].mxu0
      %v648 = vpop.f32.mrb[0].mxu0
      %649 = vdwg.mxu0
      %v650 = vadd.f32 %v359, %v637
      %v651 = vadd.f32 %v360, %v640
      %v652 = vadd.f32 %v361, %v645
      %653 = vst [vmem:[#allocation2] sm:$0xff] %v650
      %654 = vst [vmem:[#allocation2 + $0x8] sm:$0xff] %v651
      %655 = vst [vmem:[#allocation2 + $0x10] sm:$0xff] %v652
      %v656 = vld [vmem:[%s284] sm:$0xf]
      %v657 = vld [vmem:[%s284 + $0x4] sm:$0xf]
      %v658 = vld [vmem:[%s284 + $0x8] sm:$0xf]
      %v659 = vld [vmem:[%s284 + $0xc] sm:$0x1]
      %v660 = vld [vmem:[%s294] sm:$0xf]
      %v661 = vld [vmem:[%s294 + $0x4] sm:$0xf]
      %v662 = vld [vmem:[%s294 + $0x8] sm:$0xf]
      %v663 = vld [vmem:[%s294 + $0xc] sm:$0x1]
      %v664 = vld [vmem:[%s305] sm:$0xf]
      %v665 = vld [vmem:[%s305 + $0x4] sm:$0xf]
      %v666 = vld [vmem:[%s305 + $0x8] sm:$0xf]
      %v667 = vld [vmem:[%s305 + $0xc] sm:$0x1]
      %v672 = vunpack.c.l.b16 %v656
      %v673 = vunpack.c.l.b16 %v657
      %v674 = vunpack.c.l.b16 %v658
      %v675 = vunpack.c.l.b16 %v659
      %v676 = vpack.c.b16 %v673, %v672
      %v677 = vpack.c.b16 %v675, %v674
      %v682 = vunpack.c.l.b16 %v660
      %v683 = vunpack.c.l.b16 %v661
      %v684 = vunpack.c.l.b16 %v662
      %v685 = vunpack.c.l.b16 %v663
      %v686 = vpack.c.b16 %v683, %v682
      %v687 = vpack.c.b16 %v685, %v684
      %v692 = vunpack.c.l.b16 %v664
      %v693 = vunpack.c.l.b16 %v665
      %v694 = vunpack.c.l.b16 %v666
      %v695 = vunpack.c.l.b16 %v667
      %v696 = vpack.c.b16 %v693, %v692
      %v697 = vpack.c.b16 %v695, %v694
      %v698 = vld [vmem:[#allocation2] sm:$0xff]
      %v699 = vld [vmem:[#allocation2 + $0x8] sm:$0xff]
      %v700 = vld [vmem:[#allocation2 + $0x10] sm:$0xff]
      %s701 = scalar_lea.vmem %s3, 192
      %v702 = vld [vmem:[%s701] sm:$0xf]
      %v703 = vld [vmem:[%s701 + $0x4] sm:$0xf]
      %v704 = vld [vmem:[%s701 + $0x8] sm:$0xf]
      %v705 = vld [vmem:[%s701 + $0xc] sm:$0xf]
      %v706 = vld [vmem:[%s701 + $0x10] sm:$0xf]
      %v707 = vld [vmem:[%s701 + $0x14] sm:$0xf]
      %v708 = vld [vmem:[%s701 + $0x18] sm:$0xf]
      %v709 = vld [vmem:[%s701 + $0x1c] sm:$0xf]
      %v710 = vld [vmem:[%s701 + $0x20] sm:$0xf]
      %v711 = vld [vmem:[%s701 + $0x24] sm:$0xf]
      %v712 = vld [vmem:[%s701 + $0x28] sm:$0xf]
      %v713 = vld [vmem:[%s701 + $0x2c] sm:$0xf]
      %v714 = vld [vmem:[%s701 + $0x30] sm:$0xf]
      %v715 = vld [vmem:[%s701 + $0x34] sm:$0xf]
      %v716 = vld [vmem:[%s701 + $0x38] sm:$0xf]
      %v717 = vld [vmem:[%s701 + $0x3c] sm:$0xf]
      %v718 = vld [vmem:[%s701 + $0x40] sm:$0xf]
      %v719 = vld [vmem:[%s701 + $0x44] sm:$0xf]
      %v720 = vld [vmem:[%s701 + $0x48] sm:$0xf]
      %v721 = vld [vmem:[%s701 + $0x4c] sm:$0xf]
      %v722 = vld [vmem:[%s701 + $0x50] sm:$0xf]
      %v723 = vld [vmem:[%s701 + $0x54] sm:$0xf]
      %v724 = vld [vmem:[%s701 + $0x58] sm:$0xf]
      %v725 = vld [vmem:[%s701 + $0x5c] sm:$0xf]
      %v726 = vld [vmem:[%s701 + $0x60] sm:$0xf]
      %v727 = vld [vmem:[%s701 + $0x64] sm:$0xf]
      %v728 = vld [vmem:[%s701 + $0x68] sm:$0xf]
      %v729 = vld [vmem:[%s701 + $0x6c] sm:$0xf]
      %v730 = vld [vmem:[%s701 + $0x70] sm:$0xf]
      %v731 = vld [vmem:[%s701 + $0x74] sm:$0xf]
      %v732 = vld [vmem:[%s701 + $0x78] sm:$0xf]
      %v733 = vld [vmem:[%s701 + $0x7c] sm:$0xf]
      %v734 = vld [vmem:[%s701 + $0x80] sm:$0xf]
      %v735 = vld [vmem:[%s701 + $0x84] sm:$0xf]
      %v736 = vld [vmem:[%s701 + $0x88] sm:$0xf]
      %v737 = vld [vmem:[%s701 + $0x8c] sm:$0xf]
      %v738 = vld [vmem:[%s701 + $0x90] sm:$0xf]
      %v739 = vld [vmem:[%s701 + $0x94] sm:$0xf]
      %v740 = vld [vmem:[%s701 + $0x98] sm:$0xf]
      %v741 = vld [vmem:[%s701 + $0x9c] sm:$0xf]
      %v742 = vld [vmem:[%s701 + $0xa0] sm:$0xf]
      %v743 = vld [vmem:[%s701 + $0xa4] sm:$0xf]
      %v744 = vld [vmem:[%s701 + $0xa8] sm:$0xf]
      %v745 = vld [vmem:[%s701 + $0xac] sm:$0xf]
      %v746 = vld [vmem:[%s701 + $0xb0] sm:$0xf]
      %v747 = vld [vmem:[%s701 + $0xb4] sm:$0xf]
      %v748 = vld [vmem:[%s701 + $0xb8] sm:$0xf]
      %v749 = vld [vmem:[%s701 + $0xbc] sm:$0xf]
      %vm750 = vsmask.f32 7424
      %v752 = vshrl.u32 %v676, 16
      %v754 = vshll.u32 %v676, 16
      %v756 = vrot.slane %v754, 1
      %v757 = vor.u32 %v752, %v756
      %v759 = vshll.u32 %v677, 16
      %v761 = vrot.slane %v759, 1
      %v762 = vsel %vm750, %v757, %v761
      %v764 = vshrl.u32 %v686, 16
      %v766 = vshll.u32 %v686, 16
      %v768 = vrot.slane %v766, 1
      %v769 = vor.u32 %v764, %v768
      %v771 = vshll.u32 %v687, 16
      %v773 = vrot.slane %v771, 1
      %v774 = vsel %vm750, %v769, %v773
      %v776 = vshrl.u32 %v696, 16
      %v778 = vshll.u32 %v696, 16
      %v780 = vrot.slane %v778, 1
      %v781 = vor.u32 %v776, %v780
      %v783 = vshll.u32 %v697, 16
      %v785 = vrot.slane %v783, 1
      %v786 = vsel %vm750, %v781, %v785
      %v787 = vshrl.u32 %v677, 16
      %v789 = vor.u32 %v787, %v761
      %v790 = vshrl.u32 %v687, 16
      %v792 = vor.u32 %v790, %v773
      %v793 = vshrl.u32 %v697, 16
      %v795 = vor.u32 %v793, %v785
      %v850 = vunpack.c.l.b16 %v702
      %v851 = vunpack.c.l.b16 %v703
      %v852 = vunpack.c.l.b16 %v704
      %v853 = vunpack.c.l.b16 %v705
      %v854 = vunpack.c.l.b16 %v706
      %v855 = vunpack.c.l.b16 %v707
      %v856 = vunpack.c.l.b16 %v708
      %v857 = vunpack.c.l.b16 %v709
      %v858 = vunpack.c.l.b16 %v710
      %v859 = vunpack.c.l.b16 %v711
      %v860 = vunpack.c.l.b16 %v712
      %v861 = vunpack.c.l.b16 %v713
      %v862 = vunpack.c.l.b16 %v714
      %v863 = vunpack.c.l.b16 %v715
      %v864 = vunpack.c.l.b16 %v716
      %v865 = vunpack.c.l.b16 %v717
      %v866 = vunpack.c.l.b16 %v718
      %v867 = vunpack.c.l.b16 %v719
      %v868 = vunpack.c.l.b16 %v720
      %v869 = vunpack.c.l.b16 %v721
      %v870 = vunpack.c.l.b16 %v722
      %v871 = vunpack.c.l.b16 %v723
      %v872 = vunpack.c.l.b16 %v724
      %v873 = vunpack.c.l.b16 %v725
      %v874 = vunpack.c.l.b16 %v726
      %v875 = vunpack.c.l.b16 %v727
      %v876 = vunpack.c.l.b16 %v728
      %v877 = vunpack.c.l.b16 %v729
      %v878 = vunpack.c.l.b16 %v730
      %v879 = vunpack.c.l.b16 %v731
      %v880 = vunpack.c.l.b16 %v732
      %v881 = vunpack.c.l.b16 %v733
      %v882 = vunpack.c.l.b16 %v734
      %v883 = vunpack.c.l.b16 %v735
      %v884 = vunpack.c.l.b16 %v736
      %v885 = vunpack.c.l.b16 %v737
      %v886 = vunpack.c.l.b16 %v738
      %v887 = vunpack.c.l.b16 %v739
      %v888 = vunpack.c.l.b16 %v740
      %v889 = vunpack.c.l.b16 %v741
      %v890 = vunpack.c.l.b16 %v742
      %v891 = vunpack.c.l.b16 %v743
      %v892 = vunpack.c.l.b16 %v744
      %v893 = vunpack.c.l.b16 %v745
      %v894 = vunpack.c.l.b16 %v746
      %v895 = vunpack.c.l.b16 %v747
      %v896 = vunpack.c.l.b16 %v748
      %v897 = vunpack.c.l.b16 %v749
      %v898 = vpack.c.b16 %v851, %v850
      %v899 = vpack.c.b16 %v853, %v852
      %v900 = vpack.c.b16 %v855, %v854
      %v901 = vpack.c.b16 %v857, %v856
      %v902 = vpack.c.b16 %v859, %v858
      %v903 = vpack.c.b16 %v861, %v860
      %v904 = vpack.c.b16 %v863, %v862
      %v905 = vpack.c.b16 %v865, %v864
      %v906 = vpack.c.b16 %v867, %v866
      %v907 = vpack.c.b16 %v869, %v868
      %v908 = vpack.c.b16 %v871, %v870
      %v909 = vpack.c.b16 %v873, %v872
      %v910 = vpack.c.b16 %v875, %v874
      %v911 = vpack.c.b16 %v877, %v876
      %v912 = vpack.c.b16 %v879, %v878
      %v913 = vpack.c.b16 %v881, %v880
      %v914 = vpack.c.b16 %v883, %v882
      %v915 = vpack.c.b16 %v885, %v884
      %v916 = vpack.c.b16 %v887, %v886
      %v917 = vpack.c.b16 %v889, %v888
      %v918 = vpack.c.b16 %v891, %v890
      %v919 = vpack.c.b16 %v893, %v892
      %v920 = vpack.c.b16 %v895, %v894
      %v921 = vpack.c.b16 %v897, %v896
      %946 = vmatprep.subr.bf16.mxu0 0
      %947 = vmatpush1.bf16.msra.mxu0 %v898
      %948 = vmatprep.subr.bf16.mxu0 0
      %949 = vmatpush1.bf16.msra.mxu0 %v899
      %950 = vmatprep.subr.bf16.mxu0 0
      %951 = vmatpush1.bf16.msra.mxu0 %v900
      %952 = vmatprep.subr.bf16.mxu0 0
      %953 = vmatpush1.bf16.msra.mxu0 %v901
      %954 = vmatprep.subr.bf16.mxu0 0
      %955 = vmatpush1.bf16.msra.mxu0 %v902
      %956 = vmatprep.subr.bf16.mxu0 0
      %957 = vmatpush1.bf16.msra.mxu0 %v903
      %958 = vmatprep.subr.bf16.mxu0 0
      %959 = vmatpush1.bf16.msra.mxu0 %v904
      %960 = vmatprep.subr.bf16.mxu0 0
      %961 = vmatpush1.bf16.msra.mxu0 %v905
      %962 = vmatprep.subr.bf16.mxu0 0
      %963 = vmatpush1.bf16.msra.mxu0 %v906
      %964 = vmatprep.subr.bf16.mxu0 0
      %965 = vmatpush1.bf16.msra.mxu0 %v907
      %966 = vmatprep.subr.bf16.mxu0 0
      %967 = vmatpush1.bf16.msra.mxu0 %v908
      %968 = vmatprep.subr.bf16.mxu0 0
      %969 = vmatpush1.bf16.msra.mxu0 %v909
      %970 = vmatprep.subr.bf16.mxu0 0
      %971 = vmatpush1.bf16.msra.mxu0 %v910
      %972 = vmatprep.subr.bf16.mxu0 0
      %973 = vmatpush1.bf16.msra.mxu0 %v911
      %974 = vmatprep.subr.bf16.mxu0 0
      %975 = vmatpush1.bf16.msra.mxu0 %v912
      %976 = vmatprep.subr.bf16.mxu0 0
      %977 = vmatpush1.bf16.msra.mxu0 %v913
      %978 = vmatprep.mubr.bf16.mxu0 %v774
      %979 = vmatmul.mubr.bf16.gmra.mrb[0].mxu0 %v762
      %v980 = vpop.f32.mrb[0].mxu0
      %v981 = vadd.f32 0.0, %v980
      %v982 = vpop.f32.mrb[0].mxu0
      %v983 = vpop.f32.mrb[0].mxu0
      %v984 = vadd.f32 0.0, %v983
      %v985 = vpop.f32.mrb[0].mxu0
      %986 = vmatprep.mubr.bf16.mxu0 %v792
      %987 = vmatmul.mubr.bf16.gmra.mrb[0].mxu0 %v789
      %v988 = vpop.f32.mrb[0].mxu0
      %v989 = vadd.f32 0.0, %v988
      %v990 = vpop.f32.mrb[0].mxu0
      %v991 = vpop.f32.mrb[0].mxu0
      %v992 = vpop.f32.mrb[0].mxu0
      %993 = vdwg.mxu0
      %994 = vmatprep.subr.bf16.mxu0 0
      %995 = vmatpush1.bf16.msra.mxu0 %v914
      %996 = vmatprep.subr.bf16.mxu0 0
      %997 = vmatpush1.bf16.msra.mxu0 %v915
      %998 = vmatprep.subr.bf16.mxu0 0
      %999 = vmatpush1.bf16.msra.mxu0 %v916
      %1000 = vmatprep.subr.bf16.mxu0 0
      %1001 = vmatpush1.bf16.msra.mxu0 %v917
      %1002 = vmatprep.subr.bf16.mxu0 0
      %1003 = vmatpush1.bf16.msra.mxu0 %v918
      %1004 = vmatprep.subr.bf16.mxu0 0
      %1005 = vmatpush1.bf16.msra.mxu0 %v919
      %1006 = vmatprep.subr.bf16.mxu0 0
      %1007 = vmatpush1.bf16.msra.mxu0 %v920
      %1008 = vmatprep.subr.bf16.mxu0 0
      %1009 = vmatpush1.bf16.msra.mxu0 %v921
      %1010 = vmatprep.subr.bf16.mxu0 0
      %1011 = vmatpush1.bf16.msra.mxu0 0
      %1012 = vmatprep.subr.bf16.mxu0 0
      %1013 = vmatpush1.bf16.msra.mxu0 0
      %1014 = vmatprep.subr.bf16.mxu0 0
      %1015 = vmatpush1.bf16.msra.mxu0 0
      %1016 = vmatprep.subr.bf16.mxu0 0
      %1017 = vmatpush1.bf16.msra.mxu0 0
      %1018 = vmatprep.subr.bf16.mxu0 0
      %1019 = vmatpush1.bf16.msra.mxu0 0
      %1020 = vmatprep.subr.bf16.mxu0 0
      %1021 = vmatpush1.bf16.msra.mxu0 0
      %1022 = vmatprep.subr.bf16.mxu0 0
      %1023 = vmatpush1.bf16.msra.mxu0 0
      %1024 = vmatprep.subr.bf16.mxu0 0
      %1025 = vmatpush1.bf16.msra.mxu0 0
      %1026 = vmatprep.mubr.bf16.mxu0 0
      %1027 = vmatmul.mubr.bf16.gmra.mrb[0].mxu0 %v786
      %v1028 = vpop.f32.mrb[0].mxu0
      %v1029 = vadd.f32 %v981, %v1028
      %v1030 = vpop.f32.mrb[0].mxu0
      %v1031 = vpop.f32.mrb[0].mxu0
      %v1032 = vadd.f32 %v984, %v1031
      %v1033 = vpop.f32.mrb[0].mxu0
      %1034 = vmatprep.mubr.bf16.mxu0 0
      %1035 = vmatmul.mubr.bf16.gmra.mrb[0].mxu0 %v795
      %v1036 = vpop.f32.mrb[0].mxu0
      %v1037 = vadd.f32 %v989, %v1036
      %v1038 = vpop.f32.mrb[0].mxu0
      %v1039 = vpop.f32.mrb[0].mxu0
      %v1040 = vpop.f32.mrb[0].mxu0
      %1041 = vdwg.mxu0
      %v1042 = vadd.f32 %v698, %v1029
      %v1043 = vadd.f32 %v699, %v1032
      %v1044 = vadd.f32 %v700, %v1037
      %1045 = vst [vmem:[#allocation2] sm:$0xff] %v1042
      %1046 = vst [vmem:[#allocation2 + $0x8] sm:$0xff] %v1043
      %1047 = vst [vmem:[#allocation2 + $0x10] sm:$0xff] %v1044
      %v1048 = vld [vmem:[%s284] sm:$0xe]
      %v1049 = vld [vmem:[%s284 + $0x4] sm:$0xf]
      %v1050 = vld [vmem:[%s284 + $0x8] sm:$0xf]
      %v1051 = vld [vmem:[%s284 + $0xc] sm:$0x1]
      %v1052 = vld [vmem:[%s294] sm:$0xe]
      %v1053 = vld [vmem:[%s294 + $0x4] sm:$0xf]
      %v1054 = vld [vmem:[%s294 + $0x8] sm:$0xf]
      %v1055 = vld [vmem:[%s294 + $0xc] sm:$0x1]
      %v1056 = vld [vmem:[%s305] sm:$0xe]
      %v1057 = vld [vmem:[%s305 + $0x4] sm:$0xf]
      %v1058 = vld [vmem:[%s305 + $0x8] sm:$0xf]
      %v1059 = vld [vmem:[%s305 + $0xc] sm:$0x1]
      %v1064 = vunpack.c.l.b16 %v1048
      %v1065 = vunpack.c.l.b16 %v1049
      %v1066 = vunpack.c.l.b16 %v1050
      %v1067 = vunpack.c.l.b16 %v1051
      %v1068 = vpack.c.b16 %v1065, %v1064
      %v1069 = vpack.c.b16 %v1067, %v1066
      %v1074 = vunpack.c.l.b16 %v1052
      %v1075 = vunpack.c.l.b16 %v1053
      %v1076 = vunpack.c.l.b16 %v1054
      %v1077 = vunpack.c.l.b16 %v1055
      %v1078 = vpack.c.b16 %v1075, %v1074
      %v1079 = vpack.c.b16 %v1077, %v1076
      %v1084 = vunpack.c.l.b16 %v1056
      %v1085 = vunpack.c.l.b16 %v1057
      %v1086 = vunpack.c.l.b16 %v1058
      %v1087 = vunpack.c.l.b16 %v1059
      %v1088 = vpack.c.b16 %v1085, %v1084
      %v1089 = vpack.c.b16 %v1087, %v1086
      %v1090 = vld [vmem:[#allocation2] sm:$0xff]
      %v1091 = vld [vmem:[#allocation2 + $0x8] sm:$0xff]
      %v1092 = vld [vmem:[#allocation2 + $0x10] sm:$0xff]
      %s1093 = scalar_lea.vmem %s3, 384
      %v1094 = vld [vmem:[%s1093] sm:$0xf]
      %v1095 = vld [vmem:[%s1093 + $0x4] sm:$0xf]
      %v1096 = vld [vmem:[%s1093 + $0x8] sm:$0xf]
      %v1097 = vld [vmem:[%s1093 + $0xc] sm:$0xf]
      %v1098 = vld [vmem:[%s1093 + $0x10] sm:$0xf]
      %v1099 = vld [vmem:[%s1093 + $0x14] sm:$0xf]
      %v1100 = vld [vmem:[%s1093 + $0x18] sm:$0xf]
      %v1101 = vld [vmem:[%s1093 + $0x1c] sm:$0xf]
      %v1102 = vld [vmem:[%s1093 + $0x20] sm:$0xf]
      %v1103 = vld [vmem:[%s1093 + $0x24] sm:$0xf]
      %v1104 = vld [vmem:[%s1093 + $0x28] sm:$0xf]
      %v1105 = vld [vmem:[%s1093 + $0x2c] sm:$0xf]
      %v1106 = vld [vmem:[%s1093 + $0x30] sm:$0xf]
      %v1107 = vld [vmem:[%s1093 + $0x34] sm:$0xf]
      %v1108 = vld [vmem:[%s1093 + $0x38] sm:$0xf]
      %v1109 = vld [vmem:[%s1093 + $0x3c] sm:$0xf]
      %v1110 = vld [vmem:[%s1093 + $0x40] sm:$0xf]
      %v1111 = vld [vmem:[%s1093 + $0x44] sm:$0xf]
      %v1112 = vld [vmem:[%s1093 + $0x48] sm:$0xf]
      %v1113 = vld [vmem:[%s1093 + $0x4c] sm:$0xf]
      %v1114 = vld [vmem:[%s1093 + $0x50] sm:$0xf]
      %v1115 = vld [vmem:[%s1093 + $0x54] sm:$0xf]
      %v1116 = vld [vmem:[%s1093 + $0x58] sm:$0xf]
      %v1117 = vld [vmem:[%s1093 + $0x5c] sm:$0xf]
      %v1118 = vld [vmem:[%s1093 + $0x60] sm:$0xf]
      %v1119 = vld [vmem:[%s1093 + $0x64] sm:$0xf]
      %v1120 = vld [vmem:[%s1093 + $0x68] sm:$0xf]
      %v1121 = vld [vmem:[%s1093 + $0x6c] sm:$0xf]
      %v1122 = vld [vmem:[%s1093 + $0x70] sm:$0xf]
      %v1123 = vld [vmem:[%s1093 + $0x74] sm:$0xf]
      %v1124 = vld [vmem:[%s1093 + $0x78] sm:$0xf]
      %v1125 = vld [vmem:[%s1093 + $0x7c] sm:$0xf]
      %v1126 = vld [vmem:[%s1093 + $0x80] sm:$0xf]
      %v1127 = vld [vmem:[%s1093 + $0x84] sm:$0xf]
      %v1128 = vld [vmem:[%s1093 + $0x88] sm:$0xf]
      %v1129 = vld [vmem:[%s1093 + $0x8c] sm:$0xf]
      %v1130 = vld [vmem:[%s1093 + $0x90] sm:$0xf]
      %v1131 = vld [vmem:[%s1093 + $0x94] sm:$0xf]
      %v1132 = vld [vmem:[%s1093 + $0x98] sm:$0xf]
      %v1133 = vld [vmem:[%s1093 + $0x9c] sm:$0xf]
      %v1134 = vld [vmem:[%s1093 + $0xa0] sm:$0xf]
      %v1135 = vld [vmem:[%s1093 + $0xa4] sm:$0xf]
      %v1136 = vld [vmem:[%s1093 + $0xa8] sm:$0xf]
      %v1137 = vld [vmem:[%s1093 + $0xac] sm:$0xf]
      %v1138 = vld [vmem:[%s1093 + $0xb0] sm:$0xf]
      %v1139 = vld [vmem:[%s1093 + $0xb4] sm:$0xf]
      %v1140 = vld [vmem:[%s1093 + $0xb8] sm:$0xf]
      %v1141 = vld [vmem:[%s1093 + $0xbc] sm:$0xf]
      %vm1142 = vcmask 1046528
      %v1143 = vrot.slane %v1068, 1
      %v1144 = vrot.slane %v1069, 1
      %v1145 = vsel %vm1142, %v1143, %v1144
      %v1146 = vrot.slane %v1078, 1
      %v1147 = vrot.slane %v1079, 1
      %v1148 = vsel %vm1142, %v1146, %v1147
      %v1149 = vrot.slane %v1088, 1
      %v1150 = vrot.slane %v1089, 1
      %v1151 = vsel %vm1142, %v1149, %v1150
      %v1206 = vunpack.c.l.b16 %v1094
      %v1207 = vunpack.c.l.b16 %v1095
      %v1208 = vunpack.c.l.b16 %v1096
      %v1209 = vunpack.c.l.b16 %v1097
      %v1210 = vunpack.c.l.b16 %v1098
      %v1211 = vunpack.c.l.b16 %v1099
      %v1212 = vunpack.c.l.b16 %v1100
      %v1213 = vunpack.c.l.b16 %v1101
      %v1214 = vunpack.c.l.b16 %v1102
      %v1215 = vunpack.c.l.b16 %v1103
      %v1216 = vunpack.c.l.b16 %v1104
      %v1217 = vunpack.c.l.b16 %v1105
      %v1218 = vunpack.c.l.b16 %v1106
      %v1219 = vunpack.c.l.b16 %v1107
      %v1220 = vunpack.c.l.b16 %v1108
      %v1221 = vunpack.c.l.b16 %v1109
      %v1222 = vunpack.c.l.b16 %v1110
      %v1223 = vunpack.c.l.b16 %v1111
      %v1224 = vunpack.c.l.b16 %v1112
      %v1225 = vunpack.c.l.b16 %v1113
      %v1226 = vunpack.c.l.b16 %v1114
      %v1227 = vunpack.c.l.b16 %v1115
      %v1228 = vunpack.c.l.b16 %v1116
      %v1229 = vunpack.c.l.b16 %v1117
      %v1230 = vunpack.c.l.b16 %v1118
      %v1231 = vunpack.c.l.b16 %v1119
      %v1232 = vunpack.c.l.b16 %v1120
      %v1233 = vunpack.c.l.b16 %v1121
      %v1234 = vunpack.c.l.b16 %v1122
      %v1235 = vunpack.c.l.b16 %v1123
      %v1236 = vunpack.c.l.b16 %v1124
      %v1237 = vunpack.c.l.b16 %v1125
      %v1238 = vunpack.c.l.b16 %v1126
      %v1239 = vunpack.c.l.b16 %v1127
      %v1240 = vunpack.c.l.b16 %v1128
      %v1241 = vunpack.c.l.b16 %v1129
      %v1242 = vunpack.c.l.b16 %v1130
      %v1243 = vunpack.c.l.b16 %v1131
      %v1244 = vunpack.c.l.b16 %v1132
      %v1245 = vunpack.c.l.b16 %v1133
      %v1246 = vunpack.c.l.b16 %v1134
      %v1247 = vunpack.c.l.b16 %v1135
      %v1248 = vunpack.c.l.b16 %v1136
      %v1249 = vunpack.c.l.b16 %v1137
      %v1250 = vunpack.c.l.b16 %v1138
      %v1251 = vunpack.c.l.b16 %v1139
      %v1252 = vunpack.c.l.b16 %v1140
      %v1253 = vunpack.c.l.b16 %v1141
      %v1254 = vpack.c.b16 %v1207, %v1206
      %v1255 = vpack.c.b16 %v1209, %v1208
      %v1256 = vpack.c.b16 %v1211, %v1210
      %v1257 = vpack.c.b16 %v1213, %v1212
      %v1258 = vpack.c.b16 %v1215, %v1214
      %v1259 = vpack.c.b16 %v1217, %v1216
      %v1260 = vpack.c.b16 %v1219, %v1218
      %v1261 = vpack.c.b16 %v1221, %v1220
      %v1262 = vpack.c.b16 %v1223, %v1222
      %v1263 = vpack.c.b16 %v1225, %v1224
      %v1264 = vpack.c.b16 %v1227, %v1226
      %v1265 = vpack.c.b16 %v1229, %v1228
      %v1266 = vpack.c.b16 %v1231, %v1230
      %v1267 = vpack.c.b16 %v1233, %v1232
      %v1268 = vpack.c.b16 %v1235, %v1234
      %v1269 = vpack.c.b16 %v1237, %v1236
      %v1270 = vpack.c.b16 %v1239, %v1238
      %v1271 = vpack.c.b16 %v1241, %v1240
      %v1272 = vpack.c.b16 %v1243, %v1242
      %v1273 = vpack.c.b16 %v1245, %v1244
      %v1274 = vpack.c.b16 %v1247, %v1246
      %v1275 = vpack.c.b16 %v1249, %v1248
      %v1276 = vpack.c.b16 %v1251, %v1250
      %v1277 = vpack.c.b16 %v1253, %v1252
      %1302 = vmatprep.subr.bf16.mxu0 0
      %1303 = vmatpush1.bf16.msra.mxu0 %v1254
      %1304 = vmatprep.subr.bf16.mxu0 0
      %1305 = vmatpush1.bf16.msra.mxu0 %v1255
      %1306 = vmatprep.subr.bf16.mxu0 0
      %1307 = vmatpush1.bf16.msra.mxu0 %v1256
      %1308 = vmatprep.subr.bf16.mxu0 0
      %1309 = vmatpush1.bf16.msra.mxu0 %v1257
      %1310 = vmatprep.subr.bf16.mxu0 0
      %1311 = vmatpush1.bf16.msra.mxu0 %v1258
      %1312 = vmatprep.subr.bf16.mxu0 0
      %1313 = vmatpush1.bf16.msra.mxu0 %v1259
      %1314 = vmatprep.subr.bf16.mxu0 0
      %1315 = vmatpush1.bf16.msra.mxu0 %v1260
      %1316 = vmatprep.subr.bf16.mxu0 0
      %1317 = vmatpush1.bf16.msra.mxu0 %v1261
      %1318 = vmatprep.subr.bf16.mxu0 0
      %1319 = vmatpush1.bf16.msra.mxu0 %v1262
      %1320 = vmatprep.subr.bf16.mxu0 0
      %1321 = vmatpush1.bf16.msra.mxu0 %v1263
      %1322 = vmatprep.subr.bf16.mxu0 0
      %1323 = vmatpush1.bf16.msra.mxu0 %v1264
      %1324 = vmatprep.subr.bf16.mxu0 0
      %1325 = vmatpush1.bf16.msra.mxu0 %v1265
      %1326 = vmatprep.subr.bf16.mxu0 0
      %1327 = vmatpush1.bf16.msra.mxu0 %v1266
      %1328 = vmatprep.subr.bf16.mxu0 0
      %1329 = vmatpush1.bf16.msra.mxu0 %v1267
      %1330 = vmatprep.subr.bf16.mxu0 0
      %1331 = vmatpush1.bf16.msra.mxu0 %v1268
      %1332 = vmatprep.subr.bf16.mxu0 0
      %1333 = vmatpush1.bf16.msra.mxu0 %v1269
      %1334 = vmatprep.mubr.bf16.mxu0 %v1148
      %1335 = vmatmul.mubr.bf16.gmra.mrb[0].mxu0 %v1145
      %v1336 = vpop.f32.mrb[0].mxu0
      %v1337 = vadd.f32 0.0, %v1336
      %v1338 = vpop.f32.mrb[0].mxu0
      %v1339 = vpop.f32.mrb[0].mxu0
      %v1340 = vadd.f32 0.0, %v1339
      %v1341 = vpop.f32.mrb[0].mxu0
      %1342 = vmatprep.mubr.bf16.mxu0 %v1147
      %1343 = vmatmul.mubr.bf16.gmra.mrb[0].mxu0 %v1144
      %v1344 = vpop.f32.mrb[0].mxu0
      %v1345 = vadd.f32 0.0, %v1344
      %v1346 = vpop.f32.mrb[0].mxu0
      %v1347 = vpop.f32.mrb[0].mxu0
      %v1348 = vpop.f32.mrb[0].mxu0
      %1349 = vdwg.mxu0
      %1350 = vmatprep.subr.bf16.mxu0 0
      %1351 = vmatpush1.bf16.msra.mxu0 %v1270
      %1352 = vmatprep.subr.bf16.mxu0 0
      %1353 = vmatpush1.bf16.msra.mxu0 %v1271
      %1354 = vmatprep.subr.bf16.mxu0 0
      %1355 = vmatpush1.bf16.msra.mxu0 %v1272
      %1356 = vmatprep.subr.bf16.mxu0 0
      %1357 = vmatpush1.bf16.msra.mxu0 %v1273
      %1358 = vmatprep.subr.bf16.mxu0 0
      %1359 = vmatpush1.bf16.msra.mxu0 %v1274
      %1360 = vmatprep.subr.bf16.mxu0 0
      %1361 = vmatpush1.bf16.msra.mxu0 %v1275
      %1362 = vmatprep.subr.bf16.mxu0 0
      %1363 = vmatpush1.bf16.msra.mxu0 %v1276
      %1364 = vmatprep.subr.bf16.mxu0 0
      %1365 = vmatpush1.bf16.msra.mxu0 %v1277
      %1366 = vmatprep.subr.bf16.mxu0 0
      %1367 = vmatpush1.bf16.msra.mxu0 0
      %1368 = vmatprep.subr.bf16.mxu0 0
      %1369 = vmatpush1.bf16.msra.mxu0 0
      %1370 = vmatprep.subr.bf16.mxu0 0
      %1371 = vmatpush1.bf16.msra.mxu0 0
      %1372 = vmatprep.subr.bf16.mxu0 0
      %1373 = vmatpush1.bf16.msra.mxu0 0
      %1374 = vmatprep.subr.bf16.mxu0 0
      %1375 = vmatpush1.bf16.msra.mxu0 0
      %1376 = vmatprep.subr.bf16.mxu0 0
      %1377 = vmatpush1.bf16.msra.mxu0 0
      %1378 = vmatprep.subr.bf16.mxu0 0
      %1379 = vmatpush1.bf16.msra.mxu0 0
      %1380 = vmatprep.subr.bf16.mxu0 0
      %1381 = vmatpush1.bf16.msra.mxu0 0
      %1382 = vmatprep.mubr.bf16.mxu0 0
      %1383 = vmatmul.mubr.bf16.gmra.mrb[0].mxu0 %v1151
      %v1384 = vpop.f32.mrb[0].mxu0
      %v1385 = vadd.f32 %v1337, %v1384
      %v1386 = vpop.f32.mrb[0].mxu0
      %v1387 = vpop.f32.mrb[0].mxu0
      %v1388 = vadd.f32 %v1340, %v1387
      %v1389 = vpop.f32.mrb[0].mxu0
      %1390 = vmatprep.mubr.bf16.mxu0 0
      %1391 = vmatmul.mubr.bf16.gmra.mrb[0].mxu0 %v1150
      %v1392 = vpop.f32.mrb[0].mxu0
      %v1393 = vadd.f32 %v1345, %v1392
      %v1394 = vpop.f32.mrb[0].mxu0
      %v1395 = vpop.f32.mrb[0].mxu0
      %v1396 = vpop.f32.mrb[0].mxu0
      %1397 = vdwg.mxu0
      %v1398 = vadd.f32 %v1090, %v1385
      %v1399 = vadd.f32 %v1091, %v1388
      %v1400 = vadd.f32 %v1092, %v1393
      %1401 = vst [vmem:[#allocation2] sm:$0xff] %v1398
      %1402 = vst [vmem:[#allocation2 + $0x8] sm:$0xff] %v1399
      %1403 = vst [vmem:[#allocation2 + $0x10] sm:$0xff] %v1400
      %v1404 = vld [vmem:[%s284] sm:$0x8]
      %v1405 = vld [vmem:[%s284 + $0x4] sm:$0xf]
      %v1406 = vld [vmem:[%s284 + $0x8] sm:$0xf]
      %v1407 = vld [vmem:[%s284 + $0xc] sm:$0x7]
      %v1408 = vld [vmem:[%s294] sm:$0x8]
      %v1409 = vld [vmem:[%s294 + $0x4] sm:$0xf]
      %v1410 = vld [vmem:[%s294 + $0x8] sm:$0xf]
      %v1411 = vld [vmem:[%s294 + $0xc] sm:$0x7]
      %v1412 = vld [vmem:[%s305] sm:$0x8]
      %v1413 = vld [vmem:[%s305 + $0x4] sm:$0xf]
      %v1414 = vld [vmem:[%s305 + $0x8] sm:$0xf]
      %v1415 = vld [vmem:[%s305 + $0xc] sm:$0x7]
      %v1420 = vunpack.c.l.b16 %v1404
      %v1421 = vunpack.c.l.b16 %v1405
      %v1422 = vunpack.c.l.b16 %v1406
      %v1423 = vunpack.c.l.b16 %v1407
      %v1424 = vpack.c.b16 %v1421, %v1420
      %v1425 = vpack.c.b16 %v1423, %v1422
      %v1430 = vunpack.c.l.b16 %v1408
      %v1431 = vunpack.c.l.b16 %v1409
      %v1432 = vunpack.c.l.b16 %v1410
      %v1433 = vunpack.c.l.b16 %v1411
      %v1434 = vpack.c.b16 %v1431, %v1430
      %v1435 = vpack.c.b16 %v1433, %v1432
      %v1440 = vunpack.c.l.b16 %v1412
      %v1441 = vunpack.c.l.b16 %v1413
      %v1442 = vunpack.c.l.b16 %v1414
      %v1443 = vunpack.c.l.b16 %v1415
      %v1444 = vpack.c.b16 %v1441, %v1440
      %v1445 = vpack.c.b16 %v1443, %v1442
      %v1446 = vld [vmem:[#allocation2] sm:$0xff]
      %v1447 = vld [vmem:[#allocation2 + $0x8] sm:$0xff]
      %v1448 = vld [vmem:[#allocation2 + $0x10] sm:$0xff]
      %s1449 = scalar_lea.vmem %s3, 576
      %v1450 = vld [vmem:[%s1449] sm:$0xf]
      %v1451 = vld [vmem:[%s1449 + $0x4] sm:$0xf]
      %v1452 = vld [vmem:[%s1449 + $0x8] sm:$0xf]
      %v1453 = vld [vmem:[%s1449 + $0xc] sm:$0xf]
      %v1454 = vld [vmem:[%s1449 + $0x10] sm:$0xf]
      %v1455 = vld [vmem:[%s1449 + $0x14] sm:$0xf]
      %v1456 = vld [vmem:[%s1449 + $0x18] sm:$0xf]
      %v1457 = vld [vmem:[%s1449 + $0x1c] sm:$0xf]
      %v1458 = vld [vmem:[%s1449 + $0x20] sm:$0xf]
      %v1459 = vld [vmem:[%s1449 + $0x24] sm:$0xf]
      %v1460 = vld [vmem:[%s1449 + $0x28] sm:$0xf]
      %v1461 = vld [vmem:[%s1449 + $0x2c] sm:$0xf]
      %v1462 = vld [vmem:[%s1449 + $0x30] sm:$0xf]
      %v1463 = vld [vmem:[%s1449 + $0x34] sm:$0xf]
      %v1464 = vld [vmem:[%s1449 + $0x38] sm:$0xf]
      %v1465 = vld [vmem:[%s1449 + $0x3c] sm:$0xf]
      %v1466 = vld [vmem:[%s1449 + $0x40] sm:$0xf]
      %v1467 = vld [vmem:[%s1449 + $0x44] sm:$0xf]
      %v1468 = vld [vmem:[%s1449 + $0x48] sm:$0xf]
      %v1469 = vld [vmem:[%s1449 + $0x4c] sm:$0xf]
      %v1470 = vld [vmem:[%s1449 + $0x50] sm:$0xf]
      %v1471 = vld [vmem:[%s1449 + $0x54] sm:$0xf]
      %v1472 = vld [vmem:[%s1449 + $0x58] sm:$0xf]
      %v1473 = vld [vmem:[%s1449 + $0x5c] sm:$0xf]
      %v1474 = vld [vmem:[%s1449 + $0x60] sm:$0xf]
      %v1475 = vld [vmem:[%s1449 + $0x64] sm:$0xf]
      %v1476 = vld [vmem:[%s1449 + $0x68] sm:$0xf]
      %v1477 = vld [vmem:[%s1449 + $0x6c] sm:$0xf]
      %v1478 = vld [vmem:[%s1449 + $0x70] sm:$0xf]
      %v1479 = vld [vmem:[%s1449 + $0x74] sm:$0xf]
      %v1480 = vld [vmem:[%s1449 + $0x78] sm:$0xf]
      %v1481 = vld [vmem:[%s1449 + $0x7c] sm:$0xf]
      %v1482 = vld [vmem:[%s1449 + $0x80] sm:$0xf]
      %v1483 = vld [vmem:[%s1449 + $0x84] sm:$0xf]
      %v1484 = vld [vmem:[%s1449 + $0x88] sm:$0xf]
      %v1485 = vld [vmem:[%s1449 + $0x8c] sm:$0xf]
      %v1486 = vld [vmem:[%s1449 + $0x90] sm:$0xf]
      %v1487 = vld [vmem:[%s1449 + $0x94] sm:$0xf]
      %v1488 = vld [vmem:[%s1449 + $0x98] sm:$0xf]
      %v1489 = vld [vmem:[%s1449 + $0x9c] sm:$0xf]
      %v1490 = vld [vmem:[%s1449 + $0xa0] sm:$0xf]
      %v1491 = vld [vmem:[%s1449 + $0xa4] sm:$0xf]
      %v1492 = vld [vmem:[%s1449 + $0xa8] sm:$0xf]
      %v1493 = vld [vmem:[%s1449 + $0xac] sm:$0xf]
      %v1494 = vld [vmem:[%s1449 + $0xb0] sm:$0xf]
      %v1495 = vld [vmem:[%s1449 + $0xb4] sm:$0xf]
      %v1496 = vld [vmem:[%s1449 + $0xb8] sm:$0xf]
      %v1497 = vld [vmem:[%s1449 + $0xbc] sm:$0xf]
      %vm1498 = vcmask 1044480
      %v1499 = vrot.slane %v1424, 3
      %v1500 = vrot.slane %v1425, 3
      %v1501 = vsel %vm1498, %v1499, %v1500
      %v1502 = vrot.slane %v1434, 3
      %v1503 = vrot.slane %v1435, 3
      %v1504 = vsel %vm1498, %v1502, %v1503
      %v1505 = vrot.slane %v1444, 3
      %v1506 = vrot.slane %v1445, 3
      %v1507 = vsel %vm1498, %v1505, %v1506
      %v1562 = vunpack.c.l.b16 %v1450
      %v1563 = vunpack.c.l.b16 %v1451
      %v1564 = vunpack.c.l.b16 %v1452
      %v1565 = vunpack.c.l.b16 %v1453
      %v1566 = vunpack.c.l.b16 %v1454
      %v1567 = vunpack.c.l.b16 %v1455
      %v1568 = vunpack.c.l.b16 %v1456
      %v1569 = vunpack.c.l.b16 %v1457
      %v1570 = vunpack.c.l.b16 %v1458
      %v1571 = vunpack.c.l.b16 %v1459
      %v1572 = vunpack.c.l.b16 %v1460
      %v1573 = vunpack.c.l.b16 %v1461
      %v1574 = vunpack.c.l.b16 %v1462
      %v1575 = vunpack.c.l.b16 %v1463
      %v1576 = vunpack.c.l.b16 %v1464
      %v1577 = vunpack.c.l.b16 %v1465
      %v1578 = vunpack.c.l.b16 %v1466
      %v1579 = vunpack.c.l.b16 %v1467
      %v1580 = vunpack.c.l.b16 %v1468
      %v1581 = vunpack.c.l.b16 %v1469
      %v1582 = vunpack.c.l.b16 %v1470
      %v1583 = vunpack.c.l.b16 %v1471
      %v1584 = vunpack.c.l.b16 %v1472
      %v1585 = vunpack.c.l.b16 %v1473
      %v1586 = vunpack.c.l.b16 %v1474
      %v1587 = vunpack.c.l.b16 %v1475
      %v1588 = vunpack.c.l.b16 %v1476
      %v1589 = vunpack.c.l.b16 %v1477
      %v1590 = vunpack.c.l.b16 %v1478
      %v1591 = vunpack.c.l.b16 %v1479
      %v1592 = vunpack.c.l.b16 %v1480
      %v1593 = vunpack.c.l.b16 %v1481
      %v1594 = vunpack.c.l.b16 %v1482
      %v1595 = vunpack.c.l.b16 %v1483
      %v1596 = vunpack.c.l.b16 %v1484
      %v1597 = vunpack.c.l.b16 %v1485
      %v1598 = vunpack.c.l.b16 %v1486
      %v1599 = vunpack.c.l.b16 %v1487
      %v1600 = vunpack.c.l.b16 %v1488
      %v1601 = vunpack.c.l.b16 %v1489
      %v1602 = vunpack.c.l.b16 %v1490
      %v1603 = vunpack.c.l.b16 %v1491
      %v1604 = vunpack.c.l.b16 %v1492
      %v1605 = vunpack.c.l.b16 %v1493
      %v1606 = vunpack.c.l.b16 %v1494
      %v1607 = vunpack.c.l.b16 %v1495
      %v1608 = vunpack.c.l.b16 %v1496
      %v1609 = vunpack.c.l.b16 %v1497
      %v1610 = vpack.c.b16 %v1563, %v1562
      %v1611 = vpack.c.b16 %v1565, %v1564
      %v1612 = vpack.c.b16 %v1567, %v1566
      %v1613 = vpack.c.b16 %v1569, %v1568
      %v1614 = vpack.c.b16 %v1571, %v1570
      %v1615 = vpack.c.b16 %v1573, %v1572
      %v1616 = vpack.c.b16 %v1575, %v1574
      %v1617 = vpack.c.b16 %v1577, %v1576
      %v1618 = vpack.c.b16 %v1579, %v1578
      %v1619 = vpack.c.b16 %v1581, %v1580
      %v1620 = vpack.c.b16 %v1583, %v1582
      %v1621 = vpack.c.b16 %v1585, %v1584
      %v1622 = vpack.c.b16 %v1587, %v1586
      %v1623 = vpack.c.b16 %v1589, %v1588
      %v1624 = vpack.c.b16 %v1591, %v1590
      %v1625 = vpack.c.b16 %v1593, %v1592
      %v1626 = vpack.c.b16 %v1595, %v1594
      %v1627 = vpack.c.b16 %v1597, %v1596
      %v1628 = vpack.c.b16 %v1599, %v1598
      %v1629 = vpack.c.b16 %v1601, %v1600
      %v1630 = vpack.c.b16 %v1603, %v1602
      %v1631 = vpack.c.b16 %v1605, %v1604
      %v1632 = vpack.c.b16 %v1607, %v1606
      %v1633 = vpack.c.b16 %v1609, %v1608
      %1658 = vmatprep.subr.bf16.mxu0 0
      %1659 = vmatpush1.bf16.msra.mxu0 %v1610
      %1660 = vmatprep.subr.bf16.mxu0 0
      %1661 = vmatpush1.bf16.msra.mxu0 %v1611
      %1662 = vmatprep.subr.bf16.mxu0 0
      %1663 = vmatpush1.bf16.msra.mxu0 %v1612
      %1664 = vmatprep.subr.bf16.mxu0 0
      %1665 = vmatpush1.bf16.msra.mxu0 %v1613
      %1666 = vmatprep.subr.bf16.mxu0 0
      %1667 = vmatpush1.bf16.msra.mxu0 %v1614
      %1668 = vmatprep.subr.bf16.mxu0 0
      %1669 = vmatpush1.bf16.msra.mxu0 %v1615
      %1670 = vmatprep.subr.bf16.mxu0 0
      %1671 = vmatpush1.bf16.msra.mxu0 %v1616
      %1672 = vmatprep.subr.bf16.mxu0 0
      %1673 = vmatpush1.bf16.msra.mxu0 %v1617
      %1674 = vmatprep.subr.bf16.mxu0 0
      %1675 = vmatpush1.bf16.msra.mxu0 %v1618
      %1676 = vmatprep.subr.bf16.mxu0 0
      %1677 = vmatpush1.bf16.msra.mxu0 %v1619
      %1678 = vmatprep.subr.bf16.mxu0 0
      %1679 = vmatpush1.bf16.msra.mxu0 %v1620
      %1680 = vmatprep.subr.bf16.mxu0 0
      %1681 = vmatpush1.bf16.msra.mxu0 %v1621
      %1682 = vmatprep.subr.bf16.mxu0 0
      %1683 = vmatpush1.bf16.msra.mxu0 %v1622
      %1684 = vmatprep.subr.bf16.mxu0 0
      %1685 = vmatpush1.bf16.msra.mxu0 %v1623
      %1686 = vmatprep.subr.bf16.mxu0 0
      %1687 = vmatpush1.bf16.msra.mxu0 %v1624
      %1688 = vmatprep.subr.bf16.mxu0 0
      %1689 = vmatpush1.bf16.msra.mxu0 %v1625
      %1690 = vmatprep.mubr.bf16.mxu0 %v1504
      %1691 = vmatmul.mubr.bf16.gmra.mrb[0].mxu0 %v1501
      %v1692 = vpop.f32.mrb[0].mxu0
      %v1693 = vadd.f32 0.0, %v1692
      %v1694 = vpop.f32.mrb[0].mxu0
      %v1695 = vpop.f32.mrb[0].mxu0
      %v1696 = vadd.f32 0.0, %v1695
      %v1697 = vpop.f32.mrb[0].mxu0
      %1698 = vmatprep.mubr.bf16.mxu0 %v1503
      %1699 = vmatmul.mubr.bf16.gmra.mrb[0].mxu0 %v1500
      %v1700 = vpop.f32.mrb[0].mxu0
      %v1701 = vadd.f32 0.0, %v1700
      %v1702 = vpop.f32.mrb[0].mxu0
      %v1703 = vpop.f32.mrb[0].mxu0
      %v1704 = vpop.f32.mrb[0].mxu0
      %1705 = vdwg.mxu0
      %1706 = vmatprep.subr.bf16.mxu0 0
      %1707 = vmatpush1.bf16.msra.mxu0 %v1626
      %1708 = vmatprep.subr.bf16.mxu0 0
      %1709 = vmatpush1.bf16.msra.mxu0 %v1627
      %1710 = vmatprep.subr.bf16.mxu0 0
      %1711 = vmatpush1.bf16.msra.mxu0 %v1628
      %1712 = vmatprep.subr.bf16.mxu0 0
      %1713 = vmatpush1.bf16.msra.mxu0 %v1629
      %1714 = vmatprep.subr.bf16.mxu0 0
      %1715 = vmatpush1.bf16.msra.mxu0 %v1630
      %1716 = vmatprep.subr.bf16.mxu0 0
      %1717 = vmatpush1.bf16.msra.mxu0 %v1631
      %1718 = vmatprep.subr.bf16.mxu0 0
      %1719 = vmatpush1.bf16.msra.mxu0 %v1632
      %1720 = vmatprep.subr.bf16.mxu0 0
      %1721 = vmatpush1.bf16.msra.mxu0 %v1633
      %1722 = vmatprep.subr.bf16.mxu0 0
      %1723 = vmatpush1.bf16.msra.mxu0 0
      %1724 = vmatprep.subr.bf16.mxu0 0
      %1725 = vmatpush1.bf16.msra.mxu0 0
      %1726 = vmatprep.subr.bf16.mxu0 0
      %1727 = vmatpush1.bf16.msra.mxu0 0
      %1728 = vmatprep.subr.bf16.mxu0 0
      %1729 = vmatpush1.bf16.msra.mxu0 0
      %1730 = vmatprep.subr.bf16.mxu0 0
      %1731 = vmatpush1.bf16.msra.mxu0 0
      %1732 = vmatprep.subr.bf16.mxu0 0
      %1733 = vmatpush1.bf16.msra.mxu0 0
      %1734 = vmatprep.subr.bf16.mxu0 0
      %1735 = vmatpush1.bf16.msra.mxu0 0
      %1736 = vmatprep.subr.bf16.mxu0 0
      %1737 = vmatpush1.bf16.msra.mxu0 0
      %1738 = vmatprep.mubr.bf16.mxu0 0
      %1739 = vmatmul.mubr.bf16.gmra.mrb[0].mxu0 %v1507
      %v1740 = vpop.f32.mrb[0].mxu0
      %v1741 = vadd.f32 %v1693, %v1740
      %v1742 = vpop.f32.mrb[0].mxu0
      %v1743 = vpop.f32.mrb[0].mxu0
      %v1744 = vadd.f32 %v1696, %v1743
      %v1745 = vpop.f32.mrb[0].mxu0
      %1746 = vmatprep.mubr.bf16.mxu0 0
      %1747 = vmatmul.mubr.bf16.gmra.mrb[0].mxu0 %v1506
      %v1748 = vpop.f32.mrb[0].mxu0
      %v1749 = vadd.f32 %v1701, %v1748
      %v1750 = vpop.f32.mrb[0].mxu0
      %v1751 = vpop.f32.mrb[0].mxu0
      %v1752 = vpop.f32.mrb[0].mxu0
      %1753 = vdwg.mxu0
      %v1754 = vadd.f32 %v1446, %v1741
      %v1755 = vadd.f32 %v1447, %v1744
      %v1756 = vadd.f32 %v1448, %v1749
      %1757 = vst [vmem:[#allocation2] sm:$0xff] %v1754
      %1758 = vst [vmem:[#allocation2 + $0x8] sm:$0xff] %v1755
      %1759 = vst [vmem:[#allocation2 + $0x10] sm:$0xff] %v1756
      %v1760 = vld [vmem:[%s284] sm:$0x8]
      %v1761 = vld [vmem:[%s284 + $0x4] sm:$0xf]
      %v1762 = vld [vmem:[%s284 + $0x8] sm:$0xf]
      %v1763 = vld [vmem:[%s284 + $0xc] sm:$0xf]
      %v1764 = vld [vmem:[%s294] sm:$0x8]
      %v1765 = vld [vmem:[%s294 + $0x4] sm:$0xf]
      %v1766 = vld [vmem:[%s294 + $0x8] sm:$0xf]
      %v1767 = vld [vmem:[%s294 + $0xc] sm:$0xf]
      %v1768 = vld [vmem:[%s305] sm:$0x8]
      %v1769 = vld [vmem:[%s305 + $0x4] sm:$0xf]
      %v1770 = vld [vmem:[%s305 + $0x8] sm:$0xf]
      %v1771 = vld [vmem:[%s305 + $0xc] sm:$0xf]
      %v1776 = vunpack.c.l.b16 %v1760
      %v1777 = vunpack.c.l.b16 %v1761
      %v1778 = vunpack.c.l.b16 %v1762
      %v1779 = vunpack.c.l.b16 %v1763
      %v1780 = vpack.c.b16 %v1777, %v1776
      %v1781 = vpack.c.b16 %v1779, %v1778
      %v1786 = vunpack.c.l.b16 %v1764
      %v1787 = vunpack.c.l.b16 %v1765
      %v1788 = vunpack.c.l.b16 %v1766
      %v1789 = vunpack.c.l.b16 %v1767
      %v1790 = vpack.c.b16 %v1787, %v1786
      %v1791 = vpack.c.b16 %v1789, %v1788
      %v1796 = vunpack.c.l.b16 %v1768
      %v1797 = vunpack.c.l.b16 %v1769
      %v1798 = vunpack.c.l.b16 %v1770
      %v1799 = vunpack.c.l.b16 %v1771
      %v1800 = vpack.c.b16 %v1797, %v1796
      %v1801 = vpack.c.b16 %v1799, %v1798
      %v1802 = vld [vmem:[#allocation2] sm:$0xff]
      %v1803 = vld [vmem:[#allocation2 + $0x8] sm:$0xff]
      %v1804 = vld [vmem:[#allocation2 + $0x10] sm:$0xff]
      %s1805 = scalar_lea.vmem %s3, 768
      %v1806 = vld [vmem:[%s1805] sm:$0xf]
      %v1807 = vld [vmem:[%s1805 + $0x4] sm:$0xf]
      %v1808 = vld [vmem:[%s1805 + $0x8] sm:$0xf]
      %v1809 = vld [vmem:[%s1805 + $0xc] sm:$0xf]
      %v1810 = vld [vmem:[%s1805 + $0x10] sm:$0xf]
      %v1811 = vld [vmem:[%s1805 + $0x14] sm:$0xf]
      %v1812 = vld [vmem:[%s1805 + $0x18] sm:$0xf]
      %v1813 = vld [vmem:[%s1805 + $0x1c] sm:$0xf]
      %v1814 = vld [vmem:[%s1805 + $0x20] sm:$0xf]
      %v1815 = vld [vmem:[%s1805 + $0x24] sm:$0xf]
      %v1816 = vld [vmem:[%s1805 + $0x28] sm:$0xf]
      %v1817 = vld [vmem:[%s1805 + $0x2c] sm:$0xf]
      %v1818 = vld [vmem:[%s1805 + $0x30] sm:$0xf]
      %v1819 = vld [vmem:[%s1805 + $0x34] sm:$0xf]
      %v1820 = vld [vmem:[%s1805 + $0x38] sm:$0xf]
      %v1821 = vld [vmem:[%s1805 + $0x3c] sm:$0xf]
      %v1822 = vld [vmem:[%s1805 + $0x40] sm:$0xf]
      %v1823 = vld [vmem:[%s1805 + $0x44] sm:$0xf]
      %v1824 = vld [vmem:[%s1805 + $0x48] sm:$0xf]
      %v1825 = vld [vmem:[%s1805 + $0x4c] sm:$0xf]
      %v1826 = vld [vmem:[%s1805 + $0x50] sm:$0xf]
      %v1827 = vld [vmem:[%s1805 + $0x54] sm:$0xf]
      %v1828 = vld [vmem:[%s1805 + $0x58] sm:$0xf]
      %v1829 = vld [vmem:[%s1805 + $0x5c] sm:$0xf]
      %v1830 = vld [vmem:[%s1805 + $0x60] sm:$0xf]
      %v1831 = vld [vmem:[%s1805 + $0x64] sm:$0xf]
      %v1832 = vld [vmem:[%s1805 + $0x68] sm:$0xf]
      %v1833 = vld [vmem:[%s1805 + $0x6c] sm:$0xf]
      %v1834 = vld [vmem:[%s1805 + $0x70] sm:$0xf]
      %v1835 = vld [vmem:[%s1805 + $0x74] sm:$0xf]
      %v1836 = vld [vmem:[%s1805 + $0x78] sm:$0xf]
      %v1837 = vld [vmem:[%s1805 + $0x7c] sm:$0xf]
      %v1838 = vld [vmem:[%s1805 + $0x80] sm:$0xf]
      %v1839 = vld [vmem:[%s1805 + $0x84] sm:$0xf]
      %v1840 = vld [vmem:[%s1805 + $0x88] sm:$0xf]
      %v1841 = vld [vmem:[%s1805 + $0x8c] sm:$0xf]
      %v1842 = vld [vmem:[%s1805 + $0x90] sm:$0xf]
      %v1843 = vld [vmem:[%s1805 + $0x94] sm:$0xf]
      %v1844 = vld [vmem:[%s1805 + $0x98] sm:$0xf]
      %v1845 = vld [vmem:[%s1805 + $0x9c] sm:$0xf]
      %v1846 = vld [vmem:[%s1805 + $0xa0] sm:$0xf]
      %v1847 = vld [vmem:[%s1805 + $0xa4] sm:$0xf]
      %v1848 = vld [vmem:[%s1805 + $0xa8] sm:$0xf]
      %v1849 = vld [vmem:[%s1805 + $0xac] sm:$0xf]
      %v1850 = vld [vmem:[%s1805 + $0xb0] sm:$0xf]
      %v1851 = vld [vmem:[%s1805 + $0xb4] sm:$0xf]
      %v1852 = vld [vmem:[%s1805 + $0xb8] sm:$0xf]
      %v1853 = vld [vmem:[%s1805 + $0xbc] sm:$0xf]
      %vm1854 = vsmask.f32 4352
      %v1856 = vshrl.u32 %v1780, 16
      %v1858 = vrot.slane %v1856, 3
      %v1859 = vshll.u32 %v1780, 16
      %v1861 = vrot.slane %v1859, 4
      %v1862 = vor.u32 %v1858, %v1861
      %v1864 = vshrl.u32 %v1781, 16
      %v1866 = vrot.slane %v1864, 3
      %v1867 = vshll.u32 %v1781, 16
      %v1869 = vrot.slane %v1867, 4
      %v1870 = vor.u32 %v1866, %v1869
      %v1871 = vsel %vm1854, %v1862, %v1870
      %v1873 = vshrl.u32 %v1790, 16
      %v1875 = vrot.slane %v1873, 3
      %v1876 = vshll.u32 %v1790, 16
      %v1878 = vrot.slane %v1876, 4
      %v1879 = vor.u32 %v1875, %v1878
      %v1881 = vshrl.u32 %v1791, 16
      %v1883 = vrot.slane %v1881, 3
      %v1884 = vshll.u32 %v1791, 16
      %v1886 = vrot.slane %v1884, 4
      %v1887 = vor.u32 %v1883, %v1886
      %v1888 = vsel %vm1854, %v1879, %v1887
      %v1890 = vshrl.u32 %v1800, 16
      %v1892 = vrot.slane %v1890, 3
      %v1893 = vshll.u32 %v1800, 16
      %v1895 = vrot.slane %v1893, 4
      %v1896 = vor.u32 %v1892, %v1895
      %v1898 = vshrl.u32 %v1801, 16
      %v1900 = vrot.slane %v1898, 3
      %v1901 = vshll.u32 %v1801, 16
      %v1903 = vrot.slane %v1901, 4
      %v1904 = vor.u32 %v1900, %v1903
      %v1905 = vsel %vm1854, %v1896, %v1904
      %v1960 = vunpack.c.l.b16 %v1806
      %v1961 = vunpack.c.l.b16 %v1807
      %v1962 = vunpack.c.l.b16 %v1808
      %v1963 = vunpack.c.l.b16 %v1809
      %v1964 = vunpack.c.l.b16 %v1810
      %v1965 = vunpack.c.l.b16 %v1811
      %v1966 = vunpack.c.l.b16 %v1812
      %v1967 = vunpack.c.l.b16 %v1813
      %v1968 = vunpack.c.l.b16 %v1814
      %v1969 = vunpack.c.l.b16 %v1815
      %v1970 = vunpack.c.l.b16 %v1816
      %v1971 = vunpack.c.l.b16 %v1817
      %v1972 = vunpack.c.l.b16 %v1818
      %v1973 = vunpack.c.l.b16 %v1819
      %v1974 = vunpack.c.l.b16 %v1820
      %v1975 = vunpack.c.l.b16 %v1821
      %v1976 = vunpack.c.l.b16 %v1822
      %v1977 = vunpack.c.l.b16 %v1823
      %v1978 = vunpack.c.l.b16 %v1824
      %v1979 = vunpack.c.l.b16 %v1825
      %v1980 = vunpack.c.l.b16 %v1826
      %v1981 = vunpack.c.l.b16 %v1827
      %v1982 = vunpack.c.l.b16 %v1828
      %v1983 = vunpack.c.l.b16 %v1829
      %v1984 = vunpack.c.l.b16 %v1830
      %v1985 = vunpack.c.l.b16 %v1831
      %v1986 = vunpack.c.l.b16 %v1832
      %v1987 = vunpack.c.l.b16 %v1833
      %v1988 = vunpack.c.l.b16 %v1834
      %v1989 = vunpack.c.l.b16 %v1835
      %v1990 = vunpack.c.l.b16 %v1836
      %v1991 = vunpack.c.l.b16 %v1837
      %v1992 = vunpack.c.l.b16 %v1838
      %v1993 = vunpack.c.l.b16 %v1839
      %v1994 = vunpack.c.l.b16 %v1840
      %v1995 = vunpack.c.l.b16 %v1841
      %v1996 = vunpack.c.l.b16 %v1842
      %v1997 = vunpack.c.l.b16 %v1843
      %v1998 = vunpack.c.l.b16 %v1844
      %v1999 = vunpack.c.l.b16 %v1845
      %v2000 = vunpack.c.l.b16 %v1846
      %v2001 = vunpack.c.l.b16 %v1847
      %v2002 = vunpack.c.l.b16 %v1848
      %v2003 = vunpack.c.l.b16 %v1849
      %v2004 = vunpack.c.l.b16 %v1850
      %v2005 = vunpack.c.l.b16 %v1851
      %v2006 = vunpack.c.l.b16 %v1852
      %v2007 = vunpack.c.l.b16 %v1853
      %v2008 = vpack.c.b16 %v1961, %v1960
      %v2009 = vpack.c.b16 %v1963, %v1962
      %v2010 = vpack.c.b16 %v1965, %v1964
      %v2011 = vpack.c.b16 %v1967, %v1966
      %v2012 = vpack.c.b16 %v1969, %v1968
      %v2013 = vpack.c.b16 %v1971, %v1970
      %v2014 = vpack.c.b16 %v1973, %v1972
      %v2015 = vpack.c.b16 %v1975, %v1974
      %v2016 = vpack.c.b16 %v1977, %v1976
      %v2017 = vpack.c.b16 %v1979, %v1978
      %v2018 = vpack.c.b16 %v1981, %v1980
      %v2019 = vpack.c.b16 %v1983, %v1982
      %v2020 = vpack.c.b16 %v1985, %v1984
      %v2021 = vpack.c.b16 %v1987, %v1986
      %v2022 = vpack.c.b16 %v1989, %v1988
      %v2023 = vpack.c.b16 %v1991, %v1990
      %v2024 = vpack.c.b16 %v1993, %v1992
      %v2025 = vpack.c.b16 %v1995, %v1994
      %v2026 = vpack.c.b16 %v1997, %v1996
      %v2027 = vpack.c.b16 %v1999, %v1998
      %v2028 = vpack.c.b16 %v2001, %v2000
      %v2029 = vpack.c.b16 %v2003, %v2002
      %v2030 = vpack.c.b16 %v2005, %v2004
      %v2031 = vpack.c.b16 %v2007, %v2006
      %2056 = vmatprep.subr.bf16.mxu0 0
      %2057 = vmatpush1.bf16.msra.mxu0 %v2008
      %2058 = vmatprep.subr.bf16.mxu0 0
      %2059 = vmatpush1.bf16.msra.mxu0 %v2009
      %2060 = vmatprep.subr.bf16.mxu0 0
      %2061 = vmatpush1.bf16.msra.mxu0 %v2010
      %2062 = vmatprep.subr.bf16.mxu0 0
      %2063 = vmatpush1.bf16.msra.mxu0 %v2011
      %2064 = vmatprep.subr.bf16.mxu0 0
      %2065 = vmatpush1.bf16.msra.mxu0 %v2012
      %2066 = vmatprep.subr.bf16.mxu0 0
      %2067 = vmatpush1.bf16.msra.mxu0 %v2013
      %2068 = vmatprep.subr.bf16.mxu0 0
      %2069 = vmatpush1.bf16.msra.mxu0 %v2014
      %2070 = vmatprep.subr.bf16.mxu0 0
      %2071 = vmatpush1.bf16.msra.mxu0 %v2015
      %2072 = vmatprep.subr.bf16.mxu0 0
      %2073 = vmatpush1.bf16.msra.mxu0 %v2016
      %2074 = vmatprep.subr.bf16.mxu0 0
      %2075 = vmatpush1.bf16.msra.mxu0 %v2017
      %2076 = vmatprep.subr.bf16.mxu0 0
      %2077 = vmatpush1.bf16.msra.mxu0 %v2018
      %2078 = vmatprep.subr.bf16.mxu0 0
      %2079 = vmatpush1.bf16.msra.mxu0 %v2019
      %2080 = vmatprep.subr.bf16.mxu0 0
      %2081 = vmatpush1.bf16.msra.mxu0 %v2020
      %2082 = vmatprep.subr.bf16.mxu0 0
      %2083 = vmatpush1.bf16.msra.mxu0 %v2021
      %2084 = vmatprep.subr.bf16.mxu0 0
      %2085 = vmatpush1.bf16.msra.mxu0 %v2022
      %2086 = vmatprep.subr.bf16.mxu0 0
      %2087 = vmatpush1.bf16.msra.mxu0 %v2023
      %2088 = vmatprep.mubr.bf16.mxu0 %v1888
      %2089 = vmatmul.mubr.bf16.gmra.mrb[0].mxu0 %v1871
      %v2090 = vpop.f32.mrb[0].mxu0
      %v2091 = vadd.f32 0.0, %v2090
      %v2092 = vpop.f32.mrb[0].mxu0
      %v2093 = vpop.f32.mrb[0].mxu0
      %v2094 = vadd.f32 0.0, %v2093
      %v2095 = vpop.f32.mrb[0].mxu0
      %2096 = vmatprep.mubr.bf16.mxu0 %v1887
      %2097 = vmatmul.mubr.bf16.gmra.mrb[0].mxu0 %v1870
      %v2098 = vpop.f32.mrb[0].mxu0
      %v2099 = vadd.f32 0.0, %v2098
      %v2100 = vpop.f32.mrb[0].mxu0
      %v2101 = vpop.f32.mrb[0].mxu0
      %v2102 = vpop.f32.mrb[0].mxu0
      %2103 = vdwg.mxu0
      %2104 = vmatprep.subr.bf16.mxu0 0
      %2105 = vmatpush1.bf16.msra.mxu0 %v2024
      %2106 = vmatprep.subr.bf16.mxu0 0
      %2107 = vmatpush1.bf16.msra.mxu0 %v2025
      %2108 = vmatprep.subr.bf16.mxu0 0
      %2109 = vmatpush1.bf16.msra.mxu0 %v2026
      %2110 = vmatprep.subr.bf16.mxu0 0
      %2111 = vmatpush1.bf16.msra.mxu0 %v2027
      %2112 = vmatprep.subr.bf16.mxu0 0
      %2113 = vmatpush1.bf16.msra.mxu0 %v2028
      %2114 = vmatprep.subr.bf16.mxu0 0
      %2115 = vmatpush1.bf16.msra.mxu0 %v2029
      %2116 = vmatprep.subr.bf16.mxu0 0
      %2117 = vmatpush1.bf16.msra.mxu0 %v2030
      %2118 = vmatprep.subr.bf16.mxu0 0
      %2119 = vmatpush1.bf16.msra.mxu0 %v2031
      %2120 = vmatprep.subr.bf16.mxu0 0
      %2121 = vmatpush1.bf16.msra.mxu0 0
      %2122 = vmatprep.subr.bf16.mxu0 0
      %2123 = vmatpush1.bf16.msra.mxu0 0
      %2124 = vmatprep.subr.bf16.mxu0 0
      %2125 = vmatpush1.bf16.msra.mxu0 0
      %2126 = vmatprep.subr.bf16.mxu0 0
      %2127 = vmatpush1.bf16.msra.mxu0 0
      %2128 = vmatprep.subr.bf16.mxu0 0
      %2129 = vmatpush1.bf16.msra.mxu0 0
      %2130 = vmatprep.subr.bf16.mxu0 0
      %2131 = vmatpush1.bf16.msra.mxu0 0
      %2132 = vmatprep.subr.bf16.mxu0 0
      %2133 = vmatpush1.bf16.msra.mxu0 0
      %2134 = vmatprep.subr.bf16.mxu0 0
      %2135 = vmatpush1.bf16.msra.mxu0 0
      %2136 = vmatprep.mubr.bf16.mxu0 0
      %2137 = vmatmul.mubr.bf16.gmra.mrb[0].mxu0 %v1905
      %v2138 = vpop.f32.mrb[0].mxu0
      %v2139 = vadd.f32 %v2091, %v2138
      %v2140 = vpop.f32.mrb[0].mxu0
      %v2141 = vpop.f32.mrb[0].mxu0
      %v2142 = vadd.f32 %v2094, %v2141
      %v2143 = vpop.f32.mrb[0].mxu0
      %2144 = vmatprep.mubr.bf16.mxu0 0
      %2145 = vmatmul.mubr.bf16.gmra.mrb[0].mxu0 %v1904
      %v2146 = vpop.f32.mrb[0].mxu0
      %v2147 = vadd.f32 %v2099, %v2146
      %v2148 = vpop.f32.mrb[0].mxu0
      %v2149 = vpop.f32.mrb[0].mxu0
      %v2150 = vpop.f32.mrb[0].mxu0
      %2151 = vdwg.mxu0
      %v2152 = vadd.f32 %v1802, %v2139
      %v2153 = vadd.f32 %v1803, %v2142
      %v2154 = vadd.f32 %v1804, %v2147
      %2155 = vst [vmem:[#allocation2] sm:$0xff] %v2152
      %2156 = vst [vmem:[#allocation2 + $0x8] sm:$0xff] %v2153
      %2157 = vst [vmem:[#allocation2 + $0x10] sm:$0xff] %v2154
      %v2158 = vld [vmem:[%s284 + $0x4] sm:$0xf]
      %v2159 = vld [vmem:[%s284 + $0x8] sm:$0xf]
      %v2160 = vld [vmem:[%s284 + $0xc] sm:$0xf]
      %v2161 = vld [vmem:[%s294 + $0x4] sm:$0xf]
      %v2162 = vld [vmem:[%s294 + $0x8] sm:$0xf]
      %v2163 = vld [vmem:[%s294 + $0xc] sm:$0xf]
      %v2164 = vld [vmem:[%s305 + $0x4] sm:$0xf]
      %v2165 = vld [vmem:[%s305 + $0x8] sm:$0xf]
      %v2166 = vld [vmem:[%s305 + $0xc] sm:$0xf]
      %v2170 = vunpack.c.l.b16 %v2158
      %v2171 = vunpack.c.l.b16 %v2159
      %v2172 = vunpack.c.l.b16 %v2160
      %v2173 = vpack.c.b16 %v2171, %v2170
      %v2174 = vpack.c.b16 %v2172, %v2172
      %v2180 = vunpack.c.l.b16 %v2161
      %v2181 = vunpack.c.l.b16 %v2162
      %v2182 = vunpack.c.l.b16 %v2163
      %v2183 = vpack.c.b16 %v2181, %v2180
      %v2184 = vpack.c.b16 %v2182, %v2182
      %v2190 = vunpack.c.l.b16 %v2164
      %v2191 = vunpack.c.l.b16 %v2165
      %v2192 = vunpack.c.l.b16 %v2166
      %v2193 = vpack.c.b16 %v2191, %v2190
      %v2194 = vpack.c.b16 %v2192, %v2192
      %v2197 = vld [vmem:[#allocation2] sm:$0xff]
      %v2198 = vld [vmem:[#allocation2 + $0x8] sm:$0xff]
      %v2199 = vld [vmem:[#allocation2 + $0x10] sm:$0xff]
      %s2200 = scalar_lea.vmem %s3, 960
      %v2201 = vld [vmem:[%s2200] sm:$0xf]
      %v2202 = vld [vmem:[%s2200 + $0x4] sm:$0xf]
      %v2203 = vld [vmem:[%s2200 + $0x8] sm:$0xf]
      %v2204 = vld [vmem:[%s2200 + $0xc] sm:$0xf]
      %v2205 = vld [vmem:[%s2200 + $0x10] sm:$0xf]
      %v2206 = vld [vmem:[%s2200 + $0x14] sm:$0xf]
      %v2207 = vld [vmem:[%s2200 + $0x18] sm:$0xf]
      %v2208 = vld [vmem:[%s2200 + $0x1c] sm:$0xf]
      %v2209 = vld [vmem:[%s2200 + $0x20] sm:$0xf]
      %v2210 = vld [vmem:[%s2200 + $0x24] sm:$0xf]
      %v2211 = vld [vmem:[%s2200 + $0x28] sm:$0xf]
      %v2212 = vld [vmem:[%s2200 + $0x2c] sm:$0xf]
      %v2213 = vld [vmem:[%s2200 + $0x30] sm:$0xf]
      %v2214 = vld [vmem:[%s2200 + $0x34] sm:$0xf]
      %v2215 = vld [vmem:[%s2200 + $0x38] sm:$0xf]
      %v2216 = vld [vmem:[%s2200 + $0x3c] sm:$0xf]
      %v2217 = vld [vmem:[%s2200 + $0x40] sm:$0xf]
      %v2218 = vld [vmem:[%s2200 + $0x44] sm:$0xf]
      %v2219 = vld [vmem:[%s2200 + $0x48] sm:$0xf]
      %v2220 = vld [vmem:[%s2200 + $0x4c] sm:$0xf]
      %v2221 = vld [vmem:[%s2200 + $0x50] sm:$0xf]
      %v2222 = vld [vmem:[%s2200 + $0x54] sm:$0xf]
      %v2223 = vld [vmem:[%s2200 + $0x58] sm:$0xf]
      %v2224 = vld [vmem:[%s2200 + $0x5c] sm:$0xf]
      %v2225 = vld [vmem:[%s2200 + $0x60] sm:$0xf]
      %v2226 = vld [vmem:[%s2200 + $0x64] sm:$0xf]
      %v2227 = vld [vmem:[%s2200 + $0x68] sm:$0xf]
      %v2228 = vld [vmem:[%s2200 + $0x6c] sm:$0xf]
      %v2229 = vld [vmem:[%s2200 + $0x70] sm:$0xf]
      %v2230 = vld [vmem:[%s2200 + $0x74] sm:$0xf]
      %v2231 = vld [vmem:[%s2200 + $0x78] sm:$0xf]
      %v2232 = vld [vmem:[%s2200 + $0x7c] sm:$0xf]
      %v2233 = vld [vmem:[%s2200 + $0x80] sm:$0xf]
      %v2234 = vld [vmem:[%s2200 + $0x84] sm:$0xf]
      %v2235 = vld [vmem:[%s2200 + $0x88] sm:$0xf]
      %v2236 = vld [vmem:[%s2200 + $0x8c] sm:$0xf]
      %v2237 = vld [vmem:[%s2200 + $0x90] sm:$0xf]
      %v2238 = vld [vmem:[%s2200 + $0x94] sm:$0xf]
      %v2239 = vld [vmem:[%s2200 + $0x98] sm:$0xf]
      %v2240 = vld [vmem:[%s2200 + $0x9c] sm:$0xf]
      %v2241 = vld [vmem:[%s2200 + $0xa0] sm:$0xf]
      %v2242 = vld [vmem:[%s2200 + $0xa4] sm:$0xf]
      %v2243 = vld [vmem:[%s2200 + $0xa8] sm:$0xf]
      %v2244 = vld [vmem:[%s2200 + $0xac] sm:$0xf]
      %v2245 = vld [vmem:[%s2200 + $0xb0] sm:$0xf]
      %v2246 = vld [vmem:[%s2200 + $0xb4] sm:$0xf]
      %v2247 = vld [vmem:[%s2200 + $0xb8] sm:$0xf]
      %v2248 = vld [vmem:[%s2200 + $0xbc] sm:$0xf]
      %v2297 = vunpack.c.l.b16 %v2201
      %v2298 = vunpack.c.l.b16 %v2202
      %v2299 = vunpack.c.l.b16 %v2203
      %v2300 = vunpack.c.l.b16 %v2204
      %v2301 = vunpack.c.l.b16 %v2205
      %v2302 = vunpack.c.l.b16 %v2206
      %v2303 = vunpack.c.l.b16 %v2207
      %v2304 = vunpack.c.l.b16 %v2208
      %v2305 = vunpack.c.l.b16 %v2209
      %v2306 = vunpack.c.l.b16 %v2210
      %v2307 = vunpack.c.l.b16 %v2211
      %v2308 = vunpack.c.l.b16 %v2212
      %v2309 = vunpack.c.l.b16 %v2213
      %v2310 = vunpack.c.l.b16 %v2214
      %v2311 = vunpack.c.l.b16 %v2215
      %v2312 = vunpack.c.l.b16 %v2216
      %v2313 = vunpack.c.l.b16 %v2217
      %v2314 = vunpack.c.l.b16 %v2218
      %v2315 = vunpack.c.l.b16 %v2219
      %v2316 = vunpack.c.l.b16 %v2220
      %v2317 = vunpack.c.l.b16 %v2221
      %v2318 = vunpack.c.l.b16 %v2222
      %v2319 = vunpack.c.l.b16 %v2223
      %v2320 = vunpack.c.l.b16 %v2224
      %v2321 = vunpack.c.l.b16 %v2225
      %v2322 = vunpack.c.l.b16 %v2226
      %v2323 = vunpack.c.l.b16 %v2227
      %v2324 = vunpack.c.l.b16 %v2228
      %v2325 = vunpack.c.l.b16 %v2229
      %v2326 = vunpack.c.l.b16 %v2230
      %v2327 = vunpack.c.l.b16 %v2231
      %v2328 = vunpack.c.l.b16 %v2232
      %v2329 = vunpack.c.l.b16 %v2233
      %v2330 = vunpack.c.l.b16 %v2234
      %v2331 = vunpack.c.l.b16 %v2235
      %v2332 = vunpack.c.l.b16 %v2236
      %v2333 = vunpack.c.l.b16 %v2237
      %v2334 = vunpack.c.l.b16 %v2238
      %v2335 = vunpack.c.l.b16 %v2239
      %v2336 = vunpack.c.l.b16 %v2240
      %v2337 = vunpack.c.l.b16 %v2241
      %v2338 = vunpack.c.l.b16 %v2242
      %v2339 = vunpack.c.l.b16 %v2243
      %v2340 = vunpack.c.l.b16 %v2244
      %v2341 = vunpack.c.l.b16 %v2245
      %v2342 = vunpack.c.l.b16 %v2246
      %v2343 = vunpack.c.l.b16 %v2247
      %v2344 = vunpack.c.l.b16 %v2248
      %v2345 = vpack.c.b16 %v2298, %v2297
      %v2346 = vpack.c.b16 %v2300, %v2299
      %v2347 = vpack.c.b16 %v2302, %v2301
      %v2348 = vpack.c.b16 %v2304, %v2303
      %v2349 = vpack.c.b16 %v2306, %v2305
      %v2350 = vpack.c.b16 %v2308, %v2307
      %v2351 = vpack.c.b16 %v2310, %v2309
      %v2352 = vpack.c.b16 %v2312, %v2311
      %v2353 = vpack.c.b16 %v2314, %v2313
      %v2354 = vpack.c.b16 %v2316, %v2315
      %v2355 = vpack.c.b16 %v2318, %v2317
      %v2356 = vpack.c.b16 %v2320, %v2319
      %v2357 = vpack.c.b16 %v2322, %v2321
      %v2358 = vpack.c.b16 %v2324, %v2323
      %v2359 = vpack.c.b16 %v2326, %v2325
      %v2360 = vpack.c.b16 %v2328, %v2327
      %v2361 = vpack.c.b16 %v2330, %v2329
      %v2362 = vpack.c.b16 %v2332, %v2331
      %v2363 = vpack.c.b16 %v2334, %v2333
      %v2364 = vpack.c.b16 %v2336, %v2335
      %v2365 = vpack.c.b16 %v2338, %v2337
      %v2366 = vpack.c.b16 %v2340, %v2339
      %v2367 = vpack.c.b16 %v2342, %v2341
      %v2368 = vpack.c.b16 %v2344, %v2343
      %2393 = vmatprep.subr.bf16.mxu0 0
      %2394 = vmatpush1.bf16.msra.mxu0 %v2345
      %2395 = vmatprep.subr.bf16.mxu0 0
      %2396 = vmatpush1.bf16.msra.mxu0 %v2346
      %2397 = vmatprep.subr.bf16.mxu0 0
      %2398 = vmatpush1.bf16.msra.mxu0 %v2347
      %2399 = vmatprep.subr.bf16.mxu0 0
      %2400 = vmatpush1.bf16.msra.mxu0 %v2348
      %2401 = vmatprep.subr.bf16.mxu0 0
      %2402 = vmatpush1.bf16.msra.mxu0 %v2349
      %2403 = vmatprep.subr.bf16.mxu0 0
      %2404 = vmatpush1.bf16.msra.mxu0 %v2350
      %2405 = vmatprep.subr.bf16.mxu0 0
      %2406 = vmatpush1.bf16.msra.mxu0 %v2351
      %2407 = vmatprep.subr.bf16.mxu0 0
      %2408 = vmatpush1.bf16.msra.mxu0 %v2352
      %2409 = vmatprep.subr.bf16.mxu0 0
      %2410 = vmatpush1.bf16.msra.mxu0 %v2353
      %2411 = vmatprep.subr.bf16.mxu0 0
      %2412 = vmatpush1.bf16.msra.mxu0 %v2354
      %2413 = vmatprep.subr.bf16.mxu0 0
      %2414 = vmatpush1.bf16.msra.mxu0 %v2355
      %2415 = vmatprep.subr.bf16.mxu0 0
      %2416 = vmatpush1.bf16.msra.mxu0 %v2356
      %2417 = vmatprep.subr.bf16.mxu0 0
      %2418 = vmatpush1.bf16.msra.mxu0 %v2357
      %2419 = vmatprep.subr.bf16.mxu0 0
      %2420 = vmatpush1.bf16.msra.mxu0 %v2358
      %2421 = vmatprep.subr.bf16.mxu0 0
      %2422 = vmatpush1.bf16.msra.mxu0 %v2359
      %2423 = vmatprep.subr.bf16.mxu0 0
      %2424 = vmatpush1.bf16.msra.mxu0 %v2360
      %2425 = vmatprep.mubr.bf16.mxu0 %v2183
      %2426 = vmatmul.mubr.bf16.gmra.mrb[0].mxu0 %v2173
      %v2427 = vpop.f32.mrb[0].mxu0
      %v2428 = vadd.f32 0.0, %v2427
      %v2429 = vpop.f32.mrb[0].mxu0
      %v2430 = vpop.f32.mrb[0].mxu0
      %v2431 = vadd.f32 0.0, %v2430
      %v2432 = vpop.f32.mrb[0].mxu0
      %2433 = vmatprep.mubr.bf16.mxu0 %v2184
      %2434 = vmatmul.mubr.bf16.gmra.mrb[0].mxu0 %v2174
      %v2435 = vpop.f32.mrb[0].mxu0
      %v2436 = vadd.f32 0.0, %v2435
      %v2437 = vpop.f32.mrb[0].mxu0
      %v2438 = vpop.f32.mrb[0].mxu0
      %v2439 = vpop.f32.mrb[0].mxu0
      %2440 = vdwg.mxu0
      %2441 = vmatprep.subr.bf16.mxu0 0
      %2442 = vmatpush1.bf16.msra.mxu0 %v2361
      %2443 = vmatprep.subr.bf16.mxu0 0
      %2444 = vmatpush1.bf16.msra.mxu0 %v2362
      %2445 = vmatprep.subr.bf16.mxu0 0
      %2446 = vmatpush1.bf16.msra.mxu0 %v2363
      %2447 = vmatprep.subr.bf16.mxu0 0
      %2448 = vmatpush1.bf16.msra.mxu0 %v2364
      %2449 = vmatprep.subr.bf16.mxu0 0
      %2450 = vmatpush1.bf16.msra.mxu0 %v2365
      %2451 = vmatprep.subr.bf16.mxu0 0
      %2452 = vmatpush1.bf16.msra.mxu0 %v2366
      %2453 = vmatprep.subr.bf16.mxu0 0
      %2454 = vmatpush1.bf16.msra.mxu0 %v2367
      %2455 = vmatprep.subr.bf16.mxu0 0
      %2456 = vmatpush1.bf16.msra.mxu0 %v2368
      %2457 = vmatprep.subr.bf16.mxu0 0
      %2458 = vmatpush1.bf16.msra.mxu0 0
      %2459 = vmatprep.subr.bf16.mxu0 0
      %2460 = vmatpush1.bf16.msra.mxu0 0
      %2461 = vmatprep.subr.bf16.mxu0 0
      %2462 = vmatpush1.bf16.msra.mxu0 0
      %2463 = vmatprep.subr.bf16.mxu0 0
      %2464 = vmatpush1.bf16.msra.mxu0 0
      %2465 = vmatprep.subr.bf16.mxu0 0
      %2466 = vmatpush1.bf16.msra.mxu0 0
      %2467 = vmatprep.subr.bf16.mxu0 0
      %2468 = vmatpush1.bf16.msra.mxu0 0
      %2469 = vmatprep.subr.bf16.mxu0 0
      %2470 = vmatpush1.bf16.msra.mxu0 0
      %2471 = vmatprep.subr.bf16.mxu0 0
      %2472 = vmatpush1.bf16.msra.mxu0 0
      %2473 = vmatprep.mubr.bf16.mxu0 0
      %2474 = vmatmul.mubr.bf16.gmra.mrb[0].mxu0 %v2193
      %v2475 = vpop.f32.mrb[0].mxu0
      %v2476 = vadd.f32 %v2428, %v2475
      %v2477 = vpop.f32.mrb[0].mxu0
      %v2478 = vpop.f32.mrb[0].mxu0
      %v2479 = vadd.f32 %v2431, %v2478
      %v2480 = vpop.f32.mrb[0].mxu0
      %2481 = vmatprep.mubr.bf16.mxu0 0
      %2482 = vmatmul.mubr.bf16.gmra.mrb[0].mxu0 %v2194
      %v2483 = vpop.f32.mrb[0].mxu0
      %v2484 = vadd.f32 %v2436, %v2483
      %v2485 = vpop.f32.mrb[0].mxu0
      %v2486 = vpop.f32.mrb[0].mxu0
      %v2487 = vpop.f32.mrb[0].mxu0
      %2488 = vdwg.mxu0
      %v2489 = vadd.f32 %v2197, %v2476
      %v2490 = vadd.f32 %v2198, %v2479
      %v2491 = vadd.f32 %v2199, %v2484
      %2492 = vst [vmem:[#allocation2] sm:$0xff] %v2489
      %2493 = vst [vmem:[#allocation2 + $0x8] sm:$0xff] %v2490
      %2494 = vst [vmem:[#allocation2 + $0x10] sm:$0xff] %v2491
      %v2495 = vld [vmem:[%s284 + $0x4] sm:$0xc]
      %v2496 = vld [vmem:[%s284 + $0x8] sm:$0xf]
      %v2497 = vld [vmem:[%s284 + $0xc] sm:$0xf]
      %v2498 = vld [vmem:[%s284 + $0x10] sm:$0x3]
      %v2499 = vld [vmem:[%s294 + $0x4] sm:$0xc]
      %v2500 = vld [vmem:[%s294 + $0x8] sm:$0xf]
      %v2501 = vld [vmem:[%s294 + $0xc] sm:$0xf]
      %v2502 = vld [vmem:[%s294 + $0x10] sm:$0x3]
      %v2503 = vld [vmem:[%s305 + $0x4] sm:$0xc]
      %v2504 = vld [vmem:[%s305 + $0x8] sm:$0xf]
      %v2505 = vld [vmem:[%s305 + $0xc] sm:$0xf]
      %v2506 = vld [vmem:[%s305 + $0x10] sm:$0x3]
      %v2511 = vunpack.c.l.b16 %v2495
      %v2512 = vunpack.c.l.b16 %v2496
      %v2513 = vunpack.c.l.b16 %v2497
      %v2514 = vunpack.c.l.b16 %v2498
      %v2515 = vpack.c.b16 %v2512, %v2511
      %v2516 = vpack.c.b16 %v2514, %v2513
      %v2521 = vunpack.c.l.b16 %v2499
      %v2522 = vunpack.c.l.b16 %v2500
      %v2523 = vunpack.c.l.b16 %v2501
      %v2524 = vunpack.c.l.b16 %v2502
      %v2525 = vpack.c.b16 %v2522, %v2521
      %v2526 = vpack.c.b16 %v2524, %v2523
      %v2531 = vunpack.c.l.b16 %v2503
      %v2532 = vunpack.c.l.b16 %v2504
      %v2533 = vunpack.c.l.b16 %v2505
      %v2534 = vunpack.c.l.b16 %v2506
      %v2535 = vpack.c.b16 %v2532, %v2531
      %v2536 = vpack.c.b16 %v2534, %v2533
      %v2537 = vld [vmem:[#allocation2] sm:$0xff]
      %v2538 = vld [vmem:[#allocation2 + $0x8] sm:$0xff]
      %v2539 = vld [vmem:[#allocation2 + $0x10] sm:$0xff]
      %s2540 = scalar_lea.vmem %s3, 1152
      %v2541 = vld [vmem:[%s2540] sm:$0xf]
      %v2542 = vld [vmem:[%s2540 + $0x4] sm:$0xf]
      %v2543 = vld [vmem:[%s2540 + $0x8] sm:$0xf]
      %v2544 = vld [vmem:[%s2540 + $0xc] sm:$0xf]
      %v2545 = vld [vmem:[%s2540 + $0x10] sm:$0xf]
      %v2546 = vld [vmem:[%s2540 + $0x14] sm:$0xf]
      %v2547 = vld [vmem:[%s2540 + $0x18] sm:$0xf]
      %v2548 = vld [vmem:[%s2540 + $0x1c] sm:$0xf]
      %v2549 = vld [vmem:[%s2540 + $0x20] sm:$0xf]
      %v2550 = vld [vmem:[%s2540 + $0x24] sm:$0xf]
      %v2551 = vld [vmem:[%s2540 + $0x28] sm:$0xf]
      %v2552 = vld [vmem:[%s2540 + $0x2c] sm:$0xf]
      %v2553 = vld [vmem:[%s2540 + $0x30] sm:$0xf]
      %v2554 = vld [vmem:[%s2540 + $0x34] sm:$0xf]
      %v2555 = vld [vmem:[%s2540 + $0x38] sm:$0xf]
      %v2556 = vld [vmem:[%s2540 + $0x3c] sm:$0xf]
      %v2557 = vld [vmem:[%s2540 + $0x40] sm:$0xf]
      %v2558 = vld [vmem:[%s2540 + $0x44] sm:$0xf]
      %v2559 = vld [vmem:[%s2540 + $0x48] sm:$0xf]
      %v2560 = vld [vmem:[%s2540 + $0x4c] sm:$0xf]
      %v2561 = vld [vmem:[%s2540 + $0x50] sm:$0xf]
      %v2562 = vld [vmem:[%s2540 + $0x54] sm:$0xf]
      %v2563 = vld [vmem:[%s2540 + $0x58] sm:$0xf]
      %v2564 = vld [vmem:[%s2540 + $0x5c] sm:$0xf]
      %v2565 = vld [vmem:[%s2540 + $0x60] sm:$0xf]
      %v2566 = vld [vmem:[%s2540 + $0x64] sm:$0xf]
      %v2567 = vld [vmem:[%s2540 + $0x68] sm:$0xf]
      %v2568 = vld [vmem:[%s2540 + $0x6c] sm:$0xf]
      %v2569 = vld [vmem:[%s2540 + $0x70] sm:$0xf]
      %v2570 = vld [vmem:[%s2540 + $0x74] sm:$0xf]
      %v2571 = vld [vmem:[%s2540 + $0x78] sm:$0xf]
      %v2572 = vld [vmem:[%s2540 + $0x7c] sm:$0xf]
      %v2573 = vld [vmem:[%s2540 + $0x80] sm:$0xf]
      %v2574 = vld [vmem:[%s2540 + $0x84] sm:$0xf]
      %v2575 = vld [vmem:[%s2540 + $0x88] sm:$0xf]
      %v2576 = vld [vmem:[%s2540 + $0x8c] sm:$0xf]
      %v2577 = vld [vmem:[%s2540 + $0x90] sm:$0xf]
      %v2578 = vld [vmem:[%s2540 + $0x94] sm:$0xf]
      %v2579 = vld [vmem:[%s2540 + $0x98] sm:$0xf]
      %v2580 = vld [vmem:[%s2540 + $0x9c] sm:$0xf]
      %v2581 = vld [vmem:[%s2540 + $0xa0] sm:$0xf]
      %v2582 = vld [vmem:[%s2540 + $0xa4] sm:$0xf]
      %v2583 = vld [vmem:[%s2540 + $0xa8] sm:$0xf]
      %v2584 = vld [vmem:[%s2540 + $0xac] sm:$0xf]
      %v2585 = vld [vmem:[%s2540 + $0xb0] sm:$0xf]
      %v2586 = vld [vmem:[%s2540 + $0xb4] sm:$0xf]
      %v2587 = vld [vmem:[%s2540 + $0xb8] sm:$0xf]
      %v2588 = vld [vmem:[%s2540 + $0xbc] sm:$0xf]
      %vm2589 = vcmask 1045504
      %v2590 = vrot.slane %v2515, 2
      %v2591 = vrot.slane %v2516, 2
      %v2592 = vsel %vm2589, %v2590, %v2591
      %v2593 = vrot.slane %v2525, 2
      %v2594 = vrot.slane %v2526, 2
      %v2595 = vsel %vm2589, %v2593, %v2594
      %v2596 = vrot.slane %v2535, 2
      %v2597 = vrot.slane %v2536, 2
      %v2598 = vsel %vm2589, %v2596, %v2597
      %v2653 = vunpack.c.l.b16 %v2541
      %v2654 = vunpack.c.l.b16 %v2542
      %v2655 = vunpack.c.l.b16 %v2543
      %v2656 = vunpack.c.l.b16 %v2544
      %v2657 = vunpack.c.l.b16 %v2545
      %v2658 = vunpack.c.l.b16 %v2546
      %v2659 = vunpack.c.l.b16 %v2547
      %v2660 = vunpack.c.l.b16 %v2548
      %v2661 = vunpack.c.l.b16 %v2549
      %v2662 = vunpack.c.l.b16 %v2550
      %v2663 = vunpack.c.l.b16 %v2551
      %v2664 = vunpack.c.l.b16 %v2552
      %v2665 = vunpack.c.l.b16 %v2553
      %v2666 = vunpack.c.l.b16 %v2554
      %v2667 = vunpack.c.l.b16 %v2555
      %v2668 = vunpack.c.l.b16 %v2556
      %v2669 = vunpack.c.l.b16 %v2557
      %v2670 = vunpack.c.l.b16 %v2558
      %v2671 = vunpack.c.l.b16 %v2559
      %v2672 = vunpack.c.l.b16 %v2560
      %v2673 = vunpack.c.l.b16 %v2561
      %v2674 = vunpack.c.l.b16 %v2562
      %v2675 = vunpack.c.l.b16 %v2563
      %v2676 = vunpack.c.l.b16 %v2564
      %v2677 = vunpack.c.l.b16 %v2565
      %v2678 = vunpack.c.l.b16 %v2566
      %v2679 = vunpack.c.l.b16 %v2567
      %v2680 = vunpack.c.l.b16 %v2568
      %v2681 = vunpack.c.l.b16 %v2569
      %v2682 = vunpack.c.l.b16 %v2570
      %v2683 = vunpack.c.l.b16 %v2571
      %v2684 = vunpack.c.l.b16 %v2572
      %v2685 = vunpack.c.l.b16 %v2573
      %v2686 = vunpack.c.l.b16 %v2574
      %v2687 = vunpack.c.l.b16 %v2575
      %v2688 = vunpack.c.l.b16 %v2576
      %v2689 = vunpack.c.l.b16 %v2577
      %v2690 = vunpack.c.l.b16 %v2578
      %v2691 = vunpack.c.l.b16 %v2579
      %v2692 = vunpack.c.l.b16 %v2580
      %v2693 = vunpack.c.l.b16 %v2581
      %v2694 = vunpack.c.l.b16 %v2582
      %v2695 = vunpack.c.l.b16 %v2583
      %v2696 = vunpack.c.l.b16 %v2584
      %v2697 = vunpack.c.l.b16 %v2585
      %v2698 = vunpack.c.l.b16 %v2586
      %v2699 = vunpack.c.l.b16 %v2587
      %v2700 = vunpack.c.l.b16 %v2588
      %v2701 = vpack.c.b16 %v2654, %v2653
      %v2702 = vpack.c.b16 %v2656, %v2655
      %v2703 = vpack.c.b16 %v2658, %v2657
      %v2704 = vpack.c.b16 %v2660, %v2659
      %v2705 = vpack.c.b16 %v2662, %v2661
      %v2706 = vpack.c.b16 %v2664, %v2663
      %v2707 = vpack.c.b16 %v2666, %v2665
      %v2708 = vpack.c.b16 %v2668, %v2667
      %v2709 = vpack.c.b16 %v2670, %v2669
      %v2710 = vpack.c.b16 %v2672, %v2671
      %v2711 = vpack.c.b16 %v2674, %v2673
      %v2712 = vpack.c.b16 %v2676, %v2675
      %v2713 = vpack.c.b16 %v2678, %v2677
      %v2714 = vpack.c.b16 %v2680, %v2679
      %v2715 = vpack.c.b16 %v2682, %v2681
      %v2716 = vpack.c.b16 %v2684, %v2683
      %v2717 = vpack.c.b16 %v2686, %v2685
      %v2718 = vpack.c.b16 %v2688, %v2687
      %v2719 = vpack.c.b16 %v2690, %v2689
      %v2720 = vpack.c.b16 %v2692, %v2691
      %v2721 = vpack.c.b16 %v2694, %v2693
      %v2722 = vpack.c.b16 %v2696, %v2695
      %v2723 = vpack.c.b16 %v2698, %v2697
      %v2724 = vpack.c.b16 %v2700, %v2699
      %2749 = vmatprep.subr.bf16.mxu0 0
      %2750 = vmatpush1.bf16.msra.mxu0 %v2701
      %2751 = vmatprep.subr.bf16.mxu0 0
      %2752 = vmatpush1.bf16.msra.mxu0 %v2702
      %2753 = vmatprep.subr.bf16.mxu0 0
      %2754 = vmatpush1.bf16.msra.mxu0 %v2703
      %2755 = vmatprep.subr.bf16.mxu0 0
      %2756 = vmatpush1.bf16.msra.mxu0 %v2704
      %2757 = vmatprep.subr.bf16.mxu0 0
      %2758 = vmatpush1.bf16.msra.mxu0 %v2705
      %2759 = vmatprep.subr.bf16.mxu0 0
      %2760 = vmatpush1.bf16.msra.mxu0 %v2706
      %2761 = vmatprep.subr.bf16.mxu0 0
      %2762 = vmatpush1.bf16.msra.mxu0 %v2707
      %2763 = vmatprep.subr.bf16.mxu0 0
      %2764 = vmatpush1.bf16.msra.mxu0 %v2708
      %2765 = vmatprep.subr.bf16.mxu0 0
      %2766 = vmatpush1.bf16.msra.mxu0 %v2709
      %2767 = vmatprep.subr.bf16.mxu0 0
      %2768 = vmatpush1.bf16.msra.mxu0 %v2710
      %2769 = vmatprep.subr.bf16.mxu0 0
      %2770 = vmatpush1.bf16.msra.mxu0 %v2711
      %2771 = vmatprep.subr.bf16.mxu0 0
      %2772 = vmatpush1.bf16.msra.mxu0 %v2712
      %2773 = vmatprep.subr.bf16.mxu0 0
      %2774 = vmatpush1.bf16.msra.mxu0 %v2713
      %2775 = vmatprep.subr.bf16.mxu0 0
      %2776 = vmatpush1.bf16.msra.mxu0 %v2714
      %2777 = vmatprep.subr.bf16.mxu0 0
      %2778 = vmatpush1.bf16.msra.mxu0 %v2715
      %2779 = vmatprep.subr.bf16.mxu0 0
      %2780 = vmatpush1.bf16.msra.mxu0 %v2716
      %2781 = vmatprep.mubr.bf16.mxu0 %v2595
      %2782 = vmatmul.mubr.bf16.gmra.mrb[0].mxu0 %v2592
      %v2783 = vpop.f32.mrb[0].mxu0
      %v2784 = vadd.f32 0.0, %v2783
      %v2785 = vpop.f32.mrb[0].mxu0
      %v2786 = vpop.f32.mrb[0].mxu0
      %v2787 = vadd.f32 0.0, %v2786
      %v2788 = vpop.f32.mrb[0].mxu0
      %2789 = vmatprep.mubr.bf16.mxu0 %v2594
      %2790 = vmatmul.mubr.bf16.gmra.mrb[0].mxu0 %v2591
      %v2791 = vpop.f32.mrb[0].mxu0
      %v2792 = vadd.f32 0.0, %v2791
      %v2793 = vpop.f32.mrb[0].mxu0
      %v2794 = vpop.f32.mrb[0].mxu0
      %v2795 = vpop.f32.mrb[0].mxu0
      %2796 = vdwg.mxu0
      %2797 = vmatprep.subr.bf16.mxu0 0
      %2798 = vmatpush1.bf16.msra.mxu0 %v2717
      %2799 = vmatprep.subr.bf16.mxu0 0
      %2800 = vmatpush1.bf16.msra.mxu0 %v2718
      %2801 = vmatprep.subr.bf16.mxu0 0
      %2802 = vmatpush1.bf16.msra.mxu0 %v2719
      %2803 = vmatprep.subr.bf16.mxu0 0
      %2804 = vmatpush1.bf16.msra.mxu0 %v2720
      %2805 = vmatprep.subr.bf16.mxu0 0
      %2806 = vmatpush1.bf16.msra.mxu0 %v2721
      %2807 = vmatprep.subr.bf16.mxu0 0
      %2808 = vmatpush1.bf16.msra.mxu0 %v2722
      %2809 = vmatprep.subr.bf16.mxu0 0
      %2810 = vmatpush1.bf16.msra.mxu0 %v2723
      %2811 = vmatprep.subr.bf16.mxu0 0
      %2812 = vmatpush1.bf16.msra.mxu0 %v2724
      %2813 = vmatprep.subr.bf16.mxu0 0
      %2814 = vmatpush1.bf16.msra.mxu0 0
      %2815 = vmatprep.subr.bf16.mxu0 0
      %2816 = vmatpush1.bf16.msra.mxu0 0
      %2817 = vmatprep.subr.bf16.mxu0 0
      %2818 = vmatpush1.bf16.msra.mxu0 0
      %2819 = vmatprep.subr.bf16.mxu0 0
      %2820 = vmatpush1.bf16.msra.mxu0 0
      %2821 = vmatprep.subr.bf16.mxu0 0
      %2822 = vmatpush1.bf16.msra.mxu0 0
      %2823 = vmatprep.subr.bf16.mxu0 0
      %2824 = vmatpush1.bf16.msra.mxu0 0
      %2825 = vmatprep.subr.bf16.mxu0 0
      %2826 = vmatpush1.bf16.msra.mxu0 0
      %2827 = vmatprep.subr.bf16.mxu0 0
      %2828 = vmatpush1.bf16.msra.mxu0 0
      %2829 = vmatprep.mubr.bf16.mxu0 0
      %2830 = vmatmul.mubr.bf16.gmra.mrb[0].mxu0 %v2598
      %v2831 = vpop.f32.mrb[0].mxu0
      %v2832 = vadd.f32 %v2784, %v2831
      %v2833 = vpop.f32.mrb[0].mxu0
      %v2834 = vpop.f32.mrb[0].mxu0
      %v2835 = vadd.f32 %v2787, %v2834
      %v2836 = vpop.f32.mrb[0].mxu0
      %2837 = vmatprep.mubr.bf16.mxu0 0
      %2838 = vmatmul.mubr.bf16.gmra.mrb[0].mxu0 %v2597
      %v2839 = vpop.f32.mrb[0].mxu0
      %v2840 = vadd.f32 %v2792, %v2839
      %v2841 = vpop.f32.mrb[0].mxu0
      %v2842 = vpop.f32.mrb[0].mxu0
      %v2843 = vpop.f32.mrb[0].mxu0
      %2844 = vdwg.mxu0
      %v2845 = vadd.f32 %v2537, %v2832
      %v2846 = vadd.f32 %v2538, %v2835
      %v2847 = vadd.f32 %v2539, %v2840
      %2848 = vst [vmem:[#allocation2] sm:$0xff] %v2845
      %2849 = vst [vmem:[#allocation2 + $0x8] sm:$0xff] %v2846
      %2850 = vst [vmem:[#allocation2 + $0x10] sm:$0xff] %v2847
      %v2851 = vld [vmem:[%s284 + $0x4] sm:$0xc]
      %v2852 = vld [vmem:[%s284 + $0x8] sm:$0xf]
      %v2853 = vld [vmem:[%s284 + $0xc] sm:$0xf]
      %v2854 = vld [vmem:[%s284 + $0x10] sm:$0x7]
      %v2855 = vld [vmem:[%s294 + $0x4] sm:$0xc]
      %v2856 = vld [vmem:[%s294 + $0x8] sm:$0xf]
      %v2857 = vld [vmem:[%s294 + $0xc] sm:$0xf]
      %v2858 = vld [vmem:[%s294 + $0x10] sm:$0x7]
      %v2859 = vld [vmem:[%s305 + $0x4] sm:$0xc]
      %v2860 = vld [vmem:[%s305 + $0x8] sm:$0xf]
      %v2861 = vld [vmem:[%s305 + $0xc] sm:$0xf]
      %v2862 = vld [vmem:[%s305 + $0x10] sm:$0x7]
      %v2867 = vunpack.c.l.b16 %v2851
      %v2868 = vunpack.c.l.b16 %v2852
      %v2869 = vunpack.c.l.b16 %v2853
      %v2870 = vunpack.c.l.b16 %v2854
      %v2871 = vpack.c.b16 %v2868, %v2867
      %v2872 = vpack.c.b16 %v2870, %v2869
      %v2877 = vunpack.c.l.b16 %v2855
      %v2878 = vunpack.c.l.b16 %v2856
      %v2879 = vunpack.c.l.b16 %v2857
      %v2880 = vunpack.c.l.b16 %v2858
      %v2881 = vpack.c.b16 %v2878, %v2877
      %v2882 = vpack.c.b16 %v2880, %v2879
      %v2887 = vunpack.c.l.b16 %v2859
      %v2888 = vunpack.c.l.b16 %v2860
      %v2889 = vunpack.c.l.b16 %v2861
      %v2890 = vunpack.c.l.b16 %v2862
      %v2891 = vpack.c.b16 %v2888, %v2887
      %v2892 = vpack.c.b16 %v2890, %v2889
      %v2893 = vld [vmem:[#allocation2] sm:$0xff]
      %v2894 = vld [vmem:[#allocation2 + $0x8] sm:$0xff]
      %v2895 = vld [vmem:[#allocation2 + $0x10] sm:$0xff]
      %s2896 = scalar_lea.vmem %s3, 1344
      %v2897 = vld [vmem:[%s2896] sm:$0xf]
      %v2898 = vld [vmem:[%s2896 + $0x4] sm:$0xf]
      %v2899 = vld [vmem:[%s2896 + $0x8] sm:$0xf]
      %v2900 = vld [vmem:[%s2896 + $0xc] sm:$0xf]
      %v2901 = vld [vmem:[%s2896 + $0x10] sm:$0xf]
      %v2902 = vld [vmem:[%s2896 + $0x14] sm:$0xf]
      %v2903 = vld [vmem:[%s2896 + $0x18] sm:$0xf]
      %v2904 = vld [vmem:[%s2896 + $0x1c] sm:$0xf]
      %v2905 = vld [vmem:[%s2896 + $0x20] sm:$0xf]
      %v2906 = vld [vmem:[%s2896 + $0x24] sm:$0xf]
      %v2907 = vld [vmem:[%s2896 + $0x28] sm:$0xf]
      %v2908 = vld [vmem:[%s2896 + $0x2c] sm:$0xf]
      %v2909 = vld [vmem:[%s2896 + $0x30] sm:$0xf]
      %v2910 = vld [vmem:[%s2896 + $0x34] sm:$0xf]
      %v2911 = vld [vmem:[%s2896 + $0x38] sm:$0xf]
      %v2912 = vld [vmem:[%s2896 + $0x3c] sm:$0xf]
      %v2913 = vld [vmem:[%s2896 + $0x40] sm:$0xf]
      %v2914 = vld [vmem:[%s2896 + $0x44] sm:$0xf]
      %v2915 = vld [vmem:[%s2896 + $0x48] sm:$0xf]
      %v2916 = vld [vmem:[%s2896 + $0x4c] sm:$0xf]
      %v2917 = vld [vmem:[%s2896 + $0x50] sm:$0xf]
      %v2918 = vld [vmem:[%s2896 + $0x54] sm:$0xf]
      %v2919 = vld [vmem:[%s2896 + $0x58] sm:$0xf]
      %v2920 = vld [vmem:[%s2896 + $0x5c] sm:$0xf]
      %v2921 = vld [vmem:[%s2896 + $0x60] sm:$0xf]
      %v2922 = vld [vmem:[%s2896 + $0x64] sm:$0xf]
      %v2923 = vld [vmem:[%s2896 + $0x68] sm:$0xf]
      %v2924 = vld [vmem:[%s2896 + $0x6c] sm:$0xf]
      %v2925 = vld [vmem:[%s2896 + $0x70] sm:$0xf]
      %v2926 = vld [vmem:[%s2896 + $0x74] sm:$0xf]
      %v2927 = vld [vmem:[%s2896 + $0x78] sm:$0xf]
      %v2928 = vld [vmem:[%s2896 + $0x7c] sm:$0xf]
      %v2929 = vld [vmem:[%s2896 + $0x80] sm:$0xf]
      %v2930 = vld [vmem:[%s2896 + $0x84] sm:$0xf]
      %v2931 = vld [vmem:[%s2896 + $0x88] sm:$0xf]
      %v2932 = vld [vmem:[%s2896 + $0x8c] sm:$0xf]
      %v2933 = vld [vmem:[%s2896 + $0x90] sm:$0xf]
      %v2934 = vld [vmem:[%s2896 + $0x94] sm:$0xf]
      %v2935 = vld [vmem:[%s2896 + $0x98] sm:$0xf]
      %v2936 = vld [vmem:[%s2896 + $0x9c] sm:$0xf]
      %v2937 = vld [vmem:[%s2896 + $0xa0] sm:$0xf]
      %v2938 = vld [vmem:[%s2896 + $0xa4] sm:$0xf]
      %v2939 = vld [vmem:[%s2896 + $0xa8] sm:$0xf]
      %v2940 = vld [vmem:[%s2896 + $0xac] sm:$0xf]
      %v2941 = vld [vmem:[%s2896 + $0xb0] sm:$0xf]
      %v2942 = vld [vmem:[%s2896 + $0xb4] sm:$0xf]
      %v2943 = vld [vmem:[%s2896 + $0xb8] sm:$0xf]
      %v2944 = vld [vmem:[%s2896 + $0xbc] sm:$0xf]
      %vm2945 = vsmask.f32 5376
      %v2947 = vshrl.u32 %v2871, 16
      %v2949 = vrot.slane %v2947, 2
      %v2950 = vshll.u32 %v2871, 16
      %v2952 = vrot.slane %v2950, 3
      %v2953 = vor.u32 %v2949, %v2952
      %v2955 = vshrl.u32 %v2872, 16
      %v2957 = vrot.slane %v2955, 2
      %v2958 = vshll.u32 %v2872, 16
      %v2960 = vrot.slane %v2958, 3
      %v2961 = vor.u32 %v2957, %v2960
      %v2962 = vsel %vm2945, %v2953, %v2961
      %v2964 = vshrl.u32 %v2881, 16
      %v2966 = vrot.slane %v2964, 2
      %v2967 = vshll.u32 %v2881, 16
      %v2969 = vrot.slane %v2967, 3
      %v2970 = vor.u32 %v2966, %v2969
      %v2972 = vshrl.u32 %v2882, 16
      %v2974 = vrot.slane %v2972, 2
      %v2975 = vshll.u32 %v2882, 16
      %v2977 = vrot.slane %v2975, 3
      %v2978 = vor.u32 %v2974, %v2977
      %v2979 = vsel %vm2945, %v2970, %v2978
      %v2981 = vshrl.u32 %v2891, 16
      %v2983 = vrot.slane %v2981, 2
      %v2984 = vshll.u32 %v2891, 16
      %v2986 = vrot.slane %v2984, 3
      %v2987 = vor.u32 %v2983, %v2986
      %v2989 = vshrl.u32 %v2892, 16
      %v2991 = vrot.slane %v2989, 2
      %v2992 = vshll.u32 %v2892, 16
      %v2994 = vrot.slane %v2992, 3
      %v2995 = vor.u32 %v2991, %v2994
      %v2996 = vsel %vm2945, %v2987, %v2995
      %v3051 = vunpack.c.l.b16 %v2897
      %v3052 = vunpack.c.l.b16 %v2898
      %v3053 = vunpack.c.l.b16 %v2899
      %v3054 = vunpack.c.l.b16 %v2900
      %v3055 = vunpack.c.l.b16 %v2901
      %v3056 = vunpack.c.l.b16 %v2902
      %v3057 = vunpack.c.l.b16 %v2903
      %v3058 = vunpack.c.l.b16 %v2904
      %v3059 = vunpack.c.l.b16 %v2905
      %v3060 = vunpack.c.l.b16 %v2906
      %v3061 = vunpack.c.l.b16 %v2907
      %v3062 = vunpack.c.l.b16 %v2908
      %v3063 = vunpack.c.l.b16 %v2909
      %v3064 = vunpack.c.l.b16 %v2910
      %v3065 = vunpack.c.l.b16 %v2911
      %v3066 = vunpack.c.l.b16 %v2912
      %v3067 = vunpack.c.l.b16 %v2913
      %v3068 = vunpack.c.l.b16 %v2914
      %v3069 = vunpack.c.l.b16 %v2915
      %v3070 = vunpack.c.l.b16 %v2916
      %v3071 = vunpack.c.l.b16 %v2917
      %v3072 = vunpack.c.l.b16 %v2918
      %v3073 = vunpack.c.l.b16 %v2919
      %v3074 = vunpack.c.l.b16 %v2920
      %v3075 = vunpack.c.l.b16 %v2921
      %v3076 = vunpack.c.l.b16 %v2922
      %v3077 = vunpack.c.l.b16 %v2923
      %v3078 = vunpack.c.l.b16 %v2924
      %v3079 = vunpack.c.l.b16 %v2925
      %v3080 = vunpack.c.l.b16 %v2926
      %v3081 = vunpack.c.l.b16 %v2927
      %v3082 = vunpack.c.l.b16 %v2928
      %v3083 = vunpack.c.l.b16 %v2929
      %v3084 = vunpack.c.l.b16 %v2930
      %v3085 = vunpack.c.l.b16 %v2931
      %v3086 = vunpack.c.l.b16 %v2932
      %v3087 = vunpack.c.l.b16 %v2933
      %v3088 = vunpack.c.l.b16 %v2934
      %v3089 = vunpack.c.l.b16 %v2935
      %v3090 = vunpack.c.l.b16 %v2936
      %v3091 = vunpack.c.l.b16 %v2937
      %v3092 = vunpack.c.l.b16 %v2938
      %v3093 = vunpack.c.l.b16 %v2939
      %v3094 = vunpack.c.l.b16 %v2940
      %v3095 = vunpack.c.l.b16 %v2941
      %v3096 = vunpack.c.l.b16 %v2942
      %v3097 = vunpack.c.l.b16 %v2943
      %v3098 = vunpack.c.l.b16 %v2944
      %v3099 = vpack.c.b16 %v3052, %v3051
      %v3100 = vpack.c.b16 %v3054, %v3053
      %v3101 = vpack.c.b16 %v3056, %v3055
      %v3102 = vpack.c.b16 %v3058, %v3057
      %v3103 = vpack.c.b16 %v3060, %v3059
      %v3104 = vpack.c.b16 %v3062, %v3061
      %v3105 = vpack.c.b16 %v3064, %v3063
      %v3106 = vpack.c.b16 %v3066, %v3065
      %v3107 = vpack.c.b16 %v3068, %v3067
      %v3108 = vpack.c.b16 %v3070, %v3069
      %v3109 = vpack.c.b16 %v3072, %v3071
      %v3110 = vpack.c.b16 %v3074, %v3073
      %v3111 = vpack.c.b16 %v3076, %v3075
      %v3112 = vpack.c.b16 %v3078, %v3077
      %v3113 = vpack.c.b16 %v3080, %v3079
      %v3114 = vpack.c.b16 %v3082, %v3081
      %v3115 = vpack.c.b16 %v3084, %v3083
      %v3116 = vpack.c.b16 %v3086, %v3085
      %v3117 = vpack.c.b16 %v3088, %v3087
      %v3118 = vpack.c.b16 %v3090, %v3089
      %v3119 = vpack.c.b16 %v3092, %v3091
      %v3120 = vpack.c.b16 %v3094, %v3093
      %v3121 = vpack.c.b16 %v3096, %v3095
      %v3122 = vpack.c.b16 %v3098, %v3097
      %3147 = vmatprep.subr.bf16.mxu0 0
      %3148 = vmatpush1.bf16.msra.mxu0 %v3099
      %3149 = vmatprep.subr.bf16.mxu0 0
      %3150 = vmatpush1.bf16.msra.mxu0 %v3100
      %3151 = vmatprep.subr.bf16.mxu0 0
      %3152 = vmatpush1.bf16.msra.mxu0 %v3101
      %3153 = vmatprep.subr.bf16.mxu0 0
      %3154 = vmatpush1.bf16.msra.mxu0 %v3102
      %3155 = vmatprep.subr.bf16.mxu0 0
      %3156 = vmatpush1.bf16.msra.mxu0 %v3103
      %3157 = vmatprep.subr.bf16.mxu0 0
      %3158 = vmatpush1.bf16.msra.mxu0 %v3104
      %3159 = vmatprep.subr.bf16.mxu0 0
      %3160 = vmatpush1.bf16.msra.mxu0 %v3105
      %3161 = vmatprep.subr.bf16.mxu0 0
      %3162 = vmatpush1.bf16.msra.mxu0 %v3106
      %3163 = vmatprep.subr.bf16.mxu0 0
      %3164 = vmatpush1.bf16.msra.mxu0 %v3107
      %3165 = vmatprep.subr.bf16.mxu0 0
      %3166 = vmatpush1.bf16.msra.mxu0 %v3108
      %3167 = vmatprep.subr.bf16.mxu0 0
      %3168 = vmatpush1.bf16.msra.mxu0 %v3109
      %3169 = vmatprep.subr.bf16.mxu0 0
      %3170 = vmatpush1.bf16.msra.mxu0 %v3110
      %3171 = vmatprep.subr.bf16.mxu0 0
      %3172 = vmatpush1.bf16.msra.mxu0 %v3111
      %3173 = vmatprep.subr.bf16.mxu0 0
      %3174 = vmatpush1.bf16.msra.mxu0 %v3112
      %3175 = vmatprep.subr.bf16.mxu0 0
      %3176 = vmatpush1.bf16.msra.mxu0 %v3113
      %3177 = vmatprep.subr.bf16.mxu0 0
      %3178 = vmatpush1.bf16.msra.mxu0 %v3114
      %3179 = vmatprep.mubr.bf16.mxu0 %v2979
      %3180 = vmatmul.mubr.bf16.gmra.mrb[0].mxu0 %v2962
      %v3181 = vpop.f32.mrb[0].mxu0
      %v3182 = vadd.f32 0.0, %v3181
      %v3183 = vpop.f32.mrb[0].mxu0
      %v3184 = vpop.f32.mrb[0].mxu0
      %v3185 = vadd.f32 0.0, %v3184
      %v3186 = vpop.f32.mrb[0].mxu0
      %3187 = vmatprep.mubr.bf16.mxu0 %v2978
      %3188 = vmatmul.mubr.bf16.gmra.mrb[0].mxu0 %v2961
      %v3189 = vpop.f32.mrb[0].mxu0
      %v3190 = vadd.f32 0.0, %v3189
      %v3191 = vpop.f32.mrb[0].mxu0
      %v3192 = vpop.f32.mrb[0].mxu0
      %v3193 = vpop.f32.mrb[0].mxu0
      %3194 = vdwg.mxu0
      %3195 = vmatprep.subr.bf16.mxu0 0
      %3196 = vmatpush1.bf16.msra.mxu0 %v3115
      %3197 = vmatprep.subr.bf16.mxu0 0
      %3198 = vmatpush1.bf16.msra.mxu0 %v3116
      %3199 = vmatprep.subr.bf16.mxu0 0
      %3200 = vmatpush1.bf16.msra.mxu0 %v3117
      %3201 = vmatprep.subr.bf16.mxu0 0
      %3202 = vmatpush1.bf16.msra.mxu0 %v3118
      %3203 = vmatprep.subr.bf16.mxu0 0
      %3204 = vmatpush1.bf16.msra.mxu0 %v3119
      %3205 = vmatprep.subr.bf16.mxu0 0
      %3206 = vmatpush1.bf16.msra.mxu0 %v3120
      %3207 = vmatprep.subr.bf16.mxu0 0
      %3208 = vmatpush1.bf16.msra.mxu0 %v3121
      %3209 = vmatprep.subr.bf16.mxu0 0
      %3210 = vmatpush1.bf16.msra.mxu0 %v3122
      %3211 = vmatprep.subr.bf16.mxu0 0
      %3212 = vmatpush1.bf16.msra.mxu0 0
      %3213 = vmatprep.subr.bf16.mxu0 0
      %3214 = vmatpush1.bf16.msra.mxu0 0
      %3215 = vmatprep.subr.bf16.mxu0 0
      %3216 = vmatpush1.bf16.msra.mxu0 0
      %3217 = vmatprep.subr.bf16.mxu0 0
      %3218 = vmatpush1.bf16.msra.mxu0 0
      %3219 = vmatprep.subr.bf16.mxu0 0
      %3220 = vmatpush1.bf16.msra.mxu0 0
      %3221 = vmatprep.subr.bf16.mxu0 0
      %3222 = vmatpush1.bf16.msra.mxu0 0
      %3223 = vmatprep.subr.bf16.mxu0 0
      %3224 = vmatpush1.bf16.msra.mxu0 0
      %3225 = vmatprep.subr.bf16.mxu0 0
      %3226 = vmatpush1.bf16.msra.mxu0 0
      %3227 = vmatprep.mubr.bf16.mxu0 0
      %3228 = vmatmul.mubr.bf16.gmra.mrb[0].mxu0 %v2996
      %v3229 = vpop.f32.mrb[0].mxu0
      %v3230 = vadd.f32 %v3182, %v3229
      %v3231 = vpop.f32.mrb[0].mxu0
      %v3232 = vpop.f32.mrb[0].mxu0
      %v3233 = vadd.f32 %v3185, %v3232
      %v3234 = vpop.f32.mrb[0].mxu0
      %3235 = vmatprep.mubr.bf16.mxu0 0
      %3236 = vmatmul.mubr.bf16.gmra.mrb[0].mxu0 %v2995
      %v3237 = vpop.f32.mrb[0].mxu0
      %v3238 = vadd.f32 %v3190, %v3237
      %v3239 = vpop.f32.mrb[0].mxu0
      %v3240 = vpop.f32.mrb[0].mxu0
      %v3241 = vpop.f32.mrb[0].mxu0
      %3242 = vdwg.mxu0
      %v3243 = vadd.f32 %v2893, %v3230
      %v3244 = vadd.f32 %v2894, %v3233
      %v3245 = vadd.f32 %v2895, %v3238
      %3246 = vst [vmem:[#allocation2] sm:$0xff] %v3243
      %3247 = vst [vmem:[#allocation2 + $0x8] sm:$0xff] %v3244
      %3248 = vst [vmem:[#allocation2 + $0x10] sm:$0xff] %v3245
      %v3249 = vld [vmem:[%s284 + $0x4] sm:$0x8]
      %v3250 = vld [vmem:[%s284 + $0x8] sm:$0xf]
      %v3251 = vld [vmem:[%s284 + $0xc] sm:$0xf]
      %v3252 = vld [vmem:[%s284 + $0x10] sm:$0x7]
      %v3253 = vld [vmem:[%s294 + $0x4] sm:$0x8]
      %v3254 = vld [vmem:[%s294 + $0x8] sm:$0xf]
      %v3255 = vld [vmem:[%s294 + $0xc] sm:$0xf]
      %v3256 = vld [vmem:[%s294 + $0x10] sm:$0x7]
      %v3257 = vld [vmem:[%s305 + $0x4] sm:$0x8]
      %v3258 = vld [vmem:[%s305 + $0x8] sm:$0xf]
      %v3259 = vld [vmem:[%s305 + $0xc] sm:$0xf]
      %v3260 = vld [vmem:[%s305 + $0x10] sm:$0x7]
      %v3265 = vunpack.c.l.b16 %v3249
      %v3266 = vunpack.c.l.b16 %v3250
      %v3267 = vunpack.c.l.b16 %v3251
      %v3268 = vunpack.c.l.b16 %v3252
      %v3269 = vpack.c.b16 %v3266, %v3265
      %v3270 = vpack.c.b16 %v3268, %v3267
      %v3275 = vunpack.c.l.b16 %v3253
      %v3276 = vunpack.c.l.b16 %v3254
      %v3277 = vunpack.c.l.b16 %v3255
      %v3278 = vunpack.c.l.b16 %v3256
      %v3279 = vpack.c.b16 %v3276, %v3275
      %v3280 = vpack.c.b16 %v3278, %v3277
      %v3285 = vunpack.c.l.b16 %v3257
      %v3286 = vunpack.c.l.b16 %v3258
      %v3287 = vunpack.c.l.b16 %v3259
      %v3288 = vunpack.c.l.b16 %v3260
      %v3289 = vpack.c.b16 %v3286, %v3285
      %v3290 = vpack.c.b16 %v3288, %v3287
      %v3291 = vld [vmem:[#allocation2] sm:$0xff]
      %v3292 = vld [vmem:[#allocation2 + $0x8] sm:$0xff]
      %v3293 = vld [vmem:[#allocation2 + $0x10] sm:$0xff]
      %s3294 = scalar_lea.vmem %s3, 1536
      %v3295 = vld [vmem:[%s3294] sm:$0xf]
      %v3296 = vld [vmem:[%s3294 + $0x4] sm:$0xf]
      %v3297 = vld [vmem:[%s3294 + $0x8] sm:$0xf]
      %v3298 = vld [vmem:[%s3294 + $0xc] sm:$0xf]
      %v3299 = vld [vmem:[%s3294 + $0x10] sm:$0xf]
      %v3300 = vld [vmem:[%s3294 + $0x14] sm:$0xf]
      %v3301 = vld [vmem:[%s3294 + $0x18] sm:$0xf]
      %v3302 = vld [vmem:[%s3294 + $0x1c] sm:$0xf]
      %v3303 = vld [vmem:[%s3294 + $0x20] sm:$0xf]
      %v3304 = vld [vmem:[%s3294 + $0x24] sm:$0xf]
      %v3305 = vld [vmem:[%s3294 + $0x28] sm:$0xf]
      %v3306 = vld [vmem:[%s3294 + $0x2c] sm:$0xf]
      %v3307 = vld [vmem:[%s3294 + $0x30] sm:$0xf]
      %v3308 = vld [vmem:[%s3294 + $0x34] sm:$0xf]
      %v3309 = vld [vmem:[%s3294 + $0x38] sm:$0xf]
      %v3310 = vld [vmem:[%s3294 + $0x3c] sm:$0xf]
      %v3311 = vld [vmem:[%s3294 + $0x40] sm:$0xf]
      %v3312 = vld [vmem:[%s3294 + $0x44] sm:$0xf]
      %v3313 = vld [vmem:[%s3294 + $0x48] sm:$0xf]
      %v3314 = vld [vmem:[%s3294 + $0x4c] sm:$0xf]
      %v3315 = vld [vmem:[%s3294 + $0x50] sm:$0xf]
      %v3316 = vld [vmem:[%s3294 + $0x54] sm:$0xf]
      %v3317 = vld [vmem:[%s3294 + $0x58] sm:$0xf]
      %v3318 = vld [vmem:[%s3294 + $0x5c] sm:$0xf]
      %v3319 = vld [vmem:[%s3294 + $0x60] sm:$0xf]
      %v3320 = vld [vmem:[%s3294 + $0x64] sm:$0xf]
      %v3321 = vld [vmem:[%s3294 + $0x68] sm:$0xf]
      %v3322 = vld [vmem:[%s3294 + $0x6c] sm:$0xf]
      %v3323 = vld [vmem:[%s3294 + $0x70] sm:$0xf]
      %v3324 = vld [vmem:[%s3294 + $0x74] sm:$0xf]
      %v3325 = vld [vmem:[%s3294 + $0x78] sm:$0xf]
      %v3326 = vld [vmem:[%s3294 + $0x7c] sm:$0xf]
      %v3327 = vld [vmem:[%s3294 + $0x80] sm:$0xf]
      %v3328 = vld [vmem:[%s3294 + $0x84] sm:$0xf]
      %v3329 = vld [vmem:[%s3294 + $0x88] sm:$0xf]
      %v3330 = vld [vmem:[%s3294 + $0x8c] sm:$0xf]
      %v3331 = vld [vmem:[%s3294 + $0x90] sm:$0xf]
      %v3332 = vld [vmem:[%s3294 + $0x94] sm:$0xf]
      %v3333 = vld [vmem:[%s3294 + $0x98] sm:$0xf]
      %v3334 = vld [vmem:[%s3294 + $0x9c] sm:$0xf]
      %v3335 = vld [vmem:[%s3294 + $0xa0] sm:$0xf]
      %v3336 = vld [vmem:[%s3294 + $0xa4] sm:$0xf]
      %v3337 = vld [vmem:[%s3294 + $0xa8] sm:$0xf]
      %v3338 = vld [vmem:[%s3294 + $0xac] sm:$0xf]
      %v3339 = vld [vmem:[%s3294 + $0xb0] sm:$0xf]
      %v3340 = vld [vmem:[%s3294 + $0xb4] sm:$0xf]
      %v3341 = vld [vmem:[%s3294 + $0xb8] sm:$0xf]
      %v3342 = vld [vmem:[%s3294 + $0xbc] sm:$0xf]
      %v3343 = vrot.slane %v3269, 3
      %v3344 = vrot.slane %v3270, 3
      %v3345 = vsel %vm1498, %v3343, %v3344
      %v3346 = vrot.slane %v3279, 3
      %v3347 = vrot.slane %v3280, 3
      %v3348 = vsel %vm1498, %v3346, %v3347
      %v3349 = vrot.slane %v3289, 3
      %v3350 = vrot.slane %v3290, 3
      %v3351 = vsel %vm1498, %v3349, %v3350
      %v3406 = vunpack.c.l.b16 %v3295
      %v3407 = vunpack.c.l.b16 %v3296
      %v3408 = vunpack.c.l.b16 %v3297
      %v3409 = vunpack.c.l.b16 %v3298
      %v3410 = vunpack.c.l.b16 %v3299
      %v3411 = vunpack.c.l.b16 %v3300
      %v3412 = vunpack.c.l.b16 %v3301
      %v3413 = vunpack.c.l.b16 %v3302
      %v3414 = vunpack.c.l.b16 %v3303
      %v3415 = vunpack.c.l.b16 %v3304
      %v3416 = vunpack.c.l.b16 %v3305
      %v3417 = vunpack.c.l.b16 %v3306
      %v3418 = vunpack.c.l.b16 %v3307
      %v3419 = vunpack.c.l.b16 %v3308
      %v3420 = vunpack.c.l.b16 %v3309
      %v3421 = vunpack.c.l.b16 %v3310
      %v3422 = vunpack.c.l.b16 %v3311
      %v3423 = vunpack.c.l.b16 %v3312
      %v3424 = vunpack.c.l.b16 %v3313
      %v3425 = vunpack.c.l.b16 %v3314
      %v3426 = vunpack.c.l.b16 %v3315
      %v3427 = vunpack.c.l.b16 %v3316
      %v3428 = vunpack.c.l.b16 %v3317
      %v3429 = vunpack.c.l.b16 %v3318
      %v3430 = vunpack.c.l.b16 %v3319
      %v3431 = vunpack.c.l.b16 %v3320
      %v3432 = vunpack.c.l.b16 %v3321
      %v3433 = vunpack.c.l.b16 %v3322
      %v3434 = vunpack.c.l.b16 %v3323
      %v3435 = vunpack.c.l.b16 %v3324
      %v3436 = vunpack.c.l.b16 %v3325
      %v3437 = vunpack.c.l.b16 %v3326
      %v3438 = vunpack.c.l.b16 %v3327
      %v3439 = vunpack.c.l.b16 %v3328
      %v3440 = vunpack.c.l.b16 %v3329
      %v3441 = vunpack.c.l.b16 %v3330
      %v3442 = vunpack.c.l.b16 %v3331
      %v3443 = vunpack.c.l.b16 %v3332
      %v3444 = vunpack.c.l.b16 %v3333
      %v3445 = vunpack.c.l.b16 %v3334
      %v3446 = vunpack.c.l.b16 %v3335
      %v3447 = vunpack.c.l.b16 %v3336
      %v3448 = vunpack.c.l.b16 %v3337
      %v3449 = vunpack.c.l.b16 %v3338
      %v3450 = vunpack.c.l.b16 %v3339
      %v3451 = vunpack.c.l.b16 %v3340
      %v3452 = vunpack.c.l.b16 %v3341
      %v3453 = vunpack.c.l.b16 %v3342
      %v3454 = vpack.c.b16 %v3407, %v3406
      %v3455 = vpack.c.b16 %v3409, %v3408
      %v3456 = vpack.c.b16 %v3411, %v3410
      %v3457 = vpack.c.b16 %v3413, %v3412
      %v3458 = vpack.c.b16 %v3415, %v3414
      %v3459 = vpack.c.b16 %v3417, %v3416
      %v3460 = vpack.c.b16 %v3419, %v3418
      %v3461 = vpack.c.b16 %v3421, %v3420
      %v3462 = vpack.c.b16 %v3423, %v3422
      %v3463 = vpack.c.b16 %v3425, %v3424
      %v3464 = vpack.c.b16 %v3427, %v3426
      %v3465 = vpack.c.b16 %v3429, %v3428
      %v3466 = vpack.c.b16 %v3431, %v3430
      %v3467 = vpack.c.b16 %v3433, %v3432
      %v3468 = vpack.c.b16 %v3435, %v3434
      %v3469 = vpack.c.b16 %v3437, %v3436
      %v3470 = vpack.c.b16 %v3439, %v3438
      %v3471 = vpack.c.b16 %v3441, %v3440
      %v3472 = vpack.c.b16 %v3443, %v3442
      %v3473 = vpack.c.b16 %v3445, %v3444
      %v3474 = vpack.c.b16 %v3447, %v3446
      %v3475 = vpack.c.b16 %v3449, %v3448
      %v3476 = vpack.c.b16 %v3451, %v3450
      %v3477 = vpack.c.b16 %v3453, %v3452
      %3502 = vmatprep.subr.bf16.mxu0 0
      %3503 = vmatpush1.bf16.msra.mxu0 %v3454
      %3504 = vmatprep.subr.bf16.mxu0 0
      %3505 = vmatpush1.bf16.msra.mxu0 %v3455
      %3506 = vmatprep.subr.bf16.mxu0 0
      %3507 = vmatpush1.bf16.msra.mxu0 %v3456
      %3508 = vmatprep.subr.bf16.mxu0 0
      %3509 = vmatpush1.bf16.msra.mxu0 %v3457
      %3510 = vmatprep.subr.bf16.mxu0 0
      %3511 = vmatpush1.bf16.msra.mxu0 %v3458
      %3512 = vmatprep.subr.bf16.mxu0 0
      %3513 = vmatpush1.bf16.msra.mxu0 %v3459
      %3514 = vmatprep.subr.bf16.mxu0 0
      %3515 = vmatpush1.bf16.msra.mxu0 %v3460
      %3516 = vmatprep.subr.bf16.mxu0 0
      %3517 = vmatpush1.bf16.msra.mxu0 %v3461
      %3518 = vmatprep.subr.bf16.mxu0 0
      %3519 = vmatpush1.bf16.msra.mxu0 %v3462
      %3520 = vmatprep.subr.bf16.mxu0 0
      %3521 = vmatpush1.bf16.msra.mxu0 %v3463
      %3522 = vmatprep.subr.bf16.mxu0 0
      %3523 = vmatpush1.bf16.msra.mxu0 %v3464
      %3524 = vmatprep.subr.bf16.mxu0 0
      %3525 = vmatpush1.bf16.msra.mxu0 %v3465
      %3526 = vmatprep.subr.bf16.mxu0 0
      %3527 = vmatpush1.bf16.msra.mxu0 %v3466
      %3528 = vmatprep.subr.bf16.mxu0 0
      %3529 = vmatpush1.bf16.msra.mxu0 %v3467
      %3530 = vmatprep.subr.bf16.mxu0 0
      %3531 = vmatpush1.bf16.msra.mxu0 %v3468
      %3532 = vmatprep.subr.bf16.mxu0 0
      %3533 = vmatpush1.bf16.msra.mxu0 %v3469
      %3534 = vmatprep.mubr.bf16.mxu0 %v3348
      %3535 = vmatmul.mubr.bf16.gmra.mrb[0].mxu0 %v3345
      %v3536 = vpop.f32.mrb[0].mxu0
      %v3537 = vadd.f32 0.0, %v3536
      %v3538 = vpop.f32.mrb[0].mxu0
      %v3539 = vpop.f32.mrb[0].mxu0
      %v3540 = vadd.f32 0.0, %v3539
      %v3541 = vpop.f32.mrb[0].mxu0
      %3542 = vmatprep.mubr.bf16.mxu0 %v3347
      %3543 = vmatmul.mubr.bf16.gmra.mrb[0].mxu0 %v3344
      %v3544 = vpop.f32.mrb[0].mxu0
      %v3545 = vadd.f32 0.0, %v3544
      %v3546 = vpop.f32.mrb[0].mxu0
      %v3547 = vpop.f32.mrb[0].mxu0
      %v3548 = vpop.f32.mrb[0].mxu0
      %3549 = vdwg.mxu0
      %3550 = vmatprep.subr.bf16.mxu0 0
      %3551 = vmatpush1.bf16.msra.mxu0 %v3470
      %3552 = vmatprep.subr.bf16.mxu0 0
      %3553 = vmatpush1.bf16.msra.mxu0 %v3471
      %3554 = vmatprep.subr.bf16.mxu0 0
      %3555 = vmatpush1.bf16.msra.mxu0 %v3472
      %3556 = vmatprep.subr.bf16.mxu0 0
      %3557 = vmatpush1.bf16.msra.mxu0 %v3473
      %3558 = vmatprep.subr.bf16.mxu0 0
      %3559 = vmatpush1.bf16.msra.mxu0 %v3474
      %3560 = vmatprep.subr.bf16.mxu0 0
      %3561 = vmatpush1.bf16.msra.mxu0 %v3475
      %3562 = vmatprep.subr.bf16.mxu0 0
      %3563 = vmatpush1.bf16.msra.mxu0 %v3476
      %3564 = vmatprep.subr.bf16.mxu0 0
      %3565 = vmatpush1.bf16.msra.mxu0 %v3477
      %3566 = vmatprep.subr.bf16.mxu0 0
      %3567 = vmatpush1.bf16.msra.mxu0 0
      %3568 = vmatprep.subr.bf16.mxu0 0
      %3569 = vmatpush1.bf16.msra.mxu0 0
      %3570 = vmatprep.subr.bf16.mxu0 0
      %3571 = vmatpush1.bf16.msra.mxu0 0
      %3572 = vmatprep.subr.bf16.mxu0 0
      %3573 = vmatpush1.bf16.msra.mxu0 0
      %3574 = vmatprep.subr.bf16.mxu0 0
      %3575 = vmatpush1.bf16.msra.mxu0 0
      %3576 = vmatprep.subr.bf16.mxu0 0
      %3577 = vmatpush1.bf16.msra.mxu0 0
      %3578 = vmatprep.subr.bf16.mxu0 0
      %3579 = vmatpush1.bf16.msra.mxu0 0
      %3580 = vmatprep.subr.bf16.mxu0 0
      %3581 = vmatpush1.bf16.msra.mxu0 0
      %3582 = vmatprep.mubr.bf16.mxu0 0
      %3583 = vmatmul.mubr.bf16.gmra.mrb[0].mxu0 %v3351
      %v3584 = vpop.f32.mrb[0].mxu0
      %v3585 = vadd.f32 %v3537, %v3584
      %v3586 = vpop.f32.mrb[0].mxu0
      %v3587 = vpop.f32.mrb[0].mxu0
      %v3588 = vadd.f32 %v3540, %v3587
      %v3589 = vpop.f32.mrb[0].mxu0
      %3590 = vmatprep.mubr.bf16.mxu0 0
      %3591 = vmatmul.mubr.bf16.gmra.mrb[0].mxu0 %v3350
      %v3592 = vpop.f32.mrb[0].mxu0
      %v3593 = vadd.f32 %v3545, %v3592
      %v3594 = vpop.f32.mrb[0].mxu0
      %v3595 = vpop.f32.mrb[0].mxu0
      %v3596 = vpop.f32.mrb[0].mxu0
      %3597 = vdwg.mxu0
      %v3598 = vadd.f32 %v3291, %v3585
      %v3599 = vadd.f32 %v3292, %v3588
      %v3600 = vadd.f32 %v3293, %v3593
      %3601 = vst [vmem:[#allocation2] sm:$0xff] %v3598
      %3602 = vst [vmem:[#allocation2 + $0x8] sm:$0xff] %v3599
      %3603 = vst [vmem:[#allocation2 + $0x10] sm:$0xff] %v3600
      %v3604 = vld [vmem:[#allocation2] sm:$0xff]
      %v3605 = vld [vmem:[#allocation2 + $0x8] sm:$0xff]
      %v3606 = vld [vmem:[#allocation2 + $0x10] sm:$0xff]
      %v3607 = vmax.f32 %v3604, 0.0
      %v3608 = vmax.f32 %v3605, 0.0
      %v3609 = vmax.f32 %v3606, 0.0
      %3610 = vst [vmem:[%s315] sm:$0xff] %v3607
      %3611 = vst [vmem:[%s315 + $0x8] sm:$0xff] %v3608
      %3612 = vst [vmem:[%s315 + $0x10] sm:$0xff] %v3609
      %p3613 = scmp.lt.s32.totalorder %s19, 1
      %s3614 = scalar_select %p3613, %s19, 1
      %p3615 = scmp.lt.s32.totalorder %s20, 3
      %s3616 = scalar_select %p3615, %s20, 3
      %s3617 = smul.addr %s3616, 3
      %s3618 = smul.addr %s3614, 12
      %s3619 = sadd.s32 %s3617, %s3618
      %s3620 = smul.addr %s3619, 8
      %s3621 = scalar_lea.vmem %s4, %s3620
      // Predicated region
      $region37: #{encoder_forward.5} parent=35 // pred_check
        %p3622 = pneg %p156
      $region38: #{encoder_forward.5} parent=35 // pred_check_branch
        %3624 = sbr.rel (%p3622) target = $region40
      $region39: #{encoder_forward.5} parent=35 // pred_region
        _
      $region40: #{encoder_forward.5} parent=35 // pred_fallthru
        _
    $region36: #{encoder_forward.5} parent=5 // pred_fallthru
      _
    %p3625 = scmp.le.s32.totalorder 2, %s10
    // Predicated region
    $region41: #{encoder_forward.5} parent=5 // pred_check
      %p3626 = pneg %p3625
    $region42: #{encoder_forward.5} parent=5 // pred_check_branch
      %3628 = sbr.rel (%p3626) target = $region44
    $region43: #{encoder_forward.5} parent=5 // pred_region
      %s3629 = ssub.s32 %s10, 2
      // Predicated region
      $region45: #{encoder_forward.5} parent=43 // pred_check
        %p3630 = pneg %p162
      $region46: #{encoder_forward.5} parent=43 // pred_check_branch
        %3632 = sbr.rel (%p3630) target = $region48
      $region47: #{encoder_forward.5} parent=43 // pred_region
        %p3633 = scmp.lt.s32.totalorder %s21, 1
        %s3634 = scalar_select %p3633, %s21, 1
        %p3635 = scmp.lt.s32.totalorder %s22, 3
        %s3636 = scalar_select %p3635, %s22, 3
        %s3637 = smul.addr %s3636, 3
        %s3638 = smul.addr %s3634, 12
        %s3639 = sadd.s32 %s3637, %s3638
        %s3640 = smul.addr %s3639, 8
        %s3641 = scalar_lea.vmem %s4, %s3640
      $region48: #{encoder_forward.5} parent=43 // pred_fallthru
        _
    $region44: #{encoder_forward.5} parent=5 // pred_fallthru
      _
  $region6: #{encoder_forward.5} parent=0 // loop_footer
    %s14 = sadd.s32 1, %s10
  $region7: #{encoder_forward.5} parent=0 // loop_footer_branch
    %9 = sbr.rel target = $region3
  $region8: #{encoder_forward.5} parent=0 // loop_exit
    _

</llo_original>
